<compile_context>
chip_gen: v7x
topology: tpu7x:2x2x1
jax: 0.10.0
libtpu: 0.0.40
codegen_flags: <defaults>
</compile_context>

<pallas_src>
import numpy as np
import jax
import jax.numpy as jnp
from jax.experimental import pallas as pl
from jax.experimental.pallas import tpu as pltpu

REDUCED = 30          # Resize([30, 30]) / CenterCrop(30)
PAR = 15              # parity-plane edge (30 / 2); lane row-stride of every activation
SEG = PAR * PAR       # 225 lanes per packed sample
C3_V = 10             # valid conv3 output edge (30 -> conv+pool 14 -> 12 -> 10)
PAD1 = PAR + 1        # max lane shift in fused conv1+pool  (sy*15 + sx <= 16)
PAD23 = 2 * PAR + 2   # max lane shift in conv2 / conv3     (ky*15 + kx <= 32)


# ----------------------------- glue helpers ---------------------------------
def _bilinear_resize_matrix(in_size, out_size):
    scale = in_size / out_size
    dst = np.arange(out_size, dtype=np.float64)
    src = np.clip((dst + 0.5) * scale - 0.5, 0.0, in_size - 1)
    lo = np.floor(src).astype(np.int64)
    hi = np.minimum(lo + 1, in_size - 1)
    frac = (src - lo).astype(np.float32)
    m = np.zeros((out_size, in_size), np.float32)
    m[np.arange(out_size), lo] += 1.0 - frac
    m[np.arange(out_size), hi] += frac
    return m


def _parity_decompose(x30):
    # (B, C, 30, 30) -> (B, 4*C, 15, 15); channel (p*2+q)*C + c holds x30[:, c, p::2, q::2]
    parts = [x30[:, :, p::2, q::2] for p in range(2) for q in range(2)]
    return jnp.concatenate(parts, axis=1)


# ------------------------------ Pallas kernel --------------------------------
def _make_kernel(C, O1, O3, bt):
    """Per-(branch, batch-block) kernel on lane-dense flattened parity grids."""
    L3 = bt * SEG          # conv3 / output width (exactly the packed 15x15 grids)
    L2 = L3 + PAD23        # h2 width
    L1 = L2 + PAD23        # h1 width
    L0 = L1 + PAD1         # zero-padded input width

    def kernel(xp_ref, w1_ref, b1_ref, w2_ref, b2_ref, w3_ref, b3_ref, out_ref):
        f32 = jnp.float32

        # ---- conv1 (3x3, C->O1, VALID) fused with MaxPool2d(2) + ReLU ----
        # Evaluate the conv once per output parity (dy, dx) on the parity-decomposed
        # input and take the max of the four.  Only one parity accumulator plus the
        # running max are live at any time (bounded vreg pressure as O1 scales).
        pooled = None
        for dy in range(2):
            for dx in range(2):
                acc = None
                for k in range(9):
                    ky, kx = divmod(k, 3)
                    p, sy = (dy + ky) % 2, (dy + ky) // 2
                    q, sx = (dx + kx) % 2, (dx + kx) // 2
                    pq = p * 2 + q
                    s = sy * PAR + sx
                    xs = xp_ref[0, 0, pq * C:(pq + 1) * C, s:s + L1]          # (C, L1)
                    t = jnp.dot(w1_ref[0, k], xs, preferred_element_type=f32)  # (O1, L1)
                    acc = t if acc is None else acc + t
                pooled = acc if pooled is None else jnp.maximum(pooled, acc)
        h1 = jnp.maximum(pooled + b1_ref[0], 0.0)            # (O1, L1), stays in vregs

        # ---- conv2 (3x3, O1->O1, VALID) + ReLU ----
        acc = None
        for k in range(9):
            ky, kx = divmod(k, 3)
            s = ky * PAR + kx
            t = jnp.dot(w2_ref[0, k], h1[:, s:s + L2], preferred_element_type=f32)
            acc = t if acc is None else acc + t
        h2 = jnp.maximum(acc + b2_ref[0], 0.0)               # (O1, L2), stays in vregs

        # ---- conv3 (3x3, O1->O3, VALID) + ReLU ----
        acc = None
        for k in range(9):
            ky, kx = divmod(k, 3)
            s = ky * PAR + kx
            t = jnp.dot(w3_ref[0, k], h2[:, s:s + L3], preferred_element_type=f32)
            acc = t if acc is None else acc + t

        # single lane-dense store per grid cell
        out_ref[0, 0] = jnp.maximum(acc + b3_ref[0], 0.0)    # (O3, L3)

    return kernel, L0, L3


# ------------------------------ forward wrapper -------------------------------
def make_forward(in_shape, out_channels, stride=1, batch_block=None):
    assert tuple(in_shape[:2]) in [(120, 120), (150, 150)]
    assert stride == 1  # TODO(synk): stride != 1 changes static spatial sizes; not wired up.
    H, W, C = in_shape
    O1, O3 = out_channels, out_channels // 2

    rh = jnp.asarray(_bilinear_resize_matrix(H, REDUCED))
    rw = jnp.asarray(_bilinear_resize_matrix(W, REDUCED))
    top = int(round((H - REDUCED) / 2.0))
    left = int(round((W - REDUCED) / 2.0))

    def preprocess(x):
        x_low = jnp.einsum('ih,jw,bchw->bcij', rh, rw, x,
                           precision=jax.lax.Precision.HIGHEST)
        x_high = x[:, :, top:top + REDUCED, left:left + REDUCED]
        return x_low, x_high

    def forward(x, params):
        B = x.shape[0]
        # Batch packing along lanes.  Default keeps >= 4 grid cells (>= 2 per v7x core)
        # while packing batch when B is larger (lanes scale as bt*225).
        if batch_block is None:
            bt = max(1, B // 2)
            while B % bt:
                bt -= 1
        else:
            bt = batch_block
            assert B % bt == 0, (B, bt)
        nb = B // bt
        kernel, L0, L3 = _make_kernel(C, O1, O3, bt)

        x_low, x_high = preprocess(x)
        xp = jnp.stack([_parity_decompose(x_low), _parity_decompose(x_high)], axis=0)
        # pack: (2, nb, 4C, bt*225) with row-major (i, j) inside each 225-lane segment
        xp = xp.reshape(2, nb, bt, 4 * C, PAR, PAR).transpose(0, 1, 3, 2, 4, 5)
        xp = xp.reshape(2, nb, 4 * C, bt * SEG)
        xp = jnp.pad(xp, ((0, 0), (0, 0), (0, 0), (0, L0 - bt * SEG)))

        def wmat(name, co, ci):
            # (2, 9, co, ci): entry [br, ky*3+kx, o, c]
            return jnp.stack(
                [jnp.transpose(params[bn][name], (2, 3, 0, 1)).reshape(9, co, ci)
                 for bn in ('low', 'high')], axis=0)

        def bcol(name, co):
            return jnp.stack([params[bn][name] for bn in ('low', 'high')],
                             axis=0).reshape(2, co, 1)

        w1m, b1c = wmat('w1', O1, C), bcol('b1', O1)
        w2m, b2c = wmat('w2', O1, O1), bcol('b2', O1)
        w3m, b3c = wmat('w3', O3, O1), bcol('b3', O3)

        out = pl.pallas_call(
            kernel,
            out_shape=jax.ShapeDtypeStruct((2, nb, O3, L3), jnp.float32),
            grid=(2, nb),
            in_specs=[
                pl.BlockSpec((1, 1, 4 * C, L0), lambda br, nbi: (br, nbi, 0, 0)),
                pl.BlockSpec((1, 9, O1, C), lambda br, nbi: (br, 0, 0, 0)),
                pl.BlockSpec((1, O1, 1), lambda br, nbi: (br, 0, 0)),
                pl.BlockSpec((1, 9, O1, O1), lambda br, nbi: (br, 0, 0, 0)),
                pl.BlockSpec((1, O1, 1), lambda br, nbi: (br, 0, 0)),
                pl.BlockSpec((1, 9, O3, O1), lambda br, nbi: (br, 0, 0, 0)),
                pl.BlockSpec((1, O3, 1), lambda br, nbi: (br, 0, 0)),
            ],
            out_specs=pl.BlockSpec((1, 1, O3, L3), lambda br, nbi: (br, nbi, 0, 0)),
            compiler_params=pltpu.CompilerParams(
                dimension_semantics=("parallel", "parallel")),
        )(xp, w1m, b1c, w2m, b2c, w3m, b3c)

        # extract valid 10x10 windows from the stride-15 lane layout, flatten, concat
        out = out.reshape(2, nb, O3, bt, PAR, PAR).transpose(0, 1, 3, 2, 4, 5)
        out = out.reshape(2, B, O3, PAR, PAR)[:, :, :, :C3_V, :C3_V]
        low = out[0].reshape(B, -1)     # nn.Flatten of low-res branch
        high = out[1].reshape(B, -1)    # nn.Flatten of high-res branch
        return jnp.concatenate([low, high], axis=1)   # torch.cat(..., dim=1)

    return forward, preprocess


# ---------------------------- params & reference ------------------------------
def init_params(key, in_channels, out_channels):
    O1, O3, C = out_channels, out_channels // 2, in_channels

    def conv_init(k, o, c):
        kw, kb = jax.random.split(k)
        bound = 1.0 / np.sqrt(c * 9)
        w = jax.random.uniform(kw, (o, c, 3, 3), jnp.float32, -bound, bound)
        b = jax.random.uniform(kb, (o,), jnp.float32, -bound, bound)
        return w, b

    params = {}
    keys = jax.random.split(key, 6)
    for i, branch in enumerate(['low', 'high']):
        w1, b1 = conv_init(keys[3 * i + 0], O1, C)
        w2, b2 = conv_init(keys[3 * i + 1], O1, O1)
        w3, b3 = conv_init(keys[3 * i + 2], O3, O1)
        params[branch] = dict(w1=w1, b1=b1, w2=w2, b2=b2, w3=w3, b3=b3)
    return params


def _conv_ref(x, w, b):
    y = jax.lax.conv_general_dilated(
        x, w, window_strides=(1, 1), padding='VALID',
        dimension_numbers=('NCHW', 'OIHW', 'NCHW'),
        precision=jax.lax.Precision.HIGHEST)
    return y + b[None, :, None, None]


def _branch_ref(x30, p):
    h = _conv_ref(x30, p['w1'], p['b1'])
    h = jax.lax.reduce_window(h, -jnp.inf, jax.lax.max,
                              (1, 1, 2, 2), (1, 1, 2, 2), 'VALID')
    h = jnp.maximum(h, 0.0)
    h = jnp.maximum(_conv_ref(h, p['w2'], p['b2']), 0.0)
    h = jnp.maximum(_conv_ref(h, p['w3'], p['b3']), 0.0)
    return h.reshape(h.shape[0], -1)


def reference_forward(x, params, preprocess):
    x_low, x_high = preprocess(x)
    return jnp.concatenate([_branch_ref(x_low, params['low']),
                            _branch_ref(x_high, params['high'])], axis=1)


# ----------------------------------- main -------------------------------------
if __name__ == "__main__":
    B, C, HW = 2, 4, 120          # module only supports 120x120 / 150x150 maps
    out_channels = 4
    in_shape = (HW, HW, C)

    key = jax.random.PRNGKey(0)
    kx, kp = jax.random.split(key)
    x = jax.random.normal(kx, (B, C, HW, HW), jnp.float32)
    params = init_params(kp, C, out_channels)

    forward, preprocess = make_forward(in_shape, out_channels)
    out = jax.jit(forward)(x, params)
    out = jax.block_until_ready(out)

    expected_size = 2 * (out_channels // 2) * C3_V * C3_V
    assert out.shape == (B, expected_size), out.shape

    ref = reference_forward(x, params, preprocess)
    # Tolerance accounts for possible bf16-pass lowering of f32 MXU matmuls vs the
    # HIGHEST-precision XLA conv reference.
    np.testing.assert_allclose(np.asarray(out), np.asarray(ref), rtol=1e-2, atol=1e-2)
    print("KERNEL_OK")
</pallas_src>

<mosaic_0001>
module attributes {stable_mosaic.version = 11 : i64} {
  func.func @kernel(%arg0: i32, %arg1: i32, %arg2: memref<1x1x16x305xf32, #tpu.memory_space<vmem>>, %arg3: memref<1x9x4x4xf32, #tpu.memory_space<vmem>>, %arg4: memref<1x4x1xf32, #tpu.memory_space<vmem>>, %arg5: memref<1x9x4x4xf32, #tpu.memory_space<vmem>>, %arg6: memref<1x4x1xf32, #tpu.memory_space<vmem>>, %arg7: memref<1x9x2x4xf32, #tpu.memory_space<vmem>>, %arg8: memref<1x2x1xf32, #tpu.memory_space<vmem>>, %arg9: memref<1x1x2x225xf32, #tpu.memory_space<vmem>>) attributes {dimension_semantics = [#tpu.dimension_semantics<parallel>, #tpu.dimension_semantics<parallel>], iteration_bounds = array<i64: 2, 2>, scalar_prefetch = 0 : i64, scratch_operands = 0 : i64, tpu.core_type = #tpu.core_type<tc>, window_params = [{transform_indices = @transform_0, window_bounds = array<i64: 1, 1, 16, 305>}, {transform_indices = @transform_1, window_bounds = array<i64: 1, 9, 4, 4>}, {transform_indices = @transform_2, window_bounds = array<i64: 1, 4, 1>}, {transform_indices = @transform_3, window_bounds = array<i64: 1, 9, 4, 4>}, {transform_indices = @transform_4, window_bounds = array<i64: 1, 4, 1>}, {transform_indices = @transform_5, window_bounds = array<i64: 1, 9, 2, 4>}, {transform_indices = @transform_6, window_bounds = array<i64: 1, 2, 1>}, {transform_indices = @transform_7, window_bounds = array<i64: 1, 1, 2, 225>}]} {
    %c0 = arith.constant 0 : index
    %c0_0 = arith.constant 0 : index
    %c0_1 = arith.constant 0 : index
    %c0_2 = arith.constant 0 : index
    %0 = vector.load %arg2[%c0, %c0_0, %c0_1, %c0_2] : memref<1x1x16x305xf32, #tpu.memory_space<vmem>>, vector<1x1x4x289xf32>
    %1 = vector.shape_cast %0 : vector<1x1x4x289xf32> to vector<4x289xf32>
    %c0_3 = arith.constant 0 : index
    %c0_4 = arith.constant 0 : index
    %c0_5 = arith.constant 0 : index
    %c0_6 = arith.constant 0 : index
    %2 = vector.load %arg3[%c0_3, %c0_4, %c0_5, %c0_6] : memref<1x9x4x4xf32, #tpu.memory_space<vmem>>, vector<1x1x4x4xf32>
    %3 = vector.shape_cast %2 : vector<1x1x4x4xf32> to vector<4x4xf32>
    %cst = arith.constant dense<0.000000e+00> : vector<4x289xf32>
    %4 = tpu.matmul %3, %1, %cst {dimension_numbers = #tpu.dot_dimension_numbers<[1], [0], [0], [1], [0, 0, 1, 1], [], []>} : vector<4x4xf32>, vector<4x289xf32>, vector<4x289xf32> -> vector<4x289xf32>
    %c0_7 = arith.constant 0 : index
    %c0_8 = arith.constant 0 : index
    %c4 = arith.constant 4 : index
    %c0_9 = arith.constant 0 : index
    %5 = vector.load %arg2[%c0_7, %c0_8, %c4, %c0_9] : memref<1x1x16x305xf32, #tpu.memory_space<vmem>>, vector<1x1x4x289xf32>
    %6 = vector.shape_cast %5 : vector<1x1x4x289xf32> to vector<4x289xf32>
    %c0_10 = arith.constant 0 : index
    %c1 = arith.constant 1 : index
    %c0_11 = arith.constant 0 : index
    %c0_12 = arith.constant 0 : index
    %7 = vector.load %arg3[%c0_10, %c1, %c0_11, %c0_12] : memref<1x9x4x4xf32, #tpu.memory_space<vmem>>, vector<1x1x4x4xf32>
    %8 = vector.shape_cast %7 : vector<1x1x4x4xf32> to vector<4x4xf32>
    %cst_13 = arith.constant dense<0.000000e+00> : vector<4x289xf32>
    %9 = tpu.matmul %8, %6, %cst_13 {dimension_numbers = #tpu.dot_dimension_numbers<[1], [0], [0], [1], [0, 0, 1, 1], [], []>} : vector<4x4xf32>, vector<4x289xf32>, vector<4x289xf32> -> vector<4x289xf32>
    %10 = arith.addf %4, %9 : vector<4x289xf32>
    %c0_14 = arith.constant 0 : index
    %c0_15 = arith.constant 0 : index
    %c0_16 = arith.constant 0 : index
    %c1_17 = arith.constant 1 : index
    %11 = vector.load %arg2[%c0_14, %c0_15, %c0_16, %c1_17] : memref<1x1x16x305xf32, #tpu.memory_space<vmem>>, vector<1x1x4x289xf32>
    %12 = vector.shape_cast %11 : vector<1x1x4x289xf32> to vector<4x289xf32>
    %c0_18 = arith.constant 0 : index
    %c2 = arith.constant 2 : index
    %c0_19 = arith.constant 0 : index
    %c0_20 = arith.constant 0 : index
    %13 = vector.load %arg3[%c0_18, %c2, %c0_19, %c0_20] : memref<1x9x4x4xf32, #tpu.memory_space<vmem>>, vector<1x1x4x4xf32>
    %14 = vector.shape_cast %13 : vector<1x1x4x4xf32> to vector<4x4xf32>
    %cst_21 = arith.constant dense<0.000000e+00> : vector<4x289xf32>
    %15 = tpu.matmul %14, %12, %cst_21 {dimension_numbers = #tpu.dot_dimension_numbers<[1], [0], [0], [1], [0, 0, 1, 1], [], []>} : vector<4x4xf32>, vector<4x289xf32>, vector<4x289xf32> -> vector<4x289xf32>
    %16 = arith.addf %10, %15 : vector<4x289xf32>
    %c0_22 = arith.constant 0 : index
    %c0_23 = arith.constant 0 : index
    %c8 = arith.constant 8 : index
    %c0_24 = arith.constant 0 : index
    %17 = vector.load %arg2[%c0_22, %c0_23, %c8, %c0_24] : memref<1x1x16x305xf32, #tpu.memory_space<vmem>>, vector<1x1x4x289xf32>
    %18 = vector.shape_cast %17 : vector<1x1x4x289xf32> to vector<4x289xf32>
    %c0_25 = arith.constant 0 : index
    %c3 = arith.constant 3 : index
    %c0_26 = arith.constant 0 : index
    %c0_27 = arith.constant 0 : index
    %19 = vector.load %arg3[%c0_25, %c3, %c0_26, %c0_27] : memref<1x9x4x4xf32, #tpu.memory_space<vmem>>, vector<1x1x4x4xf32>
    %20 = vector.shape_cast %19 : vector<1x1x4x4xf32> to vector<4x4xf32>
    %cst_28 = arith.constant dense<0.000000e+00> : vector<4x289xf32>
    %21 = tpu.matmul %20, %18, %cst_28 {dimension_numbers = #tpu.dot_dimension_numbers<[1], [0], [0], [1], [0, 0, 1, 1], [], []>} : vector<4x4xf32>, vector<4x289xf32>, vector<4x289xf32> -> vector<4x289xf32>
    %22 = arith.addf %16, %21 : vector<4x289xf32>
    %c0_29 = arith.constant 0 : index
    %c0_30 = arith.constant 0 : index
    %c12 = arith.constant 12 : index
    %c0_31 = arith.constant 0 : index
    %23 = vector.load %arg2[%c0_29, %c0_30, %c12, %c0_31] : memref<1x1x16x305xf32, #tpu.memory_space<vmem>>, vector<1x1x4x289xf32>
    %24 = vector.shape_cast %23 : vector<1x1x4x289xf32> to vector<4x289xf32>
    %c0_32 = arith.constant 0 : index
    %c4_33 = arith.constant 4 : index
    %c0_34 = arith.constant 0 : index
    %c0_35 = arith.constant 0 : index
    %25 = vector.load %arg3[%c0_32, %c4_33, %c0_34, %c0_35] : memref<1x9x4x4xf32, #tpu.memory_space<vmem>>, vector<1x1x4x4xf32>
    %26 = vector.shape_cast %25 : vector<1x1x4x4xf32> to vector<4x4xf32>
    %cst_36 = arith.constant dense<0.000000e+00> : vector<4x289xf32>
    %27 = tpu.matmul %26, %24, %cst_36 {dimension_numbers = #tpu.dot_dimension_numbers<[1], [0], [0], [1], [0, 0, 1, 1], [], []>} : vector<4x4xf32>, vector<4x289xf32>, vector<4x289xf32> -> vector<4x289xf32>
    %28 = arith.addf %22, %27 : vector<4x289xf32>
    %c0_37 = arith.constant 0 : index
    %c0_38 = arith.constant 0 : index
    %c8_39 = arith.constant 8 : index
    %c1_40 = arith.constant 1 : index
    %29 = vector.load %arg2[%c0_37, %c0_38, %c8_39, %c1_40] : memref<1x1x16x305xf32, #tpu.memory_space<vmem>>, vector<1x1x4x289xf32>
    %30 = vector.shape_cast %29 : vector<1x1x4x289xf32> to vector<4x289xf32>
    %c0_41 = arith.constant 0 : index
    %c5 = arith.constant 5 : index
    %c0_42 = arith.constant 0 : index
    %c0_43 = arith.constant 0 : index
    %31 = vector.load %arg3[%c0_41, %c5, %c0_42, %c0_43] : memref<1x9x4x4xf32, #tpu.memory_space<vmem>>, vector<1x1x4x4xf32>
    %32 = vector.shape_cast %31 : vector<1x1x4x4xf32> to vector<4x4xf32>
    %cst_44 = arith.constant dense<0.000000e+00> : vector<4x289xf32>
    %33 = tpu.matmul %32, %30, %cst_44 {dimension_numbers = #tpu.dot_dimension_numbers<[1], [0], [0], [1], [0, 0, 1, 1], [], []>} : vector<4x4xf32>, vector<4x289xf32>, vector<4x289xf32> -> vector<4x289xf32>
    %34 = arith.addf %28, %33 : vector<4x289xf32>
    %c0_45 = arith.constant 0 : index
    %c0_46 = arith.constant 0 : index
    %c0_47 = arith.constant 0 : index
    %c15 = arith.constant 15 : index
    %35 = vector.load %arg2[%c0_45, %c0_46, %c0_47, %c15] : memref<1x1x16x305xf32, #tpu.memory_space<vmem>>, vector<1x1x4x289xf32>
    %36 = vector.shape_cast %35 : vector<1x1x4x289xf32> to vector<4x289xf32>
    %c0_48 = arith.constant 0 : index
    %c6 = arith.constant 6 : index
    %c0_49 = arith.constant 0 : index
    %c0_50 = arith.constant 0 : index
    %37 = vector.load %arg3[%c0_48, %c6, %c0_49, %c0_50] : memref<1x9x4x4xf32, #tpu.memory_space<vmem>>, vector<1x1x4x4xf32>
    %38 = vector.shape_cast %37 : vector<1x1x4x4xf32> to vector<4x4xf32>
    %cst_51 = arith.constant dense<0.000000e+00> : vector<4x289xf32>
    %39 = tpu.matmul %38, %36, %cst_51 {dimension_numbers = #tpu.dot_dimension_numbers<[1], [0], [0], [1], [0, 0, 1, 1], [], []>} : vector<4x4xf32>, vector<4x289xf32>, vector<4x289xf32> -> vector<4x289xf32>
    %40 = arith.addf %34, %39 : vector<4x289xf32>
    %c0_52 = arith.constant 0 : index
    %c0_53 = arith.constant 0 : index
    %c4_54 = arith.constant 4 : index
    %c15_55 = arith.constant 15 : index
    %41 = vector.load %arg2[%c0_52, %c0_53, %c4_54, %c15_55] : memref<1x1x16x305xf32, #tpu.memory_space<vmem>>, vector<1x1x4x289xf32>
    %42 = vector.shape_cast %41 : vector<1x1x4x289xf32> to vector<4x289xf32>
    %c0_56 = arith.constant 0 : index
    %c7 = arith.constant 7 : index
    %c0_57 = arith.constant 0 : index
    %c0_58 = arith.constant 0 : index
    %43 = vector.load %arg3[%c0_56, %c7, %c0_57, %c0_58] : memref<1x9x4x4xf32, #tpu.memory_space<vmem>>, vector<1x1x4x4xf32>
    %44 = vector.shape_cast %43 : vector<1x1x4x4xf32> to vector<4x4xf32>
    %cst_59 = arith.constant dense<0.000000e+00> : vector<4x289xf32>
    %45 = tpu.matmul %44, %42, %cst_59 {dimension_numbers = #tpu.dot_dimension_numbers<[1], [0], [0], [1], [0, 0, 1, 1], [], []>} : vector<4x4xf32>, vector<4x289xf32>, vector<4x289xf32> -> vector<4x289xf32>
    %46 = arith.addf %40, %45 : vector<4x289xf32>
    %c0_60 = arith.constant 0 : index
    %c0_61 = arith.constant 0 : index
    %c0_62 = arith.constant 0 : index
    %c16 = arith.constant 16 : index
    %47 = vector.load %arg2[%c0_60, %c0_61, %c0_62, %c16] : memref<1x1x16x305xf32, #tpu.memory_space<vmem>>, vector<1x1x4x289xf32>
    %48 = vector.shape_cast %47 : vector<1x1x4x289xf32> to vector<4x289xf32>
    %c0_63 = arith.constant 0 : index
    %c8_64 = arith.constant 8 : index
    %c0_65 = arith.constant 0 : index
    %c0_66 = arith.constant 0 : index
    %49 = vector.load %arg3[%c0_63, %c8_64, %c0_65, %c0_66] : memref<1x9x4x4xf32, #tpu.memory_space<vmem>>, vector<1x1x4x4xf32>
    %50 = vector.shape_cast %49 : vector<1x1x4x4xf32> to vector<4x4xf32>
    %cst_67 = arith.constant dense<0.000000e+00> : vector<4x289xf32>
    %51 = tpu.matmul %50, %48, %cst_67 {dimension_numbers = #tpu.dot_dimension_numbers<[1], [0], [0], [1], [0, 0, 1, 1], [], []>} : vector<4x4xf32>, vector<4x289xf32>, vector<4x289xf32> -> vector<4x289xf32>
    %52 = arith.addf %46, %51 : vector<4x289xf32>
    %c0_68 = arith.constant 0 : index
    %c0_69 = arith.constant 0 : index
    %c4_70 = arith.constant 4 : index
    %c0_71 = arith.constant 0 : index
    %53 = vector.load %arg2[%c0_68, %c0_69, %c4_70, %c0_71] : memref<1x1x16x305xf32, #tpu.memory_space<vmem>>, vector<1x1x4x289xf32>
    %54 = vector.shape_cast %53 : vector<1x1x4x289xf32> to vector<4x289xf32>
    %c0_72 = arith.constant 0 : index
    %c0_73 = arith.constant 0 : index
    %c0_74 = arith.constant 0 : index
    %c0_75 = arith.constant 0 : index
    %55 = vector.load %arg3[%c0_72, %c0_73, %c0_74, %c0_75] : memref<1x9x4x4xf32, #tpu.memory_space<vmem>>, vector<1x1x4x4xf32>
    %56 = vector.shape_cast %55 : vector<1x1x4x4xf32> to vector<4x4xf32>
    %cst_76 = arith.constant dense<0.000000e+00> : vector<4x289xf32>
    %57 = tpu.matmul %56, %54, %cst_76 {dimension_numbers = #tpu.dot_dimension_numbers<[1], [0], [0], [1], [0, 0, 1, 1], [], []>} : vector<4x4xf32>, vector<4x289xf32>, vector<4x289xf32> -> vector<4x289xf32>
    %c0_77 = arith.constant 0 : index
    %c0_78 = arith.constant 0 : index
    %c0_79 = arith.constant 0 : index
    %c1_80 = arith.constant 1 : index
    %58 = vector.load %arg2[%c0_77, %c0_78, %c0_79, %c1_80] : memref<1x1x16x305xf32, #tpu.memory_space<vmem>>, vector<1x1x4x289xf32>
    %59 = vector.shape_cast %58 : vector<1x1x4x289xf32> to vector<4x289xf32>
    %c0_81 = arith.constant 0 : index
    %c1_82 = arith.constant 1 : index
    %c0_83 = arith.constant 0 : index
    %c0_84 = arith.constant 0 : index
    %60 = vector.load %arg3[%c0_81, %c1_82, %c0_83, %c0_84] : memref<1x9x4x4xf32, #tpu.memory_space<vmem>>, vector<1x1x4x4xf32>
    %61 = vector.shape_cast %60 : vector<1x1x4x4xf32> to vector<4x4xf32>
    %cst_85 = arith.constant dense<0.000000e+00> : vector<4x289xf32>
    %62 = tpu.matmul %61, %59, %cst_85 {dimension_numbers = #tpu.dot_dimension_numbers<[1], [0], [0], [1], [0, 0, 1, 1], [], []>} : vector<4x4xf32>, vector<4x289xf32>, vector<4x289xf32> -> vector<4x289xf32>
    %63 = arith.addf %57, %62 : vector<4x289xf32>
    %c0_86 = arith.constant 0 : index
    %c0_87 = arith.constant 0 : index
    %c4_88 = arith.constant 4 : index
    %c1_89 = arith.constant 1 : index
    %64 = vector.load %arg2[%c0_86, %c0_87, %c4_88, %c1_89] : memref<1x1x16x305xf32, #tpu.memory_space<vmem>>, vector<1x1x4x289xf32>
    %65 = vector.shape_cast %64 : vector<1x1x4x289xf32> to vector<4x289xf32>
    %c0_90 = arith.constant 0 : index
    %c2_91 = arith.constant 2 : index
    %c0_92 = arith.constant 0 : index
    %c0_93 = arith.constant 0 : index
    %66 = vector.load %arg3[%c0_90, %c2_91, %c0_92, %c0_93] : memref<1x9x4x4xf32, #tpu.memory_space<vmem>>, vector<1x1x4x4xf32>
    %67 = vector.shape_cast %66 : vector<1x1x4x4xf32> to vector<4x4xf32>
    %cst_94 = arith.constant dense<0.000000e+00> : vector<4x289xf32>
    %68 = tpu.matmul %67, %65, %cst_94 {dimension_numbers = #tpu.dot_dimension_numbers<[1], [0], [0], [1], [0, 0, 1, 1], [], []>} : vector<4x4xf32>, vector<4x289xf32>, vector<4x289xf32> -> vector<4x289xf32>
    %69 = arith.addf %63, %68 : vector<4x289xf32>
    %c0_95 = arith.constant 0 : index
    %c0_96 = arith.constant 0 : index
    %c12_97 = arith.constant 12 : index
    %c0_98 = arith.constant 0 : index
    %70 = vector.load %arg2[%c0_95, %c0_96, %c12_97, %c0_98] : memref<1x1x16x305xf32, #tpu.memory_space<vmem>>, vector<1x1x4x289xf32>
    %71 = vector.shape_cast %70 : vector<1x1x4x289xf32> to vector<4x289xf32>
    %c0_99 = arith.constant 0 : index
    %c3_100 = arith.constant 3 : index
    %c0_101 = arith.constant 0 : index
    %c0_102 = arith.constant 0 : index
    %72 = vector.load %arg3[%c0_99, %c3_100, %c0_101, %c0_102] : memref<1x9x4x4xf32, #tpu.memory_space<vmem>>, vector<1x1x4x4xf32>
    %73 = vector.shape_cast %72 : vector<1x1x4x4xf32> to vector<4x4xf32>
    %cst_103 = arith.constant dense<0.000000e+00> : vector<4x289xf32>
    %74 = tpu.matmul %73, %71, %cst_103 {dimension_numbers = #tpu.dot_dimension_numbers<[1], [0], [0], [1], [0, 0, 1, 1], [], []>} : vector<4x4xf32>, vector<4x289xf32>, vector<4x289xf32> -> vector<4x289xf32>
    %75 = arith.addf %69, %74 : vector<4x289xf32>
    %c0_104 = arith.constant 0 : index
    %c0_105 = arith.constant 0 : index
    %c8_106 = arith.constant 8 : index
    %c1_107 = arith.constant 1 : index
    %76 = vector.load %arg2[%c0_104, %c0_105, %c8_106, %c1_107] : memref<1x1x16x305xf32, #tpu.memory_space<vmem>>, vector<1x1x4x289xf32>
    %77 = vector.shape_cast %76 : vector<1x1x4x289xf32> to vector<4x289xf32>
    %c0_108 = arith.constant 0 : index
    %c4_109 = arith.constant 4 : index
    %c0_110 = arith.constant 0 : index
    %c0_111 = arith.constant 0 : index
    %78 = vector.load %arg3[%c0_108, %c4_109, %c0_110, %c0_111] : memref<1x9x4x4xf32, #tpu.memory_space<vmem>>, vector<1x1x4x4xf32>
    %79 = vector.shape_cast %78 : vector<1x1x4x4xf32> to vector<4x4xf32>
    %cst_112 = arith.constant dense<0.000000e+00> : vector<4x289xf32>
    %80 = tpu.matmul %79, %77, %cst_112 {dimension_numbers = #tpu.dot_dimension_numbers<[1], [0], [0], [1], [0, 0, 1, 1], [], []>} : vector<4x4xf32>, vector<4x289xf32>, vector<4x289xf32> -> vector<4x289xf32>
    %81 = arith.addf %75, %80 : vector<4x289xf32>
    %c0_113 = arith.constant 0 : index
    %c0_114 = arith.constant 0 : index
    %c12_115 = arith.constant 12 : index
    %c1_116 = arith.constant 1 : index
    %82 = vector.load %arg2[%c0_113, %c0_114, %c12_115, %c1_116] : memref<1x1x16x305xf32, #tpu.memory_space<vmem>>, vector<1x1x4x289xf32>
    %83 = vector.shape_cast %82 : vector<1x1x4x289xf32> to vector<4x289xf32>
    %c0_117 = arith.constant 0 : index
    %c5_118 = arith.constant 5 : index
    %c0_119 = arith.constant 0 : index
    %c0_120 = arith.constant 0 : index
    %84 = vector.load %arg3[%c0_117, %c5_118, %c0_119, %c0_120] : memref<1x9x4x4xf32, #tpu.memory_space<vmem>>, vector<1x1x4x4xf32>
    %85 = vector.shape_cast %84 : vector<1x1x4x4xf32> to vector<4x4xf32>
    %cst_121 = arith.constant dense<0.000000e+00> : vector<4x289xf32>
    %86 = tpu.matmul %85, %83, %cst_121 {dimension_numbers = #tpu.dot_dimension_numbers<[1], [0], [0], [1], [0, 0, 1, 1], [], []>} : vector<4x4xf32>, vector<4x289xf32>, vector<4x289xf32> -> vector<4x289xf32>
    %87 = arith.addf %81, %86 : vector<4x289xf32>
    %c0_122 = arith.constant 0 : index
    %c0_123 = arith.constant 0 : index
    %c4_124 = arith.constant 4 : index
    %c15_125 = arith.constant 15 : index
    %88 = vector.load %arg2[%c0_122, %c0_123, %c4_124, %c15_125] : memref<1x1x16x305xf32, #tpu.memory_space<vmem>>, vector<1x1x4x289xf32>
    %89 = vector.shape_cast %88 : vector<1x1x4x289xf32> to vector<4x289xf32>
    %c0_126 = arith.constant 0 : index
    %c6_127 = arith.constant 6 : index
    %c0_128 = arith.constant 0 : index
    %c0_129 = arith.constant 0 : index
    %90 = vector.load %arg3[%c0_126, %c6_127, %c0_128, %c0_129] : memref<1x9x4x4xf32, #tpu.memory_space<vmem>>, vector<1x1x4x4xf32>
    %91 = vector.shape_cast %90 : vector<1x1x4x4xf32> to vector<4x4xf32>
    %cst_130 = arith.constant dense<0.000000e+00> : vector<4x289xf32>
    %92 = tpu.matmul %91, %89, %cst_130 {dimension_numbers = #tpu.dot_dimension_numbers<[1], [0], [0], [1], [0, 0, 1, 1], [], []>} : vector<4x4xf32>, vector<4x289xf32>, vector<4x289xf32> -> vector<4x289xf32>
    %93 = arith.addf %87, %92 : vector<4x289xf32>
    %c0_131 = arith.constant 0 : index
    %c0_132 = arith.constant 0 : index
    %c0_133 = arith.constant 0 : index
    %c16_134 = arith.constant 16 : index
    %94 = vector.load %arg2[%c0_131, %c0_132, %c0_133, %c16_134] : memref<1x1x16x305xf32, #tpu.memory_space<vmem>>, vector<1x1x4x289xf32>
    %95 = vector.shape_cast %94 : vector<1x1x4x289xf32> to vector<4x289xf32>
    %c0_135 = arith.constant 0 : index
    %c7_136 = arith.constant 7 : index
    %c0_137 = arith.constant 0 : index
    %c0_138 = arith.constant 0 : index
    %96 = vector.load %arg3[%c0_135, %c7_136, %c0_137, %c0_138] : memref<1x9x4x4xf32, #tpu.memory_space<vmem>>, vector<1x1x4x4xf32>
    %97 = vector.shape_cast %96 : vector<1x1x4x4xf32> to vector<4x4xf32>
    %cst_139 = arith.constant dense<0.000000e+00> : vector<4x289xf32>
    %98 = tpu.matmul %97, %95, %cst_139 {dimension_numbers = #tpu.dot_dimension_numbers<[1], [0], [0], [1], [0, 0, 1, 1], [], []>} : vector<4x4xf32>, vector<4x289xf32>, vector<4x289xf32> -> vector<4x289xf32>
    %99 = arith.addf %93, %98 : vector<4x289xf32>
    %c0_140 = arith.constant 0 : index
    %c0_141 = arith.constant 0 : index
    %c4_142 = arith.constant 4 : index
    %c16_143 = arith.constant 16 : index
    %100 = vector.load %arg2[%c0_140, %c0_141, %c4_142, %c16_143] : memref<1x1x16x305xf32, #tpu.memory_space<vmem>>, vector<1x1x4x289xf32>
    %101 = vector.shape_cast %100 : vector<1x1x4x289xf32> to vector<4x289xf32>
    %c0_144 = arith.constant 0 : index
    %c8_145 = arith.constant 8 : index
    %c0_146 = arith.constant 0 : index
    %c0_147 = arith.constant 0 : index
    %102 = vector.load %arg3[%c0_144, %c8_145, %c0_146, %c0_147] : memref<1x9x4x4xf32, #tpu.memory_space<vmem>>, vector<1x1x4x4xf32>
    %103 = vector.shape_cast %102 : vector<1x1x4x4xf32> to vector<4x4xf32>
    %cst_148 = arith.constant dense<0.000000e+00> : vector<4x289xf32>
    %104 = tpu.matmul %103, %101, %cst_148 {dimension_numbers = #tpu.dot_dimension_numbers<[1], [0], [0], [1], [0, 0, 1, 1], [], []>} : vector<4x4xf32>, vector<4x289xf32>, vector<4x289xf32> -> vector<4x289xf32>
    %105 = arith.addf %99, %104 : vector<4x289xf32>
    %106 = arith.maximumf %52, %105 : vector<4x289xf32>
    %c0_149 = arith.constant 0 : index
    %c0_150 = arith.constant 0 : index
    %c8_151 = arith.constant 8 : index
    %c0_152 = arith.constant 0 : index
    %107 = vector.load %arg2[%c0_149, %c0_150, %c8_151, %c0_152] : memref<1x1x16x305xf32, #tpu.memory_space<vmem>>, vector<1x1x4x289xf32>
    %108 = vector.shape_cast %107 : vector<1x1x4x289xf32> to vector<4x289xf32>
    %c0_153 = arith.constant 0 : index
    %c0_154 = arith.constant 0 : index
    %c0_155 = arith.constant 0 : index
    %c0_156 = arith.constant 0 : index
    %109 = vector.load %arg3[%c0_153, %c0_154, %c0_155, %c0_156] : memref<1x9x4x4xf32, #tpu.memory_space<vmem>>, vector<1x1x4x4xf32>
    %110 = vector.shape_cast %109 : vector<1x1x4x4xf32> to vector<4x4xf32>
    %cst_157 = arith.constant dense<0.000000e+00> : vector<4x289xf32>
    %111 = tpu.matmul %110, %108, %cst_157 {dimension_numbers = #tpu.dot_dimension_numbers<[1], [0], [0], [1], [0, 0, 1, 1], [], []>} : vector<4x4xf32>, vector<4x289xf32>, vector<4x289xf32> -> vector<4x289xf32>
    %c0_158 = arith.constant 0 : index
    %c0_159 = arith.constant 0 : index
    %c12_160 = arith.constant 12 : index
    %c0_161 = arith.constant 0 : index
    %112 = vector.load %arg2[%c0_158, %c0_159, %c12_160, %c0_161] : memref<1x1x16x305xf32, #tpu.memory_space<vmem>>, vector<1x1x4x289xf32>
    %113 = vector.shape_cast %112 : vector<1x1x4x289xf32> to vector<4x289xf32>
    %c0_162 = arith.constant 0 : index
    %c1_163 = arith.constant 1 : index
    %c0_164 = arith.constant 0 : index
    %c0_165 = arith.constant 0 : index
    %114 = vector.load %arg3[%c0_162, %c1_163, %c0_164, %c0_165] : memref<1x9x4x4xf32, #tpu.memory_space<vmem>>, vector<1x1x4x4xf32>
    %115 = vector.shape_cast %114 : vector<1x1x4x4xf32> to vector<4x4xf32>
    %cst_166 = arith.constant dense<0.000000e+00> : vector<4x289xf32>
    %116 = tpu.matmul %115, %113, %cst_166 {dimension_numbers = #tpu.dot_dimension_numbers<[1], [0], [0], [1], [0, 0, 1, 1], [], []>} : vector<4x4xf32>, vector<4x289xf32>, vector<4x289xf32> -> vector<4x289xf32>
    %117 = arith.addf %111, %116 : vector<4x289xf32>
    %c0_167 = arith.constant 0 : index
    %c0_168 = arith.constant 0 : index
    %c8_169 = arith.constant 8 : index
    %c1_170 = arith.constant 1 : index
    %118 = vector.load %arg2[%c0_167, %c0_168, %c8_169, %c1_170] : memref<1x1x16x305xf32, #tpu.memory_space<vmem>>, vector<1x1x4x289xf32>
    %119 = vector.shape_cast %118 : vector<1x1x4x289xf32> to vector<4x289xf32>
    %c0_171 = arith.constant 0 : index
    %c2_172 = arith.constant 2 : index
    %c0_173 = arith.constant 0 : index
    %c0_174 = arith.constant 0 : index
    %120 = vector.load %arg3[%c0_171, %c2_172, %c0_173, %c0_174] : memref<1x9x4x4xf32, #tpu.memory_space<vmem>>, vector<1x1x4x4xf32>
    %121 = vector.shape_cast %120 : vector<1x1x4x4xf32> to vector<4x4xf32>
    %cst_175 = arith.constant dense<0.000000e+00> : vector<4x289xf32>
    %122 = tpu.matmul %121, %119, %cst_175 {dimension_numbers = #tpu.dot_dimension_numbers<[1], [0], [0], [1], [0, 0, 1, 1], [], []>} : vector<4x4xf32>, vector<4x289xf32>, vector<4x289xf32> -> vector<4x289xf32>
    %123 = arith.addf %117, %122 : vector<4x289xf32>
    %c0_176 = arith.constant 0 : index
    %c0_177 = arith.constant 0 : index
    %c0_178 = arith.constant 0 : index
    %c15_179 = arith.constant 15 : index
    %124 = vector.load %arg2[%c0_176, %c0_177, %c0_178, %c15_179] : memref<1x1x16x305xf32, #tpu.memory_space<vmem>>, vector<1x1x4x289xf32>
    %125 = vector.shape_cast %124 : vector<1x1x4x289xf32> to vector<4x289xf32>
    %c0_180 = arith.constant 0 : index
    %c3_181 = arith.constant 3 : index
    %c0_182 = arith.constant 0 : index
    %c0_183 = arith.constant 0 : index
    %126 = vector.load %arg3[%c0_180, %c3_181, %c0_182, %c0_183] : memref<1x9x4x4xf32, #tpu.memory_space<vmem>>, vector<1x1x4x4xf32>
    %127 = vector.shape_cast %126 : vector<1x1x4x4xf32> to vector<4x4xf32>
    %cst_184 = arith.constant dense<0.000000e+00> : vector<4x289xf32>
    %128 = tpu.matmul %127, %125, %cst_184 {dimension_numbers = #tpu.dot_dimension_numbers<[1], [0], [0], [1], [0, 0, 1, 1], [], []>} : vector<4x4xf32>, vector<4x289xf32>, vector<4x289xf32> -> vector<4x289xf32>
    %129 = arith.addf %123, %128 : vector<4x289xf32>
    %c0_185 = arith.constant 0 : index
    %c0_186 = arith.constant 0 : index
    %c4_187 = arith.constant 4 : index
    %c15_188 = arith.constant 15 : index
    %130 = vector.load %arg2[%c0_185, %c0_186, %c4_187, %c15_188] : memref<1x1x16x305xf32, #tpu.memory_space<vmem>>, vector<1x1x4x289xf32>
    %131 = vector.shape_cast %130 : vector<1x1x4x289xf32> to vector<4x289xf32>
    %c0_189 = arith.constant 0 : index
    %c4_190 = arith.constant 4 : index
    %c0_191 = arith.constant 0 : index
    %c0_192 = arith.constant 0 : index
    %132 = vector.load %arg3[%c0_189, %c4_190, %c0_191, %c0_192] : memref<1x9x4x4xf32, #tpu.memory_space<vmem>>, vector<1x1x4x4xf32>
    %133 = vector.shape_cast %132 : vector<1x1x4x4xf32> to vector<4x4xf32>
    %cst_193 = arith.constant dense<0.000000e+00> : vector<4x289xf32>
    %134 = tpu.matmul %133, %131, %cst_193 {dimension_numbers = #tpu.dot_dimension_numbers<[1], [0], [0], [1], [0, 0, 1, 1], [], []>} : vector<4x4xf32>, vector<4x289xf32>, vector<4x289xf32> -> vector<4x289xf32>
    %135 = arith.addf %129, %134 : vector<4x289xf32>
    %c0_194 = arith.constant 0 : index
    %c0_195 = arith.constant 0 : index
    %c0_196 = arith.constant 0 : index
    %c16_197 = arith.constant 16 : index
    %136 = vector.load %arg2[%c0_194, %c0_195, %c0_196, %c16_197] : memref<1x1x16x305xf32, #tpu.memory_space<vmem>>, vector<1x1x4x289xf32>
    %137 = vector.shape_cast %136 : vector<1x1x4x289xf32> to vector<4x289xf32>
    %c0_198 = arith.constant 0 : index
    %c5_199 = arith.constant 5 : index
    %c0_200 = arith.constant 0 : index
    %c0_201 = arith.constant 0 : index
    %138 = vector.load %arg3[%c0_198, %c5_199, %c0_200, %c0_201] : memref<1x9x4x4xf32, #tpu.memory_space<vmem>>, vector<1x1x4x4xf32>
    %139 = vector.shape_cast %138 : vector<1x1x4x4xf32> to vector<4x4xf32>
    %cst_202 = arith.constant dense<0.000000e+00> : vector<4x289xf32>
    %140 = tpu.matmul %139, %137, %cst_202 {dimension_numbers = #tpu.dot_dimension_numbers<[1], [0], [0], [1], [0, 0, 1, 1], [], []>} : vector<4x4xf32>, vector<4x289xf32>, vector<4x289xf32> -> vector<4x289xf32>
    %141 = arith.addf %135, %140 : vector<4x289xf32>
    %c0_203 = arith.constant 0 : index
    %c0_204 = arith.constant 0 : index
    %c8_205 = arith.constant 8 : index
    %c15_206 = arith.constant 15 : index
    %142 = vector.load %arg2[%c0_203, %c0_204, %c8_205, %c15_206] : memref<1x1x16x305xf32, #tpu.memory_space<vmem>>, vector<1x1x4x289xf32>
    %143 = vector.shape_cast %142 : vector<1x1x4x289xf32> to vector<4x289xf32>
    %c0_207 = arith.constant 0 : index
    %c6_208 = arith.constant 6 : index
    %c0_209 = arith.constant 0 : index
    %c0_210 = arith.constant 0 : index
    %144 = vector.load %arg3[%c0_207, %c6_208, %c0_209, %c0_210] : memref<1x9x4x4xf32, #tpu.memory_space<vmem>>, vector<1x1x4x4xf32>
    %145 = vector.shape_cast %144 : vector<1x1x4x4xf32> to vector<4x4xf32>
    %cst_211 = arith.constant dense<0.000000e+00> : vector<4x289xf32>
    %146 = tpu.matmul %145, %143, %cst_211 {dimension_numbers = #tpu.dot_dimension_numbers<[1], [0], [0], [1], [0, 0, 1, 1], [], []>} : vector<4x4xf32>, vector<4x289xf32>, vector<4x289xf32> -> vector<4x289xf32>
    %147 = arith.addf %141, %146 : vector<4x289xf32>
    %c0_212 = arith.constant 0 : index
    %c0_213 = arith.constant 0 : index
    %c12_214 = arith.constant 12 : index
    %c15_215 = arith.constant 15 : index
    %148 = vector.load %arg2[%c0_212, %c0_213, %c12_214, %c15_215] : memref<1x1x16x305xf32, #tpu.memory_space<vmem>>, vector<1x1x4x289xf32>
    %149 = vector.shape_cast %148 : vector<1x1x4x289xf32> to vector<4x289xf32>
    %c0_216 = arith.constant 0 : index
    %c7_217 = arith.constant 7 : index
    %c0_218 = arith.constant 0 : index
    %c0_219 = arith.constant 0 : index
    %150 = vector.load %arg3[%c0_216, %c7_217, %c0_218, %c0_219] : memref<1x9x4x4xf32, #tpu.memory_space<vmem>>, vector<1x1x4x4xf32>
    %151 = vector.shape_cast %150 : vector<1x1x4x4xf32> to vector<4x4xf32>
    %cst_220 = arith.constant dense<0.000000e+00> : vector<4x289xf32>
    %152 = tpu.matmul %151, %149, %cst_220 {dimension_numbers = #tpu.dot_dimension_numbers<[1], [0], [0], [1], [0, 0, 1, 1], [], []>} : vector<4x4xf32>, vector<4x289xf32>, vector<4x289xf32> -> vector<4x289xf32>
    %153 = arith.addf %147, %152 : vector<4x289xf32>
    %c0_221 = arith.constant 0 : index
    %c0_222 = arith.constant 0 : index
    %c8_223 = arith.constant 8 : index
    %c16_224 = arith.constant 16 : index
    %154 = vector.load %arg2[%c0_221, %c0_222, %c8_223, %c16_224] : memref<1x1x16x305xf32, #tpu.memory_space<vmem>>, vector<1x1x4x289xf32>
    %155 = vector.shape_cast %154 : vector<1x1x4x289xf32> to vector<4x289xf32>
    %c0_225 = arith.constant 0 : index
    %c8_226 = arith.constant 8 : index
    %c0_227 = arith.constant 0 : index
    %c0_228 = arith.constant 0 : index
    %156 = vector.load %arg3[%c0_225, %c8_226, %c0_227, %c0_228] : memref<1x9x4x4xf32, #tpu.memory_space<vmem>>, vector<1x1x4x4xf32>
    %157 = vector.shape_cast %156 : vector<1x1x4x4xf32> to vector<4x4xf32>
    %cst_229 = arith.constant dense<0.000000e+00> : vector<4x289xf32>
    %158 = tpu.matmul %157, %155, %cst_229 {dimension_numbers = #tpu.dot_dimension_numbers<[1], [0], [0], [1], [0, 0, 1, 1], [], []>} : vector<4x4xf32>, vector<4x289xf32>, vector<4x289xf32> -> vector<4x289xf32>
    %159 = arith.addf %153, %158 : vector<4x289xf32>
    %160 = arith.maximumf %106, %159 : vector<4x289xf32>
    %c0_230 = arith.constant 0 : index
    %c0_231 = arith.constant 0 : index
    %c12_232 = arith.constant 12 : index
    %c0_233 = arith.constant 0 : index
    %161 = vector.load %arg2[%c0_230, %c0_231, %c12_232, %c0_233] : memref<1x1x16x305xf32, #tpu.memory_space<vmem>>, vector<1x1x4x289xf32>
    %162 = vector.shape_cast %161 : vector<1x1x4x289xf32> to vector<4x289xf32>
    %c0_234 = arith.constant 0 : index
    %c0_235 = arith.constant 0 : index
    %c0_236 = arith.constant 0 : index
    %c0_237 = arith.constant 0 : index
    %163 = vector.load %arg3[%c0_234, %c0_235, %c0_236, %c0_237] : memref<1x9x4x4xf32, #tpu.memory_space<vmem>>, vector<1x1x4x4xf32>
    %164 = vector.shape_cast %163 : vector<1x1x4x4xf32> to vector<4x4xf32>
    %cst_238 = arith.constant dense<0.000000e+00> : vector<4x289xf32>
    %165 = tpu.matmul %164, %162, %cst_238 {dimension_numbers = #tpu.dot_dimension_numbers<[1], [0], [0], [1], [0, 0, 1, 1], [], []>} : vector<4x4xf32>, vector<4x289xf32>, vector<4x289xf32> -> vector<4x289xf32>
    %c0_239 = arith.constant 0 : index
    %c0_240 = arith.constant 0 : index
    %c8_241 = arith.constant 8 : index
    %c1_242 = arith.constant 1 : index
    %166 = vector.load %arg2[%c0_239, %c0_240, %c8_241, %c1_242] : memref<1x1x16x305xf32, #tpu.memory_space<vmem>>, vector<1x1x4x289xf32>
    %167 = vector.shape_cast %166 : vector<1x1x4x289xf32> to vector<4x289xf32>
    %c0_243 = arith.constant 0 : index
    %c1_244 = arith.constant 1 : index
    %c0_245 = arith.constant 0 : index
    %c0_246 = arith.constant 0 : index
    %168 = vector.load %arg3[%c0_243, %c1_244, %c0_245, %c0_246] : memref<1x9x4x4xf32, #tpu.memory_space<vmem>>, vector<1x1x4x4xf32>
    %169 = vector.shape_cast %168 : vector<1x1x4x4xf32> to vector<4x4xf32>
    %cst_247 = arith.constant dense<0.000000e+00> : vector<4x289xf32>
    %170 = tpu.matmul %169, %167, %cst_247 {dimension_numbers = #tpu.dot_dimension_numbers<[1], [0], [0], [1], [0, 0, 1, 1], [], []>} : vector<4x4xf32>, vector<4x289xf32>, vector<4x289xf32> -> vector<4x289xf32>
    %171 = arith.addf %165, %170 : vector<4x289xf32>
    %c0_248 = arith.constant 0 : index
    %c0_249 = arith.constant 0 : index
    %c12_250 = arith.constant 12 : index
    %c1_251 = arith.constant 1 : index
    %172 = vector.load %arg2[%c0_248, %c0_249, %c12_250, %c1_251] : memref<1x1x16x305xf32, #tpu.memory_space<vmem>>, vector<1x1x4x289xf32>
    %173 = vector.shape_cast %172 : vector<1x1x4x289xf32> to vector<4x289xf32>
    %c0_252 = arith.constant 0 : index
    %c2_253 = arith.constant 2 : index
    %c0_254 = arith.constant 0 : index
    %c0_255 = arith.constant 0 : index
    %174 = vector.load %arg3[%c0_252, %c2_253, %c0_254, %c0_255] : memref<1x9x4x4xf32, #tpu.memory_space<vmem>>, vector<1x1x4x4xf32>
    %175 = vector.shape_cast %174 : vector<1x1x4x4xf32> to vector<4x4xf32>
    %cst_256 = arith.constant dense<0.000000e+00> : vector<4x289xf32>
    %176 = tpu.matmul %175, %173, %cst_256 {dimension_numbers = #tpu.dot_dimension_numbers<[1], [0], [0], [1], [0, 0, 1, 1], [], []>} : vector<4x4xf32>, vector<4x289xf32>, vector<4x289xf32> -> vector<4x289xf32>
    %177 = arith.addf %171, %176 : vector<4x289xf32>
    %c0_257 = arith.constant 0 : index
    %c0_258 = arith.constant 0 : index
    %c4_259 = arith.constant 4 : index
    %c15_260 = arith.constant 15 : index
    %178 = vector.load %arg2[%c0_257, %c0_258, %c4_259, %c15_260] : memref<1x1x16x305xf32, #tpu.memory_space<vmem>>, vector<1x1x4x289xf32>
    %179 = vector.shape_cast %178 : vector<1x1x4x289xf32> to vector<4x289xf32>
    %c0_261 = arith.constant 0 : index
    %c3_262 = arith.constant 3 : index
    %c0_263 = arith.constant 0 : index
    %c0_264 = arith.constant 0 : index
    %180 = vector.load %arg3[%c0_261, %c3_262, %c0_263, %c0_264] : memref<1x9x4x4xf32, #tpu.memory_space<vmem>>, vector<1x1x4x4xf32>
    %181 = vector.shape_cast %180 : vector<1x1x4x4xf32> to vector<4x4xf32>
    %cst_265 = arith.constant dense<0.000000e+00> : vector<4x289xf32>
    %182 = tpu.matmul %181, %179, %cst_265 {dimension_numbers = #tpu.dot_dimension_numbers<[1], [0], [0], [1], [0, 0, 1, 1], [], []>} : vector<4x4xf32>, vector<4x289xf32>, vector<4x289xf32> -> vector<4x289xf32>
    %183 = arith.addf %177, %182 : vector<4x289xf32>
    %c0_266 = arith.constant 0 : index
    %c0_267 = arith.constant 0 : index
    %c0_268 = arith.constant 0 : index
    %c16_269 = arith.constant 16 : index
    %184 = vector.load %arg2[%c0_266, %c0_267, %c0_268, %c16_269] : memref<1x1x16x305xf32, #tpu.memory_space<vmem>>, vector<1x1x4x289xf32>
    %185 = vector.shape_cast %184 : vector<1x1x4x289xf32> to vector<4x289xf32>
    %c0_270 = arith.constant 0 : index
    %c4_271 = arith.constant 4 : index
    %c0_272 = arith.constant 0 : index
    %c0_273 = arith.constant 0 : index
    %186 = vector.load %arg3[%c0_270, %c4_271, %c0_272, %c0_273] : memref<1x9x4x4xf32, #tpu.memory_space<vmem>>, vector<1x1x4x4xf32>
    %187 = vector.shape_cast %186 : vector<1x1x4x4xf32> to vector<4x4xf32>
    %cst_274 = arith.constant dense<0.000000e+00> : vector<4x289xf32>
    %188 = tpu.matmul %187, %185, %cst_274 {dimension_numbers = #tpu.dot_dimension_numbers<[1], [0], [0], [1], [0, 0, 1, 1], [], []>} : vector<4x4xf32>, vector<4x289xf32>, vector<4x289xf32> -> vector<4x289xf32>
    %189 = arith.addf %183, %188 : vector<4x289xf32>
    %c0_275 = arith.constant 0 : index
    %c0_276 = arith.constant 0 : index
    %c4_277 = arith.constant 4 : index
    %c16_278 = arith.constant 16 : index
    %190 = vector.load %arg2[%c0_275, %c0_276, %c4_277, %c16_278] : memref<1x1x16x305xf32, #tpu.memory_space<vmem>>, vector<1x1x4x289xf32>
    %191 = vector.shape_cast %190 : vector<1x1x4x289xf32> to vector<4x289xf32>
    %c0_279 = arith.constant 0 : index
    %c5_280 = arith.constant 5 : index
    %c0_281 = arith.constant 0 : index
    %c0_282 = arith.constant 0 : index
    %192 = vector.load %arg3[%c0_279, %c5_280, %c0_281, %c0_282] : memref<1x9x4x4xf32, #tpu.memory_space<vmem>>, vector<1x1x4x4xf32>
    %193 = vector.shape_cast %192 : vector<1x1x4x4xf32> to vector<4x4xf32>
    %cst_283 = arith.constant dense<0.000000e+00> : vector<4x289xf32>
    %194 = tpu.matmul %193, %191, %cst_283 {dimension_numbers = #tpu.dot_dimension_numbers<[1], [0], [0], [1], [0, 0, 1, 1], [], []>} : vector<4x4xf32>, vector<4x289xf32>, vector<4x289xf32> -> vector<4x289xf32>
    %195 = arith.addf %189, %194 : vector<4x289xf32>
    %c0_284 = arith.constant 0 : index
    %c0_285 = arith.constant 0 : index
    %c12_286 = arith.constant 12 : index
    %c15_287 = arith.constant 15 : index
    %196 = vector.load %arg2[%c0_284, %c0_285, %c12_286, %c15_287] : memref<1x1x16x305xf32, #tpu.memory_space<vmem>>, vector<1x1x4x289xf32>
    %197 = vector.shape_cast %196 : vector<1x1x4x289xf32> to vector<4x289xf32>
    %c0_288 = arith.constant 0 : index
    %c6_289 = arith.constant 6 : index
    %c0_290 = arith.constant 0 : index
    %c0_291 = arith.constant 0 : index
    %198 = vector.load %arg3[%c0_288, %c6_289, %c0_290, %c0_291] : memref<1x9x4x4xf32, #tpu.memory_space<vmem>>, vector<1x1x4x4xf32>
    %199 = vector.shape_cast %198 : vector<1x1x4x4xf32> to vector<4x4xf32>
    %cst_292 = arith.constant dense<0.000000e+00> : vector<4x289xf32>
    %200 = tpu.matmul %199, %197, %cst_292 {dimension_numbers = #tpu.dot_dimension_numbers<[1], [0], [0], [1], [0, 0, 1, 1], [], []>} : vector<4x4xf32>, vector<4x289xf32>, vector<4x289xf32> -> vector<4x289xf32>
    %201 = arith.addf %195, %200 : vector<4x289xf32>
    %c0_293 = arith.constant 0 : index
    %c0_294 = arith.constant 0 : index
    %c8_295 = arith.constant 8 : index
    %c16_296 = arith.constant 16 : index
    %202 = vector.load %arg2[%c0_293, %c0_294, %c8_295, %c16_296] : memref<1x1x16x305xf32, #tpu.memory_space<vmem>>, vector<1x1x4x289xf32>
    %203 = vector.shape_cast %202 : vector<1x1x4x289xf32> to vector<4x289xf32>
    %c0_297 = arith.constant 0 : index
    %c7_298 = arith.constant 7 : index
    %c0_299 = arith.constant 0 : index
    %c0_300 = arith.constant 0 : index
    %204 = vector.load %arg3[%c0_297, %c7_298, %c0_299, %c0_300] : memref<1x9x4x4xf32, #tpu.memory_space<vmem>>, vector<1x1x4x4xf32>
    %205 = vector.shape_cast %204 : vector<1x1x4x4xf32> to vector<4x4xf32>
    %cst_301 = arith.constant dense<0.000000e+00> : vector<4x289xf32>
    %206 = tpu.matmul %205, %203, %cst_301 {dimension_numbers = #tpu.dot_dimension_numbers<[1], [0], [0], [1], [0, 0, 1, 1], [], []>} : vector<4x4xf32>, vector<4x289xf32>, vector<4x289xf32> -> vector<4x289xf32>
    %207 = arith.addf %201, %206 : vector<4x289xf32>
    %c0_302 = arith.constant 0 : index
    %c0_303 = arith.constant 0 : index
    %c12_304 = arith.constant 12 : index
    %c16_305 = arith.constant 16 : index
    %208 = vector.load %arg2[%c0_302, %c0_303, %c12_304, %c16_305] : memref<1x1x16x305xf32, #tpu.memory_space<vmem>>, vector<1x1x4x289xf32>
    %209 = vector.shape_cast %208 : vector<1x1x4x289xf32> to vector<4x289xf32>
    %c0_306 = arith.constant 0 : index
    %c8_307 = arith.constant 8 : index
    %c0_308 = arith.constant 0 : index
    %c0_309 = arith.constant 0 : index
    %210 = vector.load %arg3[%c0_306, %c8_307, %c0_308, %c0_309] : memref<1x9x4x4xf32, #tpu.memory_space<vmem>>, vector<1x1x4x4xf32>
    %211 = vector.shape_cast %210 : vector<1x1x4x4xf32> to vector<4x4xf32>
    %cst_310 = arith.constant dense<0.000000e+00> : vector<4x289xf32>
    %212 = tpu.matmul %211, %209, %cst_310 {dimension_numbers = #tpu.dot_dimension_numbers<[1], [0], [0], [1], [0, 0, 1, 1], [], []>} : vector<4x4xf32>, vector<4x289xf32>, vector<4x289xf32> -> vector<4x289xf32>
    %213 = arith.addf %207, %212 : vector<4x289xf32>
    %214 = arith.maximumf %160, %213 : vector<4x289xf32>
    %c0_311 = arith.constant 0 : index
    %c0_312 = arith.constant 0 : index
    %c0_313 = arith.constant 0 : index
    %215 = vector.load %arg4[%c0_311, %c0_312, %c0_313] : memref<1x4x1xf32, #tpu.memory_space<vmem>>, vector<1x4x1xf32>
    %216 = vector.shape_cast %215 : vector<1x4x1xf32> to vector<4x1xf32>
    %217 = vector.broadcast %216 : vector<4x1xf32> to vector<4x289xf32>
    %218 = arith.addf %214, %217 : vector<4x289xf32>
    %cst_314 = arith.constant 0.000000e+00 : f32
    %219 = vector.broadcast %cst_314 : f32 to vector<4x289xf32>
    %220 = arith.maximumf %218, %219 : vector<4x289xf32>
    %c0_315 = arith.constant 0 : index
    %c0_316 = arith.constant 0 : index
    %c0_317 = arith.constant 0 : index
    %c0_318 = arith.constant 0 : index
    %221 = vector.load %arg5[%c0_315, %c0_316, %c0_317, %c0_318] : memref<1x9x4x4xf32, #tpu.memory_space<vmem>>, vector<1x1x4x4xf32>
    %222 = vector.shape_cast %221 : vector<1x1x4x4xf32> to vector<4x4xf32>
    %223 = vector.extract_strided_slice %220 {offsets = [0, 0], sizes = [4, 257], strides = [1, 1]} : vector<4x289xf32> to vector<4x257xf32>
    %cst_319 = arith.constant dense<0.000000e+00> : vector<4x257xf32>
    %224 = tpu.matmul %222, %223, %cst_319 {dimension_numbers = #tpu.dot_dimension_numbers<[1], [0], [0], [1], [0, 0, 1, 1], [], []>} : vector<4x4xf32>, vector<4x257xf32>, vector<4x257xf32> -> vector<4x257xf32>
    %c0_320 = arith.constant 0 : index
    %c1_321 = arith.constant 1 : index
    %c0_322 = arith.constant 0 : index
    %c0_323 = arith.constant 0 : index
    %225 = vector.load %arg5[%c0_320, %c1_321, %c0_322, %c0_323] : memref<1x9x4x4xf32, #tpu.memory_space<vmem>>, vector<1x1x4x4xf32>
    %226 = vector.shape_cast %225 : vector<1x1x4x4xf32> to vector<4x4xf32>
    %227 = vector.extract_strided_slice %220 {offsets = [0, 1], sizes = [4, 257], strides = [1, 1]} : vector<4x289xf32> to vector<4x257xf32>
    %cst_324 = arith.constant dense<0.000000e+00> : vector<4x257xf32>
    %228 = tpu.matmul %226, %227, %cst_324 {dimension_numbers = #tpu.dot_dimension_numbers<[1], [0], [0], [1], [0, 0, 1, 1], [], []>} : vector<4x4xf32>, vector<4x257xf32>, vector<4x257xf32> -> vector<4x257xf32>
    %229 = arith.addf %224, %228 : vector<4x257xf32>
    %c0_325 = arith.constant 0 : index
    %c2_326 = arith.constant 2 : index
    %c0_327 = arith.constant 0 : index
    %c0_328 = arith.constant 0 : index
    %230 = vector.load %arg5[%c0_325, %c2_326, %c0_327, %c0_328] : memref<1x9x4x4xf32, #tpu.memory_space<vmem>>, vector<1x1x4x4xf32>
    %231 = vector.shape_cast %230 : vector<1x1x4x4xf32> to vector<4x4xf32>
    %232 = vector.extract_strided_slice %220 {offsets = [0, 2], sizes = [4, 257], strides = [1, 1]} : vector<4x289xf32> to vector<4x257xf32>
    %cst_329 = arith.constant dense<0.000000e+00> : vector<4x257xf32>
    %233 = tpu.matmul %231, %232, %cst_329 {dimension_numbers = #tpu.dot_dimension_numbers<[1], [0], [0], [1], [0, 0, 1, 1], [], []>} : vector<4x4xf32>, vector<4x257xf32>, vector<4x257xf32> -> vector<4x257xf32>
    %234 = arith.addf %229, %233 : vector<4x257xf32>
    %c0_330 = arith.constant 0 : index
    %c3_331 = arith.constant 3 : index
    %c0_332 = arith.constant 0 : index
    %c0_333 = arith.constant 0 : index
    %235 = vector.load %arg5[%c0_330, %c3_331, %c0_332, %c0_333] : memref<1x9x4x4xf32, #tpu.memory_space<vmem>>, vector<1x1x4x4xf32>
    %236 = vector.shape_cast %235 : vector<1x1x4x4xf32> to vector<4x4xf32>
    %237 = vector.extract_strided_slice %220 {offsets = [0, 15], sizes = [4, 257], strides = [1, 1]} : vector<4x289xf32> to vector<4x257xf32>
    %cst_334 = arith.constant dense<0.000000e+00> : vector<4x257xf32>
    %238 = tpu.matmul %236, %237, %cst_334 {dimension_numbers = #tpu.dot_dimension_numbers<[1], [0], [0], [1], [0, 0, 1, 1], [], []>} : vector<4x4xf32>, vector<4x257xf32>, vector<4x257xf32> -> vector<4x257xf32>
    %239 = arith.addf %234, %238 : vector<4x257xf32>
    %c0_335 = arith.constant 0 : index
    %c4_336 = arith.constant 4 : index
    %c0_337 = arith.constant 0 : index
    %c0_338 = arith.constant 0 : index
    %240 = vector.load %arg5[%c0_335, %c4_336, %c0_337, %c0_338] : memref<1x9x4x4xf32, #tpu.memory_space<vmem>>, vector<1x1x4x4xf32>
    %241 = vector.shape_cast %240 : vector<1x1x4x4xf32> to vector<4x4xf32>
    %242 = vector.extract_strided_slice %220 {offsets = [0, 16], sizes = [4, 257], strides = [1, 1]} : vector<4x289xf32> to vector<4x257xf32>
    %cst_339 = arith.constant dense<0.000000e+00> : vector<4x257xf32>
    %243 = tpu.matmul %241, %242, %cst_339 {dimension_numbers = #tpu.dot_dimension_numbers<[1], [0], [0], [1], [0, 0, 1, 1], [], []>} : vector<4x4xf32>, vector<4x257xf32>, vector<4x257xf32> -> vector<4x257xf32>
    %244 = arith.addf %239, %243 : vector<4x257xf32>
    %c0_340 = arith.constant 0 : index
    %c5_341 = arith.constant 5 : index
    %c0_342 = arith.constant 0 : index
    %c0_343 = arith.constant 0 : index
    %245 = vector.load %arg5[%c0_340, %c5_341, %c0_342, %c0_343] : memref<1x9x4x4xf32, #tpu.memory_space<vmem>>, vector<1x1x4x4xf32>
    %246 = vector.shape_cast %245 : vector<1x1x4x4xf32> to vector<4x4xf32>
    %247 = vector.extract_strided_slice %220 {offsets = [0, 17], sizes = [4, 257], strides = [1, 1]} : vector<4x289xf32> to vector<4x257xf32>
    %cst_344 = arith.constant dense<0.000000e+00> : vector<4x257xf32>
    %248 = tpu.matmul %246, %247, %cst_344 {dimension_numbers = #tpu.dot_dimension_numbers<[1], [0], [0], [1], [0, 0, 1, 1], [], []>} : vector<4x4xf32>, vector<4x257xf32>, vector<4x257xf32> -> vector<4x257xf32>
    %249 = arith.addf %244, %248 : vector<4x257xf32>
    %c0_345 = arith.constant 0 : index
    %c6_346 = arith.constant 6 : index
    %c0_347 = arith.constant 0 : index
    %c0_348 = arith.constant 0 : index
    %250 = vector.load %arg5[%c0_345, %c6_346, %c0_347, %c0_348] : memref<1x9x4x4xf32, #tpu.memory_space<vmem>>, vector<1x1x4x4xf32>
    %251 = vector.shape_cast %250 : vector<1x1x4x4xf32> to vector<4x4xf32>
    %252 = vector.extract_strided_slice %220 {offsets = [0, 30], sizes = [4, 257], strides = [1, 1]} : vector<4x289xf32> to vector<4x257xf32>
    %cst_349 = arith.constant dense<0.000000e+00> : vector<4x257xf32>
    %253 = tpu.matmul %251, %252, %cst_349 {dimension_numbers = #tpu.dot_dimension_numbers<[1], [0], [0], [1], [0, 0, 1, 1], [], []>} : vector<4x4xf32>, vector<4x257xf32>, vector<4x257xf32> -> vector<4x257xf32>
    %254 = arith.addf %249, %253 : vector<4x257xf32>
    %c0_350 = arith.constant 0 : index
    %c7_351 = arith.constant 7 : index
    %c0_352 = arith.constant 0 : index
    %c0_353 = arith.constant 0 : index
    %255 = vector.load %arg5[%c0_350, %c7_351, %c0_352, %c0_353] : memref<1x9x4x4xf32, #tpu.memory_space<vmem>>, vector<1x1x4x4xf32>
    %256 = vector.shape_cast %255 : vector<1x1x4x4xf32> to vector<4x4xf32>
    %257 = vector.extract_strided_slice %220 {offsets = [0, 31], sizes = [4, 257], strides = [1, 1]} : vector<4x289xf32> to vector<4x257xf32>
    %cst_354 = arith.constant dense<0.000000e+00> : vector<4x257xf32>
    %258 = tpu.matmul %256, %257, %cst_354 {dimension_numbers = #tpu.dot_dimension_numbers<[1], [0], [0], [1], [0, 0, 1, 1], [], []>} : vector<4x4xf32>, vector<4x257xf32>, vector<4x257xf32> -> vector<4x257xf32>
    %259 = arith.addf %254, %258 : vector<4x257xf32>
    %c0_355 = arith.constant 0 : index
    %c8_356 = arith.constant 8 : index
    %c0_357 = arith.constant 0 : index
    %c0_358 = arith.constant 0 : index
    %260 = vector.load %arg5[%c0_355, %c8_356, %c0_357, %c0_358] : memref<1x9x4x4xf32, #tpu.memory_space<vmem>>, vector<1x1x4x4xf32>
    %261 = vector.shape_cast %260 : vector<1x1x4x4xf32> to vector<4x4xf32>
    %262 = vector.extract_strided_slice %220 {offsets = [0, 32], sizes = [4, 257], strides = [1, 1]} : vector<4x289xf32> to vector<4x257xf32>
    %cst_359 = arith.constant dense<0.000000e+00> : vector<4x257xf32>
    %263 = tpu.matmul %261, %262, %cst_359 {dimension_numbers = #tpu.dot_dimension_numbers<[1], [0], [0], [1], [0, 0, 1, 1], [], []>} : vector<4x4xf32>, vector<4x257xf32>, vector<4x257xf32> -> vector<4x257xf32>
    %264 = arith.addf %259, %263 : vector<4x257xf32>
    %c0_360 = arith.constant 0 : index
    %c0_361 = arith.constant 0 : index
    %c0_362 = arith.constant 0 : index
    %265 = vector.load %arg6[%c0_360, %c0_361, %c0_362] : memref<1x4x1xf32, #tpu.memory_space<vmem>>, vector<1x4x1xf32>
    %266 = vector.shape_cast %265 : vector<1x4x1xf32> to vector<4x1xf32>
    %267 = vector.broadcast %266 : vector<4x1xf32> to vector<4x257xf32>
    %268 = arith.addf %264, %267 : vector<4x257xf32>
    %cst_363 = arith.constant 0.000000e+00 : f32
    %269 = vector.broadcast %cst_363 : f32 to vector<4x257xf32>
    %270 = arith.maximumf %268, %269 : vector<4x257xf32>
    %c0_364 = arith.constant 0 : index
    %c0_365 = arith.constant 0 : index
    %c0_366 = arith.constant 0 : index
    %c0_367 = arith.constant 0 : index
    %271 = vector.load %arg7[%c0_364, %c0_365, %c0_366, %c0_367] : memref<1x9x2x4xf32, #tpu.memory_space<vmem>>, vector<1x1x2x4xf32>
    %272 = vector.shape_cast %271 : vector<1x1x2x4xf32> to vector<2x4xf32>
    %273 = vector.extract_strided_slice %270 {offsets = [0, 0], sizes = [4, 225], strides = [1, 1]} : vector<4x257xf32> to vector<4x225xf32>
    %cst_368 = arith.constant dense<0.000000e+00> : vector<2x225xf32>
    %274 = tpu.matmul %272, %273, %cst_368 {dimension_numbers = #tpu.dot_dimension_numbers<[1], [0], [0], [1], [0, 0, 1, 1], [], []>} : vector<2x4xf32>, vector<4x225xf32>, vector<2x225xf32> -> vector<2x225xf32>
    %c0_369 = arith.constant 0 : index
    %c1_370 = arith.constant 1 : index
    %c0_371 = arith.constant 0 : index
    %c0_372 = arith.constant 0 : index
    %275 = vector.load %arg7[%c0_369, %c1_370, %c0_371, %c0_372] : memref<1x9x2x4xf32, #tpu.memory_space<vmem>>, vector<1x1x2x4xf32>
    %276 = vector.shape_cast %275 : vector<1x1x2x4xf32> to vector<2x4xf32>
    %277 = vector.extract_strided_slice %270 {offsets = [0, 1], sizes = [4, 225], strides = [1, 1]} : vector<4x257xf32> to vector<4x225xf32>
    %cst_373 = arith.constant dense<0.000000e+00> : vector<2x225xf32>
    %278 = tpu.matmul %276, %277, %cst_373 {dimension_numbers = #tpu.dot_dimension_numbers<[1], [0], [0], [1], [0, 0, 1, 1], [], []>} : vector<2x4xf32>, vector<4x225xf32>, vector<2x225xf32> -> vector<2x225xf32>
    %279 = arith.addf %274, %278 : vector<2x225xf32>
    %c0_374 = arith.constant 0 : index
    %c2_375 = arith.constant 2 : index
    %c0_376 = arith.constant 0 : index
    %c0_377 = arith.constant 0 : index
    %280 = vector.load %arg7[%c0_374, %c2_375, %c0_376, %c0_377] : memref<1x9x2x4xf32, #tpu.memory_space<vmem>>, vector<1x1x2x4xf32>
    %281 = vector.shape_cast %280 : vector<1x1x2x4xf32> to vector<2x4xf32>
    %282 = vector.extract_strided_slice %270 {offsets = [0, 2], sizes = [4, 225], strides = [1, 1]} : vector<4x257xf32> to vector<4x225xf32>
    %cst_378 = arith.constant dense<0.000000e+00> : vector<2x225xf32>
    %283 = tpu.matmul %281, %282, %cst_378 {dimension_numbers = #tpu.dot_dimension_numbers<[1], [0], [0], [1], [0, 0, 1, 1], [], []>} : vector<2x4xf32>, vector<4x225xf32>, vector<2x225xf32> -> vector<2x225xf32>
    %284 = arith.addf %279, %283 : vector<2x225xf32>
    %c0_379 = arith.constant 0 : index
    %c3_380 = arith.constant 3 : index
    %c0_381 = arith.constant 0 : index
    %c0_382 = arith.constant 0 : index
    %285 = vector.load %arg7[%c0_379, %c3_380, %c0_381, %c0_382] : memref<1x9x2x4xf32, #tpu.memory_space<vmem>>, vector<1x1x2x4xf32>
    %286 = vector.shape_cast %285 : vector<1x1x2x4xf32> to vector<2x4xf32>
    %287 = vector.extract_strided_slice %270 {offsets = [0, 15], sizes = [4, 225], strides = [1, 1]} : vector<4x257xf32> to vector<4x225xf32>
    %cst_383 = arith.constant dense<0.000000e+00> : vector<2x225xf32>
    %288 = tpu.matmul %286, %287, %cst_383 {dimension_numbers = #tpu.dot_dimension_numbers<[1], [0], [0], [1], [0, 0, 1, 1], [], []>} : vector<2x4xf32>, vector<4x225xf32>, vector<2x225xf32> -> vector<2x225xf32>
    %289 = arith.addf %284, %288 : vector<2x225xf32>
    %c0_384 = arith.constant 0 : index
    %c4_385 = arith.constant 4 : index
    %c0_386 = arith.constant 0 : index
    %c0_387 = arith.constant 0 : index
    %290 = vector.load %arg7[%c0_384, %c4_385, %c0_386, %c0_387] : memref<1x9x2x4xf32, #tpu.memory_space<vmem>>, vector<1x1x2x4xf32>
    %291 = vector.shape_cast %290 : vector<1x1x2x4xf32> to vector<2x4xf32>
    %292 = vector.extract_strided_slice %270 {offsets = [0, 16], sizes = [4, 225], strides = [1, 1]} : vector<4x257xf32> to vector<4x225xf32>
    %cst_388 = arith.constant dense<0.000000e+00> : vector<2x225xf32>
    %293 = tpu.matmul %291, %292, %cst_388 {dimension_numbers = #tpu.dot_dimension_numbers<[1], [0], [0], [1], [0, 0, 1, 1], [], []>} : vector<2x4xf32>, vector<4x225xf32>, vector<2x225xf32> -> vector<2x225xf32>
    %294 = arith.addf %289, %293 : vector<2x225xf32>
    %c0_389 = arith.constant 0 : index
    %c5_390 = arith.constant 5 : index
    %c0_391 = arith.constant 0 : index
    %c0_392 = arith.constant 0 : index
    %295 = vector.load %arg7[%c0_389, %c5_390, %c0_391, %c0_392] : memref<1x9x2x4xf32, #tpu.memory_space<vmem>>, vector<1x1x2x4xf32>
    %296 = vector.shape_cast %295 : vector<1x1x2x4xf32> to vector<2x4xf32>
    %297 = vector.extract_strided_slice %270 {offsets = [0, 17], sizes = [4, 225], strides = [1, 1]} : vector<4x257xf32> to vector<4x225xf32>
    %cst_393 = arith.constant dense<0.000000e+00> : vector<2x225xf32>
    %298 = tpu.matmul %296, %297, %cst_393 {dimension_numbers = #tpu.dot_dimension_numbers<[1], [0], [0], [1], [0, 0, 1, 1], [], []>} : vector<2x4xf32>, vector<4x225xf32>, vector<2x225xf32> -> vector<2x225xf32>
    %299 = arith.addf %294, %298 : vector<2x225xf32>
    %c0_394 = arith.constant 0 : index
    %c6_395 = arith.constant 6 : index
    %c0_396 = arith.constant 0 : index
    %c0_397 = arith.constant 0 : index
    %300 = vector.load %arg7[%c0_394, %c6_395, %c0_396, %c0_397] : memref<1x9x2x4xf32, #tpu.memory_space<vmem>>, vector<1x1x2x4xf32>
    %301 = vector.shape_cast %300 : vector<1x1x2x4xf32> to vector<2x4xf32>
    %302 = vector.extract_strided_slice %270 {offsets = [0, 30], sizes = [4, 225], strides = [1, 1]} : vector<4x257xf32> to vector<4x225xf32>
    %cst_398 = arith.constant dense<0.000000e+00> : vector<2x225xf32>
    %303 = tpu.matmul %301, %302, %cst_398 {dimension_numbers = #tpu.dot_dimension_numbers<[1], [0], [0], [1], [0, 0, 1, 1], [], []>} : vector<2x4xf32>, vector<4x225xf32>, vector<2x225xf32> -> vector<2x225xf32>
    %304 = arith.addf %299, %303 : vector<2x225xf32>
    %c0_399 = arith.constant 0 : index
    %c7_400 = arith.constant 7 : index
    %c0_401 = arith.constant 0 : index
    %c0_402 = arith.constant 0 : index
    %305 = vector.load %arg7[%c0_399, %c7_400, %c0_401, %c0_402] : memref<1x9x2x4xf32, #tpu.memory_space<vmem>>, vector<1x1x2x4xf32>
    %306 = vector.shape_cast %305 : vector<1x1x2x4xf32> to vector<2x4xf32>
    %307 = vector.extract_strided_slice %270 {offsets = [0, 31], sizes = [4, 225], strides = [1, 1]} : vector<4x257xf32> to vector<4x225xf32>
    %cst_403 = arith.constant dense<0.000000e+00> : vector<2x225xf32>
    %308 = tpu.matmul %306, %307, %cst_403 {dimension_numbers = #tpu.dot_dimension_numbers<[1], [0], [0], [1], [0, 0, 1, 1], [], []>} : vector<2x4xf32>, vector<4x225xf32>, vector<2x225xf32> -> vector<2x225xf32>
    %309 = arith.addf %304, %308 : vector<2x225xf32>
    %c0_404 = arith.constant 0 : index
    %c8_405 = arith.constant 8 : index
    %c0_406 = arith.constant 0 : index
    %c0_407 = arith.constant 0 : index
    %310 = vector.load %arg7[%c0_404, %c8_405, %c0_406, %c0_407] : memref<1x9x2x4xf32, #tpu.memory_space<vmem>>, vector<1x1x2x4xf32>
    %311 = vector.shape_cast %310 : vector<1x1x2x4xf32> to vector<2x4xf32>
    %312 = vector.extract_strided_slice %270 {offsets = [0, 32], sizes = [4, 225], strides = [1, 1]} : vector<4x257xf32> to vector<4x225xf32>
    %cst_408 = arith.constant dense<0.000000e+00> : vector<2x225xf32>
    %313 = tpu.matmul %311, %312, %cst_408 {dimension_numbers = #tpu.dot_dimension_numbers<[1], [0], [0], [1], [0, 0, 1, 1], [], []>} : vector<2x4xf32>, vector<4x225xf32>, vector<2x225xf32> -> vector<2x225xf32>
    %314 = arith.addf %309, %313 : vector<2x225xf32>
    %c0_409 = arith.constant 0 : index
    %c0_410 = arith.constant 0 : index
    %c0_411 = arith.constant 0 : index
    %315 = vector.load %arg8[%c0_409, %c0_410, %c0_411] : memref<1x2x1xf32, #tpu.memory_space<vmem>>, vector<1x2x1xf32>
    %316 = vector.shape_cast %315 : vector<1x2x1xf32> to vector<2x1xf32>
    %317 = vector.broadcast %316 : vector<2x1xf32> to vector<2x225xf32>
    %318 = arith.addf %314, %317 : vector<2x225xf32>
    %cst_412 = arith.constant 0.000000e+00 : f32
    %319 = vector.broadcast %cst_412 : f32 to vector<2x225xf32>
    %320 = arith.maximumf %318, %319 : vector<2x225xf32>
    %c0_413 = arith.constant 0 : index
    %c0_414 = arith.constant 0 : index
    %c0_415 = arith.constant 0 : index
    %c0_416 = arith.constant 0 : index
    %321 = vector.load %arg9[%c0_413, %c0_414, %c0_415, %c0_416] : memref<1x1x2x225xf32, #tpu.memory_space<vmem>>, vector<1x1x2x225xf32>
    %322 = vector.shape_cast %321 : vector<1x1x2x225xf32> to vector<2x225xf32>
    %323 = vector.shape_cast %320 : vector<2x225xf32> to vector<1x1x2x225xf32>
    tpu.vector_store %arg9[%c0_413, %c0_414, %c0_415, %c0_416], %323 {strides = array<i32>} : memref<1x1x2x225xf32, #tpu.memory_space<vmem>>, vector<1x1x2x225xf32>,
    return
  }
  func.func @transform_0(%arg0: i32, %arg1: i32) -> (i32, i32, i32, i32) {
    %c0_i32 = arith.constant 0 : i32
    %c0_i32_0 = arith.constant 0 : i32
    %c0_i32_1 = arith.constant 0 : i32
    return %arg0, %arg1, %c0_i32, %c0_i32_0 : i32, i32, i32, i32
  }
  func.func @transform_1(%arg0: i32, %arg1: i32) -> (i32, i32, i32, i32) {
    %c0_i32 = arith.constant 0 : i32
    %c0_i32_0 = arith.constant 0 : i32
    %c0_i32_1 = arith.constant 0 : i32
    %c0_i32_2 = arith.constant 0 : i32
    return %arg0, %c0_i32, %c0_i32_0, %c0_i32_1 : i32, i32, i32, i32
  }
  func.func @transform_2(%arg0: i32, %arg1: i32) -> (i32, i32, i32) {
    %c0_i32 = arith.constant 0 : i32
    %c0_i32_0 = arith.constant 0 : i32
    %c0_i32_1 = arith.constant 0 : i32
    return %arg0, %c0_i32, %c0_i32_0 : i32, i32, i32
  }
  func.func @transform_3(%arg0: i32, %arg1: i32) -> (i32, i32, i32, i32) {
    %c0_i32 = arith.constant 0 : i32
    %c0_i32_0 = arith.constant 0 : i32
    %c0_i32_1 = arith.constant 0 : i32
    %c0_i32_2 = arith.constant 0 : i32
    return %arg0, %c0_i32, %c0_i32_0, %c0_i32_1 : i32, i32, i32, i32
  }
  func.func @transform_4(%arg0: i32, %arg1: i32) -> (i32, i32, i32) {
    %c0_i32 = arith.constant 0 : i32
    %c0_i32_0 = arith.constant 0 : i32
    %c0_i32_1 = arith.constant 0 : i32
    return %arg0, %c0_i32, %c0_i32_0 : i32, i32, i32
  }
  func.func @transform_5(%arg0: i32, %arg1: i32) -> (i32, i32, i32, i32) {
    %c0_i32 = arith.constant 0 : i32
    %c0_i32_0 = arith.constant 0 : i32
    %c0_i32_1 = arith.constant 0 : i32
    %c0_i32_2 = arith.constant 0 : i32
    return %arg0, %c0_i32, %c0_i32_0, %c0_i32_1 : i32, i32, i32, i32
  }
  func.func @transform_6(%arg0: i32, %arg1: i32) -> (i32, i32, i32) {
    %c0_i32 = arith.constant 0 : i32
    %c0_i32_0 = arith.constant 0 : i32
    %c0_i32_1 = arith.constant 0 : i32
    return %arg0, %c0_i32, %c0_i32_0 : i32, i32, i32
  }
  func.func @transform_7(%arg0: i32, %arg1: i32) -> (i32, i32, i32, i32) {
    %c0_i32 = arith.constant 0 : i32
    %c0_i32_0 = arith.constant 0 : i32
    %c0_i32_1 = arith.constant 0 : i32
    return %arg0, %arg1, %c0_i32, %c0_i32_0 : i32, i32, i32, i32
  }
}

</mosaic_0001>

<llo_original>
// kernel: squeeze.2
$region0: #{squeeze.2}
  %s0 = inlined_call_operand.vmem [shape: f32[1,2,2,10,10], index: 0, kind: input, shape index: {}]
  %s1 = inlined_call_operand.vmem [shape: f32[2,200], index: 1, kind: output, shape index: {}]
  $region1: #{squeeze.2} parent=0
    #allocation0 [shape = 'u8[8192]{0}', space=vmem, size = 0x2000, scoped, tag = 'scoped mem for output reshape']
    %v2 = vld [vmem:[%s0] sm:$0x1]
    %s3 = scalar_lea.vmem %s0, 31
    %v4 = vld [vmem:[%s3] sm:$0x2]
    %vm5 = vcmask 1041409
    %v6 = vsel %vm5, %v4, %v2
    %vm7 = vcmask 80896
    %8 = vst.msk [vmem:[#allocation0] sm:$0x3] %vm7, %v6
    %s9 = scalar_lea.vmem %s0, 18
    %v10 = vld [vmem:[%s9] sm:$0x1]
    %s11 = scalar_lea.vmem %s0, 49
    %v12 = vld [vmem:[%s11] sm:$0x2]
    %vm13 = vcmask 1041409
    %v14 = vsel %vm13, %v12, %v10
    %s15 = scalar_lea.vmem %s0, 18
    %v16 = vld [vmem:[%s15] sm:$0x1]
    %s17 = scalar_lea.vmem %s0, 49
    %v18 = vld [vmem:[%s17] sm:$0x2]
    %vm19 = vcmask 1041409
    %v20 = vsel %vm19, %v18, %v16
    %vm21 = vcmask 64512
    %v22 = vsel %vm21, %v20, %v14
    %23 = vrot.lane.b32.xlu0 %v22, 120
    %v24 = vpop.permute.xlu0 %23
    %vm25 = vcmask 15360
    %s26 = scalar_lea.vmem [#allocation0], 8
    %27 = vst.msk [vmem:[%s26] sm:$0x3] %vm25, %v24
    %vm28 = vcmask 1048512
    %29 = vst.msk [vmem:[#allocation0] sm:$0x3] %vm28, %v24
    %s30 = scalar_lea.vmem %s0, 17
    %v31 = vld [vmem:[%s30] sm:$0x1]
    %s32 = scalar_lea.vmem %s0, 48
    %v33 = vld [vmem:[%s32] sm:$0x2]
    %vm34 = vcmask 1041409
    %v35 = vsel %vm34, %v33, %v31
    %36 = vrot.lane.b32.xlu0 %v35, 110
    %v37 = vpop.permute.xlu0 %36
    %vm38 = vcmask 982896
    %39 = vst.msk [vmem:[#allocation0] sm:$0x3] %vm38, %v37
    %s40 = scalar_lea.vmem %s0, 16
    %v41 = vld [vmem:[%s40] sm:$0x1]
    %s42 = scalar_lea.vmem %s0, 47
    %v43 = vld [vmem:[%s42] sm:$0x2]
    %vm44 = vcmask 1041409
    %v45 = vsel %vm44, %v43, %v41
    %46 = vrot.lane.b32.xlu0 %v45, 100
    %v47 = vpop.permute.xlu0 %46
    %vm48 = vcmask 900896
    %49 = vst.msk [vmem:[#allocation0] sm:$0x3] %vm48, %v47
    %s50 = scalar_lea.vmem %s0, 9
    %v51 = vld [vmem:[%s50] sm:$0x1]
    %s52 = scalar_lea.vmem %s0, 40
    %v53 = vld [vmem:[%s52] sm:$0x2]
    %vm54 = vcmask 1041409
    %v55 = vsel %vm54, %v53, %v51
    %56 = vrot.lane.b32.xlu0 %v55, 90
    %v57 = vpop.permute.xlu0 %56
    %vm58 = vcmask 818896
    %59 = vst.msk [vmem:[#allocation0] sm:$0x3] %vm58, %v57
    %s60 = scalar_lea.vmem %s0, 8
    %v61 = vld [vmem:[%s60] sm:$0x1]
    %s62 = scalar_lea.vmem %s0, 39
    %v63 = vld [vmem:[%s62] sm:$0x2]
    %vm64 = vcmask 1041409
    %v65 = vsel %vm64, %v63, %v61
    %66 = vrot.lane.b32.xlu0 %v65, 80
    %v67 = vpop.permute.xlu0 %66
    %vm68 = vcmask 736896
    %69 = vst.msk [vmem:[#allocation0] sm:$0x3] %vm68, %v67
    %s70 = scalar_lea.vmem %s0, 7
    %v71 = vld [vmem:[%s70] sm:$0x1]
    %s72 = scalar_lea.vmem %s0, 38
    %v73 = vld [vmem:[%s72] sm:$0x2]
    %vm74 = vcmask 1041409
    %v75 = vsel %vm74, %v73, %v71
    %76 = vrot.lane.b32.xlu0 %v75, 70
    %v77 = vpop.permute.xlu0 %76
    %vm78 = vcmask 654896
    %79 = vst.msk [vmem:[#allocation0] sm:$0x3] %vm78, %v77
    %s80 = scalar_lea.vmem %s0, 25
    %v81 = vld [vmem:[%s80] sm:$0x1]
    %s82 = scalar_lea.vmem %s0, 56
    %v83 = vld [vmem:[%s82] sm:$0x2]
    %vm84 = vcmask 1041409
    %v85 = vsel %vm84, %v83, %v81
    %86 = vrot.lane.b32.xlu0 %v85, 62
    %v87 = vpop.permute.xlu0 %86
    %vm88 = vcmask 589296
    %s89 = scalar_lea.vmem [#allocation0], 8
    %90 = vst.msk [vmem:[%s89] sm:$0x3] %vm88, %v87
    %s91 = scalar_lea.vmem %s0, 6
    %v92 = vld [vmem:[%s91] sm:$0x1]
    %s93 = scalar_lea.vmem %s0, 37
    %v94 = vld [vmem:[%s93] sm:$0x2]
    %vm95 = vcmask 1041409
    %v96 = vsel %vm95, %v94, %v92
    %97 = vrot.lane.b32.xlu0 %v96, 60
    %v98 = vpop.permute.xlu0 %97
    %vm99 = vcmask 572896
    %100 = vst.msk [vmem:[#allocation0] sm:$0x3] %vm99, %v98
    %s101 = scalar_lea.vmem %s0, 24
    %v102 = vld [vmem:[%s101] sm:$0x1]
    %s103 = scalar_lea.vmem %s0, 55
    %v104 = vld [vmem:[%s103] sm:$0x2]
    %vm105 = vcmask 1041409
    %v106 = vsel %vm105, %v104, %v102
    %107 = vrot.lane.b32.xlu0 %v106, 52
    %v108 = vpop.permute.xlu0 %107
    %vm109 = vcmask 507296
    %s110 = scalar_lea.vmem [#allocation0], 8
    %111 = vst.msk [vmem:[%s110] sm:$0x3] %vm109, %v108
    %s112 = scalar_lea.vmem %s0, 5
    %v113 = vld [vmem:[%s112] sm:$0x1]
    %s114 = scalar_lea.vmem %s0, 36
    %v115 = vld [vmem:[%s114] sm:$0x2]
    %vm116 = vcmask 1041409
    %v117 = vsel %vm116, %v115, %v113
    %118 = vrot.lane.b32.xlu0 %v117, 50
    %v119 = vpop.permute.xlu0 %118
    %vm120 = vcmask 490896
    %121 = vst.msk [vmem:[#allocation0] sm:$0x3] %vm120, %v119
    %s122 = scalar_lea.vmem %s0, 23
    %v123 = vld [vmem:[%s122] sm:$0x1]
    %s124 = scalar_lea.vmem %s0, 54
    %v125 = vld [vmem:[%s124] sm:$0x2]
    %vm126 = vcmask 1041409
    %v127 = vsel %vm126, %v125, %v123
    %128 = vrot.lane.b32.xlu0 %v127, 42
    %v129 = vpop.permute.xlu0 %128
    %vm130 = vcmask 425296
    %s131 = scalar_lea.vmem [#allocation0], 8
    %132 = vst.msk [vmem:[%s131] sm:$0x3] %vm130, %v129
    %s133 = scalar_lea.vmem %s0, 4
    %v134 = vld [vmem:[%s133] sm:$0x1]
    %s135 = scalar_lea.vmem %s0, 35
    %v136 = vld [vmem:[%s135] sm:$0x2]
    %vm137 = vcmask 1041409
    %v138 = vsel %vm137, %v136, %v134
    %139 = vrot.lane.b32.xlu0 %v138, 40
    %v140 = vpop.permute.xlu0 %139
    %vm141 = vcmask 408896
    %142 = vst.msk [vmem:[#allocation0] sm:$0x3] %vm141, %v140
    %s143 = scalar_lea.vmem %s0, 22
    %v144 = vld [vmem:[%s143] sm:$0x1]
    %s145 = scalar_lea.vmem %s0, 53
    %v146 = vld [vmem:[%s145] sm:$0x2]
    %vm147 = vcmask 1041409
    %v148 = vsel %vm147, %v146, %v144
    %149 = vrot.lane.b32.xlu0 %v148, 32
    %v150 = vpop.permute.xlu0 %149
    %vm151 = vcmask 343296
    %s152 = scalar_lea.vmem [#allocation0], 8
    %153 = vst.msk [vmem:[%s152] sm:$0x3] %vm151, %v150
    %s154 = scalar_lea.vmem %s0, 3
    %v155 = vld [vmem:[%s154] sm:$0x1]
    %s156 = scalar_lea.vmem %s0, 34
    %v157 = vld [vmem:[%s156] sm:$0x2]
    %vm158 = vcmask 1041409
    %v159 = vsel %vm158, %v157, %v155
    %160 = vrot.lane.b32.xlu0 %v159, 30
    %v161 = vpop.permute.xlu0 %160
    %vm162 = vcmask 326896
    %163 = vst.msk [vmem:[#allocation0] sm:$0x3] %vm162, %v161
    %s164 = scalar_lea.vmem %s0, 21
    %v165 = vld [vmem:[%s164] sm:$0x1]
    %s166 = scalar_lea.vmem %s0, 52
    %v167 = vld [vmem:[%s166] sm:$0x2]
    %vm168 = vcmask 1041409
    %v169 = vsel %vm168, %v167, %v165
    %170 = vrot.lane.b32.xlu0 %v169, 22
    %v171 = vpop.permute.xlu0 %170
    %vm172 = vcmask 261296
    %s173 = scalar_lea.vmem [#allocation0], 8
    %174 = vst.msk [vmem:[%s173] sm:$0x3] %vm172, %v171
    %s175 = scalar_lea.vmem %s0, 2
    %v176 = vld [vmem:[%s175] sm:$0x1]
    %s177 = scalar_lea.vmem %s0, 33
    %v178 = vld [vmem:[%s177] sm:$0x2]
    %vm179 = vcmask 1041409
    %v180 = vsel %vm179, %v178, %v176
    %181 = vrot.lane.b32.xlu0 %v180, 20
    %v182 = vpop.permute.xlu0 %181
    %vm183 = vcmask 244896
    %184 = vst.msk [vmem:[#allocation0] sm:$0x3] %vm183, %v182
    %s185 = scalar_lea.vmem %s0, 20
    %v186 = vld [vmem:[%s185] sm:$0x1]
    %s187 = scalar_lea.vmem %s0, 51
    %v188 = vld [vmem:[%s187] sm:$0x2]
    %vm189 = vcmask 1041409
    %v190 = vsel %vm189, %v188, %v186
    %191 = vrot.lane.b32.xlu0 %v190, 12
    %v192 = vpop.permute.xlu0 %191
    %vm193 = vcmask 179296
    %s194 = scalar_lea.vmem [#allocation0], 8
    %195 = vst.msk [vmem:[%s194] sm:$0x3] %vm193, %v192
    %s196 = scalar_lea.vmem %s0, 1
    %v197 = vld [vmem:[%s196] sm:$0x1]
    %s198 = scalar_lea.vmem %s0, 32
    %v199 = vld [vmem:[%s198] sm:$0x2]
    %vm200 = vcmask 1041409
    %v201 = vsel %vm200, %v199, %v197
    %202 = vrot.lane.b32.xlu0 %v201, 10
    %v203 = vpop.permute.xlu0 %202
    %vm204 = vcmask 162896
    %205 = vst.msk [vmem:[#allocation0] sm:$0x3] %vm204, %v203
    %s206 = scalar_lea.vmem %s0, 19
    %v207 = vld [vmem:[%s206] sm:$0x1]
    %s208 = scalar_lea.vmem %s0, 50
    %v209 = vld [vmem:[%s208] sm:$0x2]
    %vm210 = vcmask 1041409
    %v211 = vsel %vm210, %v209, %v207
    %212 = vrot.lane.b32.xlu0 %v211, 2
    %v213 = vpop.permute.xlu0 %212
    %vm214 = vcmask 97296
    %s215 = scalar_lea.vmem [#allocation0], 8
    %216 = vst.msk [vmem:[%s215] sm:$0x3] %vm214, %v213
    %s218 = sshllo.u32 0, 2
    %v220 = vld [vmem:[#allocation0] sm:%s218]
    %s221 = sshllo.u32 0, 2
    %222 = vst [vmem:[%s1] sm:%s221] %v220
    %s223 = scalar_lea.vmem [#allocation0], 8
    %v224 = vld [vmem:[%s223] sm:%s218]
    %s225 = sshllo.u32 0, 2
    %s226 = scalar_lea.vmem %s1, 2
    %227 = vst [vmem:[%s226] sm:%s225] %v224

// kernel: forward.1
$region0: #{forward.1}
  #allocation0 [shape = 'u32[]', space=smem, size = 0x4, offset = 0x4, fixed_abs, tag = 'smem constant byte address 0x4 - core index']
  #allocation1 [shape = 'u32[144,128]{1,0:T(1,128)}', space=vmem, size = 0x12000, scoped, tag = 'internal scratch']
  %s0 = inlined_call_operand.vmem [shape: f32[2,2,16,305], index: 0, kind: input, shape index: {}]
  %s1 = inlined_call_operand.vmem [shape: f32[2,9,4,4], index: 1, kind: input, shape index: {}]
  %s2 = inlined_call_operand.vmem [shape: f32[2,4,1], index: 2, kind: input, shape index: {}]
  %s3 = inlined_call_operand.vmem [shape: f32[2,9,4,4], index: 3, kind: input, shape index: {}]
  %s4 = inlined_call_operand.vmem [shape: f32[2,4,1], index: 4, kind: input, shape index: {}]
  %s5 = inlined_call_operand.vmem [shape: f32[2,9,2,4], index: 5, kind: input, shape index: {}]
  %s6 = inlined_call_operand.vmem [shape: f32[2,2,1], index: 6, kind: input, shape index: {}]
  %s7 = inlined_call_operand.vmem [shape: f32[2,2,2,225], index: 7, kind: output, shape index: {}]
  %s8 = sld [smem:[#allocation0]]
  $region61: #{forward.1} parent=0
    _
  %s10 = ssub.s32 1, %s8
  %s11 = scalar_select 0, %s10, %s8
  loop: start=0, step=1, limit=6
  $region2: #{forward.1} parent=0 // loop_pre_header
    _
  $region3: #{forward.1} parent=0 // loop_header
    %s13 = sphi 0, %s17
    %p14 = scmp.ge.s32.totalorder %s13, 6
    %s20 = sphi 0, %s32
    %s21 = sphi 0, %s28
    %s22 = sphi 0, %s20
    %s23 = sphi 0, %s21
    %s24 = sphi 0, %s22
    %s25 = sphi 0, %s23
    %s37 = sphi 0, %s39
    %s40 = sphi 0, %s37
    %s41 = sphi 0, %s40
    %s57 = sphi 0, %s41
    %s63 = sphi 0, %s65
    %s66 = sphi 0, %s63
    %s67 = sphi 0, %s66
    %s83 = sphi 0, %s67
    %s89 = sphi 0, %s91
    %s92 = sphi 0, %s89
    %s93 = sphi 0, %s92
    %s109 = sphi 0, %s93
    %s115 = sphi 0, %s117
    %s118 = sphi 0, %s115
    %s119 = sphi 0, %s118
    %s135 = sphi 0, %s119
    %s141 = sphi 0, %s143
    %s144 = sphi 0, %s141
    %s145 = sphi 0, %s144
    %s161 = sphi 0, %s145
    %s167 = sphi 0, %s169
    %s170 = sphi 0, %s167
    %s171 = sphi 0, %s170
    %s187 = sphi 0, %s171
    %s193 = sphi 0, %s195
    %s196 = sphi 0, %s193
    %s197 = sphi 0, %s196
    %s213 = sphi 0, %s197
    %s221 = sphi 0, %s223
    %s224 = sphi 0, %s221
    %s225 = sphi 0, %s224
    %s241 = sphi 0, %s225
  $region4: #{forward.1} parent=0 // loop_header_branch
    %16 = sbr.rel (%p14) target = $region8
  $region5: #{forward.1} parent=0 // loop_body
    %s18 = ssub.s32 %s13, 1
    %s19 = ssub.s32 %s13, 2
    %s26 = sadd.s32 1, %s21
    %p27 = scmp.ge.s32.totalorder %s26, 2
    %s28 = scalar_select %p27, 0, %s26
    %s29 = sadd.s32 1, %s20
    %s30 = scalar_select %p27, %s29, %s20
    %p31 = scmp.ge.s32.totalorder %s30, 2
    %s32 = scalar_select %p31, 0, %s30
    %s33 = ssub.s32 %s20, %s32
    %s34 = ssub.s32 %s21, %s28
    %s35 = sor.u32 %s33, %s34
    %p36 = scmp.eq.s32.totalorder %s35, 0
    %s38 = sadd.s32 %s37, 1
    %s39 = scalar_select %p36, %s37, %s38
    %p42 = pneg %p36
    %p43 = scmp.eq.s32.totalorder %s13, 3
    %p44 = por %p42, %p43
    %p45 = scmp.ne.s32.totalorder %s37, %s40
    %p46 = scmp.eq.s32.totalorder %s13, 0
    %p47 = por %p45, %p46
    %p48 = scmp.ne.s32.totalorder %s37, %s40
    %p49 = scmp.eq.s32.totalorder %s18, 3
    %p50 = por %p48, %p49
    %p51 = scmp.ne.s32.totalorder %s40, %s41
    %p52 = scmp.eq.s32.totalorder %s18, 0
    %p53 = por %p51, %p52
    %p54 = scmp.ne.s32.totalorder %s40, %s41
    %p55 = scmp.eq.s32.totalorder %s19, 3
    %p56 = por %p54, %p55
    %p58 = scmp.ne.s32.totalorder %s41, %s57
    %p59 = scmp.eq.s32.totalorder %s19, 0
    %p60 = por %p58, %p59
    %s61 = ssub.s32 %s20, %s32
    %p62 = scmp.eq.s32.totalorder %s61, 0
    %s64 = sadd.s32 %s63, 1
    %s65 = scalar_select %p62, %s63, %s64
    %p68 = pneg %p62
    %p69 = scmp.eq.s32.totalorder %s13, 3
    %p70 = por %p68, %p69
    %p71 = scmp.ne.s32.totalorder %s63, %s66
    %p72 = scmp.eq.s32.totalorder %s13, 0
    %p73 = por %p71, %p72
    %p74 = scmp.ne.s32.totalorder %s63, %s66
    %p75 = scmp.eq.s32.totalorder %s18, 3
    %p76 = por %p74, %p75
    %p77 = scmp.ne.s32.totalorder %s66, %s67
    %p78 = scmp.eq.s32.totalorder %s18, 0
    %p79 = por %p77, %p78
    %p80 = scmp.ne.s32.totalorder %s66, %s67
    %p81 = scmp.eq.s32.totalorder %s19, 3
    %p82 = por %p80, %p81
    %p84 = scmp.ne.s32.totalorder %s67, %s83
    %p85 = scmp.eq.s32.totalorder %s19, 0
    %p86 = por %p84, %p85
    %s87 = ssub.s32 %s20, %s32
    %p88 = scmp.eq.s32.totalorder %s87, 0
    %s90 = sadd.s32 %s89, 1
    %s91 = scalar_select %p88, %s89, %s90
    %p94 = pneg %p88
    %p95 = scmp.eq.s32.totalorder %s13, 3
    %p96 = por %p94, %p95
    %p97 = scmp.ne.s32.totalorder %s89, %s92
    %p98 = scmp.eq.s32.totalorder %s13, 0
    %p99 = por %p97, %p98
    %p100 = scmp.ne.s32.totalorder %s89, %s92
    %p101 = scmp.eq.s32.totalorder %s18, 3
    %p102 = por %p100, %p101
    %p103 = scmp.ne.s32.totalorder %s92, %s93
    %p104 = scmp.eq.s32.totalorder %s18, 0
    %p105 = por %p103, %p104
    %p106 = scmp.ne.s32.totalorder %s92, %s93
    %p107 = scmp.eq.s32.totalorder %s19, 3
    %p108 = por %p106, %p107
    %p110 = scmp.ne.s32.totalorder %s93, %s109
    %p111 = scmp.eq.s32.totalorder %s19, 0
    %p112 = por %p110, %p111
    %s113 = ssub.s32 %s20, %s32
    %p114 = scmp.eq.s32.totalorder %s113, 0
    %s116 = sadd.s32 %s115, 1
    %s117 = scalar_select %p114, %s115, %s116
    %p120 = pneg %p114
    %p121 = scmp.eq.s32.totalorder %s13, 3
    %p122 = por %p120, %p121
    %p123 = scmp.ne.s32.totalorder %s115, %s118
    %p124 = scmp.eq.s32.totalorder %s13, 0
    %p125 = por %p123, %p124
    %p126 = scmp.ne.s32.totalorder %s115, %s118
    %p127 = scmp.eq.s32.totalorder %s18, 3
    %p128 = por %p126, %p127
    %p129 = scmp.ne.s32.totalorder %s118, %s119
    %p130 = scmp.eq.s32.totalorder %s18, 0
    %p131 = por %p129, %p130
    %p132 = scmp.ne.s32.totalorder %s118, %s119
    %p133 = scmp.eq.s32.totalorder %s19, 3
    %p134 = por %p132, %p133
    %p136 = scmp.ne.s32.totalorder %s119, %s135
    %p137 = scmp.eq.s32.totalorder %s19, 0
    %p138 = por %p136, %p137
    %s139 = ssub.s32 %s20, %s32
    %p140 = scmp.eq.s32.totalorder %s139, 0
    %s142 = sadd.s32 %s141, 1
    %s143 = scalar_select %p140, %s141, %s142
    %p146 = pneg %p140
    %p147 = scmp.eq.s32.totalorder %s13, 3
    %p148 = por %p146, %p147
    %p149 = scmp.ne.s32.totalorder %s141, %s144
    %p150 = scmp.eq.s32.totalorder %s13, 0
    %p151 = por %p149, %p150
    %p152 = scmp.ne.s32.totalorder %s141, %s144
    %p153 = scmp.eq.s32.totalorder %s18, 3
    %p154 = por %p152, %p153
    %p155 = scmp.ne.s32.totalorder %s144, %s145
    %p156 = scmp.eq.s32.totalorder %s18, 0
    %p157 = por %p155, %p156
    %p158 = scmp.ne.s32.totalorder %s144, %s145
    %p159 = scmp.eq.s32.totalorder %s19, 3
    %p160 = por %p158, %p159
    %p162 = scmp.ne.s32.totalorder %s145, %s161
    %p163 = scmp.eq.s32.totalorder %s19, 0
    %p164 = por %p162, %p163
    %s165 = ssub.s32 %s20, %s32
    %p166 = scmp.eq.s32.totalorder %s165, 0
    %s168 = sadd.s32 %s167, 1
    %s169 = scalar_select %p166, %s167, %s168
    %p172 = pneg %p166
    %p173 = scmp.eq.s32.totalorder %s13, 3
    %p174 = por %p172, %p173
    %p175 = scmp.ne.s32.totalorder %s167, %s170
    %p176 = scmp.eq.s32.totalorder %s13, 0
    %p177 = por %p175, %p176
    %p178 = scmp.ne.s32.totalorder %s167, %s170
    %p179 = scmp.eq.s32.totalorder %s18, 3
    %p180 = por %p178, %p179
    %p181 = scmp.ne.s32.totalorder %s170, %s171
    %p182 = scmp.eq.s32.totalorder %s18, 0
    %p183 = por %p181, %p182
    %p184 = scmp.ne.s32.totalorder %s170, %s171
    %p185 = scmp.eq.s32.totalorder %s19, 3
    %p186 = por %p184, %p185
    %p188 = scmp.ne.s32.totalorder %s171, %s187
    %p189 = scmp.eq.s32.totalorder %s19, 0
    %p190 = por %p188, %p189
    %s191 = ssub.s32 %s20, %s32
    %p192 = scmp.eq.s32.totalorder %s191, 0
    %s194 = sadd.s32 %s193, 1
    %s195 = scalar_select %p192, %s193, %s194
    %p198 = pneg %p192
    %p199 = scmp.eq.s32.totalorder %s13, 3
    %p200 = por %p198, %p199
    %p201 = scmp.ne.s32.totalorder %s193, %s196
    %p202 = scmp.eq.s32.totalorder %s13, 0
    %p203 = por %p201, %p202
    %p204 = scmp.ne.s32.totalorder %s193, %s196
    %p205 = scmp.eq.s32.totalorder %s18, 3
    %p206 = por %p204, %p205
    %p207 = scmp.ne.s32.totalorder %s196, %s197
    %p208 = scmp.eq.s32.totalorder %s18, 0
    %p209 = por %p207, %p208
    %p210 = scmp.ne.s32.totalorder %s196, %s197
    %p211 = scmp.eq.s32.totalorder %s19, 3
    %p212 = por %p210, %p211
    %p214 = scmp.ne.s32.totalorder %s197, %s213
    %p215 = scmp.eq.s32.totalorder %s19, 0
    %p216 = por %p214, %p215
    %s217 = ssub.s32 %s20, %s32
    %s218 = ssub.s32 %s21, %s28
    %s219 = sor.u32 %s217, %s218
    %p220 = scmp.eq.s32.totalorder %s219, 0
    %s222 = sadd.s32 %s221, 1
    %s223 = scalar_select %p220, %s221, %s222
    %p226 = pneg %p220
    %p227 = scmp.eq.s32.totalorder %s13, 3
    %p228 = por %p226, %p227
    %p229 = scmp.ne.s32.totalorder %s221, %s224
    %p230 = scmp.eq.s32.totalorder %s13, 0
    %p231 = por %p229, %p230
    %p232 = scmp.ne.s32.totalorder %s221, %s224
    %p233 = scmp.eq.s32.totalorder %s18, 3
    %p234 = por %p232, %p233
    %p235 = scmp.ne.s32.totalorder %s224, %s225
    %p236 = scmp.eq.s32.totalorder %s18, 0
    %p237 = por %p235, %p236
    %p238 = scmp.ne.s32.totalorder %s224, %s225
    %p239 = scmp.eq.s32.totalorder %s19, 3
    %p240 = por %p238, %p239
    %p242 = scmp.ne.s32.totalorder %s225, %s241
    %p243 = scmp.eq.s32.totalorder %s19, 0
    %p244 = por %p242, %p243
    %p245 = scmp.le.s32.totalorder 1, %s13
    %p246 = scmp.lt.s32.totalorder %s13, 5
    %p247 = pnand %p245, %p246
    %p248 = pneg %p247
    // Predicated region
    $region9: #{forward.1} parent=5 // pred_check
      _
    $region10: #{forward.1} parent=5 // pred_check_branch
      %250 = sbr.rel (%p247) target = $region12
    $region11: #{forward.1} parent=5 // pred_region
      %s251 = ssub.s32 %s13, 1
    $region12: #{forward.1} parent=5 // pred_fallthru
      _
    %p252 = scmp.lt.s32.totalorder %s13, 4
    // Predicated region
    $region13: #{forward.1} parent=5 // pred_check
      %p253 = pneg %p252
    $region14: #{forward.1} parent=5 // pred_check_branch
      %255 = sbr.rel (%p253) target = $region16
    $region15: #{forward.1} parent=5 // pred_region
      // Predicated region
      $region17: #{forward.1} parent=15 // pred_check
        %p256 = pneg %p47
      $region18: #{forward.1} parent=15 // pred_check_branch
        %258 = sbr.rel (%p256) target = $region20
      $region19: #{forward.1} parent=15 // pred_region
        %p259 = scmp.lt.s32.totalorder %s20, 1
        %s260 = scalar_select %p259, %s20, 1
        %p261 = scmp.lt.s32.totalorder %s21, 1
        %s262 = scalar_select %p261, %s21, 1
        %s263 = smul.addr %s262, 6
        %s264 = smul.addr %s260, 12
        %s265 = sadd.s32 %s263, %s264
        %s266 = smul.addr %s265, 8
        %s267 = scalar_lea.vmem %s0, %s266
      $region20: #{forward.1} parent=15 // pred_fallthru
        _
      // Predicated region
      $region21: #{forward.1} parent=15 // pred_check
        %p268 = pneg %p73
      $region22: #{forward.1} parent=15 // pred_check_branch
        %270 = sbr.rel (%p268) target = $region24
      $region23: #{forward.1} parent=15 // pred_region
        %p271 = scmp.lt.s32.totalorder %s20, 1
        %s272 = scalar_select %p271, %s20, 1
        %s273 = smul.addr %s272, 9
        %s274 = smul.addr %s273, 4
        %s275 = scalar_lea.vmem %s1, %s274
      $region24: #{forward.1} parent=15 // pred_fallthru
        _
      // Predicated region
      $region25: #{forward.1} parent=15 // pred_check
        %p276 = pneg %p99
      $region26: #{forward.1} parent=15 // pred_check_branch
        %278 = sbr.rel (%p276) target = $region28
      $region27: #{forward.1} parent=15 // pred_region
        %p279 = scmp.lt.s32.totalorder %s20, 1
        %s280 = scalar_select %p279, %s20, 1
        %s281 = smul.addr %s280, 4
        %s282 = scalar_lea.vmem %s2, %s281
      $region28: #{forward.1} parent=15 // pred_fallthru
        _
      // Predicated region
      $region29: #{forward.1} parent=15 // pred_check
        %p283 = pneg %p125
      $region30: #{forward.1} parent=15 // pred_check_branch
        %285 = sbr.rel (%p283) target = $region32
      $region31: #{forward.1} parent=15 // pred_region
        %p286 = scmp.lt.s32.totalorder %s20, 1
        %s287 = scalar_select %p286, %s20, 1
        %s288 = smul.addr %s287, 9
        %s289 = smul.addr %s288, 4
        %s290 = scalar_lea.vmem %s3, %s289
      $region32: #{forward.1} parent=15 // pred_fallthru
        _
      // Predicated region
      $region33: #{forward.1} parent=15 // pred_check
        %p291 = pneg %p151
      $region34: #{forward.1} parent=15 // pred_check_branch
        %293 = sbr.rel (%p291) target = $region36
      $region35: #{forward.1} parent=15 // pred_region
        %p294 = scmp.lt.s32.totalorder %s20, 1
        %s295 = scalar_select %p294, %s20, 1
        %s296 = smul.addr %s295, 4
        %s297 = scalar_lea.vmem %s4, %s296
      $region36: #{forward.1} parent=15 // pred_fallthru
        _
      // Predicated region
      $region37: #{forward.1} parent=15 // pred_check
        %p298 = pneg %p177
      $region38: #{forward.1} parent=15 // pred_check_branch
        %300 = sbr.rel (%p298) target = $region40
      $region39: #{forward.1} parent=15 // pred_region
        %p301 = scmp.lt.s32.totalorder %s20, 1
        %s302 = scalar_select %p301, %s20, 1
        %s303 = smul.addr %s302, 9
        %s304 = smul.addr %s303, 2
        %s305 = scalar_lea.vmem %s5, %s304
      $region40: #{forward.1} parent=15 // pred_fallthru
        _
      // Predicated region
      $region41: #{forward.1} parent=15 // pred_check
        %p306 = pneg %p203
      $region42: #{forward.1} parent=15 // pred_check_branch
        %308 = sbr.rel (%p306) target = $region44
      $region43: #{forward.1} parent=15 // pred_region
        %p309 = scmp.lt.s32.totalorder %s20, 1
        %s310 = scalar_select %p309, %s20, 1
        %s311 = smul.addr %s310, 2
        %s312 = scalar_lea.vmem %s6, %s311
      $region44: #{forward.1} parent=15 // pred_fallthru
        _
    $region16: #{forward.1} parent=5 // pred_fallthru
      _
    %p313 = scmp.le.s32.totalorder 1, %s13
    %p314 = scmp.lt.s32.totalorder %s13, 5
    %p315 = pnand %p313, %p314
    %p316 = pneg %p315
    // Predicated region
    $region45: #{forward.1} parent=5 // pred_check
      _
    $region46: #{forward.1} parent=5 // pred_check_branch
      %318 = sbr.rel (%p315) target = $region48
    $region47: #{forward.1} parent=5 // pred_region
      %s319 = ssub.s32 %s13, 1
      %p320 = scmp.lt.s32.totalorder %s22, 1
      %s321 = scalar_select %p320, %s22, 1
      %p322 = scmp.lt.s32.totalorder %s23, 1
      %s323 = scalar_select %p322, %s23, 1
      %s324 = smul.addr %s323, 6
      %s325 = smul.addr %s321, 12
      %s326 = sadd.s32 %s324, %s325
      %s327 = smul.addr %s326, 8
      %s328 = scalar_lea.vmem %s0, %s327
      %p329 = pneg %p53
      %p330 = pneg %p50
      %p331 = scmp.lt.s32.totalorder %s22, 1
      %s332 = scalar_select %p331, %s22, 1
      %s333 = smul.addr %s332, 9
      %s334 = smul.addr %s333, 4
      %s335 = scalar_lea.vmem %s1, %s334
      %p336 = pneg %p79
      %p337 = pneg %p76
      %p338 = scmp.lt.s32.totalorder %s22, 1
      %s339 = scalar_select %p338, %s22, 1
      %s340 = smul.addr %s339, 4
      %s341 = scalar_lea.vmem %s2, %s340
      %p342 = pneg %p105
      %p343 = pneg %p102
      %p344 = scmp.lt.s32.totalorder %s22, 1
      %s345 = scalar_select %p344, %s22, 1
      %s346 = smul.addr %s345, 9
      %s347 = smul.addr %s346, 4
      %s348 = scalar_lea.vmem %s3, %s347
      %p349 = pneg %p131
      %p350 = pneg %p128
      %p351 = scmp.lt.s32.totalorder %s22, 1
      %s352 = scalar_select %p351, %s22, 1
      %s353 = smul.addr %s352, 4
      %s354 = scalar_lea.vmem %s4, %s353
      %p355 = pneg %p157
      %p356 = pneg %p154
      %p357 = scmp.lt.s32.totalorder %s22, 1
      %s358 = scalar_select %p357, %s22, 1
      %s359 = smul.addr %s358, 9
      %s360 = smul.addr %s359, 2
      %s361 = scalar_lea.vmem %s5, %s360
      %p362 = pneg %p183
      %p363 = pneg %p180
      %p364 = scmp.lt.s32.totalorder %s22, 1
      %s365 = scalar_select %p364, %s22, 1
      %s366 = smul.addr %s365, 2
      %s367 = scalar_lea.vmem %s6, %s366
      %p368 = pneg %p209
      %p369 = pneg %p206
      %p370 = pneg %p237
      %p371 = pneg %p234
      %p372 = scmp.lt.s32.totalorder %s22, 1
      %s373 = scalar_select %p372, %s22, 1
      %p374 = scmp.lt.s32.totalorder %s23, 1
      %s375 = scalar_select %p374, %s23, 1
      %s376 = smul.addr %s375, 2
      %s377 = smul.addr %s373, 4
      %s378 = sadd.s32 %s376, %s377
      %s379 = smul.addr %s378, 2
      %s380 = scalar_lea.vmem %s7, %s379
      %p381 = scmp.lt.s32.totalorder %s22, 1
      %s382 = scalar_select %p381, %s22, 1
      %p383 = scmp.lt.s32.totalorder %s23, 1
      %s384 = scalar_select %p383, %s23, 1
      %s385 = smul.addr %s384, 6
      %s386 = smul.addr %s382, 12
      %s387 = sadd.s32 %s385, %s386
      %s388 = smul.addr %s387, 8
      %s389 = scalar_lea.vmem %s0, %s388
      %p390 = scmp.lt.s32.totalorder %s22, 1
      %s391 = scalar_select %p390, %s22, 1
      %s392 = smul.addr %s391, 9
      %s393 = smul.addr %s392, 4
      %s394 = scalar_lea.vmem %s1, %s393
      %p395 = scmp.lt.s32.totalorder %s22, 1
      %s396 = scalar_select %p395, %s22, 1
      %s397 = smul.addr %s396, 4
      %s398 = scalar_lea.vmem %s2, %s397
      %p399 = scmp.lt.s32.totalorder %s22, 1
      %s400 = scalar_select %p399, %s22, 1
      %s401 = smul.addr %s400, 9
      %s402 = smul.addr %s401, 4
      %s403 = scalar_lea.vmem %s3, %s402
      %p404 = scmp.lt.s32.totalorder %s22, 1
      %s405 = scalar_select %p404, %s22, 1
      %s406 = smul.addr %s405, 4
      %s407 = scalar_lea.vmem %s4, %s406
      %p408 = scmp.lt.s32.totalorder %s22, 1
      %s409 = scalar_select %p408, %s22, 1
      %s410 = smul.addr %s409, 9
      %s411 = smul.addr %s410, 2
      %s412 = scalar_lea.vmem %s5, %s411
      %p413 = scmp.lt.s32.totalorder %s22, 1
      %s414 = scalar_select %p413, %s22, 1
      %s415 = smul.addr %s414, 2
      %s416 = scalar_lea.vmem %s6, %s415
      %p417 = scmp.lt.s32.totalorder %s22, 1
      %s418 = scalar_select %p417, %s22, 1
      %p419 = scmp.lt.s32.totalorder %s23, 1
      %s420 = scalar_select %p419, %s23, 1
      %s421 = smul.addr %s420, 2
      %s422 = smul.addr %s418, 4
      %s423 = sadd.s32 %s421, %s422
      %s424 = smul.addr %s423, 2
      %s425 = scalar_lea.vmem %s7, %s424
      %v426 = vld [vmem:[%s389] sm:$0xf]
      %v427 = vld [vmem:[%s389 + $0x8] sm:$0xf]
      %v428 = vld [vmem:[%s389 + $0x10] sm:$0xf]
      %v429 = vld [vmem:[%s394] sm:$0xf]
      %v430 = vld [vmem:[%s389] sm:$0xf0]
      %v431 = vld [vmem:[%s389 + $0x8] sm:$0xf0]
      %v432 = vld [vmem:[%s389 + $0x10] sm:$0xf0]
      %s433 = scalar_lea.vmem %s394, 4
      %v434 = vld [vmem:[%s433] sm:$0xf]
      %v438 = vrot.slane %v430, 4
      %v439 = vrot.slane %v431, 4
      %v440 = vrot.slane %v432, 4
      %vm441 = vcmask 31744
      %v443 = vsel %vm441, %v434, 0
      %vm445 = vcmask 1043456
      %v446 = vsel %vm445, %v438, 0
      %v448 = vsel %vm445, %v439, 0
      %v450 = vsel %vm445, %v440, 0
      %452 = vmatprep.subr.mxu0 %v448
      %453 = vmatpush1.msra.mxu0 %v446
      %454 = vmatprep.subr.mxu0 0.0
      %455 = vmatpush1.msra.mxu0 0.0
      %456 = vmatprep.subr.mxu0 0.0
      %457 = vmatpush1.msra.mxu0 0.0
      %458 = vmatprep.subr.mxu0 0.0
      %459 = vmatpush1.msra.mxu0 0.0
      %460 = vmatprep.subr.mxu0 0.0
      %461 = vmatpush1.msra.mxu0 0.0
      %462 = vmatprep.subr.mxu0 0.0
      %463 = vmatpush1.msra.mxu0 0.0
      %464 = vmatprep.subr.mxu0 0.0
      %465 = vmatpush1.msra.mxu0 0.0
      %466 = vmatprep.subr.mxu0 0.0
      %467 = vmatpush1.msra.mxu0 0.0
      %468 = vmatprep.subr.mxu0 0.0
      %469 = vmatpush1.msra.mxu0 0.0
      %470 = vmatprep.subr.mxu0 0.0
      %471 = vmatpush1.msra.mxu0 0.0
      %472 = vmatprep.subr.mxu0 0.0
      %473 = vmatpush1.msra.mxu0 0.0
      %474 = vmatprep.subr.mxu0 0.0
      %475 = vmatpush1.msra.mxu0 0.0
      %476 = vmatprep.subr.mxu0 0.0
      %477 = vmatpush1.msra.mxu0 0.0
      %478 = vmatprep.subr.mxu0 0.0
      %479 = vmatpush1.msra.mxu0 0.0
      %480 = vmatprep.subr.mxu0 0.0
      %481 = vmatpush1.msra.mxu0 0.0
      %482 = vmatprep.subr.mxu0 0.0
      %483 = vmatpush1.msra.mxu0 0.0
      %484 = vmatprep.subr.mxu0 0.0
      %485 = vmatpush1.msra.mxu0 0.0
      %486 = vmatprep.subr.mxu0 0.0
      %487 = vmatpush1.msra.mxu0 0.0
      %488 = vmatprep.subr.mxu0 0.0
      %489 = vmatpush1.msra.mxu0 0.0
      %490 = vmatprep.subr.mxu0 0.0
      %491 = vmatpush1.msra.mxu0 0.0
      %492 = vmatprep.subr.mxu0 0.0
      %493 = vmatpush1.msra.mxu0 0.0
      %494 = vmatprep.subr.mxu0 0.0
      %495 = vmatpush1.msra.mxu0 0.0
      %496 = vmatprep.subr.mxu0 0.0
      %497 = vmatpush1.msra.mxu0 0.0
      %498 = vmatprep.subr.mxu0 0.0
      %499 = vmatpush1.msra.mxu0 0.0
      %500 = vmatprep.subr.mxu0 0.0
      %501 = vmatpush1.msra.mxu0 0.0
      %502 = vmatprep.subr.mxu0 0.0
      %503 = vmatpush1.msra.mxu0 0.0
      %504 = vmatprep.subr.mxu0 0.0
      %505 = vmatpush1.msra.mxu0 0.0
      %506 = vmatprep.subr.mxu0 0.0
      %507 = vmatpush1.msra.mxu0 0.0
      %508 = vmatprep.subr.mxu0 0.0
      %509 = vmatpush1.msra.mxu0 0.0
      %510 = vmatprep.subr.mxu0 0.0
      %511 = vmatpush1.msra.mxu0 0.0
      %512 = vmatprep.subr.mxu0 0.0
      %513 = vmatpush1.msra.mxu0 0.0
      %514 = vmatprep.subr.mxu0 0.0
      %515 = vmatpush1.msra.mxu0 0.0
      %516 = vmatprep.mubr.f32.mxu0 0.0
      %517 = vmatmul.mubr.f32.gmra.mrb[0].mxu0 %v443
      %v518 = vpop.f32.mrb[0].mxu0
      %v519 = vadd.f32 0.0, %v518
      %v520 = vpop.f32.mrb[0].mxu0
      %v521 = vadd.f32 0.0, %v520
      %522 = vdwg.mxu0
      %523 = vmatprep.subr.mxu0 0.0
      %524 = vmatpush1.msra.mxu0 %v450
      %525 = vmatprep.subr.mxu0 0.0
      %526 = vmatpush1.msra.mxu0 0.0
      %527 = vmatprep.subr.mxu0 0.0
      %528 = vmatpush1.msra.mxu0 0.0
      %529 = vmatprep.subr.mxu0 0.0
      %530 = vmatpush1.msra.mxu0 0.0
      %531 = vmatprep.subr.mxu0 0.0
      %532 = vmatpush1.msra.mxu0 0.0
      %533 = vmatprep.subr.mxu0 0.0
      %534 = vmatpush1.msra.mxu0 0.0
      %535 = vmatprep.subr.mxu0 0.0
      %536 = vmatpush1.msra.mxu0 0.0
      %537 = vmatprep.subr.mxu0 0.0
      %538 = vmatpush1.msra.mxu0 0.0
      %539 = vmatprep.subr.mxu0 0.0
      %540 = vmatpush1.msra.mxu0 0.0
      %541 = vmatprep.subr.mxu0 0.0
      %542 = vmatpush1.msra.mxu0 0.0
      %543 = vmatprep.subr.mxu0 0.0
      %544 = vmatpush1.msra.mxu0 0.0
      %545 = vmatprep.subr.mxu0 0.0
      %546 = vmatpush1.msra.mxu0 0.0
      %547 = vmatprep.subr.mxu0 0.0
      %548 = vmatpush1.msra.mxu0 0.0
      %549 = vmatprep.subr.mxu0 0.0
      %550 = vmatpush1.msra.mxu0 0.0
      %551 = vmatprep.subr.mxu0 0.0
      %552 = vmatpush1.msra.mxu0 0.0
      %553 = vmatprep.subr.mxu0 0.0
      %554 = vmatpush1.msra.mxu0 0.0
      %555 = vmatprep.subr.mxu0 0.0
      %556 = vmatpush1.msra.mxu0 0.0
      %557 = vmatprep.subr.mxu0 0.0
      %558 = vmatpush1.msra.mxu0 0.0
      %559 = vmatprep.subr.mxu0 0.0
      %560 = vmatpush1.msra.mxu0 0.0
      %561 = vmatprep.subr.mxu0 0.0
      %562 = vmatpush1.msra.mxu0 0.0
      %563 = vmatprep.subr.mxu0 0.0
      %564 = vmatpush1.msra.mxu0 0.0
      %565 = vmatprep.subr.mxu0 0.0
      %566 = vmatpush1.msra.mxu0 0.0
      %567 = vmatprep.subr.mxu0 0.0
      %568 = vmatpush1.msra.mxu0 0.0
      %569 = vmatprep.subr.mxu0 0.0
      %570 = vmatpush1.msra.mxu0 0.0
      %571 = vmatprep.subr.mxu0 0.0
      %572 = vmatpush1.msra.mxu0 0.0
      %573 = vmatprep.subr.mxu0 0.0
      %574 = vmatpush1.msra.mxu0 0.0
      %575 = vmatprep.subr.mxu0 0.0
      %576 = vmatpush1.msra.mxu0 0.0
      %577 = vmatprep.subr.mxu0 0.0
      %578 = vmatpush1.msra.mxu0 0.0
      %579 = vmatprep.subr.mxu0 0.0
      %580 = vmatpush1.msra.mxu0 0.0
      %581 = vmatprep.subr.mxu0 0.0
      %582 = vmatpush1.msra.mxu0 0.0
      %583 = vmatprep.subr.mxu0 0.0
      %584 = vmatpush1.msra.mxu0 0.0
      %585 = vmatprep.subr.mxu0 0.0
      %586 = vmatpush1.msra.mxu0 0.0
      %587 = vmatprep.mubr.f32.mxu0 0.0
      %588 = vmatmul.mubr.f32.gmra.mrb[0].mxu0 %v443
      %v589 = vpop.f32.mrb[0].mxu0
      %v590 = vadd.f32 0.0, %v589
      %v591 = vpop.f32.mrb[0].mxu0
      %592 = vdwg.mxu0
      %v594 = vsel %vm441, %v429, 0
      %v597 = vsel %vm445, %v426, 0
      %v600 = vsel %vm445, %v427, 0
      %v603 = vsel %vm445, %v428, 0
      %605 = vmatprep.subr.mxu0 %v600
      %606 = vmatpush1.msra.mxu0 %v597
      %607 = vmatprep.subr.mxu0 0.0
      %608 = vmatpush1.msra.mxu0 0.0
      %609 = vmatprep.subr.mxu0 0.0
      %610 = vmatpush1.msra.mxu0 0.0
      %611 = vmatprep.subr.mxu0 0.0
      %612 = vmatpush1.msra.mxu0 0.0
      %613 = vmatprep.subr.mxu0 0.0
      %614 = vmatpush1.msra.mxu0 0.0
      %615 = vmatprep.subr.mxu0 0.0
      %616 = vmatpush1.msra.mxu0 0.0
      %617 = vmatprep.subr.mxu0 0.0
      %618 = vmatpush1.msra.mxu0 0.0
      %619 = vmatprep.subr.mxu0 0.0
      %620 = vmatpush1.msra.mxu0 0.0
      %621 = vmatprep.subr.mxu0 0.0
      %622 = vmatpush1.msra.mxu0 0.0
      %623 = vmatprep.subr.mxu0 0.0
      %624 = vmatpush1.msra.mxu0 0.0
      %625 = vmatprep.subr.mxu0 0.0
      %626 = vmatpush1.msra.mxu0 0.0
      %627 = vmatprep.subr.mxu0 0.0
      %628 = vmatpush1.msra.mxu0 0.0
      %629 = vmatprep.subr.mxu0 0.0
      %630 = vmatpush1.msra.mxu0 0.0
      %631 = vmatprep.subr.mxu0 0.0
      %632 = vmatpush1.msra.mxu0 0.0
      %633 = vmatprep.subr.mxu0 0.0
      %634 = vmatpush1.msra.mxu0 0.0
      %635 = vmatprep.subr.mxu0 0.0
      %636 = vmatpush1.msra.mxu0 0.0
      %637 = vmatprep.subr.mxu0 0.0
      %638 = vmatpush1.msra.mxu0 0.0
      %639 = vmatprep.subr.mxu0 0.0
      %640 = vmatpush1.msra.mxu0 0.0
      %641 = vmatprep.subr.mxu0 0.0
      %642 = vmatpush1.msra.mxu0 0.0
      %643 = vmatprep.subr.mxu0 0.0
      %644 = vmatpush1.msra.mxu0 0.0
      %645 = vmatprep.subr.mxu0 0.0
      %646 = vmatpush1.msra.mxu0 0.0
      %647 = vmatprep.subr.mxu0 0.0
      %648 = vmatpush1.msra.mxu0 0.0
      %649 = vmatprep.subr.mxu0 0.0
      %650 = vmatpush1.msra.mxu0 0.0
      %651 = vmatprep.subr.mxu0 0.0
      %652 = vmatpush1.msra.mxu0 0.0
      %653 = vmatprep.subr.mxu0 0.0
      %654 = vmatpush1.msra.mxu0 0.0
      %655 = vmatprep.subr.mxu0 0.0
      %656 = vmatpush1.msra.mxu0 0.0
      %657 = vmatprep.subr.mxu0 0.0
      %658 = vmatpush1.msra.mxu0 0.0
      %659 = vmatprep.subr.mxu0 0.0
      %660 = vmatpush1.msra.mxu0 0.0
      %661 = vmatprep.subr.mxu0 0.0
      %662 = vmatpush1.msra.mxu0 0.0
      %663 = vmatprep.subr.mxu0 0.0
      %664 = vmatpush1.msra.mxu0 0.0
      %665 = vmatprep.subr.mxu0 0.0
      %666 = vmatpush1.msra.mxu0 0.0
      %667 = vmatprep.subr.mxu0 0.0
      %668 = vmatpush1.msra.mxu0 0.0
      %669 = vmatprep.mubr.f32.mxu0 0.0
      %670 = vmatmul.mubr.f32.gmra.mrb[0].mxu0 %v594
      %v671 = vpop.f32.mrb[0].mxu0
      %v672 = vadd.f32 %v519, %v671
      %v673 = vpop.f32.mrb[0].mxu0
      %v674 = vadd.f32 %v521, %v673
      %675 = vdwg.mxu0
      %676 = vmatprep.subr.mxu0 0.0
      %677 = vmatpush1.msra.mxu0 %v603
      %678 = vmatprep.subr.mxu0 0.0
      %679 = vmatpush1.msra.mxu0 0.0
      %680 = vmatprep.subr.mxu0 0.0
      %681 = vmatpush1.msra.mxu0 0.0
      %682 = vmatprep.subr.mxu0 0.0
      %683 = vmatpush1.msra.mxu0 0.0
      %684 = vmatprep.subr.mxu0 0.0
      %685 = vmatpush1.msra.mxu0 0.0
      %686 = vmatprep.subr.mxu0 0.0
      %687 = vmatpush1.msra.mxu0 0.0
      %688 = vmatprep.subr.mxu0 0.0
      %689 = vmatpush1.msra.mxu0 0.0
      %690 = vmatprep.subr.mxu0 0.0
      %691 = vmatpush1.msra.mxu0 0.0
      %692 = vmatprep.subr.mxu0 0.0
      %693 = vmatpush1.msra.mxu0 0.0
      %694 = vmatprep.subr.mxu0 0.0
      %695 = vmatpush1.msra.mxu0 0.0
      %696 = vmatprep.subr.mxu0 0.0
      %697 = vmatpush1.msra.mxu0 0.0
      %698 = vmatprep.subr.mxu0 0.0
      %699 = vmatpush1.msra.mxu0 0.0
      %700 = vmatprep.subr.mxu0 0.0
      %701 = vmatpush1.msra.mxu0 0.0
      %702 = vmatprep.subr.mxu0 0.0
      %703 = vmatpush1.msra.mxu0 0.0
      %704 = vmatprep.subr.mxu0 0.0
      %705 = vmatpush1.msra.mxu0 0.0
      %706 = vmatprep.subr.mxu0 0.0
      %707 = vmatpush1.msra.mxu0 0.0
      %708 = vmatprep.subr.mxu0 0.0
      %709 = vmatpush1.msra.mxu0 0.0
      %710 = vmatprep.subr.mxu0 0.0
      %711 = vmatpush1.msra.mxu0 0.0
      %712 = vmatprep.subr.mxu0 0.0
      %713 = vmatpush1.msra.mxu0 0.0
      %714 = vmatprep.subr.mxu0 0.0
      %715 = vmatpush1.msra.mxu0 0.0
      %716 = vmatprep.subr.mxu0 0.0
      %717 = vmatpush1.msra.mxu0 0.0
      %718 = vmatprep.subr.mxu0 0.0
      %719 = vmatpush1.msra.mxu0 0.0
      %720 = vmatprep.subr.mxu0 0.0
      %721 = vmatpush1.msra.mxu0 0.0
      %722 = vmatprep.subr.mxu0 0.0
      %723 = vmatpush1.msra.mxu0 0.0
      %724 = vmatprep.subr.mxu0 0.0
      %725 = vmatpush1.msra.mxu0 0.0
      %726 = vmatprep.subr.mxu0 0.0
      %727 = vmatpush1.msra.mxu0 0.0
      %728 = vmatprep.subr.mxu0 0.0
      %729 = vmatpush1.msra.mxu0 0.0
      %730 = vmatprep.subr.mxu0 0.0
      %731 = vmatpush1.msra.mxu0 0.0
      %732 = vmatprep.subr.mxu0 0.0
      %733 = vmatpush1.msra.mxu0 0.0
      %734 = vmatprep.subr.mxu0 0.0
      %735 = vmatpush1.msra.mxu0 0.0
      %736 = vmatprep.subr.mxu0 0.0
      %737 = vmatpush1.msra.mxu0 0.0
      %738 = vmatprep.subr.mxu0 0.0
      %739 = vmatpush1.msra.mxu0 0.0
      %740 = vmatprep.mubr.f32.mxu0 0.0
      %741 = vmatmul.mubr.f32.gmra.mrb[0].mxu0 %v594
      %v742 = vpop.f32.mrb[0].mxu0
      %v743 = vadd.f32 %v590, %v742
      %v744 = vpop.f32.mrb[0].mxu0
      %745 = vdwg.mxu0
      %s746 = scalar_lea.vmem %s394, 8
      %v747 = vld [vmem:[%s746] sm:$0xf]
      %748 = vrot.lane.b32.xlu0 %v426, 127
      %v749 = vpop.permute.xlu0 %748
      %750 = vrot.lane.b32.xlu0 %v427, 127
      %v751 = vpop.permute.xlu0 %750
      %752 = vrot.lane.b32.xlu0 %v428, 127
      %v753 = vpop.permute.xlu0 %752
      %vm754 = vcmask 1039360
      %v755 = vsel %vm754, %v749, %v751
      %v756 = vsel %vm754, %v751, %v753
      %v758 = vsel %vm441, %v747, 0
      %v760 = vsel %vm445, %v755, 0
      %v762 = vsel %vm445, %v756, 0
      %v764 = vsel %vm445, %v753, 0
      %766 = vmatprep.subr.mxu0 %v762
      %767 = vmatpush1.msra.mxu0 %v760
      %768 = vmatprep.subr.mxu0 0.0
      %769 = vmatpush1.msra.mxu0 0.0
      %770 = vmatprep.subr.mxu0 0.0
      %771 = vmatpush1.msra.mxu0 0.0
      %772 = vmatprep.subr.mxu0 0.0
      %773 = vmatpush1.msra.mxu0 0.0
      %774 = vmatprep.subr.mxu0 0.0
      %775 = vmatpush1.msra.mxu0 0.0
      %776 = vmatprep.subr.mxu0 0.0
      %777 = vmatpush1.msra.mxu0 0.0
      %778 = vmatprep.subr.mxu0 0.0
      %779 = vmatpush1.msra.mxu0 0.0
      %780 = vmatprep.subr.mxu0 0.0
      %781 = vmatpush1.msra.mxu0 0.0
      %782 = vmatprep.subr.mxu0 0.0
      %783 = vmatpush1.msra.mxu0 0.0
      %784 = vmatprep.subr.mxu0 0.0
      %785 = vmatpush1.msra.mxu0 0.0
      %786 = vmatprep.subr.mxu0 0.0
      %787 = vmatpush1.msra.mxu0 0.0
      %788 = vmatprep.subr.mxu0 0.0
      %789 = vmatpush1.msra.mxu0 0.0
      %790 = vmatprep.subr.mxu0 0.0
      %791 = vmatpush1.msra.mxu0 0.0
      %792 = vmatprep.subr.mxu0 0.0
      %793 = vmatpush1.msra.mxu0 0.0
      %794 = vmatprep.subr.mxu0 0.0
      %795 = vmatpush1.msra.mxu0 0.0
      %796 = vmatprep.subr.mxu0 0.0
      %797 = vmatpush1.msra.mxu0 0.0
      %798 = vmatprep.subr.mxu0 0.0
      %799 = vmatpush1.msra.mxu0 0.0
      %800 = vmatprep.subr.mxu0 0.0
      %801 = vmatpush1.msra.mxu0 0.0
      %802 = vmatprep.subr.mxu0 0.0
      %803 = vmatpush1.msra.mxu0 0.0
      %804 = vmatprep.subr.mxu0 0.0
      %805 = vmatpush1.msra.mxu0 0.0
      %806 = vmatprep.subr.mxu0 0.0
      %807 = vmatpush1.msra.mxu0 0.0
      %808 = vmatprep.subr.mxu0 0.0
      %809 = vmatpush1.msra.mxu0 0.0
      %810 = vmatprep.subr.mxu0 0.0
      %811 = vmatpush1.msra.mxu0 0.0
      %812 = vmatprep.subr.mxu0 0.0
      %813 = vmatpush1.msra.mxu0 0.0
      %814 = vmatprep.subr.mxu0 0.0
      %815 = vmatpush1.msra.mxu0 0.0
      %816 = vmatprep.subr.mxu0 0.0
      %817 = vmatpush1.msra.mxu0 0.0
      %818 = vmatprep.subr.mxu0 0.0
      %819 = vmatpush1.msra.mxu0 0.0
      %820 = vmatprep.subr.mxu0 0.0
      %821 = vmatpush1.msra.mxu0 0.0
      %822 = vmatprep.subr.mxu0 0.0
      %823 = vmatpush1.msra.mxu0 0.0
      %824 = vmatprep.subr.mxu0 0.0
      %825 = vmatpush1.msra.mxu0 0.0
      %826 = vmatprep.subr.mxu0 0.0
      %827 = vmatpush1.msra.mxu0 0.0
      %828 = vmatprep.subr.mxu0 0.0
      %829 = vmatpush1.msra.mxu0 0.0
      %830 = vmatprep.mubr.f32.mxu0 0.0
      %831 = vmatmul.mubr.f32.gmra.mrb[0].mxu0 %v758
      %v832 = vpop.f32.mrb[0].mxu0
      %v833 = vadd.f32 0.0, %v832
      %v834 = vpop.f32.mrb[0].mxu0
      %v835 = vadd.f32 0.0, %v834
      %836 = vdwg.mxu0
      %837 = vmatprep.subr.mxu0 0.0
      %838 = vmatpush1.msra.mxu0 %v764
      %839 = vmatprep.subr.mxu0 0.0
      %840 = vmatpush1.msra.mxu0 0.0
      %841 = vmatprep.subr.mxu0 0.0
      %842 = vmatpush1.msra.mxu0 0.0
      %843 = vmatprep.subr.mxu0 0.0
      %844 = vmatpush1.msra.mxu0 0.0
      %845 = vmatprep.subr.mxu0 0.0
      %846 = vmatpush1.msra.mxu0 0.0
      %847 = vmatprep.subr.mxu0 0.0
      %848 = vmatpush1.msra.mxu0 0.0
      %849 = vmatprep.subr.mxu0 0.0
      %850 = vmatpush1.msra.mxu0 0.0
      %851 = vmatprep.subr.mxu0 0.0
      %852 = vmatpush1.msra.mxu0 0.0
      %853 = vmatprep.subr.mxu0 0.0
      %854 = vmatpush1.msra.mxu0 0.0
      %855 = vmatprep.subr.mxu0 0.0
      %856 = vmatpush1.msra.mxu0 0.0
      %857 = vmatprep.subr.mxu0 0.0
      %858 = vmatpush1.msra.mxu0 0.0
      %859 = vmatprep.subr.mxu0 0.0
      %860 = vmatpush1.msra.mxu0 0.0
      %861 = vmatprep.subr.mxu0 0.0
      %862 = vmatpush1.msra.mxu0 0.0
      %863 = vmatprep.subr.mxu0 0.0
      %864 = vmatpush1.msra.mxu0 0.0
      %865 = vmatprep.subr.mxu0 0.0
      %866 = vmatpush1.msra.mxu0 0.0
      %867 = vmatprep.subr.mxu0 0.0
      %868 = vmatpush1.msra.mxu0 0.0
      %869 = vmatprep.subr.mxu0 0.0
      %870 = vmatpush1.msra.mxu0 0.0
      %871 = vmatprep.subr.mxu0 0.0
      %872 = vmatpush1.msra.mxu0 0.0
      %873 = vmatprep.subr.mxu0 0.0
      %874 = vmatpush1.msra.mxu0 0.0
      %875 = vmatprep.subr.mxu0 0.0
      %876 = vmatpush1.msra.mxu0 0.0
      %877 = vmatprep.subr.mxu0 0.0
      %878 = vmatpush1.msra.mxu0 0.0
      %879 = vmatprep.subr.mxu0 0.0
      %880 = vmatpush1.msra.mxu0 0.0
      %881 = vmatprep.subr.mxu0 0.0
      %882 = vmatpush1.msra.mxu0 0.0
      %883 = vmatprep.subr.mxu0 0.0
      %884 = vmatpush1.msra.mxu0 0.0
      %885 = vmatprep.subr.mxu0 0.0
      %886 = vmatpush1.msra.mxu0 0.0
      %887 = vmatprep.subr.mxu0 0.0
      %888 = vmatpush1.msra.mxu0 0.0
      %889 = vmatprep.subr.mxu0 0.0
      %890 = vmatpush1.msra.mxu0 0.0
      %891 = vmatprep.subr.mxu0 0.0
      %892 = vmatpush1.msra.mxu0 0.0
      %893 = vmatprep.subr.mxu0 0.0
      %894 = vmatpush1.msra.mxu0 0.0
      %895 = vmatprep.subr.mxu0 0.0
      %896 = vmatpush1.msra.mxu0 0.0
      %897 = vmatprep.subr.mxu0 0.0
      %898 = vmatpush1.msra.mxu0 0.0
      %899 = vmatprep.subr.mxu0 0.0
      %900 = vmatpush1.msra.mxu0 0.0
      %901 = vmatprep.mubr.f32.mxu0 0.0
      %902 = vmatmul.mubr.f32.gmra.mrb[0].mxu0 %v758
      %v903 = vpop.f32.mrb[0].mxu0
      %v904 = vadd.f32 0.0, %v903
      %v905 = vpop.f32.mrb[0].mxu0
      %906 = vdwg.mxu0
      %v907 = vadd.f32 %v672, %v833
      %v908 = vadd.f32 %v674, %v835
      %v909 = vadd.f32 %v743, %v904
      %v910 = vld [vmem:[%s389 + $0x18] sm:$0xf]
      %v911 = vld [vmem:[%s389 + $0x20] sm:$0xf]
      %v912 = vld [vmem:[%s389 + $0x28] sm:$0xf]
      %s913 = scalar_lea.vmem %s394, 12
      %v914 = vld [vmem:[%s913] sm:$0xf]
      %v916 = vsel %vm441, %v914, 0
      %v919 = vsel %vm445, %v910, 0
      %v922 = vsel %vm445, %v911, 0
      %v925 = vsel %vm445, %v912, 0
      %927 = vmatprep.subr.mxu0 %v922
      %928 = vmatpush1.msra.mxu0 %v919
      %929 = vmatprep.subr.mxu0 0.0
      %930 = vmatpush1.msra.mxu0 0.0
      %931 = vmatprep.subr.mxu0 0.0
      %932 = vmatpush1.msra.mxu0 0.0
      %933 = vmatprep.subr.mxu0 0.0
      %934 = vmatpush1.msra.mxu0 0.0
      %935 = vmatprep.subr.mxu0 0.0
      %936 = vmatpush1.msra.mxu0 0.0
      %937 = vmatprep.subr.mxu0 0.0
      %938 = vmatpush1.msra.mxu0 0.0
      %939 = vmatprep.subr.mxu0 0.0
      %940 = vmatpush1.msra.mxu0 0.0
      %941 = vmatprep.subr.mxu0 0.0
      %942 = vmatpush1.msra.mxu0 0.0
      %943 = vmatprep.subr.mxu0 0.0
      %944 = vmatpush1.msra.mxu0 0.0
      %945 = vmatprep.subr.mxu0 0.0
      %946 = vmatpush1.msra.mxu0 0.0
      %947 = vmatprep.subr.mxu0 0.0
      %948 = vmatpush1.msra.mxu0 0.0
      %949 = vmatprep.subr.mxu0 0.0
      %950 = vmatpush1.msra.mxu0 0.0
      %951 = vmatprep.subr.mxu0 0.0
      %952 = vmatpush1.msra.mxu0 0.0
      %953 = vmatprep.subr.mxu0 0.0
      %954 = vmatpush1.msra.mxu0 0.0
      %955 = vmatprep.subr.mxu0 0.0
      %956 = vmatpush1.msra.mxu0 0.0
      %957 = vmatprep.subr.mxu0 0.0
      %958 = vmatpush1.msra.mxu0 0.0
      %959 = vmatprep.subr.mxu0 0.0
      %960 = vmatpush1.msra.mxu0 0.0
      %961 = vmatprep.subr.mxu0 0.0
      %962 = vmatpush1.msra.mxu0 0.0
      %963 = vmatprep.subr.mxu0 0.0
      %964 = vmatpush1.msra.mxu0 0.0
      %965 = vmatprep.subr.mxu0 0.0
      %966 = vmatpush1.msra.mxu0 0.0
      %967 = vmatprep.subr.mxu0 0.0
      %968 = vmatpush1.msra.mxu0 0.0
      %969 = vmatprep.subr.mxu0 0.0
      %970 = vmatpush1.msra.mxu0 0.0
      %971 = vmatprep.subr.mxu0 0.0
      %972 = vmatpush1.msra.mxu0 0.0
      %973 = vmatprep.subr.mxu0 0.0
      %974 = vmatpush1.msra.mxu0 0.0
      %975 = vmatprep.subr.mxu0 0.0
      %976 = vmatpush1.msra.mxu0 0.0
      %977 = vmatprep.subr.mxu0 0.0
      %978 = vmatpush1.msra.mxu0 0.0
      %979 = vmatprep.subr.mxu0 0.0
      %980 = vmatpush1.msra.mxu0 0.0
      %981 = vmatprep.subr.mxu0 0.0
      %982 = vmatpush1.msra.mxu0 0.0
      %983 = vmatprep.subr.mxu0 0.0
      %984 = vmatpush1.msra.mxu0 0.0
      %985 = vmatprep.subr.mxu0 0.0
      %986 = vmatpush1.msra.mxu0 0.0
      %987 = vmatprep.subr.mxu0 0.0
      %988 = vmatpush1.msra.mxu0 0.0
      %989 = vmatprep.subr.mxu0 0.0
      %990 = vmatpush1.msra.mxu0 0.0
      %991 = vmatprep.mubr.f32.mxu0 0.0
      %992 = vmatmul.mubr.f32.gmra.mrb[0].mxu0 %v916
      %v993 = vpop.f32.mrb[0].mxu0
      %v994 = vadd.f32 0.0, %v993
      %v995 = vpop.f32.mrb[0].mxu0
      %v996 = vadd.f32 0.0, %v995
      %997 = vdwg.mxu0
      %998 = vmatprep.subr.mxu0 0.0
      %999 = vmatpush1.msra.mxu0 %v925
      %1000 = vmatprep.subr.mxu0 0.0
      %1001 = vmatpush1.msra.mxu0 0.0
      %1002 = vmatprep.subr.mxu0 0.0
      %1003 = vmatpush1.msra.mxu0 0.0
      %1004 = vmatprep.subr.mxu0 0.0
      %1005 = vmatpush1.msra.mxu0 0.0
      %1006 = vmatprep.subr.mxu0 0.0
      %1007 = vmatpush1.msra.mxu0 0.0
      %1008 = vmatprep.subr.mxu0 0.0
      %1009 = vmatpush1.msra.mxu0 0.0
      %1010 = vmatprep.subr.mxu0 0.0
      %1011 = vmatpush1.msra.mxu0 0.0
      %1012 = vmatprep.subr.mxu0 0.0
      %1013 = vmatpush1.msra.mxu0 0.0
      %1014 = vmatprep.subr.mxu0 0.0
      %1015 = vmatpush1.msra.mxu0 0.0
      %1016 = vmatprep.subr.mxu0 0.0
      %1017 = vmatpush1.msra.mxu0 0.0
      %1018 = vmatprep.subr.mxu0 0.0
      %1019 = vmatpush1.msra.mxu0 0.0
      %1020 = vmatprep.subr.mxu0 0.0
      %1021 = vmatpush1.msra.mxu0 0.0
      %1022 = vmatprep.subr.mxu0 0.0
      %1023 = vmatpush1.msra.mxu0 0.0
      %1024 = vmatprep.subr.mxu0 0.0
      %1025 = vmatpush1.msra.mxu0 0.0
      %1026 = vmatprep.subr.mxu0 0.0
      %1027 = vmatpush1.msra.mxu0 0.0
      %1028 = vmatprep.subr.mxu0 0.0
      %1029 = vmatpush1.msra.mxu0 0.0
      %1030 = vmatprep.subr.mxu0 0.0
      %1031 = vmatpush1.msra.mxu0 0.0
      %1032 = vmatprep.subr.mxu0 0.0
      %1033 = vmatpush1.msra.mxu0 0.0
      %1034 = vmatprep.subr.mxu0 0.0
      %1035 = vmatpush1.msra.mxu0 0.0
      %1036 = vmatprep.subr.mxu0 0.0
      %1037 = vmatpush1.msra.mxu0 0.0
      %1038 = vmatprep.subr.mxu0 0.0
      %1039 = vmatpush1.msra.mxu0 0.0
      %1040 = vmatprep.subr.mxu0 0.0
      %1041 = vmatpush1.msra.mxu0 0.0
      %1042 = vmatprep.subr.mxu0 0.0
      %1043 = vmatpush1.msra.mxu0 0.0
      %1044 = vmatprep.subr.mxu0 0.0
      %1045 = vmatpush1.msra.mxu0 0.0
      %1046 = vmatprep.subr.mxu0 0.0
      %1047 = vmatpush1.msra.mxu0 0.0
      %1048 = vmatprep.subr.mxu0 0.0
      %1049 = vmatpush1.msra.mxu0 0.0
      %1050 = vmatprep.subr.mxu0 0.0
      %1051 = vmatpush1.msra.mxu0 0.0
      %1052 = vmatprep.subr.mxu0 0.0
      %1053 = vmatpush1.msra.mxu0 0.0
      %1054 = vmatprep.subr.mxu0 0.0
      %1055 = vmatpush1.msra.mxu0 0.0
      %1056 = vmatprep.subr.mxu0 0.0
      %1057 = vmatpush1.msra.mxu0 0.0
      %1058 = vmatprep.subr.mxu0 0.0
      %1059 = vmatpush1.msra.mxu0 0.0
      %1060 = vmatprep.subr.mxu0 0.0
      %1061 = vmatpush1.msra.mxu0 0.0
      %1062 = vmatprep.mubr.f32.mxu0 0.0
      %1063 = vmatmul.mubr.f32.gmra.mrb[0].mxu0 %v916
      %v1064 = vpop.f32.mrb[0].mxu0
      %v1065 = vadd.f32 0.0, %v1064
      %v1066 = vpop.f32.mrb[0].mxu0
      %1067 = vdwg.mxu0
      %v1068 = vadd.f32 %v907, %v994
      %v1069 = vadd.f32 %v908, %v996
      %v1070 = vadd.f32 %v909, %v1065
      %v1071 = vld [vmem:[%s389 + $0x18] sm:$0xf0]
      %v1072 = vld [vmem:[%s389 + $0x20] sm:$0xf0]
      %v1073 = vld [vmem:[%s389 + $0x28] sm:$0xf0]
      %s1074 = scalar_lea.vmem %s394, 16
      %v1075 = vld [vmem:[%s1074] sm:$0xf]
      %v1079 = vrot.slane %v1071, 4
      %v1080 = vrot.slane %v1072, 4
      %v1081 = vrot.slane %v1073, 4
      %v1083 = vsel %vm441, %v1075, 0
      %v1085 = vsel %vm445, %v1079, 0
      %v1087 = vsel %vm445, %v1080, 0
      %v1089 = vsel %vm445, %v1081, 0
      %1091 = vmatprep.subr.mxu0 %v1087
      %1092 = vmatpush1.msra.mxu0 %v1085
      %1093 = vmatprep.subr.mxu0 0.0
      %1094 = vmatpush1.msra.mxu0 0.0
      %1095 = vmatprep.subr.mxu0 0.0
      %1096 = vmatpush1.msra.mxu0 0.0
      %1097 = vmatprep.subr.mxu0 0.0
      %1098 = vmatpush1.msra.mxu0 0.0
      %1099 = vmatprep.subr.mxu0 0.0
      %1100 = vmatpush1.msra.mxu0 0.0
      %1101 = vmatprep.subr.mxu0 0.0
      %1102 = vmatpush1.msra.mxu0 0.0
      %1103 = vmatprep.subr.mxu0 0.0
      %1104 = vmatpush1.msra.mxu0 0.0
      %1105 = vmatprep.subr.mxu0 0.0
      %1106 = vmatpush1.msra.mxu0 0.0
      %1107 = vmatprep.subr.mxu0 0.0
      %1108 = vmatpush1.msra.mxu0 0.0
      %1109 = vmatprep.subr.mxu0 0.0
      %1110 = vmatpush1.msra.mxu0 0.0
      %1111 = vmatprep.subr.mxu0 0.0
      %1112 = vmatpush1.msra.mxu0 0.0
      %1113 = vmatprep.subr.mxu0 0.0
      %1114 = vmatpush1.msra.mxu0 0.0
      %1115 = vmatprep.subr.mxu0 0.0
      %1116 = vmatpush1.msra.mxu0 0.0
      %1117 = vmatprep.subr.mxu0 0.0
      %1118 = vmatpush1.msra.mxu0 0.0
      %1119 = vmatprep.subr.mxu0 0.0
      %1120 = vmatpush1.msra.mxu0 0.0
      %1121 = vmatprep.subr.mxu0 0.0
      %1122 = vmatpush1.msra.mxu0 0.0
      %1123 = vmatprep.subr.mxu0 0.0
      %1124 = vmatpush1.msra.mxu0 0.0
      %1125 = vmatprep.subr.mxu0 0.0
      %1126 = vmatpush1.msra.mxu0 0.0
      %1127 = vmatprep.subr.mxu0 0.0
      %1128 = vmatpush1.msra.mxu0 0.0
      %1129 = vmatprep.subr.mxu0 0.0
      %1130 = vmatpush1.msra.mxu0 0.0
      %1131 = vmatprep.subr.mxu0 0.0
      %1132 = vmatpush1.msra.mxu0 0.0
      %1133 = vmatprep.subr.mxu0 0.0
      %1134 = vmatpush1.msra.mxu0 0.0
      %1135 = vmatprep.subr.mxu0 0.0
      %1136 = vmatpush1.msra.mxu0 0.0
      %1137 = vmatprep.subr.mxu0 0.0
      %1138 = vmatpush1.msra.mxu0 0.0
      %1139 = vmatprep.subr.mxu0 0.0
      %1140 = vmatpush1.msra.mxu0 0.0
      %1141 = vmatprep.subr.mxu0 0.0
      %1142 = vmatpush1.msra.mxu0 0.0
      %1143 = vmatprep.subr.mxu0 0.0
      %1144 = vmatpush1.msra.mxu0 0.0
      %1145 = vmatprep.subr.mxu0 0.0
      %1146 = vmatpush1.msra.mxu0 0.0
      %1147 = vmatprep.subr.mxu0 0.0
      %1148 = vmatpush1.msra.mxu0 0.0
      %1149 = vmatprep.subr.mxu0 0.0
      %1150 = vmatpush1.msra.mxu0 0.0
      %1151 = vmatprep.subr.mxu0 0.0
      %1152 = vmatpush1.msra.mxu0 0.0
      %1153 = vmatprep.subr.mxu0 0.0
      %1154 = vmatpush1.msra.mxu0 0.0
      %1155 = vmatprep.mubr.f32.mxu0 0.0
      %1156 = vmatmul.mubr.f32.gmra.mrb[0].mxu0 %v1083
      %v1157 = vpop.f32.mrb[0].mxu0
      %v1158 = vadd.f32 0.0, %v1157
      %v1159 = vpop.f32.mrb[0].mxu0
      %v1160 = vadd.f32 0.0, %v1159
      %1161 = vdwg.mxu0
      %1162 = vmatprep.subr.mxu0 0.0
      %1163 = vmatpush1.msra.mxu0 %v1089
      %1164 = vmatprep.subr.mxu0 0.0
      %1165 = vmatpush1.msra.mxu0 0.0
      %1166 = vmatprep.subr.mxu0 0.0
      %1167 = vmatpush1.msra.mxu0 0.0
      %1168 = vmatprep.subr.mxu0 0.0
      %1169 = vmatpush1.msra.mxu0 0.0
      %1170 = vmatprep.subr.mxu0 0.0
      %1171 = vmatpush1.msra.mxu0 0.0
      %1172 = vmatprep.subr.mxu0 0.0
      %1173 = vmatpush1.msra.mxu0 0.0
      %1174 = vmatprep.subr.mxu0 0.0
      %1175 = vmatpush1.msra.mxu0 0.0
      %1176 = vmatprep.subr.mxu0 0.0
      %1177 = vmatpush1.msra.mxu0 0.0
      %1178 = vmatprep.subr.mxu0 0.0
      %1179 = vmatpush1.msra.mxu0 0.0
      %1180 = vmatprep.subr.mxu0 0.0
      %1181 = vmatpush1.msra.mxu0 0.0
      %1182 = vmatprep.subr.mxu0 0.0
      %1183 = vmatpush1.msra.mxu0 0.0
      %1184 = vmatprep.subr.mxu0 0.0
      %1185 = vmatpush1.msra.mxu0 0.0
      %1186 = vmatprep.subr.mxu0 0.0
      %1187 = vmatpush1.msra.mxu0 0.0
      %1188 = vmatprep.subr.mxu0 0.0
      %1189 = vmatpush1.msra.mxu0 0.0
      %1190 = vmatprep.subr.mxu0 0.0
      %1191 = vmatpush1.msra.mxu0 0.0
      %1192 = vmatprep.subr.mxu0 0.0
      %1193 = vmatpush1.msra.mxu0 0.0
      %1194 = vmatprep.subr.mxu0 0.0
      %1195 = vmatpush1.msra.mxu0 0.0
      %1196 = vmatprep.subr.mxu0 0.0
      %1197 = vmatpush1.msra.mxu0 0.0
      %1198 = vmatprep.subr.mxu0 0.0
      %1199 = vmatpush1.msra.mxu0 0.0
      %1200 = vmatprep.subr.mxu0 0.0
      %1201 = vmatpush1.msra.mxu0 0.0
      %1202 = vmatprep.subr.mxu0 0.0
      %1203 = vmatpush1.msra.mxu0 0.0
      %1204 = vmatprep.subr.mxu0 0.0
      %1205 = vmatpush1.msra.mxu0 0.0
      %1206 = vmatprep.subr.mxu0 0.0
      %1207 = vmatpush1.msra.mxu0 0.0
      %1208 = vmatprep.subr.mxu0 0.0
      %1209 = vmatpush1.msra.mxu0 0.0
      %1210 = vmatprep.subr.mxu0 0.0
      %1211 = vmatpush1.msra.mxu0 0.0
      %1212 = vmatprep.subr.mxu0 0.0
      %1213 = vmatpush1.msra.mxu0 0.0
      %1214 = vmatprep.subr.mxu0 0.0
      %1215 = vmatpush1.msra.mxu0 0.0
      %1216 = vmatprep.subr.mxu0 0.0
      %1217 = vmatpush1.msra.mxu0 0.0
      %1218 = vmatprep.subr.mxu0 0.0
      %1219 = vmatpush1.msra.mxu0 0.0
      %1220 = vmatprep.subr.mxu0 0.0
      %1221 = vmatpush1.msra.mxu0 0.0
      %1222 = vmatprep.subr.mxu0 0.0
      %1223 = vmatpush1.msra.mxu0 0.0
      %1224 = vmatprep.subr.mxu0 0.0
      %1225 = vmatpush1.msra.mxu0 0.0
      %1226 = vmatprep.mubr.f32.mxu0 0.0
      %1227 = vmatmul.mubr.f32.gmra.mrb[0].mxu0 %v1083
      %v1228 = vpop.f32.mrb[0].mxu0
      %v1229 = vadd.f32 0.0, %v1228
      %v1230 = vpop.f32.mrb[0].mxu0
      %1231 = vdwg.mxu0
      %v1232 = vadd.f32 %v1068, %v1158
      %v1233 = vadd.f32 %v1069, %v1160
      %v1234 = vadd.f32 %v1070, %v1229
      %s1235 = scalar_lea.vmem %s394, 20
      %v1236 = vld [vmem:[%s1235] sm:$0xf]
      %1237 = vrot.lane.b32.xlu0 %v910, 127
      %v1238 = vpop.permute.xlu0 %1237
      %1239 = vrot.lane.b32.xlu0 %v911, 127
      %v1240 = vpop.permute.xlu0 %1239
      %1241 = vrot.lane.b32.xlu0 %v912, 127
      %v1242 = vpop.permute.xlu0 %1241
      %v1243 = vsel %vm754, %v1238, %v1240
      %v1244 = vsel %vm754, %v1240, %v1242
      %v1246 = vsel %vm441, %v1236, 0
      %v1248 = vsel %vm445, %v1243, 0
      %v1250 = vsel %vm445, %v1244, 0
      %v1252 = vsel %vm445, %v1242, 0
      %1254 = vmatprep.subr.mxu0 %v1250
      %1255 = vmatpush1.msra.mxu0 %v1248
      %1256 = vmatprep.subr.mxu0 0.0
      %1257 = vmatpush1.msra.mxu0 0.0
      %1258 = vmatprep.subr.mxu0 0.0
      %1259 = vmatpush1.msra.mxu0 0.0
      %1260 = vmatprep.subr.mxu0 0.0
      %1261 = vmatpush1.msra.mxu0 0.0
      %1262 = vmatprep.subr.mxu0 0.0
      %1263 = vmatpush1.msra.mxu0 0.0
      %1264 = vmatprep.subr.mxu0 0.0
      %1265 = vmatpush1.msra.mxu0 0.0
      %1266 = vmatprep.subr.mxu0 0.0
      %1267 = vmatpush1.msra.mxu0 0.0
      %1268 = vmatprep.subr.mxu0 0.0
      %1269 = vmatpush1.msra.mxu0 0.0
      %1270 = vmatprep.subr.mxu0 0.0
      %1271 = vmatpush1.msra.mxu0 0.0
      %1272 = vmatprep.subr.mxu0 0.0
      %1273 = vmatpush1.msra.mxu0 0.0
      %1274 = vmatprep.subr.mxu0 0.0
      %1275 = vmatpush1.msra.mxu0 0.0
      %1276 = vmatprep.subr.mxu0 0.0
      %1277 = vmatpush1.msra.mxu0 0.0
      %1278 = vmatprep.subr.mxu0 0.0
      %1279 = vmatpush1.msra.mxu0 0.0
      %1280 = vmatprep.subr.mxu0 0.0
      %1281 = vmatpush1.msra.mxu0 0.0
      %1282 = vmatprep.subr.mxu0 0.0
      %1283 = vmatpush1.msra.mxu0 0.0
      %1284 = vmatprep.subr.mxu0 0.0
      %1285 = vmatpush1.msra.mxu0 0.0
      %1286 = vmatprep.subr.mxu0 0.0
      %1287 = vmatpush1.msra.mxu0 0.0
      %1288 = vmatprep.subr.mxu0 0.0
      %1289 = vmatpush1.msra.mxu0 0.0
      %1290 = vmatprep.subr.mxu0 0.0
      %1291 = vmatpush1.msra.mxu0 0.0
      %1292 = vmatprep.subr.mxu0 0.0
      %1293 = vmatpush1.msra.mxu0 0.0
      %1294 = vmatprep.subr.mxu0 0.0
      %1295 = vmatpush1.msra.mxu0 0.0
      %1296 = vmatprep.subr.mxu0 0.0
      %1297 = vmatpush1.msra.mxu0 0.0
      %1298 = vmatprep.subr.mxu0 0.0
      %1299 = vmatpush1.msra.mxu0 0.0
      %1300 = vmatprep.subr.mxu0 0.0
      %1301 = vmatpush1.msra.mxu0 0.0
      %1302 = vmatprep.subr.mxu0 0.0
      %1303 = vmatpush1.msra.mxu0 0.0
      %1304 = vmatprep.subr.mxu0 0.0
      %1305 = vmatpush1.msra.mxu0 0.0
      %1306 = vmatprep.subr.mxu0 0.0
      %1307 = vmatpush1.msra.mxu0 0.0
      %1308 = vmatprep.subr.mxu0 0.0
      %1309 = vmatpush1.msra.mxu0 0.0
      %1310 = vmatprep.subr.mxu0 0.0
      %1311 = vmatpush1.msra.mxu0 0.0
      %1312 = vmatprep.subr.mxu0 0.0
      %1313 = vmatpush1.msra.mxu0 0.0
      %1314 = vmatprep.subr.mxu0 0.0
      %1315 = vmatpush1.msra.mxu0 0.0
      %1316 = vmatprep.subr.mxu0 0.0
      %1317 = vmatpush1.msra.mxu0 0.0
      %1318 = vmatprep.mubr.f32.mxu0 0.0
      %1319 = vmatmul.mubr.f32.gmra.mrb[0].mxu0 %v1246
      %v1320 = vpop.f32.mrb[0].mxu0
      %v1321 = vadd.f32 0.0, %v1320
      %v1322 = vpop.f32.mrb[0].mxu0
      %v1323 = vadd.f32 0.0, %v1322
      %1324 = vdwg.mxu0
      %1325 = vmatprep.subr.mxu0 0.0
      %1326 = vmatpush1.msra.mxu0 %v1252
      %1327 = vmatprep.subr.mxu0 0.0
      %1328 = vmatpush1.msra.mxu0 0.0
      %1329 = vmatprep.subr.mxu0 0.0
      %1330 = vmatpush1.msra.mxu0 0.0
      %1331 = vmatprep.subr.mxu0 0.0
      %1332 = vmatpush1.msra.mxu0 0.0
      %1333 = vmatprep.subr.mxu0 0.0
      %1334 = vmatpush1.msra.mxu0 0.0
      %1335 = vmatprep.subr.mxu0 0.0
      %1336 = vmatpush1.msra.mxu0 0.0
      %1337 = vmatprep.subr.mxu0 0.0
      %1338 = vmatpush1.msra.mxu0 0.0
      %1339 = vmatprep.subr.mxu0 0.0
      %1340 = vmatpush1.msra.mxu0 0.0
      %1341 = vmatprep.subr.mxu0 0.0
      %1342 = vmatpush1.msra.mxu0 0.0
      %1343 = vmatprep.subr.mxu0 0.0
      %1344 = vmatpush1.msra.mxu0 0.0
      %1345 = vmatprep.subr.mxu0 0.0
      %1346 = vmatpush1.msra.mxu0 0.0
      %1347 = vmatprep.subr.mxu0 0.0
      %1348 = vmatpush1.msra.mxu0 0.0
      %1349 = vmatprep.subr.mxu0 0.0
      %1350 = vmatpush1.msra.mxu0 0.0
      %1351 = vmatprep.subr.mxu0 0.0
      %1352 = vmatpush1.msra.mxu0 0.0
      %1353 = vmatprep.subr.mxu0 0.0
      %1354 = vmatpush1.msra.mxu0 0.0
      %1355 = vmatprep.subr.mxu0 0.0
      %1356 = vmatpush1.msra.mxu0 0.0
      %1357 = vmatprep.subr.mxu0 0.0
      %1358 = vmatpush1.msra.mxu0 0.0
      %1359 = vmatprep.subr.mxu0 0.0
      %1360 = vmatpush1.msra.mxu0 0.0
      %1361 = vmatprep.subr.mxu0 0.0
      %1362 = vmatpush1.msra.mxu0 0.0
      %1363 = vmatprep.subr.mxu0 0.0
      %1364 = vmatpush1.msra.mxu0 0.0
      %1365 = vmatprep.subr.mxu0 0.0
      %1366 = vmatpush1.msra.mxu0 0.0
      %1367 = vmatprep.subr.mxu0 0.0
      %1368 = vmatpush1.msra.mxu0 0.0
      %1369 = vmatprep.subr.mxu0 0.0
      %1370 = vmatpush1.msra.mxu0 0.0
      %1371 = vmatprep.subr.mxu0 0.0
      %1372 = vmatpush1.msra.mxu0 0.0
      %1373 = vmatprep.subr.mxu0 0.0
      %1374 = vmatpush1.msra.mxu0 0.0
      %1375 = vmatprep.subr.mxu0 0.0
      %1376 = vmatpush1.msra.mxu0 0.0
      %1377 = vmatprep.subr.mxu0 0.0
      %1378 = vmatpush1.msra.mxu0 0.0
      %1379 = vmatprep.subr.mxu0 0.0
      %1380 = vmatpush1.msra.mxu0 0.0
      %1381 = vmatprep.subr.mxu0 0.0
      %1382 = vmatpush1.msra.mxu0 0.0
      %1383 = vmatprep.subr.mxu0 0.0
      %1384 = vmatpush1.msra.mxu0 0.0
      %1385 = vmatprep.subr.mxu0 0.0
      %1386 = vmatpush1.msra.mxu0 0.0
      %1387 = vmatprep.subr.mxu0 0.0
      %1388 = vmatpush1.msra.mxu0 0.0
      %1389 = vmatprep.mubr.f32.mxu0 0.0
      %1390 = vmatmul.mubr.f32.gmra.mrb[0].mxu0 %v1246
      %v1391 = vpop.f32.mrb[0].mxu0
      %v1392 = vadd.f32 0.0, %v1391
      %v1393 = vpop.f32.mrb[0].mxu0
      %1394 = vdwg.mxu0
      %v1395 = vadd.f32 %v1232, %v1321
      %v1396 = vadd.f32 %v1233, %v1323
      %v1397 = vadd.f32 %v1234, %v1392
      %s1398 = scalar_lea.vmem %s394, 24
      %v1399 = vld [vmem:[%s1398] sm:$0xf]
      %1400 = vrot.lane.b32.xlu0 %v426, 113
      %v1401 = vpop.permute.xlu0 %1400
      %1402 = vrot.lane.b32.xlu0 %v427, 113
      %v1403 = vpop.permute.xlu0 %1402
      %1404 = vrot.lane.b32.xlu0 %v428, 113
      %v1405 = vpop.permute.xlu0 %1404
      %vm1406 = vcmask 924672
      %v1407 = vsel %vm1406, %v1401, %v1403
      %v1408 = vsel %vm1406, %v1403, %v1405
      %v1410 = vsel %vm441, %v1399, 0
      %v1412 = vsel %vm445, %v1407, 0
      %v1414 = vsel %vm445, %v1408, 0
      %v1416 = vsel %vm445, %v1405, 0
      %1418 = vmatprep.subr.mxu0 %v1414
      %1419 = vmatpush1.msra.mxu0 %v1412
      %1420 = vmatprep.subr.mxu0 0.0
      %1421 = vmatpush1.msra.mxu0 0.0
      %1422 = vmatprep.subr.mxu0 0.0
      %1423 = vmatpush1.msra.mxu0 0.0
      %1424 = vmatprep.subr.mxu0 0.0
      %1425 = vmatpush1.msra.mxu0 0.0
      %1426 = vmatprep.subr.mxu0 0.0
      %1427 = vmatpush1.msra.mxu0 0.0
      %1428 = vmatprep.subr.mxu0 0.0
      %1429 = vmatpush1.msra.mxu0 0.0
      %1430 = vmatprep.subr.mxu0 0.0
      %1431 = vmatpush1.msra.mxu0 0.0
      %1432 = vmatprep.subr.mxu0 0.0
      %1433 = vmatpush1.msra.mxu0 0.0
      %1434 = vmatprep.subr.mxu0 0.0
      %1435 = vmatpush1.msra.mxu0 0.0
      %1436 = vmatprep.subr.mxu0 0.0
      %1437 = vmatpush1.msra.mxu0 0.0
      %1438 = vmatprep.subr.mxu0 0.0
      %1439 = vmatpush1.msra.mxu0 0.0
      %1440 = vmatprep.subr.mxu0 0.0
      %1441 = vmatpush1.msra.mxu0 0.0
      %1442 = vmatprep.subr.mxu0 0.0
      %1443 = vmatpush1.msra.mxu0 0.0
      %1444 = vmatprep.subr.mxu0 0.0
      %1445 = vmatpush1.msra.mxu0 0.0
      %1446 = vmatprep.subr.mxu0 0.0
      %1447 = vmatpush1.msra.mxu0 0.0
      %1448 = vmatprep.subr.mxu0 0.0
      %1449 = vmatpush1.msra.mxu0 0.0
      %1450 = vmatprep.subr.mxu0 0.0
      %1451 = vmatpush1.msra.mxu0 0.0
      %1452 = vmatprep.subr.mxu0 0.0
      %1453 = vmatpush1.msra.mxu0 0.0
      %1454 = vmatprep.subr.mxu0 0.0
      %1455 = vmatpush1.msra.mxu0 0.0
      %1456 = vmatprep.subr.mxu0 0.0
      %1457 = vmatpush1.msra.mxu0 0.0
      %1458 = vmatprep.subr.mxu0 0.0
      %1459 = vmatpush1.msra.mxu0 0.0
      %1460 = vmatprep.subr.mxu0 0.0
      %1461 = vmatpush1.msra.mxu0 0.0
      %1462 = vmatprep.subr.mxu0 0.0
      %1463 = vmatpush1.msra.mxu0 0.0
      %1464 = vmatprep.subr.mxu0 0.0
      %1465 = vmatpush1.msra.mxu0 0.0
      %1466 = vmatprep.subr.mxu0 0.0
      %1467 = vmatpush1.msra.mxu0 0.0
      %1468 = vmatprep.subr.mxu0 0.0
      %1469 = vmatpush1.msra.mxu0 0.0
      %1470 = vmatprep.subr.mxu0 0.0
      %1471 = vmatpush1.msra.mxu0 0.0
      %1472 = vmatprep.subr.mxu0 0.0
      %1473 = vmatpush1.msra.mxu0 0.0
      %1474 = vmatprep.subr.mxu0 0.0
      %1475 = vmatpush1.msra.mxu0 0.0
      %1476 = vmatprep.subr.mxu0 0.0
      %1477 = vmatpush1.msra.mxu0 0.0
      %1478 = vmatprep.subr.mxu0 0.0
      %1479 = vmatpush1.msra.mxu0 0.0
      %1480 = vmatprep.subr.mxu0 0.0
      %1481 = vmatpush1.msra.mxu0 0.0
      %1482 = vmatprep.mubr.f32.mxu0 0.0
      %1483 = vmatmul.mubr.f32.gmra.mrb[0].mxu0 %v1410
      %v1484 = vpop.f32.mrb[0].mxu0
      %v1485 = vadd.f32 0.0, %v1484
      %v1486 = vpop.f32.mrb[0].mxu0
      %v1487 = vadd.f32 0.0, %v1486
      %1488 = vdwg.mxu0
      %1489 = vmatprep.subr.mxu0 0.0
      %1490 = vmatpush1.msra.mxu0 %v1416
      %1491 = vmatprep.subr.mxu0 0.0
      %1492 = vmatpush1.msra.mxu0 0.0
      %1493 = vmatprep.subr.mxu0 0.0
      %1494 = vmatpush1.msra.mxu0 0.0
      %1495 = vmatprep.subr.mxu0 0.0
      %1496 = vmatpush1.msra.mxu0 0.0
      %1497 = vmatprep.subr.mxu0 0.0
      %1498 = vmatpush1.msra.mxu0 0.0
      %1499 = vmatprep.subr.mxu0 0.0
      %1500 = vmatpush1.msra.mxu0 0.0
      %1501 = vmatprep.subr.mxu0 0.0
      %1502 = vmatpush1.msra.mxu0 0.0
      %1503 = vmatprep.subr.mxu0 0.0
      %1504 = vmatpush1.msra.mxu0 0.0
      %1505 = vmatprep.subr.mxu0 0.0
      %1506 = vmatpush1.msra.mxu0 0.0
      %1507 = vmatprep.subr.mxu0 0.0
      %1508 = vmatpush1.msra.mxu0 0.0
      %1509 = vmatprep.subr.mxu0 0.0
      %1510 = vmatpush1.msra.mxu0 0.0
      %1511 = vmatprep.subr.mxu0 0.0
      %1512 = vmatpush1.msra.mxu0 0.0
      %1513 = vmatprep.subr.mxu0 0.0
      %1514 = vmatpush1.msra.mxu0 0.0
      %1515 = vmatprep.subr.mxu0 0.0
      %1516 = vmatpush1.msra.mxu0 0.0
      %1517 = vmatprep.subr.mxu0 0.0
      %1518 = vmatpush1.msra.mxu0 0.0
      %1519 = vmatprep.subr.mxu0 0.0
      %1520 = vmatpush1.msra.mxu0 0.0
      %1521 = vmatprep.subr.mxu0 0.0
      %1522 = vmatpush1.msra.mxu0 0.0
      %1523 = vmatprep.subr.mxu0 0.0
      %1524 = vmatpush1.msra.mxu0 0.0
      %1525 = vmatprep.subr.mxu0 0.0
      %1526 = vmatpush1.msra.mxu0 0.0
      %1527 = vmatprep.subr.mxu0 0.0
      %1528 = vmatpush1.msra.mxu0 0.0
      %1529 = vmatprep.subr.mxu0 0.0
      %1530 = vmatpush1.msra.mxu0 0.0
      %1531 = vmatprep.subr.mxu0 0.0
      %1532 = vmatpush1.msra.mxu0 0.0
      %1533 = vmatprep.subr.mxu0 0.0
      %1534 = vmatpush1.msra.mxu0 0.0
      %1535 = vmatprep.subr.mxu0 0.0
      %1536 = vmatpush1.msra.mxu0 0.0
      %1537 = vmatprep.subr.mxu0 0.0
      %1538 = vmatpush1.msra.mxu0 0.0
      %1539 = vmatprep.subr.mxu0 0.0
      %1540 = vmatpush1.msra.mxu0 0.0
      %1541 = vmatprep.subr.mxu0 0.0
      %1542 = vmatpush1.msra.mxu0 0.0
      %1543 = vmatprep.subr.mxu0 0.0
      %1544 = vmatpush1.msra.mxu0 0.0
      %1545 = vmatprep.subr.mxu0 0.0
      %1546 = vmatpush1.msra.mxu0 0.0
      %1547 = vmatprep.subr.mxu0 0.0
      %1548 = vmatpush1.msra.mxu0 0.0
      %1549 = vmatprep.subr.mxu0 0.0
      %1550 = vmatpush1.msra.mxu0 0.0
      %1551 = vmatprep.subr.mxu0 0.0
      %1552 = vmatpush1.msra.mxu0 0.0
      %1553 = vmatprep.mubr.f32.mxu0 0.0
      %1554 = vmatmul.mubr.f32.gmra.mrb[0].mxu0 %v1410
      %v1555 = vpop.f32.mrb[0].mxu0
      %v1556 = vadd.f32 0.0, %v1555
      %v1557 = vpop.f32.mrb[0].mxu0
      %1558 = vdwg.mxu0
      %v1559 = vadd.f32 %v1395, %v1485
      %v1560 = vadd.f32 %v1396, %v1487
      %v1561 = vadd.f32 %v1397, %v1556
      %s1562 = scalar_lea.vmem %s394, 28
      %v1563 = vld [vmem:[%s1562] sm:$0xf]
      %1564 = vrot.lane.b32.xlu0 %v438, 113
      %v1565 = vpop.permute.xlu0 %1564
      %1566 = vrot.lane.b32.xlu0 %v439, 113
      %v1567 = vpop.permute.xlu0 %1566
      %1568 = vrot.lane.b32.xlu0 %v440, 113
      %v1569 = vpop.permute.xlu0 %1568
      %v1570 = vsel %vm1406, %v1565, %v1567
      %v1571 = vsel %vm1406, %v1567, %v1569
      %v1573 = vsel %vm441, %v1563, 0
      %v1575 = vsel %vm445, %v1570, 0
      %v1577 = vsel %vm445, %v1571, 0
      %v1579 = vsel %vm445, %v1569, 0
      %1581 = vmatprep.subr.mxu0 %v1577
      %1582 = vmatpush1.msra.mxu0 %v1575
      %1583 = vmatprep.subr.mxu0 0.0
      %1584 = vmatpush1.msra.mxu0 0.0
      %1585 = vmatprep.subr.mxu0 0.0
      %1586 = vmatpush1.msra.mxu0 0.0
      %1587 = vmatprep.subr.mxu0 0.0
      %1588 = vmatpush1.msra.mxu0 0.0
      %1589 = vmatprep.subr.mxu0 0.0
      %1590 = vmatpush1.msra.mxu0 0.0
      %1591 = vmatprep.subr.mxu0 0.0
      %1592 = vmatpush1.msra.mxu0 0.0
      %1593 = vmatprep.subr.mxu0 0.0
      %1594 = vmatpush1.msra.mxu0 0.0
      %1595 = vmatprep.subr.mxu0 0.0
      %1596 = vmatpush1.msra.mxu0 0.0
      %1597 = vmatprep.subr.mxu0 0.0
      %1598 = vmatpush1.msra.mxu0 0.0
      %1599 = vmatprep.subr.mxu0 0.0
      %1600 = vmatpush1.msra.mxu0 0.0
      %1601 = vmatprep.subr.mxu0 0.0
      %1602 = vmatpush1.msra.mxu0 0.0
      %1603 = vmatprep.subr.mxu0 0.0
      %1604 = vmatpush1.msra.mxu0 0.0
      %1605 = vmatprep.subr.mxu0 0.0
      %1606 = vmatpush1.msra.mxu0 0.0
      %1607 = vmatprep.subr.mxu0 0.0
      %1608 = vmatpush1.msra.mxu0 0.0
      %1609 = vmatprep.subr.mxu0 0.0
      %1610 = vmatpush1.msra.mxu0 0.0
      %1611 = vmatprep.subr.mxu0 0.0
      %1612 = vmatpush1.msra.mxu0 0.0
      %1613 = vmatprep.subr.mxu0 0.0
      %1614 = vmatpush1.msra.mxu0 0.0
      %1615 = vmatprep.subr.mxu0 0.0
      %1616 = vmatpush1.msra.mxu0 0.0
      %1617 = vmatprep.subr.mxu0 0.0
      %1618 = vmatpush1.msra.mxu0 0.0
      %1619 = vmatprep.subr.mxu0 0.0
      %1620 = vmatpush1.msra.mxu0 0.0
      %1621 = vmatprep.subr.mxu0 0.0
      %1622 = vmatpush1.msra.mxu0 0.0
      %1623 = vmatprep.subr.mxu0 0.0
      %1624 = vmatpush1.msra.mxu0 0.0
      %1625 = vmatprep.subr.mxu0 0.0
      %1626 = vmatpush1.msra.mxu0 0.0
      %1627 = vmatprep.subr.mxu0 0.0
      %1628 = vmatpush1.msra.mxu0 0.0
      %1629 = vmatprep.subr.mxu0 0.0
      %1630 = vmatpush1.msra.mxu0 0.0
      %1631 = vmatprep.subr.mxu0 0.0
      %1632 = vmatpush1.msra.mxu0 0.0
      %1633 = vmatprep.subr.mxu0 0.0
      %1634 = vmatpush1.msra.mxu0 0.0
      %1635 = vmatprep.subr.mxu0 0.0
      %1636 = vmatpush1.msra.mxu0 0.0
      %1637 = vmatprep.subr.mxu0 0.0
      %1638 = vmatpush1.msra.mxu0 0.0
      %1639 = vmatprep.subr.mxu0 0.0
      %1640 = vmatpush1.msra.mxu0 0.0
      %1641 = vmatprep.subr.mxu0 0.0
      %1642 = vmatpush1.msra.mxu0 0.0
      %1643 = vmatprep.subr.mxu0 0.0
      %1644 = vmatpush1.msra.mxu0 0.0
      %1645 = vmatprep.mubr.f32.mxu0 0.0
      %1646 = vmatmul.mubr.f32.gmra.mrb[0].mxu0 %v1573
      %v1647 = vpop.f32.mrb[0].mxu0
      %v1648 = vadd.f32 0.0, %v1647
      %v1649 = vpop.f32.mrb[0].mxu0
      %v1650 = vadd.f32 0.0, %v1649
      %1651 = vdwg.mxu0
      %1652 = vmatprep.subr.mxu0 0.0
      %1653 = vmatpush1.msra.mxu0 %v1579
      %1654 = vmatprep.subr.mxu0 0.0
      %1655 = vmatpush1.msra.mxu0 0.0
      %1656 = vmatprep.subr.mxu0 0.0
      %1657 = vmatpush1.msra.mxu0 0.0
      %1658 = vmatprep.subr.mxu0 0.0
      %1659 = vmatpush1.msra.mxu0 0.0
      %1660 = vmatprep.subr.mxu0 0.0
      %1661 = vmatpush1.msra.mxu0 0.0
      %1662 = vmatprep.subr.mxu0 0.0
      %1663 = vmatpush1.msra.mxu0 0.0
      %1664 = vmatprep.subr.mxu0 0.0
      %1665 = vmatpush1.msra.mxu0 0.0
      %1666 = vmatprep.subr.mxu0 0.0
      %1667 = vmatpush1.msra.mxu0 0.0
      %1668 = vmatprep.subr.mxu0 0.0
      %1669 = vmatpush1.msra.mxu0 0.0
      %1670 = vmatprep.subr.mxu0 0.0
      %1671 = vmatpush1.msra.mxu0 0.0
      %1672 = vmatprep.subr.mxu0 0.0
      %1673 = vmatpush1.msra.mxu0 0.0
      %1674 = vmatprep.subr.mxu0 0.0
      %1675 = vmatpush1.msra.mxu0 0.0
      %1676 = vmatprep.subr.mxu0 0.0
      %1677 = vmatpush1.msra.mxu0 0.0
      %1678 = vmatprep.subr.mxu0 0.0
      %1679 = vmatpush1.msra.mxu0 0.0
      %1680 = vmatprep.subr.mxu0 0.0
      %1681 = vmatpush1.msra.mxu0 0.0
      %1682 = vmatprep.subr.mxu0 0.0
      %1683 = vmatpush1.msra.mxu0 0.0
      %1684 = vmatprep.subr.mxu0 0.0
      %1685 = vmatpush1.msra.mxu0 0.0
      %1686 = vmatprep.subr.mxu0 0.0
      %1687 = vmatpush1.msra.mxu0 0.0
      %1688 = vmatprep.subr.mxu0 0.0
      %1689 = vmatpush1.msra.mxu0 0.0
      %1690 = vmatprep.subr.mxu0 0.0
      %1691 = vmatpush1.msra.mxu0 0.0
      %1692 = vmatprep.subr.mxu0 0.0
      %1693 = vmatpush1.msra.mxu0 0.0
      %1694 = vmatprep.subr.mxu0 0.0
      %1695 = vmatpush1.msra.mxu0 0.0
      %1696 = vmatprep.subr.mxu0 0.0
      %1697 = vmatpush1.msra.mxu0 0.0
      %1698 = vmatprep.subr.mxu0 0.0
      %1699 = vmatpush1.msra.mxu0 0.0
      %1700 = vmatprep.subr.mxu0 0.0
      %1701 = vmatpush1.msra.mxu0 0.0
      %1702 = vmatprep.subr.mxu0 0.0
      %1703 = vmatpush1.msra.mxu0 0.0
      %1704 = vmatprep.subr.mxu0 0.0
      %1705 = vmatpush1.msra.mxu0 0.0
      %1706 = vmatprep.subr.mxu0 0.0
      %1707 = vmatpush1.msra.mxu0 0.0
      %1708 = vmatprep.subr.mxu0 0.0
      %1709 = vmatpush1.msra.mxu0 0.0
      %1710 = vmatprep.subr.mxu0 0.0
      %1711 = vmatpush1.msra.mxu0 0.0
      %1712 = vmatprep.subr.mxu0 0.0
      %1713 = vmatpush1.msra.mxu0 0.0
      %1714 = vmatprep.subr.mxu0 0.0
      %1715 = vmatpush1.msra.mxu0 0.0
      %1716 = vmatprep.mubr.f32.mxu0 0.0
      %1717 = vmatmul.mubr.f32.gmra.mrb[0].mxu0 %v1573
      %v1718 = vpop.f32.mrb[0].mxu0
      %v1719 = vadd.f32 0.0, %v1718
      %v1720 = vpop.f32.mrb[0].mxu0
      %1721 = vdwg.mxu0
      %v1722 = vadd.f32 %v1559, %v1648
      %v1723 = vadd.f32 %v1560, %v1650
      %v1724 = vadd.f32 %v1561, %v1719
      %s1725 = scalar_lea.vmem %s394, 32
      %v1726 = vld [vmem:[%s1725] sm:$0xf]
      %1727 = vrot.lane.b32.xlu0 %v426, 112
      %v1728 = vpop.permute.xlu0 %1727
      %1729 = vrot.lane.b32.xlu0 %v427, 112
      %v1730 = vpop.permute.xlu0 %1729
      %1731 = vrot.lane.b32.xlu0 %v428, 112
      %v1732 = vpop.permute.xlu0 %1731
      %vm1733 = vcmask 916480
      %v1734 = vsel %vm1733, %v1728, %v1730
      %v1735 = vsel %vm1733, %v1730, %v1732
      %v1737 = vsel %vm441, %v1726, 0
      %v1739 = vsel %vm445, %v1734, 0
      %v1741 = vsel %vm445, %v1735, 0
      %v1743 = vsel %vm445, %v1732, 0
      %1745 = vmatprep.subr.mxu0 %v1741
      %1746 = vmatpush1.msra.mxu0 %v1739
      %1747 = vmatprep.subr.mxu0 0.0
      %1748 = vmatpush1.msra.mxu0 0.0
      %1749 = vmatprep.subr.mxu0 0.0
      %1750 = vmatpush1.msra.mxu0 0.0
      %1751 = vmatprep.subr.mxu0 0.0
      %1752 = vmatpush1.msra.mxu0 0.0
      %1753 = vmatprep.subr.mxu0 0.0
      %1754 = vmatpush1.msra.mxu0 0.0
      %1755 = vmatprep.subr.mxu0 0.0
      %1756 = vmatpush1.msra.mxu0 0.0
      %1757 = vmatprep.subr.mxu0 0.0
      %1758 = vmatpush1.msra.mxu0 0.0
      %1759 = vmatprep.subr.mxu0 0.0
      %1760 = vmatpush1.msra.mxu0 0.0
      %1761 = vmatprep.subr.mxu0 0.0
      %1762 = vmatpush1.msra.mxu0 0.0
      %1763 = vmatprep.subr.mxu0 0.0
      %1764 = vmatpush1.msra.mxu0 0.0
      %1765 = vmatprep.subr.mxu0 0.0
      %1766 = vmatpush1.msra.mxu0 0.0
      %1767 = vmatprep.subr.mxu0 0.0
      %1768 = vmatpush1.msra.mxu0 0.0
      %1769 = vmatprep.subr.mxu0 0.0
      %1770 = vmatpush1.msra.mxu0 0.0
      %1771 = vmatprep.subr.mxu0 0.0
      %1772 = vmatpush1.msra.mxu0 0.0
      %1773 = vmatprep.subr.mxu0 0.0
      %1774 = vmatpush1.msra.mxu0 0.0
      %1775 = vmatprep.subr.mxu0 0.0
      %1776 = vmatpush1.msra.mxu0 0.0
      %1777 = vmatprep.subr.mxu0 0.0
      %1778 = vmatpush1.msra.mxu0 0.0
      %1779 = vmatprep.subr.mxu0 0.0
      %1780 = vmatpush1.msra.mxu0 0.0
      %1781 = vmatprep.subr.mxu0 0.0
      %1782 = vmatpush1.msra.mxu0 0.0
      %1783 = vmatprep.subr.mxu0 0.0
      %1784 = vmatpush1.msra.mxu0 0.0
      %1785 = vmatprep.subr.mxu0 0.0
      %1786 = vmatpush1.msra.mxu0 0.0
      %1787 = vmatprep.subr.mxu0 0.0
      %1788 = vmatpush1.msra.mxu0 0.0
      %1789 = vmatprep.subr.mxu0 0.0
      %1790 = vmatpush1.msra.mxu0 0.0
      %1791 = vmatprep.subr.mxu0 0.0
      %1792 = vmatpush1.msra.mxu0 0.0
      %1793 = vmatprep.subr.mxu0 0.0
      %1794 = vmatpush1.msra.mxu0 0.0
      %1795 = vmatprep.subr.mxu0 0.0
      %1796 = vmatpush1.msra.mxu0 0.0
      %1797 = vmatprep.subr.mxu0 0.0
      %1798 = vmatpush1.msra.mxu0 0.0
      %1799 = vmatprep.subr.mxu0 0.0
      %1800 = vmatpush1.msra.mxu0 0.0
      %1801 = vmatprep.subr.mxu0 0.0
      %1802 = vmatpush1.msra.mxu0 0.0
      %1803 = vmatprep.subr.mxu0 0.0
      %1804 = vmatpush1.msra.mxu0 0.0
      %1805 = vmatprep.subr.mxu0 0.0
      %1806 = vmatpush1.msra.mxu0 0.0
      %1807 = vmatprep.subr.mxu0 0.0
      %1808 = vmatpush1.msra.mxu0 0.0
      %1809 = vmatprep.mubr.f32.mxu0 0.0
      %1810 = vmatmul.mubr.f32.gmra.mrb[0].mxu0 %v1737
      %v1811 = vpop.f32.mrb[0].mxu0
      %v1812 = vadd.f32 0.0, %v1811
      %v1813 = vpop.f32.mrb[0].mxu0
      %v1814 = vadd.f32 0.0, %v1813
      %1815 = vdwg.mxu0
      %1816 = vmatprep.subr.mxu0 0.0
      %1817 = vmatpush1.msra.mxu0 %v1743
      %1818 = vmatprep.subr.mxu0 0.0
      %1819 = vmatpush1.msra.mxu0 0.0
      %1820 = vmatprep.subr.mxu0 0.0
      %1821 = vmatpush1.msra.mxu0 0.0
      %1822 = vmatprep.subr.mxu0 0.0
      %1823 = vmatpush1.msra.mxu0 0.0
      %1824 = vmatprep.subr.mxu0 0.0
      %1825 = vmatpush1.msra.mxu0 0.0
      %1826 = vmatprep.subr.mxu0 0.0
      %1827 = vmatpush1.msra.mxu0 0.0
      %1828 = vmatprep.subr.mxu0 0.0
      %1829 = vmatpush1.msra.mxu0 0.0
      %1830 = vmatprep.subr.mxu0 0.0
      %1831 = vmatpush1.msra.mxu0 0.0
      %1832 = vmatprep.subr.mxu0 0.0
      %1833 = vmatpush1.msra.mxu0 0.0
      %1834 = vmatprep.subr.mxu0 0.0
      %1835 = vmatpush1.msra.mxu0 0.0
      %1836 = vmatprep.subr.mxu0 0.0
      %1837 = vmatpush1.msra.mxu0 0.0
      %1838 = vmatprep.subr.mxu0 0.0
      %1839 = vmatpush1.msra.mxu0 0.0
      %1840 = vmatprep.subr.mxu0 0.0
      %1841 = vmatpush1.msra.mxu0 0.0
      %1842 = vmatprep.subr.mxu0 0.0
      %1843 = vmatpush1.msra.mxu0 0.0
      %1844 = vmatprep.subr.mxu0 0.0
      %1845 = vmatpush1.msra.mxu0 0.0
      %1846 = vmatprep.subr.mxu0 0.0
      %1847 = vmatpush1.msra.mxu0 0.0
      %1848 = vmatprep.subr.mxu0 0.0
      %1849 = vmatpush1.msra.mxu0 0.0
      %1850 = vmatprep.subr.mxu0 0.0
      %1851 = vmatpush1.msra.mxu0 0.0
      %1852 = vmatprep.subr.mxu0 0.0
      %1853 = vmatpush1.msra.mxu0 0.0
      %1854 = vmatprep.subr.mxu0 0.0
      %1855 = vmatpush1.msra.mxu0 0.0
      %1856 = vmatprep.subr.mxu0 0.0
      %1857 = vmatpush1.msra.mxu0 0.0
      %1858 = vmatprep.subr.mxu0 0.0
      %1859 = vmatpush1.msra.mxu0 0.0
      %1860 = vmatprep.subr.mxu0 0.0
      %1861 = vmatpush1.msra.mxu0 0.0
      %1862 = vmatprep.subr.mxu0 0.0
      %1863 = vmatpush1.msra.mxu0 0.0
      %1864 = vmatprep.subr.mxu0 0.0
      %1865 = vmatpush1.msra.mxu0 0.0
      %1866 = vmatprep.subr.mxu0 0.0
      %1867 = vmatpush1.msra.mxu0 0.0
      %1868 = vmatprep.subr.mxu0 0.0
      %1869 = vmatpush1.msra.mxu0 0.0
      %1870 = vmatprep.subr.mxu0 0.0
      %1871 = vmatpush1.msra.mxu0 0.0
      %1872 = vmatprep.subr.mxu0 0.0
      %1873 = vmatpush1.msra.mxu0 0.0
      %1874 = vmatprep.subr.mxu0 0.0
      %1875 = vmatpush1.msra.mxu0 0.0
      %1876 = vmatprep.subr.mxu0 0.0
      %1877 = vmatpush1.msra.mxu0 0.0
      %1878 = vmatprep.subr.mxu0 0.0
      %1879 = vmatpush1.msra.mxu0 0.0
      %1880 = vmatprep.mubr.f32.mxu0 0.0
      %1881 = vmatmul.mubr.f32.gmra.mrb[0].mxu0 %v1737
      %v1882 = vpop.f32.mrb[0].mxu0
      %v1883 = vadd.f32 0.0, %v1882
      %v1884 = vpop.f32.mrb[0].mxu0
      %1885 = vdwg.mxu0
      %v1886 = vadd.f32 %v1722, %v1812
      %v1887 = vadd.f32 %v1723, %v1814
      %v1888 = vadd.f32 %v1724, %v1883
      %1889 = vmatprep.subr.mxu0 %v762
      %1890 = vmatpush1.msra.mxu0 %v760
      %1891 = vmatprep.subr.mxu0 0.0
      %1892 = vmatpush1.msra.mxu0 0.0
      %1893 = vmatprep.subr.mxu0 0.0
      %1894 = vmatpush1.msra.mxu0 0.0
      %1895 = vmatprep.subr.mxu0 0.0
      %1896 = vmatpush1.msra.mxu0 0.0
      %1897 = vmatprep.subr.mxu0 0.0
      %1898 = vmatpush1.msra.mxu0 0.0
      %1899 = vmatprep.subr.mxu0 0.0
      %1900 = vmatpush1.msra.mxu0 0.0
      %1901 = vmatprep.subr.mxu0 0.0
      %1902 = vmatpush1.msra.mxu0 0.0
      %1903 = vmatprep.subr.mxu0 0.0
      %1904 = vmatpush1.msra.mxu0 0.0
      %1905 = vmatprep.subr.mxu0 0.0
      %1906 = vmatpush1.msra.mxu0 0.0
      %1907 = vmatprep.subr.mxu0 0.0
      %1908 = vmatpush1.msra.mxu0 0.0
      %1909 = vmatprep.subr.mxu0 0.0
      %1910 = vmatpush1.msra.mxu0 0.0
      %1911 = vmatprep.subr.mxu0 0.0
      %1912 = vmatpush1.msra.mxu0 0.0
      %1913 = vmatprep.subr.mxu0 0.0
      %1914 = vmatpush1.msra.mxu0 0.0
      %1915 = vmatprep.subr.mxu0 0.0
      %1916 = vmatpush1.msra.mxu0 0.0
      %1917 = vmatprep.subr.mxu0 0.0
      %1918 = vmatpush1.msra.mxu0 0.0
      %1919 = vmatprep.subr.mxu0 0.0
      %1920 = vmatpush1.msra.mxu0 0.0
      %1921 = vmatprep.subr.mxu0 0.0
      %1922 = vmatpush1.msra.mxu0 0.0
      %1923 = vmatprep.subr.mxu0 0.0
      %1924 = vmatpush1.msra.mxu0 0.0
      %1925 = vmatprep.subr.mxu0 0.0
      %1926 = vmatpush1.msra.mxu0 0.0
      %1927 = vmatprep.subr.mxu0 0.0
      %1928 = vmatpush1.msra.mxu0 0.0
      %1929 = vmatprep.subr.mxu0 0.0
      %1930 = vmatpush1.msra.mxu0 0.0
      %1931 = vmatprep.subr.mxu0 0.0
      %1932 = vmatpush1.msra.mxu0 0.0
      %1933 = vmatprep.subr.mxu0 0.0
      %1934 = vmatpush1.msra.mxu0 0.0
      %1935 = vmatprep.subr.mxu0 0.0
      %1936 = vmatpush1.msra.mxu0 0.0
      %1937 = vmatprep.subr.mxu0 0.0
      %1938 = vmatpush1.msra.mxu0 0.0
      %1939 = vmatprep.subr.mxu0 0.0
      %1940 = vmatpush1.msra.mxu0 0.0
      %1941 = vmatprep.subr.mxu0 0.0
      %1942 = vmatpush1.msra.mxu0 0.0
      %1943 = vmatprep.subr.mxu0 0.0
      %1944 = vmatpush1.msra.mxu0 0.0
      %1945 = vmatprep.subr.mxu0 0.0
      %1946 = vmatpush1.msra.mxu0 0.0
      %1947 = vmatprep.subr.mxu0 0.0
      %1948 = vmatpush1.msra.mxu0 0.0
      %1949 = vmatprep.subr.mxu0 0.0
      %1950 = vmatpush1.msra.mxu0 0.0
      %1951 = vmatprep.subr.mxu0 0.0
      %1952 = vmatpush1.msra.mxu0 0.0
      %1953 = vmatprep.mubr.f32.mxu0 0.0
      %1954 = vmatmul.mubr.f32.gmra.mrb[0].mxu0 %v443
      %v1955 = vpop.f32.mrb[0].mxu0
      %v1956 = vadd.f32 0.0, %v1955
      %v1957 = vpop.f32.mrb[0].mxu0
      %v1958 = vadd.f32 0.0, %v1957
      %1959 = vdwg.mxu0
      %1960 = vmatprep.subr.mxu0 0.0
      %1961 = vmatpush1.msra.mxu0 %v764
      %1962 = vmatprep.subr.mxu0 0.0
      %1963 = vmatpush1.msra.mxu0 0.0
      %1964 = vmatprep.subr.mxu0 0.0
      %1965 = vmatpush1.msra.mxu0 0.0
      %1966 = vmatprep.subr.mxu0 0.0
      %1967 = vmatpush1.msra.mxu0 0.0
      %1968 = vmatprep.subr.mxu0 0.0
      %1969 = vmatpush1.msra.mxu0 0.0
      %1970 = vmatprep.subr.mxu0 0.0
      %1971 = vmatpush1.msra.mxu0 0.0
      %1972 = vmatprep.subr.mxu0 0.0
      %1973 = vmatpush1.msra.mxu0 0.0
      %1974 = vmatprep.subr.mxu0 0.0
      %1975 = vmatpush1.msra.mxu0 0.0
      %1976 = vmatprep.subr.mxu0 0.0
      %1977 = vmatpush1.msra.mxu0 0.0
      %1978 = vmatprep.subr.mxu0 0.0
      %1979 = vmatpush1.msra.mxu0 0.0
      %1980 = vmatprep.subr.mxu0 0.0
      %1981 = vmatpush1.msra.mxu0 0.0
      %1982 = vmatprep.subr.mxu0 0.0
      %1983 = vmatpush1.msra.mxu0 0.0
      %1984 = vmatprep.subr.mxu0 0.0
      %1985 = vmatpush1.msra.mxu0 0.0
      %1986 = vmatprep.subr.mxu0 0.0
      %1987 = vmatpush1.msra.mxu0 0.0
      %1988 = vmatprep.subr.mxu0 0.0
      %1989 = vmatpush1.msra.mxu0 0.0
      %1990 = vmatprep.subr.mxu0 0.0
      %1991 = vmatpush1.msra.mxu0 0.0
      %1992 = vmatprep.subr.mxu0 0.0
      %1993 = vmatpush1.msra.mxu0 0.0
      %1994 = vmatprep.subr.mxu0 0.0
      %1995 = vmatpush1.msra.mxu0 0.0
      %1996 = vmatprep.subr.mxu0 0.0
      %1997 = vmatpush1.msra.mxu0 0.0
      %1998 = vmatprep.subr.mxu0 0.0
      %1999 = vmatpush1.msra.mxu0 0.0
      %2000 = vmatprep.subr.mxu0 0.0
      %2001 = vmatpush1.msra.mxu0 0.0
      %2002 = vmatprep.subr.mxu0 0.0
      %2003 = vmatpush1.msra.mxu0 0.0
      %2004 = vmatprep.subr.mxu0 0.0
      %2005 = vmatpush1.msra.mxu0 0.0
      %2006 = vmatprep.subr.mxu0 0.0
      %2007 = vmatpush1.msra.mxu0 0.0
      %2008 = vmatprep.subr.mxu0 0.0
      %2009 = vmatpush1.msra.mxu0 0.0
      %2010 = vmatprep.subr.mxu0 0.0
      %2011 = vmatpush1.msra.mxu0 0.0
      %2012 = vmatprep.subr.mxu0 0.0
      %2013 = vmatpush1.msra.mxu0 0.0
      %2014 = vmatprep.subr.mxu0 0.0
      %2015 = vmatpush1.msra.mxu0 0.0
      %2016 = vmatprep.subr.mxu0 0.0
      %2017 = vmatpush1.msra.mxu0 0.0
      %2018 = vmatprep.subr.mxu0 0.0
      %2019 = vmatpush1.msra.mxu0 0.0
      %2020 = vmatprep.subr.mxu0 0.0
      %2021 = vmatpush1.msra.mxu0 0.0
      %2022 = vmatprep.subr.mxu0 0.0
      %2023 = vmatpush1.msra.mxu0 0.0
      %2024 = vmatprep.mubr.f32.mxu0 0.0
      %2025 = vmatmul.mubr.f32.gmra.mrb[0].mxu0 %v443
      %v2026 = vpop.f32.mrb[0].mxu0
      %v2027 = vadd.f32 0.0, %v2026
      %v2028 = vpop.f32.mrb[0].mxu0
      %2029 = vdwg.mxu0
      %2030 = vmatprep.subr.mxu0 %v448
      %2031 = vmatpush1.msra.mxu0 %v446
      %2032 = vmatprep.subr.mxu0 0.0
      %2033 = vmatpush1.msra.mxu0 0.0
      %2034 = vmatprep.subr.mxu0 0.0
      %2035 = vmatpush1.msra.mxu0 0.0
      %2036 = vmatprep.subr.mxu0 0.0
      %2037 = vmatpush1.msra.mxu0 0.0
      %2038 = vmatprep.subr.mxu0 0.0
      %2039 = vmatpush1.msra.mxu0 0.0
      %2040 = vmatprep.subr.mxu0 0.0
      %2041 = vmatpush1.msra.mxu0 0.0
      %2042 = vmatprep.subr.mxu0 0.0
      %2043 = vmatpush1.msra.mxu0 0.0
      %2044 = vmatprep.subr.mxu0 0.0
      %2045 = vmatpush1.msra.mxu0 0.0
      %2046 = vmatprep.subr.mxu0 0.0
      %2047 = vmatpush1.msra.mxu0 0.0
      %2048 = vmatprep.subr.mxu0 0.0
      %2049 = vmatpush1.msra.mxu0 0.0
      %2050 = vmatprep.subr.mxu0 0.0
      %2051 = vmatpush1.msra.mxu0 0.0
      %2052 = vmatprep.subr.mxu0 0.0
      %2053 = vmatpush1.msra.mxu0 0.0
      %2054 = vmatprep.subr.mxu0 0.0
      %2055 = vmatpush1.msra.mxu0 0.0
      %2056 = vmatprep.subr.mxu0 0.0
      %2057 = vmatpush1.msra.mxu0 0.0
      %2058 = vmatprep.subr.mxu0 0.0
      %2059 = vmatpush1.msra.mxu0 0.0
      %2060 = vmatprep.subr.mxu0 0.0
      %2061 = vmatpush1.msra.mxu0 0.0
      %2062 = vmatprep.subr.mxu0 0.0
      %2063 = vmatpush1.msra.mxu0 0.0
      %2064 = vmatprep.subr.mxu0 0.0
      %2065 = vmatpush1.msra.mxu0 0.0
      %2066 = vmatprep.subr.mxu0 0.0
      %2067 = vmatpush1.msra.mxu0 0.0
      %2068 = vmatprep.subr.mxu0 0.0
      %2069 = vmatpush1.msra.mxu0 0.0
      %2070 = vmatprep.subr.mxu0 0.0
      %2071 = vmatpush1.msra.mxu0 0.0
      %2072 = vmatprep.subr.mxu0 0.0
      %2073 = vmatpush1.msra.mxu0 0.0
      %2074 = vmatprep.subr.mxu0 0.0
      %2075 = vmatpush1.msra.mxu0 0.0
      %2076 = vmatprep.subr.mxu0 0.0
      %2077 = vmatpush1.msra.mxu0 0.0
      %2078 = vmatprep.subr.mxu0 0.0
      %2079 = vmatpush1.msra.mxu0 0.0
      %2080 = vmatprep.subr.mxu0 0.0
      %2081 = vmatpush1.msra.mxu0 0.0
      %2082 = vmatprep.subr.mxu0 0.0
      %2083 = vmatpush1.msra.mxu0 0.0
      %2084 = vmatprep.subr.mxu0 0.0
      %2085 = vmatpush1.msra.mxu0 0.0
      %2086 = vmatprep.subr.mxu0 0.0
      %2087 = vmatpush1.msra.mxu0 0.0
      %2088 = vmatprep.subr.mxu0 0.0
      %2089 = vmatpush1.msra.mxu0 0.0
      %2090 = vmatprep.subr.mxu0 0.0
      %2091 = vmatpush1.msra.mxu0 0.0
      %2092 = vmatprep.subr.mxu0 0.0
      %2093 = vmatpush1.msra.mxu0 0.0
      %2094 = vmatprep.mubr.f32.mxu0 0.0
      %2095 = vmatmul.mubr.f32.gmra.mrb[0].mxu0 %v594
      %v2096 = vpop.f32.mrb[0].mxu0
      %v2097 = vadd.f32 %v1956, %v2096
      %v2098 = vpop.f32.mrb[0].mxu0
      %v2099 = vadd.f32 %v1958, %v2098
      %2100 = vdwg.mxu0
      %2101 = vmatprep.subr.mxu0 0.0
      %2102 = vmatpush1.msra.mxu0 %v450
      %2103 = vmatprep.subr.mxu0 0.0
      %2104 = vmatpush1.msra.mxu0 0.0
      %2105 = vmatprep.subr.mxu0 0.0
      %2106 = vmatpush1.msra.mxu0 0.0
      %2107 = vmatprep.subr.mxu0 0.0
      %2108 = vmatpush1.msra.mxu0 0.0
      %2109 = vmatprep.subr.mxu0 0.0
      %2110 = vmatpush1.msra.mxu0 0.0
      %2111 = vmatprep.subr.mxu0 0.0
      %2112 = vmatpush1.msra.mxu0 0.0
      %2113 = vmatprep.subr.mxu0 0.0
      %2114 = vmatpush1.msra.mxu0 0.0
      %2115 = vmatprep.subr.mxu0 0.0
      %2116 = vmatpush1.msra.mxu0 0.0
      %2117 = vmatprep.subr.mxu0 0.0
      %2118 = vmatpush1.msra.mxu0 0.0
      %2119 = vmatprep.subr.mxu0 0.0
      %2120 = vmatpush1.msra.mxu0 0.0
      %2121 = vmatprep.subr.mxu0 0.0
      %2122 = vmatpush1.msra.mxu0 0.0
      %2123 = vmatprep.subr.mxu0 0.0
      %2124 = vmatpush1.msra.mxu0 0.0
      %2125 = vmatprep.subr.mxu0 0.0
      %2126 = vmatpush1.msra.mxu0 0.0
      %2127 = vmatprep.subr.mxu0 0.0
      %2128 = vmatpush1.msra.mxu0 0.0
      %2129 = vmatprep.subr.mxu0 0.0
      %2130 = vmatpush1.msra.mxu0 0.0
      %2131 = vmatprep.subr.mxu0 0.0
      %2132 = vmatpush1.msra.mxu0 0.0
      %2133 = vmatprep.subr.mxu0 0.0
      %2134 = vmatpush1.msra.mxu0 0.0
      %2135 = vmatprep.subr.mxu0 0.0
      %2136 = vmatpush1.msra.mxu0 0.0
      %2137 = vmatprep.subr.mxu0 0.0
      %2138 = vmatpush1.msra.mxu0 0.0
      %2139 = vmatprep.subr.mxu0 0.0
      %2140 = vmatpush1.msra.mxu0 0.0
      %2141 = vmatprep.subr.mxu0 0.0
      %2142 = vmatpush1.msra.mxu0 0.0
      %2143 = vmatprep.subr.mxu0 0.0
      %2144 = vmatpush1.msra.mxu0 0.0
      %2145 = vmatprep.subr.mxu0 0.0
      %2146 = vmatpush1.msra.mxu0 0.0
      %2147 = vmatprep.subr.mxu0 0.0
      %2148 = vmatpush1.msra.mxu0 0.0
      %2149 = vmatprep.subr.mxu0 0.0
      %2150 = vmatpush1.msra.mxu0 0.0
      %2151 = vmatprep.subr.mxu0 0.0
      %2152 = vmatpush1.msra.mxu0 0.0
      %2153 = vmatprep.subr.mxu0 0.0
      %2154 = vmatpush1.msra.mxu0 0.0
      %2155 = vmatprep.subr.mxu0 0.0
      %2156 = vmatpush1.msra.mxu0 0.0
      %2157 = vmatprep.subr.mxu0 0.0
      %2158 = vmatpush1.msra.mxu0 0.0
      %2159 = vmatprep.subr.mxu0 0.0
      %2160 = vmatpush1.msra.mxu0 0.0
      %2161 = vmatprep.subr.mxu0 0.0
      %2162 = vmatpush1.msra.mxu0 0.0
      %2163 = vmatprep.subr.mxu0 0.0
      %2164 = vmatpush1.msra.mxu0 0.0
      %2165 = vmatprep.mubr.f32.mxu0 0.0
      %2166 = vmatmul.mubr.f32.gmra.mrb[0].mxu0 %v594
      %v2167 = vpop.f32.mrb[0].mxu0
      %v2168 = vadd.f32 %v2027, %v2167
      %v2169 = vpop.f32.mrb[0].mxu0
      %2170 = vdwg.mxu0
      %2171 = vrot.lane.b32.xlu0 %v438, 127
      %v2172 = vpop.permute.xlu0 %2171
      %2173 = vrot.lane.b32.xlu0 %v439, 127
      %v2174 = vpop.permute.xlu0 %2173
      %2175 = vrot.lane.b32.xlu0 %v440, 127
      %v2176 = vpop.permute.xlu0 %2175
      %v2177 = vsel %vm754, %v2172, %v2174
      %v2178 = vsel %vm754, %v2174, %v2176
      %v2179 = vsel %vm445, %v2177, 0
      %v2181 = vsel %vm445, %v2178, 0
      %v2183 = vsel %vm445, %v2176, 0
      %2185 = vmatprep.subr.mxu0 %v2181
      %2186 = vmatpush1.msra.mxu0 %v2179
      %2187 = vmatprep.subr.mxu0 0.0
      %2188 = vmatpush1.msra.mxu0 0.0
      %2189 = vmatprep.subr.mxu0 0.0
      %2190 = vmatpush1.msra.mxu0 0.0
      %2191 = vmatprep.subr.mxu0 0.0
      %2192 = vmatpush1.msra.mxu0 0.0
      %2193 = vmatprep.subr.mxu0 0.0
      %2194 = vmatpush1.msra.mxu0 0.0
      %2195 = vmatprep.subr.mxu0 0.0
      %2196 = vmatpush1.msra.mxu0 0.0
      %2197 = vmatprep.subr.mxu0 0.0
      %2198 = vmatpush1.msra.mxu0 0.0
      %2199 = vmatprep.subr.mxu0 0.0
      %2200 = vmatpush1.msra.mxu0 0.0
      %2201 = vmatprep.subr.mxu0 0.0
      %2202 = vmatpush1.msra.mxu0 0.0
      %2203 = vmatprep.subr.mxu0 0.0
      %2204 = vmatpush1.msra.mxu0 0.0
      %2205 = vmatprep.subr.mxu0 0.0
      %2206 = vmatpush1.msra.mxu0 0.0
      %2207 = vmatprep.subr.mxu0 0.0
      %2208 = vmatpush1.msra.mxu0 0.0
      %2209 = vmatprep.subr.mxu0 0.0
      %2210 = vmatpush1.msra.mxu0 0.0
      %2211 = vmatprep.subr.mxu0 0.0
      %2212 = vmatpush1.msra.mxu0 0.0
      %2213 = vmatprep.subr.mxu0 0.0
      %2214 = vmatpush1.msra.mxu0 0.0
      %2215 = vmatprep.subr.mxu0 0.0
      %2216 = vmatpush1.msra.mxu0 0.0
      %2217 = vmatprep.subr.mxu0 0.0
      %2218 = vmatpush1.msra.mxu0 0.0
      %2219 = vmatprep.subr.mxu0 0.0
      %2220 = vmatpush1.msra.mxu0 0.0
      %2221 = vmatprep.subr.mxu0 0.0
      %2222 = vmatpush1.msra.mxu0 0.0
      %2223 = vmatprep.subr.mxu0 0.0
      %2224 = vmatpush1.msra.mxu0 0.0
      %2225 = vmatprep.subr.mxu0 0.0
      %2226 = vmatpush1.msra.mxu0 0.0
      %2227 = vmatprep.subr.mxu0 0.0
      %2228 = vmatpush1.msra.mxu0 0.0
      %2229 = vmatprep.subr.mxu0 0.0
      %2230 = vmatpush1.msra.mxu0 0.0
      %2231 = vmatprep.subr.mxu0 0.0
      %2232 = vmatpush1.msra.mxu0 0.0
      %2233 = vmatprep.subr.mxu0 0.0
      %2234 = vmatpush1.msra.mxu0 0.0
      %2235 = vmatprep.subr.mxu0 0.0
      %2236 = vmatpush1.msra.mxu0 0.0
      %2237 = vmatprep.subr.mxu0 0.0
      %2238 = vmatpush1.msra.mxu0 0.0
      %2239 = vmatprep.subr.mxu0 0.0
      %2240 = vmatpush1.msra.mxu0 0.0
      %2241 = vmatprep.subr.mxu0 0.0
      %2242 = vmatpush1.msra.mxu0 0.0
      %2243 = vmatprep.subr.mxu0 0.0
      %2244 = vmatpush1.msra.mxu0 0.0
      %2245 = vmatprep.subr.mxu0 0.0
      %2246 = vmatpush1.msra.mxu0 0.0
      %2247 = vmatprep.subr.mxu0 0.0
      %2248 = vmatpush1.msra.mxu0 0.0
      %2249 = vmatprep.mubr.f32.mxu0 0.0
      %2250 = vmatmul.mubr.f32.gmra.mrb[0].mxu0 %v758
      %v2251 = vpop.f32.mrb[0].mxu0
      %v2252 = vadd.f32 0.0, %v2251
      %v2253 = vpop.f32.mrb[0].mxu0
      %v2254 = vadd.f32 0.0, %v2253
      %2255 = vdwg.mxu0
      %2256 = vmatprep.subr.mxu0 0.0
      %2257 = vmatpush1.msra.mxu0 %v2183
      %2258 = vmatprep.subr.mxu0 0.0
      %2259 = vmatpush1.msra.mxu0 0.0
      %2260 = vmatprep.subr.mxu0 0.0
      %2261 = vmatpush1.msra.mxu0 0.0
      %2262 = vmatprep.subr.mxu0 0.0
      %2263 = vmatpush1.msra.mxu0 0.0
      %2264 = vmatprep.subr.mxu0 0.0
      %2265 = vmatpush1.msra.mxu0 0.0
      %2266 = vmatprep.subr.mxu0 0.0
      %2267 = vmatpush1.msra.mxu0 0.0
      %2268 = vmatprep.subr.mxu0 0.0
      %2269 = vmatpush1.msra.mxu0 0.0
      %2270 = vmatprep.subr.mxu0 0.0
      %2271 = vmatpush1.msra.mxu0 0.0
      %2272 = vmatprep.subr.mxu0 0.0
      %2273 = vmatpush1.msra.mxu0 0.0
      %2274 = vmatprep.subr.mxu0 0.0
      %2275 = vmatpush1.msra.mxu0 0.0
      %2276 = vmatprep.subr.mxu0 0.0
      %2277 = vmatpush1.msra.mxu0 0.0
      %2278 = vmatprep.subr.mxu0 0.0
      %2279 = vmatpush1.msra.mxu0 0.0
      %2280 = vmatprep.subr.mxu0 0.0
      %2281 = vmatpush1.msra.mxu0 0.0
      %2282 = vmatprep.subr.mxu0 0.0
      %2283 = vmatpush1.msra.mxu0 0.0
      %2284 = vmatprep.subr.mxu0 0.0
      %2285 = vmatpush1.msra.mxu0 0.0
      %2286 = vmatprep.subr.mxu0 0.0
      %2287 = vmatpush1.msra.mxu0 0.0
      %2288 = vmatprep.subr.mxu0 0.0
      %2289 = vmatpush1.msra.mxu0 0.0
      %2290 = vmatprep.subr.mxu0 0.0
      %2291 = vmatpush1.msra.mxu0 0.0
      %2292 = vmatprep.subr.mxu0 0.0
      %2293 = vmatpush1.msra.mxu0 0.0
      %2294 = vmatprep.subr.mxu0 0.0
      %2295 = vmatpush1.msra.mxu0 0.0
      %2296 = vmatprep.subr.mxu0 0.0
      %2297 = vmatpush1.msra.mxu0 0.0
      %2298 = vmatprep.subr.mxu0 0.0
      %2299 = vmatpush1.msra.mxu0 0.0
      %2300 = vmatprep.subr.mxu0 0.0
      %2301 = vmatpush1.msra.mxu0 0.0
      %2302 = vmatprep.subr.mxu0 0.0
      %2303 = vmatpush1.msra.mxu0 0.0
      %2304 = vmatprep.subr.mxu0 0.0
      %2305 = vmatpush1.msra.mxu0 0.0
      %2306 = vmatprep.subr.mxu0 0.0
      %2307 = vmatpush1.msra.mxu0 0.0
      %2308 = vmatprep.subr.mxu0 0.0
      %2309 = vmatpush1.msra.mxu0 0.0
      %2310 = vmatprep.subr.mxu0 0.0
      %2311 = vmatpush1.msra.mxu0 0.0
      %2312 = vmatprep.subr.mxu0 0.0
      %2313 = vmatpush1.msra.mxu0 0.0
      %2314 = vmatprep.subr.mxu0 0.0
      %2315 = vmatpush1.msra.mxu0 0.0
      %2316 = vmatprep.subr.mxu0 0.0
      %2317 = vmatpush1.msra.mxu0 0.0
      %2318 = vmatprep.subr.mxu0 0.0
      %2319 = vmatpush1.msra.mxu0 0.0
      %2320 = vmatprep.mubr.f32.mxu0 0.0
      %2321 = vmatmul.mubr.f32.gmra.mrb[0].mxu0 %v758
      %v2322 = vpop.f32.mrb[0].mxu0
      %v2323 = vadd.f32 0.0, %v2322
      %v2324 = vpop.f32.mrb[0].mxu0
      %2325 = vdwg.mxu0
      %v2326 = vadd.f32 %v2097, %v2252
      %v2327 = vadd.f32 %v2099, %v2254
      %v2328 = vadd.f32 %v2168, %v2323
      %2329 = vmatprep.subr.mxu0 %v1087
      %2330 = vmatpush1.msra.mxu0 %v1085
      %2331 = vmatprep.subr.mxu0 0.0
      %2332 = vmatpush1.msra.mxu0 0.0
      %2333 = vmatprep.subr.mxu0 0.0
      %2334 = vmatpush1.msra.mxu0 0.0
      %2335 = vmatprep.subr.mxu0 0.0
      %2336 = vmatpush1.msra.mxu0 0.0
      %2337 = vmatprep.subr.mxu0 0.0
      %2338 = vmatpush1.msra.mxu0 0.0
      %2339 = vmatprep.subr.mxu0 0.0
      %2340 = vmatpush1.msra.mxu0 0.0
      %2341 = vmatprep.subr.mxu0 0.0
      %2342 = vmatpush1.msra.mxu0 0.0
      %2343 = vmatprep.subr.mxu0 0.0
      %2344 = vmatpush1.msra.mxu0 0.0
      %2345 = vmatprep.subr.mxu0 0.0
      %2346 = vmatpush1.msra.mxu0 0.0
      %2347 = vmatprep.subr.mxu0 0.0
      %2348 = vmatpush1.msra.mxu0 0.0
      %2349 = vmatprep.subr.mxu0 0.0
      %2350 = vmatpush1.msra.mxu0 0.0
      %2351 = vmatprep.subr.mxu0 0.0
      %2352 = vmatpush1.msra.mxu0 0.0
      %2353 = vmatprep.subr.mxu0 0.0
      %2354 = vmatpush1.msra.mxu0 0.0
      %2355 = vmatprep.subr.mxu0 0.0
      %2356 = vmatpush1.msra.mxu0 0.0
      %2357 = vmatprep.subr.mxu0 0.0
      %2358 = vmatpush1.msra.mxu0 0.0
      %2359 = vmatprep.subr.mxu0 0.0
      %2360 = vmatpush1.msra.mxu0 0.0
      %2361 = vmatprep.subr.mxu0 0.0
      %2362 = vmatpush1.msra.mxu0 0.0
      %2363 = vmatprep.subr.mxu0 0.0
      %2364 = vmatpush1.msra.mxu0 0.0
      %2365 = vmatprep.subr.mxu0 0.0
      %2366 = vmatpush1.msra.mxu0 0.0
      %2367 = vmatprep.subr.mxu0 0.0
      %2368 = vmatpush1.msra.mxu0 0.0
      %2369 = vmatprep.subr.mxu0 0.0
      %2370 = vmatpush1.msra.mxu0 0.0
      %2371 = vmatprep.subr.mxu0 0.0
      %2372 = vmatpush1.msra.mxu0 0.0
      %2373 = vmatprep.subr.mxu0 0.0
      %2374 = vmatpush1.msra.mxu0 0.0
      %2375 = vmatprep.subr.mxu0 0.0
      %2376 = vmatpush1.msra.mxu0 0.0
      %2377 = vmatprep.subr.mxu0 0.0
      %2378 = vmatpush1.msra.mxu0 0.0
      %2379 = vmatprep.subr.mxu0 0.0
      %2380 = vmatpush1.msra.mxu0 0.0
      %2381 = vmatprep.subr.mxu0 0.0
      %2382 = vmatpush1.msra.mxu0 0.0
      %2383 = vmatprep.subr.mxu0 0.0
      %2384 = vmatpush1.msra.mxu0 0.0
      %2385 = vmatprep.subr.mxu0 0.0
      %2386 = vmatpush1.msra.mxu0 0.0
      %2387 = vmatprep.subr.mxu0 0.0
      %2388 = vmatpush1.msra.mxu0 0.0
      %2389 = vmatprep.subr.mxu0 0.0
      %2390 = vmatpush1.msra.mxu0 0.0
      %2391 = vmatprep.subr.mxu0 0.0
      %2392 = vmatpush1.msra.mxu0 0.0
      %2393 = vmatprep.mubr.f32.mxu0 0.0
      %2394 = vmatmul.mubr.f32.gmra.mrb[0].mxu0 %v916
      %v2395 = vpop.f32.mrb[0].mxu0
      %v2396 = vadd.f32 0.0, %v2395
      %v2397 = vpop.f32.mrb[0].mxu0
      %v2398 = vadd.f32 0.0, %v2397
      %2399 = vdwg.mxu0
      %2400 = vmatprep.subr.mxu0 0.0
      %2401 = vmatpush1.msra.mxu0 %v1089
      %2402 = vmatprep.subr.mxu0 0.0
      %2403 = vmatpush1.msra.mxu0 0.0
      %2404 = vmatprep.subr.mxu0 0.0
      %2405 = vmatpush1.msra.mxu0 0.0
      %2406 = vmatprep.subr.mxu0 0.0
      %2407 = vmatpush1.msra.mxu0 0.0
      %2408 = vmatprep.subr.mxu0 0.0
      %2409 = vmatpush1.msra.mxu0 0.0
      %2410 = vmatprep.subr.mxu0 0.0
      %2411 = vmatpush1.msra.mxu0 0.0
      %2412 = vmatprep.subr.mxu0 0.0
      %2413 = vmatpush1.msra.mxu0 0.0
      %2414 = vmatprep.subr.mxu0 0.0
      %2415 = vmatpush1.msra.mxu0 0.0
      %2416 = vmatprep.subr.mxu0 0.0
      %2417 = vmatpush1.msra.mxu0 0.0
      %2418 = vmatprep.subr.mxu0 0.0
      %2419 = vmatpush1.msra.mxu0 0.0
      %2420 = vmatprep.subr.mxu0 0.0
      %2421 = vmatpush1.msra.mxu0 0.0
      %2422 = vmatprep.subr.mxu0 0.0
      %2423 = vmatpush1.msra.mxu0 0.0
      %2424 = vmatprep.subr.mxu0 0.0
      %2425 = vmatpush1.msra.mxu0 0.0
      %2426 = vmatprep.subr.mxu0 0.0
      %2427 = vmatpush1.msra.mxu0 0.0
      %2428 = vmatprep.subr.mxu0 0.0
      %2429 = vmatpush1.msra.mxu0 0.0
      %2430 = vmatprep.subr.mxu0 0.0
      %2431 = vmatpush1.msra.mxu0 0.0
      %2432 = vmatprep.subr.mxu0 0.0
      %2433 = vmatpush1.msra.mxu0 0.0
      %2434 = vmatprep.subr.mxu0 0.0
      %2435 = vmatpush1.msra.mxu0 0.0
      %2436 = vmatprep.subr.mxu0 0.0
      %2437 = vmatpush1.msra.mxu0 0.0
      %2438 = vmatprep.subr.mxu0 0.0
      %2439 = vmatpush1.msra.mxu0 0.0
      %2440 = vmatprep.subr.mxu0 0.0
      %2441 = vmatpush1.msra.mxu0 0.0
      %2442 = vmatprep.subr.mxu0 0.0
      %2443 = vmatpush1.msra.mxu0 0.0
      %2444 = vmatprep.subr.mxu0 0.0
      %2445 = vmatpush1.msra.mxu0 0.0
      %2446 = vmatprep.subr.mxu0 0.0
      %2447 = vmatpush1.msra.mxu0 0.0
      %2448 = vmatprep.subr.mxu0 0.0
      %2449 = vmatpush1.msra.mxu0 0.0
      %2450 = vmatprep.subr.mxu0 0.0
      %2451 = vmatpush1.msra.mxu0 0.0
      %2452 = vmatprep.subr.mxu0 0.0
      %2453 = vmatpush1.msra.mxu0 0.0
      %2454 = vmatprep.subr.mxu0 0.0
      %2455 = vmatpush1.msra.mxu0 0.0
      %2456 = vmatprep.subr.mxu0 0.0
      %2457 = vmatpush1.msra.mxu0 0.0
      %2458 = vmatprep.subr.mxu0 0.0
      %2459 = vmatpush1.msra.mxu0 0.0
      %2460 = vmatprep.subr.mxu0 0.0
      %2461 = vmatpush1.msra.mxu0 0.0
      %2462 = vmatprep.subr.mxu0 0.0
      %2463 = vmatpush1.msra.mxu0 0.0
      %2464 = vmatprep.mubr.f32.mxu0 0.0
      %2465 = vmatmul.mubr.f32.gmra.mrb[0].mxu0 %v916
      %v2466 = vpop.f32.mrb[0].mxu0
      %v2467 = vadd.f32 0.0, %v2466
      %v2468 = vpop.f32.mrb[0].mxu0
      %2469 = vdwg.mxu0
      %v2470 = vadd.f32 %v2326, %v2396
      %v2471 = vadd.f32 %v2327, %v2398
      %v2472 = vadd.f32 %v2328, %v2467
      %2473 = vmatprep.subr.mxu0 %v1250
      %2474 = vmatpush1.msra.mxu0 %v1248
      %2475 = vmatprep.subr.mxu0 0.0
      %2476 = vmatpush1.msra.mxu0 0.0
      %2477 = vmatprep.subr.mxu0 0.0
      %2478 = vmatpush1.msra.mxu0 0.0
      %2479 = vmatprep.subr.mxu0 0.0
      %2480 = vmatpush1.msra.mxu0 0.0
      %2481 = vmatprep.subr.mxu0 0.0
      %2482 = vmatpush1.msra.mxu0 0.0
      %2483 = vmatprep.subr.mxu0 0.0
      %2484 = vmatpush1.msra.mxu0 0.0
      %2485 = vmatprep.subr.mxu0 0.0
      %2486 = vmatpush1.msra.mxu0 0.0
      %2487 = vmatprep.subr.mxu0 0.0
      %2488 = vmatpush1.msra.mxu0 0.0
      %2489 = vmatprep.subr.mxu0 0.0
      %2490 = vmatpush1.msra.mxu0 0.0
      %2491 = vmatprep.subr.mxu0 0.0
      %2492 = vmatpush1.msra.mxu0 0.0
      %2493 = vmatprep.subr.mxu0 0.0
      %2494 = vmatpush1.msra.mxu0 0.0
      %2495 = vmatprep.subr.mxu0 0.0
      %2496 = vmatpush1.msra.mxu0 0.0
      %2497 = vmatprep.subr.mxu0 0.0
      %2498 = vmatpush1.msra.mxu0 0.0
      %2499 = vmatprep.subr.mxu0 0.0
      %2500 = vmatpush1.msra.mxu0 0.0
      %2501 = vmatprep.subr.mxu0 0.0
      %2502 = vmatpush1.msra.mxu0 0.0
      %2503 = vmatprep.subr.mxu0 0.0
      %2504 = vmatpush1.msra.mxu0 0.0
      %2505 = vmatprep.subr.mxu0 0.0
      %2506 = vmatpush1.msra.mxu0 0.0
      %2507 = vmatprep.subr.mxu0 0.0
      %2508 = vmatpush1.msra.mxu0 0.0
      %2509 = vmatprep.subr.mxu0 0.0
      %2510 = vmatpush1.msra.mxu0 0.0
      %2511 = vmatprep.subr.mxu0 0.0
      %2512 = vmatpush1.msra.mxu0 0.0
      %2513 = vmatprep.subr.mxu0 0.0
      %2514 = vmatpush1.msra.mxu0 0.0
      %2515 = vmatprep.subr.mxu0 0.0
      %2516 = vmatpush1.msra.mxu0 0.0
      %2517 = vmatprep.subr.mxu0 0.0
      %2518 = vmatpush1.msra.mxu0 0.0
      %2519 = vmatprep.subr.mxu0 0.0
      %2520 = vmatpush1.msra.mxu0 0.0
      %2521 = vmatprep.subr.mxu0 0.0
      %2522 = vmatpush1.msra.mxu0 0.0
      %2523 = vmatprep.subr.mxu0 0.0
      %2524 = vmatpush1.msra.mxu0 0.0
      %2525 = vmatprep.subr.mxu0 0.0
      %2526 = vmatpush1.msra.mxu0 0.0
      %2527 = vmatprep.subr.mxu0 0.0
      %2528 = vmatpush1.msra.mxu0 0.0
      %2529 = vmatprep.subr.mxu0 0.0
      %2530 = vmatpush1.msra.mxu0 0.0
      %2531 = vmatprep.subr.mxu0 0.0
      %2532 = vmatpush1.msra.mxu0 0.0
      %2533 = vmatprep.subr.mxu0 0.0
      %2534 = vmatpush1.msra.mxu0 0.0
      %2535 = vmatprep.subr.mxu0 0.0
      %2536 = vmatpush1.msra.mxu0 0.0
      %2537 = vmatprep.mubr.f32.mxu0 0.0
      %2538 = vmatmul.mubr.f32.gmra.mrb[0].mxu0 %v1083
      %v2539 = vpop.f32.mrb[0].mxu0
      %v2540 = vadd.f32 0.0, %v2539
      %v2541 = vpop.f32.mrb[0].mxu0
      %v2542 = vadd.f32 0.0, %v2541
      %2543 = vdwg.mxu0
      %2544 = vmatprep.subr.mxu0 0.0
      %2545 = vmatpush1.msra.mxu0 %v1252
      %2546 = vmatprep.subr.mxu0 0.0
      %2547 = vmatpush1.msra.mxu0 0.0
      %2548 = vmatprep.subr.mxu0 0.0
      %2549 = vmatpush1.msra.mxu0 0.0
      %2550 = vmatprep.subr.mxu0 0.0
      %2551 = vmatpush1.msra.mxu0 0.0
      %2552 = vmatprep.subr.mxu0 0.0
      %2553 = vmatpush1.msra.mxu0 0.0
      %2554 = vmatprep.subr.mxu0 0.0
      %2555 = vmatpush1.msra.mxu0 0.0
      %2556 = vmatprep.subr.mxu0 0.0
      %2557 = vmatpush1.msra.mxu0 0.0
      %2558 = vmatprep.subr.mxu0 0.0
      %2559 = vmatpush1.msra.mxu0 0.0
      %2560 = vmatprep.subr.mxu0 0.0
      %2561 = vmatpush1.msra.mxu0 0.0
      %2562 = vmatprep.subr.mxu0 0.0
      %2563 = vmatpush1.msra.mxu0 0.0
      %2564 = vmatprep.subr.mxu0 0.0
      %2565 = vmatpush1.msra.mxu0 0.0
      %2566 = vmatprep.subr.mxu0 0.0
      %2567 = vmatpush1.msra.mxu0 0.0
      %2568 = vmatprep.subr.mxu0 0.0
      %2569 = vmatpush1.msra.mxu0 0.0
      %2570 = vmatprep.subr.mxu0 0.0
      %2571 = vmatpush1.msra.mxu0 0.0
      %2572 = vmatprep.subr.mxu0 0.0
      %2573 = vmatpush1.msra.mxu0 0.0
      %2574 = vmatprep.subr.mxu0 0.0
      %2575 = vmatpush1.msra.mxu0 0.0
      %2576 = vmatprep.subr.mxu0 0.0
      %2577 = vmatpush1.msra.mxu0 0.0
      %2578 = vmatprep.subr.mxu0 0.0
      %2579 = vmatpush1.msra.mxu0 0.0
      %2580 = vmatprep.subr.mxu0 0.0
      %2581 = vmatpush1.msra.mxu0 0.0
      %2582 = vmatprep.subr.mxu0 0.0
      %2583 = vmatpush1.msra.mxu0 0.0
      %2584 = vmatprep.subr.mxu0 0.0
      %2585 = vmatpush1.msra.mxu0 0.0
      %2586 = vmatprep.subr.mxu0 0.0
      %2587 = vmatpush1.msra.mxu0 0.0
      %2588 = vmatprep.subr.mxu0 0.0
      %2589 = vmatpush1.msra.mxu0 0.0
      %2590 = vmatprep.subr.mxu0 0.0
      %2591 = vmatpush1.msra.mxu0 0.0
      %2592 = vmatprep.subr.mxu0 0.0
      %2593 = vmatpush1.msra.mxu0 0.0
      %2594 = vmatprep.subr.mxu0 0.0
      %2595 = vmatpush1.msra.mxu0 0.0
      %2596 = vmatprep.subr.mxu0 0.0
      %2597 = vmatpush1.msra.mxu0 0.0
      %2598 = vmatprep.subr.mxu0 0.0
      %2599 = vmatpush1.msra.mxu0 0.0
      %2600 = vmatprep.subr.mxu0 0.0
      %2601 = vmatpush1.msra.mxu0 0.0
      %2602 = vmatprep.subr.mxu0 0.0
      %2603 = vmatpush1.msra.mxu0 0.0
      %2604 = vmatprep.subr.mxu0 0.0
      %2605 = vmatpush1.msra.mxu0 0.0
      %2606 = vmatprep.subr.mxu0 0.0
      %2607 = vmatpush1.msra.mxu0 0.0
      %2608 = vmatprep.mubr.f32.mxu0 0.0
      %2609 = vmatmul.mubr.f32.gmra.mrb[0].mxu0 %v1083
      %v2610 = vpop.f32.mrb[0].mxu0
      %v2611 = vadd.f32 0.0, %v2610
      %v2612 = vpop.f32.mrb[0].mxu0
      %2613 = vdwg.mxu0
      %v2614 = vadd.f32 %v2470, %v2540
      %v2615 = vadd.f32 %v2471, %v2542
      %v2616 = vadd.f32 %v2472, %v2611
      %2617 = vrot.lane.b32.xlu0 %v1079, 127
      %v2618 = vpop.permute.xlu0 %2617
      %2619 = vrot.lane.b32.xlu0 %v1080, 127
      %v2620 = vpop.permute.xlu0 %2619
      %2621 = vrot.lane.b32.xlu0 %v1081, 127
      %v2622 = vpop.permute.xlu0 %2621
      %v2623 = vsel %vm754, %v2618, %v2620
      %v2624 = vsel %vm754, %v2620, %v2622
      %v2625 = vsel %vm445, %v2623, 0
      %v2627 = vsel %vm445, %v2624, 0
      %v2629 = vsel %vm445, %v2622, 0
      %2631 = vmatprep.subr.mxu0 %v2627
      %2632 = vmatpush1.msra.mxu0 %v2625
      %2633 = vmatprep.subr.mxu0 0.0
      %2634 = vmatpush1.msra.mxu0 0.0
      %2635 = vmatprep.subr.mxu0 0.0
      %2636 = vmatpush1.msra.mxu0 0.0
      %2637 = vmatprep.subr.mxu0 0.0
      %2638 = vmatpush1.msra.mxu0 0.0
      %2639 = vmatprep.subr.mxu0 0.0
      %2640 = vmatpush1.msra.mxu0 0.0
      %2641 = vmatprep.subr.mxu0 0.0
      %2642 = vmatpush1.msra.mxu0 0.0
      %2643 = vmatprep.subr.mxu0 0.0
      %2644 = vmatpush1.msra.mxu0 0.0
      %2645 = vmatprep.subr.mxu0 0.0
      %2646 = vmatpush1.msra.mxu0 0.0
      %2647 = vmatprep.subr.mxu0 0.0
      %2648 = vmatpush1.msra.mxu0 0.0
      %2649 = vmatprep.subr.mxu0 0.0
      %2650 = vmatpush1.msra.mxu0 0.0
      %2651 = vmatprep.subr.mxu0 0.0
      %2652 = vmatpush1.msra.mxu0 0.0
      %2653 = vmatprep.subr.mxu0 0.0
      %2654 = vmatpush1.msra.mxu0 0.0
      %2655 = vmatprep.subr.mxu0 0.0
      %2656 = vmatpush1.msra.mxu0 0.0
      %2657 = vmatprep.subr.mxu0 0.0
      %2658 = vmatpush1.msra.mxu0 0.0
      %2659 = vmatprep.subr.mxu0 0.0
      %2660 = vmatpush1.msra.mxu0 0.0
      %2661 = vmatprep.subr.mxu0 0.0
      %2662 = vmatpush1.msra.mxu0 0.0
      %2663 = vmatprep.subr.mxu0 0.0
      %2664 = vmatpush1.msra.mxu0 0.0
      %2665 = vmatprep.subr.mxu0 0.0
      %2666 = vmatpush1.msra.mxu0 0.0
      %2667 = vmatprep.subr.mxu0 0.0
      %2668 = vmatpush1.msra.mxu0 0.0
      %2669 = vmatprep.subr.mxu0 0.0
      %2670 = vmatpush1.msra.mxu0 0.0
      %2671 = vmatprep.subr.mxu0 0.0
      %2672 = vmatpush1.msra.mxu0 0.0
      %2673 = vmatprep.subr.mxu0 0.0
      %2674 = vmatpush1.msra.mxu0 0.0
      %2675 = vmatprep.subr.mxu0 0.0
      %2676 = vmatpush1.msra.mxu0 0.0
      %2677 = vmatprep.subr.mxu0 0.0
      %2678 = vmatpush1.msra.mxu0 0.0
      %2679 = vmatprep.subr.mxu0 0.0
      %2680 = vmatpush1.msra.mxu0 0.0
      %2681 = vmatprep.subr.mxu0 0.0
      %2682 = vmatpush1.msra.mxu0 0.0
      %2683 = vmatprep.subr.mxu0 0.0
      %2684 = vmatpush1.msra.mxu0 0.0
      %2685 = vmatprep.subr.mxu0 0.0
      %2686 = vmatpush1.msra.mxu0 0.0
      %2687 = vmatprep.subr.mxu0 0.0
      %2688 = vmatpush1.msra.mxu0 0.0
      %2689 = vmatprep.subr.mxu0 0.0
      %2690 = vmatpush1.msra.mxu0 0.0
      %2691 = vmatprep.subr.mxu0 0.0
      %2692 = vmatpush1.msra.mxu0 0.0
      %2693 = vmatprep.subr.mxu0 0.0
      %2694 = vmatpush1.msra.mxu0 0.0
      %2695 = vmatprep.mubr.f32.mxu0 0.0
      %2696 = vmatmul.mubr.f32.gmra.mrb[0].mxu0 %v1246
      %v2697 = vpop.f32.mrb[0].mxu0
      %v2698 = vadd.f32 0.0, %v2697
      %v2699 = vpop.f32.mrb[0].mxu0
      %v2700 = vadd.f32 0.0, %v2699
      %2701 = vdwg.mxu0
      %2702 = vmatprep.subr.mxu0 0.0
      %2703 = vmatpush1.msra.mxu0 %v2629
      %2704 = vmatprep.subr.mxu0 0.0
      %2705 = vmatpush1.msra.mxu0 0.0
      %2706 = vmatprep.subr.mxu0 0.0
      %2707 = vmatpush1.msra.mxu0 0.0
      %2708 = vmatprep.subr.mxu0 0.0
      %2709 = vmatpush1.msra.mxu0 0.0
      %2710 = vmatprep.subr.mxu0 0.0
      %2711 = vmatpush1.msra.mxu0 0.0
      %2712 = vmatprep.subr.mxu0 0.0
      %2713 = vmatpush1.msra.mxu0 0.0
      %2714 = vmatprep.subr.mxu0 0.0
      %2715 = vmatpush1.msra.mxu0 0.0
      %2716 = vmatprep.subr.mxu0 0.0
      %2717 = vmatpush1.msra.mxu0 0.0
      %2718 = vmatprep.subr.mxu0 0.0
      %2719 = vmatpush1.msra.mxu0 0.0
      %2720 = vmatprep.subr.mxu0 0.0
      %2721 = vmatpush1.msra.mxu0 0.0
      %2722 = vmatprep.subr.mxu0 0.0
      %2723 = vmatpush1.msra.mxu0 0.0
      %2724 = vmatprep.subr.mxu0 0.0
      %2725 = vmatpush1.msra.mxu0 0.0
      %2726 = vmatprep.subr.mxu0 0.0
      %2727 = vmatpush1.msra.mxu0 0.0
      %2728 = vmatprep.subr.mxu0 0.0
      %2729 = vmatpush1.msra.mxu0 0.0
      %2730 = vmatprep.subr.mxu0 0.0
      %2731 = vmatpush1.msra.mxu0 0.0
      %2732 = vmatprep.subr.mxu0 0.0
      %2733 = vmatpush1.msra.mxu0 0.0
      %2734 = vmatprep.subr.mxu0 0.0
      %2735 = vmatpush1.msra.mxu0 0.0
      %2736 = vmatprep.subr.mxu0 0.0
      %2737 = vmatpush1.msra.mxu0 0.0
      %2738 = vmatprep.subr.mxu0 0.0
      %2739 = vmatpush1.msra.mxu0 0.0
      %2740 = vmatprep.subr.mxu0 0.0
      %2741 = vmatpush1.msra.mxu0 0.0
      %2742 = vmatprep.subr.mxu0 0.0
      %2743 = vmatpush1.msra.mxu0 0.0
      %2744 = vmatprep.subr.mxu0 0.0
      %2745 = vmatpush1.msra.mxu0 0.0
      %2746 = vmatprep.subr.mxu0 0.0
      %2747 = vmatpush1.msra.mxu0 0.0
      %2748 = vmatprep.subr.mxu0 0.0
      %2749 = vmatpush1.msra.mxu0 0.0
      %2750 = vmatprep.subr.mxu0 0.0
      %2751 = vmatpush1.msra.mxu0 0.0
      %2752 = vmatprep.subr.mxu0 0.0
      %2753 = vmatpush1.msra.mxu0 0.0
      %2754 = vmatprep.subr.mxu0 0.0
      %2755 = vmatpush1.msra.mxu0 0.0
      %2756 = vmatprep.subr.mxu0 0.0
      %2757 = vmatpush1.msra.mxu0 0.0
      %2758 = vmatprep.subr.mxu0 0.0
      %2759 = vmatpush1.msra.mxu0 0.0
      %2760 = vmatprep.subr.mxu0 0.0
      %2761 = vmatpush1.msra.mxu0 0.0
      %2762 = vmatprep.subr.mxu0 0.0
      %2763 = vmatpush1.msra.mxu0 0.0
      %2764 = vmatprep.subr.mxu0 0.0
      %2765 = vmatpush1.msra.mxu0 0.0
      %2766 = vmatprep.mubr.f32.mxu0 0.0
      %2767 = vmatmul.mubr.f32.gmra.mrb[0].mxu0 %v1246
      %v2768 = vpop.f32.mrb[0].mxu0
      %v2769 = vadd.f32 0.0, %v2768
      %v2770 = vpop.f32.mrb[0].mxu0
      %2771 = vdwg.mxu0
      %v2772 = vadd.f32 %v2614, %v2698
      %v2773 = vadd.f32 %v2615, %v2700
      %v2774 = vadd.f32 %v2616, %v2769
      %2775 = vmatprep.subr.mxu0 %v1577
      %2776 = vmatpush1.msra.mxu0 %v1575
      %2777 = vmatprep.subr.mxu0 0.0
      %2778 = vmatpush1.msra.mxu0 0.0
      %2779 = vmatprep.subr.mxu0 0.0
      %2780 = vmatpush1.msra.mxu0 0.0
      %2781 = vmatprep.subr.mxu0 0.0
      %2782 = vmatpush1.msra.mxu0 0.0
      %2783 = vmatprep.subr.mxu0 0.0
      %2784 = vmatpush1.msra.mxu0 0.0
      %2785 = vmatprep.subr.mxu0 0.0
      %2786 = vmatpush1.msra.mxu0 0.0
      %2787 = vmatprep.subr.mxu0 0.0
      %2788 = vmatpush1.msra.mxu0 0.0
      %2789 = vmatprep.subr.mxu0 0.0
      %2790 = vmatpush1.msra.mxu0 0.0
      %2791 = vmatprep.subr.mxu0 0.0
      %2792 = vmatpush1.msra.mxu0 0.0
      %2793 = vmatprep.subr.mxu0 0.0
      %2794 = vmatpush1.msra.mxu0 0.0
      %2795 = vmatprep.subr.mxu0 0.0
      %2796 = vmatpush1.msra.mxu0 0.0
      %2797 = vmatprep.subr.mxu0 0.0
      %2798 = vmatpush1.msra.mxu0 0.0
      %2799 = vmatprep.subr.mxu0 0.0
      %2800 = vmatpush1.msra.mxu0 0.0
      %2801 = vmatprep.subr.mxu0 0.0
      %2802 = vmatpush1.msra.mxu0 0.0
      %2803 = vmatprep.subr.mxu0 0.0
      %2804 = vmatpush1.msra.mxu0 0.0
      %2805 = vmatprep.subr.mxu0 0.0
      %2806 = vmatpush1.msra.mxu0 0.0
      %2807 = vmatprep.subr.mxu0 0.0
      %2808 = vmatpush1.msra.mxu0 0.0
      %2809 = vmatprep.subr.mxu0 0.0
      %2810 = vmatpush1.msra.mxu0 0.0
      %2811 = vmatprep.subr.mxu0 0.0
      %2812 = vmatpush1.msra.mxu0 0.0
      %2813 = vmatprep.subr.mxu0 0.0
      %2814 = vmatpush1.msra.mxu0 0.0
      %2815 = vmatprep.subr.mxu0 0.0
      %2816 = vmatpush1.msra.mxu0 0.0
      %2817 = vmatprep.subr.mxu0 0.0
      %2818 = vmatpush1.msra.mxu0 0.0
      %2819 = vmatprep.subr.mxu0 0.0
      %2820 = vmatpush1.msra.mxu0 0.0
      %2821 = vmatprep.subr.mxu0 0.0
      %2822 = vmatpush1.msra.mxu0 0.0
      %2823 = vmatprep.subr.mxu0 0.0
      %2824 = vmatpush1.msra.mxu0 0.0
      %2825 = vmatprep.subr.mxu0 0.0
      %2826 = vmatpush1.msra.mxu0 0.0
      %2827 = vmatprep.subr.mxu0 0.0
      %2828 = vmatpush1.msra.mxu0 0.0
      %2829 = vmatprep.subr.mxu0 0.0
      %2830 = vmatpush1.msra.mxu0 0.0
      %2831 = vmatprep.subr.mxu0 0.0
      %2832 = vmatpush1.msra.mxu0 0.0
      %2833 = vmatprep.subr.mxu0 0.0
      %2834 = vmatpush1.msra.mxu0 0.0
      %2835 = vmatprep.subr.mxu0 0.0
      %2836 = vmatpush1.msra.mxu0 0.0
      %2837 = vmatprep.subr.mxu0 0.0
      %2838 = vmatpush1.msra.mxu0 0.0
      %2839 = vmatprep.mubr.f32.mxu0 0.0
      %2840 = vmatmul.mubr.f32.gmra.mrb[0].mxu0 %v1410
      %v2841 = vpop.f32.mrb[0].mxu0
      %v2842 = vadd.f32 0.0, %v2841
      %v2843 = vpop.f32.mrb[0].mxu0
      %v2844 = vadd.f32 0.0, %v2843
      %2845 = vdwg.mxu0
      %2846 = vmatprep.subr.mxu0 0.0
      %2847 = vmatpush1.msra.mxu0 %v1579
      %2848 = vmatprep.subr.mxu0 0.0
      %2849 = vmatpush1.msra.mxu0 0.0
      %2850 = vmatprep.subr.mxu0 0.0
      %2851 = vmatpush1.msra.mxu0 0.0
      %2852 = vmatprep.subr.mxu0 0.0
      %2853 = vmatpush1.msra.mxu0 0.0
      %2854 = vmatprep.subr.mxu0 0.0
      %2855 = vmatpush1.msra.mxu0 0.0
      %2856 = vmatprep.subr.mxu0 0.0
      %2857 = vmatpush1.msra.mxu0 0.0
      %2858 = vmatprep.subr.mxu0 0.0
      %2859 = vmatpush1.msra.mxu0 0.0
      %2860 = vmatprep.subr.mxu0 0.0
      %2861 = vmatpush1.msra.mxu0 0.0
      %2862 = vmatprep.subr.mxu0 0.0
      %2863 = vmatpush1.msra.mxu0 0.0
      %2864 = vmatprep.subr.mxu0 0.0
      %2865 = vmatpush1.msra.mxu0 0.0
      %2866 = vmatprep.subr.mxu0 0.0
      %2867 = vmatpush1.msra.mxu0 0.0
      %2868 = vmatprep.subr.mxu0 0.0
      %2869 = vmatpush1.msra.mxu0 0.0
      %2870 = vmatprep.subr.mxu0 0.0
      %2871 = vmatpush1.msra.mxu0 0.0
      %2872 = vmatprep.subr.mxu0 0.0
      %2873 = vmatpush1.msra.mxu0 0.0
      %2874 = vmatprep.subr.mxu0 0.0
      %2875 = vmatpush1.msra.mxu0 0.0
      %2876 = vmatprep.subr.mxu0 0.0
      %2877 = vmatpush1.msra.mxu0 0.0
      %2878 = vmatprep.subr.mxu0 0.0
      %2879 = vmatpush1.msra.mxu0 0.0
      %2880 = vmatprep.subr.mxu0 0.0
      %2881 = vmatpush1.msra.mxu0 0.0
      %2882 = vmatprep.subr.mxu0 0.0
      %2883 = vmatpush1.msra.mxu0 0.0
      %2884 = vmatprep.subr.mxu0 0.0
      %2885 = vmatpush1.msra.mxu0 0.0
      %2886 = vmatprep.subr.mxu0 0.0
      %2887 = vmatpush1.msra.mxu0 0.0
      %2888 = vmatprep.subr.mxu0 0.0
      %2889 = vmatpush1.msra.mxu0 0.0
      %2890 = vmatprep.subr.mxu0 0.0
      %2891 = vmatpush1.msra.mxu0 0.0
      %2892 = vmatprep.subr.mxu0 0.0
      %2893 = vmatpush1.msra.mxu0 0.0
      %2894 = vmatprep.subr.mxu0 0.0
      %2895 = vmatpush1.msra.mxu0 0.0
      %2896 = vmatprep.subr.mxu0 0.0
      %2897 = vmatpush1.msra.mxu0 0.0
      %2898 = vmatprep.subr.mxu0 0.0
      %2899 = vmatpush1.msra.mxu0 0.0
      %2900 = vmatprep.subr.mxu0 0.0
      %2901 = vmatpush1.msra.mxu0 0.0
      %2902 = vmatprep.subr.mxu0 0.0
      %2903 = vmatpush1.msra.mxu0 0.0
      %2904 = vmatprep.subr.mxu0 0.0
      %2905 = vmatpush1.msra.mxu0 0.0
      %2906 = vmatprep.subr.mxu0 0.0
      %2907 = vmatpush1.msra.mxu0 0.0
      %2908 = vmatprep.subr.mxu0 0.0
      %2909 = vmatpush1.msra.mxu0 0.0
      %2910 = vmatprep.mubr.f32.mxu0 0.0
      %2911 = vmatmul.mubr.f32.gmra.mrb[0].mxu0 %v1410
      %v2912 = vpop.f32.mrb[0].mxu0
      %v2913 = vadd.f32 0.0, %v2912
      %v2914 = vpop.f32.mrb[0].mxu0
      %2915 = vdwg.mxu0
      %v2916 = vadd.f32 %v2772, %v2842
      %v2917 = vadd.f32 %v2773, %v2844
      %v2918 = vadd.f32 %v2774, %v2913
      %2919 = vmatprep.subr.mxu0 %v1741
      %2920 = vmatpush1.msra.mxu0 %v1739
      %2921 = vmatprep.subr.mxu0 0.0
      %2922 = vmatpush1.msra.mxu0 0.0
      %2923 = vmatprep.subr.mxu0 0.0
      %2924 = vmatpush1.msra.mxu0 0.0
      %2925 = vmatprep.subr.mxu0 0.0
      %2926 = vmatpush1.msra.mxu0 0.0
      %2927 = vmatprep.subr.mxu0 0.0
      %2928 = vmatpush1.msra.mxu0 0.0
      %2929 = vmatprep.subr.mxu0 0.0
      %2930 = vmatpush1.msra.mxu0 0.0
      %2931 = vmatprep.subr.mxu0 0.0
      %2932 = vmatpush1.msra.mxu0 0.0
      %2933 = vmatprep.subr.mxu0 0.0
      %2934 = vmatpush1.msra.mxu0 0.0
      %2935 = vmatprep.subr.mxu0 0.0
      %2936 = vmatpush1.msra.mxu0 0.0
      %2937 = vmatprep.subr.mxu0 0.0
      %2938 = vmatpush1.msra.mxu0 0.0
      %2939 = vmatprep.subr.mxu0 0.0
      %2940 = vmatpush1.msra.mxu0 0.0
      %2941 = vmatprep.subr.mxu0 0.0
      %2942 = vmatpush1.msra.mxu0 0.0
      %2943 = vmatprep.subr.mxu0 0.0
      %2944 = vmatpush1.msra.mxu0 0.0
      %2945 = vmatprep.subr.mxu0 0.0
      %2946 = vmatpush1.msra.mxu0 0.0
      %2947 = vmatprep.subr.mxu0 0.0
      %2948 = vmatpush1.msra.mxu0 0.0
      %2949 = vmatprep.subr.mxu0 0.0
      %2950 = vmatpush1.msra.mxu0 0.0
      %2951 = vmatprep.subr.mxu0 0.0
      %2952 = vmatpush1.msra.mxu0 0.0
      %2953 = vmatprep.subr.mxu0 0.0
      %2954 = vmatpush1.msra.mxu0 0.0
      %2955 = vmatprep.subr.mxu0 0.0
      %2956 = vmatpush1.msra.mxu0 0.0
      %2957 = vmatprep.subr.mxu0 0.0
      %2958 = vmatpush1.msra.mxu0 0.0
      %2959 = vmatprep.subr.mxu0 0.0
      %2960 = vmatpush1.msra.mxu0 0.0
      %2961 = vmatprep.subr.mxu0 0.0
      %2962 = vmatpush1.msra.mxu0 0.0
      %2963 = vmatprep.subr.mxu0 0.0
      %2964 = vmatpush1.msra.mxu0 0.0
      %2965 = vmatprep.subr.mxu0 0.0
      %2966 = vmatpush1.msra.mxu0 0.0
      %2967 = vmatprep.subr.mxu0 0.0
      %2968 = vmatpush1.msra.mxu0 0.0
      %2969 = vmatprep.subr.mxu0 0.0
      %2970 = vmatpush1.msra.mxu0 0.0
      %2971 = vmatprep.subr.mxu0 0.0
      %2972 = vmatpush1.msra.mxu0 0.0
      %2973 = vmatprep.subr.mxu0 0.0
      %2974 = vmatpush1.msra.mxu0 0.0
      %2975 = vmatprep.subr.mxu0 0.0
      %2976 = vmatpush1.msra.mxu0 0.0
      %2977 = vmatprep.subr.mxu0 0.0
      %2978 = vmatpush1.msra.mxu0 0.0
      %2979 = vmatprep.subr.mxu0 0.0
      %2980 = vmatpush1.msra.mxu0 0.0
      %2981 = vmatprep.subr.mxu0 0.0
      %2982 = vmatpush1.msra.mxu0 0.0
      %2983 = vmatprep.mubr.f32.mxu0 0.0
      %2984 = vmatmul.mubr.f32.gmra.mrb[0].mxu0 %v1573
      %v2985 = vpop.f32.mrb[0].mxu0
      %v2986 = vadd.f32 0.0, %v2985
      %v2987 = vpop.f32.mrb[0].mxu0
      %v2988 = vadd.f32 0.0, %v2987
      %2989 = vdwg.mxu0
      %2990 = vmatprep.subr.mxu0 0.0
      %2991 = vmatpush1.msra.mxu0 %v1743
      %2992 = vmatprep.subr.mxu0 0.0
      %2993 = vmatpush1.msra.mxu0 0.0
      %2994 = vmatprep.subr.mxu0 0.0
      %2995 = vmatpush1.msra.mxu0 0.0
      %2996 = vmatprep.subr.mxu0 0.0
      %2997 = vmatpush1.msra.mxu0 0.0
      %2998 = vmatprep.subr.mxu0 0.0
      %2999 = vmatpush1.msra.mxu0 0.0
      %3000 = vmatprep.subr.mxu0 0.0
      %3001 = vmatpush1.msra.mxu0 0.0
      %3002 = vmatprep.subr.mxu0 0.0
      %3003 = vmatpush1.msra.mxu0 0.0
      %3004 = vmatprep.subr.mxu0 0.0
      %3005 = vmatpush1.msra.mxu0 0.0
      %3006 = vmatprep.subr.mxu0 0.0
      %3007 = vmatpush1.msra.mxu0 0.0
      %3008 = vmatprep.subr.mxu0 0.0
      %3009 = vmatpush1.msra.mxu0 0.0
      %3010 = vmatprep.subr.mxu0 0.0
      %3011 = vmatpush1.msra.mxu0 0.0
      %3012 = vmatprep.subr.mxu0 0.0
      %3013 = vmatpush1.msra.mxu0 0.0
      %3014 = vmatprep.subr.mxu0 0.0
      %3015 = vmatpush1.msra.mxu0 0.0
      %3016 = vmatprep.subr.mxu0 0.0
      %3017 = vmatpush1.msra.mxu0 0.0
      %3018 = vmatprep.subr.mxu0 0.0
      %3019 = vmatpush1.msra.mxu0 0.0
      %3020 = vmatprep.subr.mxu0 0.0
      %3021 = vmatpush1.msra.mxu0 0.0
      %3022 = vmatprep.subr.mxu0 0.0
      %3023 = vmatpush1.msra.mxu0 0.0
      %3024 = vmatprep.subr.mxu0 0.0
      %3025 = vmatpush1.msra.mxu0 0.0
      %3026 = vmatprep.subr.mxu0 0.0
      %3027 = vmatpush1.msra.mxu0 0.0
      %3028 = vmatprep.subr.mxu0 0.0
      %3029 = vmatpush1.msra.mxu0 0.0
      %3030 = vmatprep.subr.mxu0 0.0
      %3031 = vmatpush1.msra.mxu0 0.0
      %3032 = vmatprep.subr.mxu0 0.0
      %3033 = vmatpush1.msra.mxu0 0.0
      %3034 = vmatprep.subr.mxu0 0.0
      %3035 = vmatpush1.msra.mxu0 0.0
      %3036 = vmatprep.subr.mxu0 0.0
      %3037 = vmatpush1.msra.mxu0 0.0
      %3038 = vmatprep.subr.mxu0 0.0
      %3039 = vmatpush1.msra.mxu0 0.0
      %3040 = vmatprep.subr.mxu0 0.0
      %3041 = vmatpush1.msra.mxu0 0.0
      %3042 = vmatprep.subr.mxu0 0.0
      %3043 = vmatpush1.msra.mxu0 0.0
      %3044 = vmatprep.subr.mxu0 0.0
      %3045 = vmatpush1.msra.mxu0 0.0
      %3046 = vmatprep.subr.mxu0 0.0
      %3047 = vmatpush1.msra.mxu0 0.0
      %3048 = vmatprep.subr.mxu0 0.0
      %3049 = vmatpush1.msra.mxu0 0.0
      %3050 = vmatprep.subr.mxu0 0.0
      %3051 = vmatpush1.msra.mxu0 0.0
      %3052 = vmatprep.subr.mxu0 0.0
      %3053 = vmatpush1.msra.mxu0 0.0
      %3054 = vmatprep.mubr.f32.mxu0 0.0
      %3055 = vmatmul.mubr.f32.gmra.mrb[0].mxu0 %v1573
      %v3056 = vpop.f32.mrb[0].mxu0
      %v3057 = vadd.f32 0.0, %v3056
      %v3058 = vpop.f32.mrb[0].mxu0
      %3059 = vdwg.mxu0
      %v3060 = vadd.f32 %v2916, %v2986
      %v3061 = vadd.f32 %v2917, %v2988
      %v3062 = vadd.f32 %v2918, %v3057
      %3063 = vrot.lane.b32.xlu0 %v438, 112
      %v3064 = vpop.permute.xlu0 %3063
      %3065 = vrot.lane.b32.xlu0 %v439, 112
      %v3066 = vpop.permute.xlu0 %3065
      %3067 = vrot.lane.b32.xlu0 %v440, 112
      %v3068 = vpop.permute.xlu0 %3067
      %v3069 = vsel %vm1733, %v3064, %v3066
      %v3070 = vsel %vm1733, %v3066, %v3068
      %v3071 = vsel %vm445, %v3069, 0
      %v3073 = vsel %vm445, %v3070, 0
      %v3075 = vsel %vm445, %v3068, 0
      %3077 = vmatprep.subr.mxu0 %v3073
      %3078 = vmatpush1.msra.mxu0 %v3071
      %3079 = vmatprep.subr.mxu0 0.0
      %3080 = vmatpush1.msra.mxu0 0.0
      %3081 = vmatprep.subr.mxu0 0.0
      %3082 = vmatpush1.msra.mxu0 0.0
      %3083 = vmatprep.subr.mxu0 0.0
      %3084 = vmatpush1.msra.mxu0 0.0
      %3085 = vmatprep.subr.mxu0 0.0
      %3086 = vmatpush1.msra.mxu0 0.0
      %3087 = vmatprep.subr.mxu0 0.0
      %3088 = vmatpush1.msra.mxu0 0.0
      %3089 = vmatprep.subr.mxu0 0.0
      %3090 = vmatpush1.msra.mxu0 0.0
      %3091 = vmatprep.subr.mxu0 0.0
      %3092 = vmatpush1.msra.mxu0 0.0
      %3093 = vmatprep.subr.mxu0 0.0
      %3094 = vmatpush1.msra.mxu0 0.0
      %3095 = vmatprep.subr.mxu0 0.0
      %3096 = vmatpush1.msra.mxu0 0.0
      %3097 = vmatprep.subr.mxu0 0.0
      %3098 = vmatpush1.msra.mxu0 0.0
      %3099 = vmatprep.subr.mxu0 0.0
      %3100 = vmatpush1.msra.mxu0 0.0
      %3101 = vmatprep.subr.mxu0 0.0
      %3102 = vmatpush1.msra.mxu0 0.0
      %3103 = vmatprep.subr.mxu0 0.0
      %3104 = vmatpush1.msra.mxu0 0.0
      %3105 = vmatprep.subr.mxu0 0.0
      %3106 = vmatpush1.msra.mxu0 0.0
      %3107 = vmatprep.subr.mxu0 0.0
      %3108 = vmatpush1.msra.mxu0 0.0
      %3109 = vmatprep.subr.mxu0 0.0
      %3110 = vmatpush1.msra.mxu0 0.0
      %3111 = vmatprep.subr.mxu0 0.0
      %3112 = vmatpush1.msra.mxu0 0.0
      %3113 = vmatprep.subr.mxu0 0.0
      %3114 = vmatpush1.msra.mxu0 0.0
      %3115 = vmatprep.subr.mxu0 0.0
      %3116 = vmatpush1.msra.mxu0 0.0
      %3117 = vmatprep.subr.mxu0 0.0
      %3118 = vmatpush1.msra.mxu0 0.0
      %3119 = vmatprep.subr.mxu0 0.0
      %3120 = vmatpush1.msra.mxu0 0.0
      %3121 = vmatprep.subr.mxu0 0.0
      %3122 = vmatpush1.msra.mxu0 0.0
      %3123 = vmatprep.subr.mxu0 0.0
      %3124 = vmatpush1.msra.mxu0 0.0
      %3125 = vmatprep.subr.mxu0 0.0
      %3126 = vmatpush1.msra.mxu0 0.0
      %3127 = vmatprep.subr.mxu0 0.0
      %3128 = vmatpush1.msra.mxu0 0.0
      %3129 = vmatprep.subr.mxu0 0.0
      %3130 = vmatpush1.msra.mxu0 0.0
      %3131 = vmatprep.subr.mxu0 0.0
      %3132 = vmatpush1.msra.mxu0 0.0
      %3133 = vmatprep.subr.mxu0 0.0
      %3134 = vmatpush1.msra.mxu0 0.0
      %3135 = vmatprep.subr.mxu0 0.0
      %3136 = vmatpush1.msra.mxu0 0.0
      %3137 = vmatprep.subr.mxu0 0.0
      %3138 = vmatpush1.msra.mxu0 0.0
      %3139 = vmatprep.subr.mxu0 0.0
      %3140 = vmatpush1.msra.mxu0 0.0
      %3141 = vmatprep.mubr.f32.mxu0 0.0
      %3142 = vmatmul.mubr.f32.gmra.mrb[0].mxu0 %v1737
      %v3143 = vpop.f32.mrb[0].mxu0
      %v3144 = vadd.f32 0.0, %v3143
      %v3145 = vpop.f32.mrb[0].mxu0
      %v3146 = vadd.f32 0.0, %v3145
      %3147 = vdwg.mxu0
      %3148 = vmatprep.subr.mxu0 0.0
      %3149 = vmatpush1.msra.mxu0 %v3075
      %3150 = vmatprep.subr.mxu0 0.0
      %3151 = vmatpush1.msra.mxu0 0.0
      %3152 = vmatprep.subr.mxu0 0.0
      %3153 = vmatpush1.msra.mxu0 0.0
      %3154 = vmatprep.subr.mxu0 0.0
      %3155 = vmatpush1.msra.mxu0 0.0
      %3156 = vmatprep.subr.mxu0 0.0
      %3157 = vmatpush1.msra.mxu0 0.0
      %3158 = vmatprep.subr.mxu0 0.0
      %3159 = vmatpush1.msra.mxu0 0.0
      %3160 = vmatprep.subr.mxu0 0.0
      %3161 = vmatpush1.msra.mxu0 0.0
      %3162 = vmatprep.subr.mxu0 0.0
      %3163 = vmatpush1.msra.mxu0 0.0
      %3164 = vmatprep.subr.mxu0 0.0
      %3165 = vmatpush1.msra.mxu0 0.0
      %3166 = vmatprep.subr.mxu0 0.0
      %3167 = vmatpush1.msra.mxu0 0.0
      %3168 = vmatprep.subr.mxu0 0.0
      %3169 = vmatpush1.msra.mxu0 0.0
      %3170 = vmatprep.subr.mxu0 0.0
      %3171 = vmatpush1.msra.mxu0 0.0
      %3172 = vmatprep.subr.mxu0 0.0
      %3173 = vmatpush1.msra.mxu0 0.0
      %3174 = vmatprep.subr.mxu0 0.0
      %3175 = vmatpush1.msra.mxu0 0.0
      %3176 = vmatprep.subr.mxu0 0.0
      %3177 = vmatpush1.msra.mxu0 0.0
      %3178 = vmatprep.subr.mxu0 0.0
      %3179 = vmatpush1.msra.mxu0 0.0
      %3180 = vmatprep.subr.mxu0 0.0
      %3181 = vmatpush1.msra.mxu0 0.0
      %3182 = vmatprep.subr.mxu0 0.0
      %3183 = vmatpush1.msra.mxu0 0.0
      %3184 = vmatprep.subr.mxu0 0.0
      %3185 = vmatpush1.msra.mxu0 0.0
      %3186 = vmatprep.subr.mxu0 0.0
      %3187 = vmatpush1.msra.mxu0 0.0
      %3188 = vmatprep.subr.mxu0 0.0
      %3189 = vmatpush1.msra.mxu0 0.0
      %3190 = vmatprep.subr.mxu0 0.0
      %3191 = vmatpush1.msra.mxu0 0.0
      %3192 = vmatprep.subr.mxu0 0.0
      %3193 = vmatpush1.msra.mxu0 0.0
      %3194 = vmatprep.subr.mxu0 0.0
      %3195 = vmatpush1.msra.mxu0 0.0
      %3196 = vmatprep.subr.mxu0 0.0
      %3197 = vmatpush1.msra.mxu0 0.0
      %3198 = vmatprep.subr.mxu0 0.0
      %3199 = vmatpush1.msra.mxu0 0.0
      %3200 = vmatprep.subr.mxu0 0.0
      %3201 = vmatpush1.msra.mxu0 0.0
      %3202 = vmatprep.subr.mxu0 0.0
      %3203 = vmatpush1.msra.mxu0 0.0
      %3204 = vmatprep.subr.mxu0 0.0
      %3205 = vmatpush1.msra.mxu0 0.0
      %3206 = vmatprep.subr.mxu0 0.0
      %3207 = vmatpush1.msra.mxu0 0.0
      %3208 = vmatprep.subr.mxu0 0.0
      %3209 = vmatpush1.msra.mxu0 0.0
      %3210 = vmatprep.subr.mxu0 0.0
      %3211 = vmatpush1.msra.mxu0 0.0
      %3212 = vmatprep.mubr.f32.mxu0 0.0
      %3213 = vmatmul.mubr.f32.gmra.mrb[0].mxu0 %v1737
      %v3214 = vpop.f32.mrb[0].mxu0
      %v3215 = vadd.f32 0.0, %v3214
      %v3216 = vpop.f32.mrb[0].mxu0
      %3217 = vdwg.mxu0
      %v3218 = vadd.f32 %v3060, %v3144
      %v3219 = vadd.f32 %v3061, %v3146
      %v3220 = vadd.f32 %v3062, %v3215
      %v3221 = vmax.f32 %v1886, %v3218
      %v3222 = vmax.f32 %v1887, %v3219
      %v3223 = vmax.f32 %v1888, %v3220
      %3224 = vmatprep.subr.mxu0 %v1087
      %3225 = vmatpush1.msra.mxu0 %v1085
      %3226 = vmatprep.subr.mxu0 0.0
      %3227 = vmatpush1.msra.mxu0 0.0
      %3228 = vmatprep.subr.mxu0 0.0
      %3229 = vmatpush1.msra.mxu0 0.0
      %3230 = vmatprep.subr.mxu0 0.0
      %3231 = vmatpush1.msra.mxu0 0.0
      %3232 = vmatprep.subr.mxu0 0.0
      %3233 = vmatpush1.msra.mxu0 0.0
      %3234 = vmatprep.subr.mxu0 0.0
      %3235 = vmatpush1.msra.mxu0 0.0
      %3236 = vmatprep.subr.mxu0 0.0
      %3237 = vmatpush1.msra.mxu0 0.0
      %3238 = vmatprep.subr.mxu0 0.0
      %3239 = vmatpush1.msra.mxu0 0.0
      %3240 = vmatprep.subr.mxu0 0.0
      %3241 = vmatpush1.msra.mxu0 0.0
      %3242 = vmatprep.subr.mxu0 0.0
      %3243 = vmatpush1.msra.mxu0 0.0
      %3244 = vmatprep.subr.mxu0 0.0
      %3245 = vmatpush1.msra.mxu0 0.0
      %3246 = vmatprep.subr.mxu0 0.0
      %3247 = vmatpush1.msra.mxu0 0.0
      %3248 = vmatprep.subr.mxu0 0.0
      %3249 = vmatpush1.msra.mxu0 0.0
      %3250 = vmatprep.subr.mxu0 0.0
      %3251 = vmatpush1.msra.mxu0 0.0
      %3252 = vmatprep.subr.mxu0 0.0
      %3253 = vmatpush1.msra.mxu0 0.0
      %3254 = vmatprep.subr.mxu0 0.0
      %3255 = vmatpush1.msra.mxu0 0.0
      %3256 = vmatprep.subr.mxu0 0.0
      %3257 = vmatpush1.msra.mxu0 0.0
      %3258 = vmatprep.subr.mxu0 0.0
      %3259 = vmatpush1.msra.mxu0 0.0
      %3260 = vmatprep.subr.mxu0 0.0
      %3261 = vmatpush1.msra.mxu0 0.0
      %3262 = vmatprep.subr.mxu0 0.0
      %3263 = vmatpush1.msra.mxu0 0.0
      %3264 = vmatprep.subr.mxu0 0.0
      %3265 = vmatpush1.msra.mxu0 0.0
      %3266 = vmatprep.subr.mxu0 0.0
      %3267 = vmatpush1.msra.mxu0 0.0
      %3268 = vmatprep.subr.mxu0 0.0
      %3269 = vmatpush1.msra.mxu0 0.0
      %3270 = vmatprep.subr.mxu0 0.0
      %3271 = vmatpush1.msra.mxu0 0.0
      %3272 = vmatprep.subr.mxu0 0.0
      %3273 = vmatpush1.msra.mxu0 0.0
      %3274 = vmatprep.subr.mxu0 0.0
      %3275 = vmatpush1.msra.mxu0 0.0
      %3276 = vmatprep.subr.mxu0 0.0
      %3277 = vmatpush1.msra.mxu0 0.0
      %3278 = vmatprep.subr.mxu0 0.0
      %3279 = vmatpush1.msra.mxu0 0.0
      %3280 = vmatprep.subr.mxu0 0.0
      %3281 = vmatpush1.msra.mxu0 0.0
      %3282 = vmatprep.subr.mxu0 0.0
      %3283 = vmatpush1.msra.mxu0 0.0
      %3284 = vmatprep.subr.mxu0 0.0
      %3285 = vmatpush1.msra.mxu0 0.0
      %3286 = vmatprep.subr.mxu0 0.0
      %3287 = vmatpush1.msra.mxu0 0.0
      %3288 = vmatprep.mubr.f32.mxu0 0.0
      %3289 = vmatmul.mubr.f32.gmra.mrb[0].mxu0 %v443
      %v3290 = vpop.f32.mrb[0].mxu0
      %v3291 = vadd.f32 0.0, %v3290
      %v3292 = vpop.f32.mrb[0].mxu0
      %v3293 = vadd.f32 0.0, %v3292
      %3294 = vdwg.mxu0
      %3295 = vmatprep.subr.mxu0 0.0
      %3296 = vmatpush1.msra.mxu0 %v1089
      %3297 = vmatprep.subr.mxu0 0.0
      %3298 = vmatpush1.msra.mxu0 0.0
      %3299 = vmatprep.subr.mxu0 0.0
      %3300 = vmatpush1.msra.mxu0 0.0
      %3301 = vmatprep.subr.mxu0 0.0
      %3302 = vmatpush1.msra.mxu0 0.0
      %3303 = vmatprep.subr.mxu0 0.0
      %3304 = vmatpush1.msra.mxu0 0.0
      %3305 = vmatprep.subr.mxu0 0.0
      %3306 = vmatpush1.msra.mxu0 0.0
      %3307 = vmatprep.subr.mxu0 0.0
      %3308 = vmatpush1.msra.mxu0 0.0
      %3309 = vmatprep.subr.mxu0 0.0
      %3310 = vmatpush1.msra.mxu0 0.0
      %3311 = vmatprep.subr.mxu0 0.0
      %3312 = vmatpush1.msra.mxu0 0.0
      %3313 = vmatprep.subr.mxu0 0.0
      %3314 = vmatpush1.msra.mxu0 0.0
      %3315 = vmatprep.subr.mxu0 0.0
      %3316 = vmatpush1.msra.mxu0 0.0
      %3317 = vmatprep.subr.mxu0 0.0
      %3318 = vmatpush1.msra.mxu0 0.0
      %3319 = vmatprep.subr.mxu0 0.0
      %3320 = vmatpush1.msra.mxu0 0.0
      %3321 = vmatprep.subr.mxu0 0.0
      %3322 = vmatpush1.msra.mxu0 0.0
      %3323 = vmatprep.subr.mxu0 0.0
      %3324 = vmatpush1.msra.mxu0 0.0
      %3325 = vmatprep.subr.mxu0 0.0
      %3326 = vmatpush1.msra.mxu0 0.0
      %3327 = vmatprep.subr.mxu0 0.0
      %3328 = vmatpush1.msra.mxu0 0.0
      %3329 = vmatprep.subr.mxu0 0.0
      %3330 = vmatpush1.msra.mxu0 0.0
      %3331 = vmatprep.subr.mxu0 0.0
      %3332 = vmatpush1.msra.mxu0 0.0
      %3333 = vmatprep.subr.mxu0 0.0
      %3334 = vmatpush1.msra.mxu0 0.0
      %3335 = vmatprep.subr.mxu0 0.0
      %3336 = vmatpush1.msra.mxu0 0.0
      %3337 = vmatprep.subr.mxu0 0.0
      %3338 = vmatpush1.msra.mxu0 0.0
      %3339 = vmatprep.subr.mxu0 0.0
      %3340 = vmatpush1.msra.mxu0 0.0
      %3341 = vmatprep.subr.mxu0 0.0
      %3342 = vmatpush1.msra.mxu0 0.0
      %3343 = vmatprep.subr.mxu0 0.0
      %3344 = vmatpush1.msra.mxu0 0.0
      %3345 = vmatprep.subr.mxu0 0.0
      %3346 = vmatpush1.msra.mxu0 0.0
      %3347 = vmatprep.subr.mxu0 0.0
      %3348 = vmatpush1.msra.mxu0 0.0
      %3349 = vmatprep.subr.mxu0 0.0
      %3350 = vmatpush1.msra.mxu0 0.0
      %3351 = vmatprep.subr.mxu0 0.0
      %3352 = vmatpush1.msra.mxu0 0.0
      %3353 = vmatprep.subr.mxu0 0.0
      %3354 = vmatpush1.msra.mxu0 0.0
      %3355 = vmatprep.subr.mxu0 0.0
      %3356 = vmatpush1.msra.mxu0 0.0
      %3357 = vmatprep.subr.mxu0 0.0
      %3358 = vmatpush1.msra.mxu0 0.0
      %3359 = vmatprep.mubr.f32.mxu0 0.0
      %3360 = vmatmul.mubr.f32.gmra.mrb[0].mxu0 %v443
      %v3361 = vpop.f32.mrb[0].mxu0
      %v3362 = vadd.f32 0.0, %v3361
      %v3363 = vpop.f32.mrb[0].mxu0
      %3364 = vdwg.mxu0
      %3365 = vmatprep.subr.mxu0 %v922
      %3366 = vmatpush1.msra.mxu0 %v919
      %3367 = vmatprep.subr.mxu0 0.0
      %3368 = vmatpush1.msra.mxu0 0.0
      %3369 = vmatprep.subr.mxu0 0.0
      %3370 = vmatpush1.msra.mxu0 0.0
      %3371 = vmatprep.subr.mxu0 0.0
      %3372 = vmatpush1.msra.mxu0 0.0
      %3373 = vmatprep.subr.mxu0 0.0
      %3374 = vmatpush1.msra.mxu0 0.0
      %3375 = vmatprep.subr.mxu0 0.0
      %3376 = vmatpush1.msra.mxu0 0.0
      %3377 = vmatprep.subr.mxu0 0.0
      %3378 = vmatpush1.msra.mxu0 0.0
      %3379 = vmatprep.subr.mxu0 0.0
      %3380 = vmatpush1.msra.mxu0 0.0
      %3381 = vmatprep.subr.mxu0 0.0
      %3382 = vmatpush1.msra.mxu0 0.0
      %3383 = vmatprep.subr.mxu0 0.0
      %3384 = vmatpush1.msra.mxu0 0.0
      %3385 = vmatprep.subr.mxu0 0.0
      %3386 = vmatpush1.msra.mxu0 0.0
      %3387 = vmatprep.subr.mxu0 0.0
      %3388 = vmatpush1.msra.mxu0 0.0
      %3389 = vmatprep.subr.mxu0 0.0
      %3390 = vmatpush1.msra.mxu0 0.0
      %3391 = vmatprep.subr.mxu0 0.0
      %3392 = vmatpush1.msra.mxu0 0.0
      %3393 = vmatprep.subr.mxu0 0.0
      %3394 = vmatpush1.msra.mxu0 0.0
      %3395 = vmatprep.subr.mxu0 0.0
      %3396 = vmatpush1.msra.mxu0 0.0
      %3397 = vmatprep.subr.mxu0 0.0
      %3398 = vmatpush1.msra.mxu0 0.0
      %3399 = vmatprep.subr.mxu0 0.0
      %3400 = vmatpush1.msra.mxu0 0.0
      %3401 = vmatprep.subr.mxu0 0.0
      %3402 = vmatpush1.msra.mxu0 0.0
      %3403 = vmatprep.subr.mxu0 0.0
      %3404 = vmatpush1.msra.mxu0 0.0
      %3405 = vmatprep.subr.mxu0 0.0
      %3406 = vmatpush1.msra.mxu0 0.0
      %3407 = vmatprep.subr.mxu0 0.0
      %3408 = vmatpush1.msra.mxu0 0.0
      %3409 = vmatprep.subr.mxu0 0.0
      %3410 = vmatpush1.msra.mxu0 0.0
      %3411 = vmatprep.subr.mxu0 0.0
      %3412 = vmatpush1.msra.mxu0 0.0
      %3413 = vmatprep.subr.mxu0 0.0
      %3414 = vmatpush1.msra.mxu0 0.0
      %3415 = vmatprep.subr.mxu0 0.0
      %3416 = vmatpush1.msra.mxu0 0.0
      %3417 = vmatprep.subr.mxu0 0.0
      %3418 = vmatpush1.msra.mxu0 0.0
      %3419 = vmatprep.subr.mxu0 0.0
      %3420 = vmatpush1.msra.mxu0 0.0
      %3421 = vmatprep.subr.mxu0 0.0
      %3422 = vmatpush1.msra.mxu0 0.0
      %3423 = vmatprep.subr.mxu0 0.0
      %3424 = vmatpush1.msra.mxu0 0.0
      %3425 = vmatprep.subr.mxu0 0.0
      %3426 = vmatpush1.msra.mxu0 0.0
      %3427 = vmatprep.subr.mxu0 0.0
      %3428 = vmatpush1.msra.mxu0 0.0
      %3429 = vmatprep.mubr.f32.mxu0 0.0
      %3430 = vmatmul.mubr.f32.gmra.mrb[0].mxu0 %v594
      %v3431 = vpop.f32.mrb[0].mxu0
      %v3432 = vadd.f32 %v3291, %v3431
      %v3433 = vpop.f32.mrb[0].mxu0
      %v3434 = vadd.f32 %v3293, %v3433
      %3435 = vdwg.mxu0
      %3436 = vmatprep.subr.mxu0 0.0
      %3437 = vmatpush1.msra.mxu0 %v925
      %3438 = vmatprep.subr.mxu0 0.0
      %3439 = vmatpush1.msra.mxu0 0.0
      %3440 = vmatprep.subr.mxu0 0.0
      %3441 = vmatpush1.msra.mxu0 0.0
      %3442 = vmatprep.subr.mxu0 0.0
      %3443 = vmatpush1.msra.mxu0 0.0
      %3444 = vmatprep.subr.mxu0 0.0
      %3445 = vmatpush1.msra.mxu0 0.0
      %3446 = vmatprep.subr.mxu0 0.0
      %3447 = vmatpush1.msra.mxu0 0.0
      %3448 = vmatprep.subr.mxu0 0.0
      %3449 = vmatpush1.msra.mxu0 0.0
      %3450 = vmatprep.subr.mxu0 0.0
      %3451 = vmatpush1.msra.mxu0 0.0
      %3452 = vmatprep.subr.mxu0 0.0
      %3453 = vmatpush1.msra.mxu0 0.0
      %3454 = vmatprep.subr.mxu0 0.0
      %3455 = vmatpush1.msra.mxu0 0.0
      %3456 = vmatprep.subr.mxu0 0.0
      %3457 = vmatpush1.msra.mxu0 0.0
      %3458 = vmatprep.subr.mxu0 0.0
      %3459 = vmatpush1.msra.mxu0 0.0
      %3460 = vmatprep.subr.mxu0 0.0
      %3461 = vmatpush1.msra.mxu0 0.0
      %3462 = vmatprep.subr.mxu0 0.0
      %3463 = vmatpush1.msra.mxu0 0.0
      %3464 = vmatprep.subr.mxu0 0.0
      %3465 = vmatpush1.msra.mxu0 0.0
      %3466 = vmatprep.subr.mxu0 0.0
      %3467 = vmatpush1.msra.mxu0 0.0
      %3468 = vmatprep.subr.mxu0 0.0
      %3469 = vmatpush1.msra.mxu0 0.0
      %3470 = vmatprep.subr.mxu0 0.0
      %3471 = vmatpush1.msra.mxu0 0.0
      %3472 = vmatprep.subr.mxu0 0.0
      %3473 = vmatpush1.msra.mxu0 0.0
      %3474 = vmatprep.subr.mxu0 0.0
      %3475 = vmatpush1.msra.mxu0 0.0
      %3476 = vmatprep.subr.mxu0 0.0
      %3477 = vmatpush1.msra.mxu0 0.0
      %3478 = vmatprep.subr.mxu0 0.0
      %3479 = vmatpush1.msra.mxu0 0.0
      %3480 = vmatprep.subr.mxu0 0.0
      %3481 = vmatpush1.msra.mxu0 0.0
      %3482 = vmatprep.subr.mxu0 0.0
      %3483 = vmatpush1.msra.mxu0 0.0
      %3484 = vmatprep.subr.mxu0 0.0
      %3485 = vmatpush1.msra.mxu0 0.0
      %3486 = vmatprep.subr.mxu0 0.0
      %3487 = vmatpush1.msra.mxu0 0.0
      %3488 = vmatprep.subr.mxu0 0.0
      %3489 = vmatpush1.msra.mxu0 0.0
      %3490 = vmatprep.subr.mxu0 0.0
      %3491 = vmatpush1.msra.mxu0 0.0
      %3492 = vmatprep.subr.mxu0 0.0
      %3493 = vmatpush1.msra.mxu0 0.0
      %3494 = vmatprep.subr.mxu0 0.0
      %3495 = vmatpush1.msra.mxu0 0.0
      %3496 = vmatprep.subr.mxu0 0.0
      %3497 = vmatpush1.msra.mxu0 0.0
      %3498 = vmatprep.subr.mxu0 0.0
      %3499 = vmatpush1.msra.mxu0 0.0
      %3500 = vmatprep.mubr.f32.mxu0 0.0
      %3501 = vmatmul.mubr.f32.gmra.mrb[0].mxu0 %v594
      %v3502 = vpop.f32.mrb[0].mxu0
      %v3503 = vadd.f32 %v3362, %v3502
      %v3504 = vpop.f32.mrb[0].mxu0
      %3505 = vdwg.mxu0
      %3506 = vmatprep.subr.mxu0 %v1250
      %3507 = vmatpush1.msra.mxu0 %v1248
      %3508 = vmatprep.subr.mxu0 0.0
      %3509 = vmatpush1.msra.mxu0 0.0
      %3510 = vmatprep.subr.mxu0 0.0
      %3511 = vmatpush1.msra.mxu0 0.0
      %3512 = vmatprep.subr.mxu0 0.0
      %3513 = vmatpush1.msra.mxu0 0.0
      %3514 = vmatprep.subr.mxu0 0.0
      %3515 = vmatpush1.msra.mxu0 0.0
      %3516 = vmatprep.subr.mxu0 0.0
      %3517 = vmatpush1.msra.mxu0 0.0
      %3518 = vmatprep.subr.mxu0 0.0
      %3519 = vmatpush1.msra.mxu0 0.0
      %3520 = vmatprep.subr.mxu0 0.0
      %3521 = vmatpush1.msra.mxu0 0.0
      %3522 = vmatprep.subr.mxu0 0.0
      %3523 = vmatpush1.msra.mxu0 0.0
      %3524 = vmatprep.subr.mxu0 0.0
      %3525 = vmatpush1.msra.mxu0 0.0
      %3526 = vmatprep.subr.mxu0 0.0
      %3527 = vmatpush1.msra.mxu0 0.0
      %3528 = vmatprep.subr.mxu0 0.0
      %3529 = vmatpush1.msra.mxu0 0.0
      %3530 = vmatprep.subr.mxu0 0.0
      %3531 = vmatpush1.msra.mxu0 0.0
      %3532 = vmatprep.subr.mxu0 0.0
      %3533 = vmatpush1.msra.mxu0 0.0
      %3534 = vmatprep.subr.mxu0 0.0
      %3535 = vmatpush1.msra.mxu0 0.0
      %3536 = vmatprep.subr.mxu0 0.0
      %3537 = vmatpush1.msra.mxu0 0.0
      %3538 = vmatprep.subr.mxu0 0.0
      %3539 = vmatpush1.msra.mxu0 0.0
      %3540 = vmatprep.subr.mxu0 0.0
      %3541 = vmatpush1.msra.mxu0 0.0
      %3542 = vmatprep.subr.mxu0 0.0
      %3543 = vmatpush1.msra.mxu0 0.0
      %3544 = vmatprep.subr.mxu0 0.0
      %3545 = vmatpush1.msra.mxu0 0.0
      %3546 = vmatprep.subr.mxu0 0.0
      %3547 = vmatpush1.msra.mxu0 0.0
      %3548 = vmatprep.subr.mxu0 0.0
      %3549 = vmatpush1.msra.mxu0 0.0
      %3550 = vmatprep.subr.mxu0 0.0
      %3551 = vmatpush1.msra.mxu0 0.0
      %3552 = vmatprep.subr.mxu0 0.0
      %3553 = vmatpush1.msra.mxu0 0.0
      %3554 = vmatprep.subr.mxu0 0.0
      %3555 = vmatpush1.msra.mxu0 0.0
      %3556 = vmatprep.subr.mxu0 0.0
      %3557 = vmatpush1.msra.mxu0 0.0
      %3558 = vmatprep.subr.mxu0 0.0
      %3559 = vmatpush1.msra.mxu0 0.0
      %3560 = vmatprep.subr.mxu0 0.0
      %3561 = vmatpush1.msra.mxu0 0.0
      %3562 = vmatprep.subr.mxu0 0.0
      %3563 = vmatpush1.msra.mxu0 0.0
      %3564 = vmatprep.subr.mxu0 0.0
      %3565 = vmatpush1.msra.mxu0 0.0
      %3566 = vmatprep.subr.mxu0 0.0
      %3567 = vmatpush1.msra.mxu0 0.0
      %3568 = vmatprep.subr.mxu0 0.0
      %3569 = vmatpush1.msra.mxu0 0.0
      %3570 = vmatprep.mubr.f32.mxu0 0.0
      %3571 = vmatmul.mubr.f32.gmra.mrb[0].mxu0 %v758
      %v3572 = vpop.f32.mrb[0].mxu0
      %v3573 = vadd.f32 0.0, %v3572
      %v3574 = vpop.f32.mrb[0].mxu0
      %v3575 = vadd.f32 0.0, %v3574
      %3576 = vdwg.mxu0
      %3577 = vmatprep.subr.mxu0 0.0
      %3578 = vmatpush1.msra.mxu0 %v1252
      %3579 = vmatprep.subr.mxu0 0.0
      %3580 = vmatpush1.msra.mxu0 0.0
      %3581 = vmatprep.subr.mxu0 0.0
      %3582 = vmatpush1.msra.mxu0 0.0
      %3583 = vmatprep.subr.mxu0 0.0
      %3584 = vmatpush1.msra.mxu0 0.0
      %3585 = vmatprep.subr.mxu0 0.0
      %3586 = vmatpush1.msra.mxu0 0.0
      %3587 = vmatprep.subr.mxu0 0.0
      %3588 = vmatpush1.msra.mxu0 0.0
      %3589 = vmatprep.subr.mxu0 0.0
      %3590 = vmatpush1.msra.mxu0 0.0
      %3591 = vmatprep.subr.mxu0 0.0
      %3592 = vmatpush1.msra.mxu0 0.0
      %3593 = vmatprep.subr.mxu0 0.0
      %3594 = vmatpush1.msra.mxu0 0.0
      %3595 = vmatprep.subr.mxu0 0.0
      %3596 = vmatpush1.msra.mxu0 0.0
      %3597 = vmatprep.subr.mxu0 0.0
      %3598 = vmatpush1.msra.mxu0 0.0
      %3599 = vmatprep.subr.mxu0 0.0
      %3600 = vmatpush1.msra.mxu0 0.0
      %3601 = vmatprep.subr.mxu0 0.0
      %3602 = vmatpush1.msra.mxu0 0.0
      %3603 = vmatprep.subr.mxu0 0.0
      %3604 = vmatpush1.msra.mxu0 0.0
      %3605 = vmatprep.subr.mxu0 0.0
      %3606 = vmatpush1.msra.mxu0 0.0
      %3607 = vmatprep.subr.mxu0 0.0
      %3608 = vmatpush1.msra.mxu0 0.0
      %3609 = vmatprep.subr.mxu0 0.0
      %3610 = vmatpush1.msra.mxu0 0.0
      %3611 = vmatprep.subr.mxu0 0.0
      %3612 = vmatpush1.msra.mxu0 0.0
      %3613 = vmatprep.subr.mxu0 0.0
      %3614 = vmatpush1.msra.mxu0 0.0
      %3615 = vmatprep.subr.mxu0 0.0
      %3616 = vmatpush1.msra.mxu0 0.0
      %3617 = vmatprep.subr.mxu0 0.0
      %3618 = vmatpush1.msra.mxu0 0.0
      %3619 = vmatprep.subr.mxu0 0.0
      %3620 = vmatpush1.msra.mxu0 0.0
      %3621 = vmatprep.subr.mxu0 0.0
      %3622 = vmatpush1.msra.mxu0 0.0
      %3623 = vmatprep.subr.mxu0 0.0
      %3624 = vmatpush1.msra.mxu0 0.0
      %3625 = vmatprep.subr.mxu0 0.0
      %3626 = vmatpush1.msra.mxu0 0.0
      %3627 = vmatprep.subr.mxu0 0.0
      %3628 = vmatpush1.msra.mxu0 0.0
      %3629 = vmatprep.subr.mxu0 0.0
      %3630 = vmatpush1.msra.mxu0 0.0
      %3631 = vmatprep.subr.mxu0 0.0
      %3632 = vmatpush1.msra.mxu0 0.0
      %3633 = vmatprep.subr.mxu0 0.0
      %3634 = vmatpush1.msra.mxu0 0.0
      %3635 = vmatprep.subr.mxu0 0.0
      %3636 = vmatpush1.msra.mxu0 0.0
      %3637 = vmatprep.subr.mxu0 0.0
      %3638 = vmatpush1.msra.mxu0 0.0
      %3639 = vmatprep.subr.mxu0 0.0
      %3640 = vmatpush1.msra.mxu0 0.0
      %3641 = vmatprep.mubr.f32.mxu0 0.0
      %3642 = vmatmul.mubr.f32.gmra.mrb[0].mxu0 %v758
      %v3643 = vpop.f32.mrb[0].mxu0
      %v3644 = vadd.f32 0.0, %v3643
      %v3645 = vpop.f32.mrb[0].mxu0
      %3646 = vdwg.mxu0
      %v3647 = vadd.f32 %v3432, %v3573
      %v3648 = vadd.f32 %v3434, %v3575
      %v3649 = vadd.f32 %v3503, %v3644
      %3650 = vmatprep.subr.mxu0 %v1414
      %3651 = vmatpush1.msra.mxu0 %v1412
      %3652 = vmatprep.subr.mxu0 0.0
      %3653 = vmatpush1.msra.mxu0 0.0
      %3654 = vmatprep.subr.mxu0 0.0
      %3655 = vmatpush1.msra.mxu0 0.0
      %3656 = vmatprep.subr.mxu0 0.0
      %3657 = vmatpush1.msra.mxu0 0.0
      %3658 = vmatprep.subr.mxu0 0.0
      %3659 = vmatpush1.msra.mxu0 0.0
      %3660 = vmatprep.subr.mxu0 0.0
      %3661 = vmatpush1.msra.mxu0 0.0
      %3662 = vmatprep.subr.mxu0 0.0
      %3663 = vmatpush1.msra.mxu0 0.0
      %3664 = vmatprep.subr.mxu0 0.0
      %3665 = vmatpush1.msra.mxu0 0.0
      %3666 = vmatprep.subr.mxu0 0.0
      %3667 = vmatpush1.msra.mxu0 0.0
      %3668 = vmatprep.subr.mxu0 0.0
      %3669 = vmatpush1.msra.mxu0 0.0
      %3670 = vmatprep.subr.mxu0 0.0
      %3671 = vmatpush1.msra.mxu0 0.0
      %3672 = vmatprep.subr.mxu0 0.0
      %3673 = vmatpush1.msra.mxu0 0.0
      %3674 = vmatprep.subr.mxu0 0.0
      %3675 = vmatpush1.msra.mxu0 0.0
      %3676 = vmatprep.subr.mxu0 0.0
      %3677 = vmatpush1.msra.mxu0 0.0
      %3678 = vmatprep.subr.mxu0 0.0
      %3679 = vmatpush1.msra.mxu0 0.0
      %3680 = vmatprep.subr.mxu0 0.0
      %3681 = vmatpush1.msra.mxu0 0.0
      %3682 = vmatprep.subr.mxu0 0.0
      %3683 = vmatpush1.msra.mxu0 0.0
      %3684 = vmatprep.subr.mxu0 0.0
      %3685 = vmatpush1.msra.mxu0 0.0
      %3686 = vmatprep.subr.mxu0 0.0
      %3687 = vmatpush1.msra.mxu0 0.0
      %3688 = vmatprep.subr.mxu0 0.0
      %3689 = vmatpush1.msra.mxu0 0.0
      %3690 = vmatprep.subr.mxu0 0.0
      %3691 = vmatpush1.msra.mxu0 0.0
      %3692 = vmatprep.subr.mxu0 0.0
      %3693 = vmatpush1.msra.mxu0 0.0
      %3694 = vmatprep.subr.mxu0 0.0
      %3695 = vmatpush1.msra.mxu0 0.0
      %3696 = vmatprep.subr.mxu0 0.0
      %3697 = vmatpush1.msra.mxu0 0.0
      %3698 = vmatprep.subr.mxu0 0.0
      %3699 = vmatpush1.msra.mxu0 0.0
      %3700 = vmatprep.subr.mxu0 0.0
      %3701 = vmatpush1.msra.mxu0 0.0
      %3702 = vmatprep.subr.mxu0 0.0
      %3703 = vmatpush1.msra.mxu0 0.0
      %3704 = vmatprep.subr.mxu0 0.0
      %3705 = vmatpush1.msra.mxu0 0.0
      %3706 = vmatprep.subr.mxu0 0.0
      %3707 = vmatpush1.msra.mxu0 0.0
      %3708 = vmatprep.subr.mxu0 0.0
      %3709 = vmatpush1.msra.mxu0 0.0
      %3710 = vmatprep.subr.mxu0 0.0
      %3711 = vmatpush1.msra.mxu0 0.0
      %3712 = vmatprep.subr.mxu0 0.0
      %3713 = vmatpush1.msra.mxu0 0.0
      %3714 = vmatprep.mubr.f32.mxu0 0.0
      %3715 = vmatmul.mubr.f32.gmra.mrb[0].mxu0 %v916
      %v3716 = vpop.f32.mrb[0].mxu0
      %v3717 = vadd.f32 0.0, %v3716
      %v3718 = vpop.f32.mrb[0].mxu0
      %v3719 = vadd.f32 0.0, %v3718
      %3720 = vdwg.mxu0
      %3721 = vmatprep.subr.mxu0 0.0
      %3722 = vmatpush1.msra.mxu0 %v1416
      %3723 = vmatprep.subr.mxu0 0.0
      %3724 = vmatpush1.msra.mxu0 0.0
      %3725 = vmatprep.subr.mxu0 0.0
      %3726 = vmatpush1.msra.mxu0 0.0
      %3727 = vmatprep.subr.mxu0 0.0
      %3728 = vmatpush1.msra.mxu0 0.0
      %3729 = vmatprep.subr.mxu0 0.0
      %3730 = vmatpush1.msra.mxu0 0.0
      %3731 = vmatprep.subr.mxu0 0.0
      %3732 = vmatpush1.msra.mxu0 0.0
      %3733 = vmatprep.subr.mxu0 0.0
      %3734 = vmatpush1.msra.mxu0 0.0
      %3735 = vmatprep.subr.mxu0 0.0
      %3736 = vmatpush1.msra.mxu0 0.0
      %3737 = vmatprep.subr.mxu0 0.0
      %3738 = vmatpush1.msra.mxu0 0.0
      %3739 = vmatprep.subr.mxu0 0.0
      %3740 = vmatpush1.msra.mxu0 0.0
      %3741 = vmatprep.subr.mxu0 0.0
      %3742 = vmatpush1.msra.mxu0 0.0
      %3743 = vmatprep.subr.mxu0 0.0
      %3744 = vmatpush1.msra.mxu0 0.0
      %3745 = vmatprep.subr.mxu0 0.0
      %3746 = vmatpush1.msra.mxu0 0.0
      %3747 = vmatprep.subr.mxu0 0.0
      %3748 = vmatpush1.msra.mxu0 0.0
      %3749 = vmatprep.subr.mxu0 0.0
      %3750 = vmatpush1.msra.mxu0 0.0
      %3751 = vmatprep.subr.mxu0 0.0
      %3752 = vmatpush1.msra.mxu0 0.0
      %3753 = vmatprep.subr.mxu0 0.0
      %3754 = vmatpush1.msra.mxu0 0.0
      %3755 = vmatprep.subr.mxu0 0.0
      %3756 = vmatpush1.msra.mxu0 0.0
      %3757 = vmatprep.subr.mxu0 0.0
      %3758 = vmatpush1.msra.mxu0 0.0
      %3759 = vmatprep.subr.mxu0 0.0
      %3760 = vmatpush1.msra.mxu0 0.0
      %3761 = vmatprep.subr.mxu0 0.0
      %3762 = vmatpush1.msra.mxu0 0.0
      %3763 = vmatprep.subr.mxu0 0.0
      %3764 = vmatpush1.msra.mxu0 0.0
      %3765 = vmatprep.subr.mxu0 0.0
      %3766 = vmatpush1.msra.mxu0 0.0
      %3767 = vmatprep.subr.mxu0 0.0
      %3768 = vmatpush1.msra.mxu0 0.0
      %3769 = vmatprep.subr.mxu0 0.0
      %3770 = vmatpush1.msra.mxu0 0.0
      %3771 = vmatprep.subr.mxu0 0.0
      %3772 = vmatpush1.msra.mxu0 0.0
      %3773 = vmatprep.subr.mxu0 0.0
      %3774 = vmatpush1.msra.mxu0 0.0
      %3775 = vmatprep.subr.mxu0 0.0
      %3776 = vmatpush1.msra.mxu0 0.0
      %3777 = vmatprep.subr.mxu0 0.0
      %3778 = vmatpush1.msra.mxu0 0.0
      %3779 = vmatprep.subr.mxu0 0.0
      %3780 = vmatpush1.msra.mxu0 0.0
      %3781 = vmatprep.subr.mxu0 0.0
      %3782 = vmatpush1.msra.mxu0 0.0
      %3783 = vmatprep.subr.mxu0 0.0
      %3784 = vmatpush1.msra.mxu0 0.0
      %3785 = vmatprep.mubr.f32.mxu0 0.0
      %3786 = vmatmul.mubr.f32.gmra.mrb[0].mxu0 %v916
      %v3787 = vpop.f32.mrb[0].mxu0
      %v3788 = vadd.f32 0.0, %v3787
      %v3789 = vpop.f32.mrb[0].mxu0
      %3790 = vdwg.mxu0
      %v3791 = vadd.f32 %v3647, %v3717
      %v3792 = vadd.f32 %v3648, %v3719
      %v3793 = vadd.f32 %v3649, %v3788
      %3794 = vmatprep.subr.mxu0 %v1577
      %3795 = vmatpush1.msra.mxu0 %v1575
      %3796 = vmatprep.subr.mxu0 0.0
      %3797 = vmatpush1.msra.mxu0 0.0
      %3798 = vmatprep.subr.mxu0 0.0
      %3799 = vmatpush1.msra.mxu0 0.0
      %3800 = vmatprep.subr.mxu0 0.0
      %3801 = vmatpush1.msra.mxu0 0.0
      %3802 = vmatprep.subr.mxu0 0.0
      %3803 = vmatpush1.msra.mxu0 0.0
      %3804 = vmatprep.subr.mxu0 0.0
      %3805 = vmatpush1.msra.mxu0 0.0
      %3806 = vmatprep.subr.mxu0 0.0
      %3807 = vmatpush1.msra.mxu0 0.0
      %3808 = vmatprep.subr.mxu0 0.0
      %3809 = vmatpush1.msra.mxu0 0.0
      %3810 = vmatprep.subr.mxu0 0.0
      %3811 = vmatpush1.msra.mxu0 0.0
      %3812 = vmatprep.subr.mxu0 0.0
      %3813 = vmatpush1.msra.mxu0 0.0
      %3814 = vmatprep.subr.mxu0 0.0
      %3815 = vmatpush1.msra.mxu0 0.0
      %3816 = vmatprep.subr.mxu0 0.0
      %3817 = vmatpush1.msra.mxu0 0.0
      %3818 = vmatprep.subr.mxu0 0.0
      %3819 = vmatpush1.msra.mxu0 0.0
      %3820 = vmatprep.subr.mxu0 0.0
      %3821 = vmatpush1.msra.mxu0 0.0
      %3822 = vmatprep.subr.mxu0 0.0
      %3823 = vmatpush1.msra.mxu0 0.0
      %3824 = vmatprep.subr.mxu0 0.0
      %3825 = vmatpush1.msra.mxu0 0.0
      %3826 = vmatprep.subr.mxu0 0.0
      %3827 = vmatpush1.msra.mxu0 0.0
      %3828 = vmatprep.subr.mxu0 0.0
      %3829 = vmatpush1.msra.mxu0 0.0
      %3830 = vmatprep.subr.mxu0 0.0
      %3831 = vmatpush1.msra.mxu0 0.0
      %3832 = vmatprep.subr.mxu0 0.0
      %3833 = vmatpush1.msra.mxu0 0.0
      %3834 = vmatprep.subr.mxu0 0.0
      %3835 = vmatpush1.msra.mxu0 0.0
      %3836 = vmatprep.subr.mxu0 0.0
      %3837 = vmatpush1.msra.mxu0 0.0
      %3838 = vmatprep.subr.mxu0 0.0
      %3839 = vmatpush1.msra.mxu0 0.0
      %3840 = vmatprep.subr.mxu0 0.0
      %3841 = vmatpush1.msra.mxu0 0.0
      %3842 = vmatprep.subr.mxu0 0.0
      %3843 = vmatpush1.msra.mxu0 0.0
      %3844 = vmatprep.subr.mxu0 0.0
      %3845 = vmatpush1.msra.mxu0 0.0
      %3846 = vmatprep.subr.mxu0 0.0
      %3847 = vmatpush1.msra.mxu0 0.0
      %3848 = vmatprep.subr.mxu0 0.0
      %3849 = vmatpush1.msra.mxu0 0.0
      %3850 = vmatprep.subr.mxu0 0.0
      %3851 = vmatpush1.msra.mxu0 0.0
      %3852 = vmatprep.subr.mxu0 0.0
      %3853 = vmatpush1.msra.mxu0 0.0
      %3854 = vmatprep.subr.mxu0 0.0
      %3855 = vmatpush1.msra.mxu0 0.0
      %3856 = vmatprep.subr.mxu0 0.0
      %3857 = vmatpush1.msra.mxu0 0.0
      %3858 = vmatprep.mubr.f32.mxu0 0.0
      %3859 = vmatmul.mubr.f32.gmra.mrb[0].mxu0 %v1083
      %v3860 = vpop.f32.mrb[0].mxu0
      %v3861 = vadd.f32 0.0, %v3860
      %v3862 = vpop.f32.mrb[0].mxu0
      %v3863 = vadd.f32 0.0, %v3862
      %3864 = vdwg.mxu0
      %3865 = vmatprep.subr.mxu0 0.0
      %3866 = vmatpush1.msra.mxu0 %v1579
      %3867 = vmatprep.subr.mxu0 0.0
      %3868 = vmatpush1.msra.mxu0 0.0
      %3869 = vmatprep.subr.mxu0 0.0
      %3870 = vmatpush1.msra.mxu0 0.0
      %3871 = vmatprep.subr.mxu0 0.0
      %3872 = vmatpush1.msra.mxu0 0.0
      %3873 = vmatprep.subr.mxu0 0.0
      %3874 = vmatpush1.msra.mxu0 0.0
      %3875 = vmatprep.subr.mxu0 0.0
      %3876 = vmatpush1.msra.mxu0 0.0
      %3877 = vmatprep.subr.mxu0 0.0
      %3878 = vmatpush1.msra.mxu0 0.0
      %3879 = vmatprep.subr.mxu0 0.0
      %3880 = vmatpush1.msra.mxu0 0.0
      %3881 = vmatprep.subr.mxu0 0.0
      %3882 = vmatpush1.msra.mxu0 0.0
      %3883 = vmatprep.subr.mxu0 0.0
      %3884 = vmatpush1.msra.mxu0 0.0
      %3885 = vmatprep.subr.mxu0 0.0
      %3886 = vmatpush1.msra.mxu0 0.0
      %3887 = vmatprep.subr.mxu0 0.0
      %3888 = vmatpush1.msra.mxu0 0.0
      %3889 = vmatprep.subr.mxu0 0.0
      %3890 = vmatpush1.msra.mxu0 0.0
      %3891 = vmatprep.subr.mxu0 0.0
      %3892 = vmatpush1.msra.mxu0 0.0
      %3893 = vmatprep.subr.mxu0 0.0
      %3894 = vmatpush1.msra.mxu0 0.0
      %3895 = vmatprep.subr.mxu0 0.0
      %3896 = vmatpush1.msra.mxu0 0.0
      %3897 = vmatprep.subr.mxu0 0.0
      %3898 = vmatpush1.msra.mxu0 0.0
      %3899 = vmatprep.subr.mxu0 0.0
      %3900 = vmatpush1.msra.mxu0 0.0
      %3901 = vmatprep.subr.mxu0 0.0
      %3902 = vmatpush1.msra.mxu0 0.0
      %3903 = vmatprep.subr.mxu0 0.0
      %3904 = vmatpush1.msra.mxu0 0.0
      %3905 = vmatprep.subr.mxu0 0.0
      %3906 = vmatpush1.msra.mxu0 0.0
      %3907 = vmatprep.subr.mxu0 0.0
      %3908 = vmatpush1.msra.mxu0 0.0
      %3909 = vmatprep.subr.mxu0 0.0
      %3910 = vmatpush1.msra.mxu0 0.0
      %3911 = vmatprep.subr.mxu0 0.0
      %3912 = vmatpush1.msra.mxu0 0.0
      %3913 = vmatprep.subr.mxu0 0.0
      %3914 = vmatpush1.msra.mxu0 0.0
      %3915 = vmatprep.subr.mxu0 0.0
      %3916 = vmatpush1.msra.mxu0 0.0
      %3917 = vmatprep.subr.mxu0 0.0
      %3918 = vmatpush1.msra.mxu0 0.0
      %3919 = vmatprep.subr.mxu0 0.0
      %3920 = vmatpush1.msra.mxu0 0.0
      %3921 = vmatprep.subr.mxu0 0.0
      %3922 = vmatpush1.msra.mxu0 0.0
      %3923 = vmatprep.subr.mxu0 0.0
      %3924 = vmatpush1.msra.mxu0 0.0
      %3925 = vmatprep.subr.mxu0 0.0
      %3926 = vmatpush1.msra.mxu0 0.0
      %3927 = vmatprep.subr.mxu0 0.0
      %3928 = vmatpush1.msra.mxu0 0.0
      %3929 = vmatprep.mubr.f32.mxu0 0.0
      %3930 = vmatmul.mubr.f32.gmra.mrb[0].mxu0 %v1083
      %v3931 = vpop.f32.mrb[0].mxu0
      %v3932 = vadd.f32 0.0, %v3931
      %v3933 = vpop.f32.mrb[0].mxu0
      %3934 = vdwg.mxu0
      %v3935 = vadd.f32 %v3791, %v3861
      %v3936 = vadd.f32 %v3792, %v3863
      %v3937 = vadd.f32 %v3793, %v3932
      %3938 = vmatprep.subr.mxu0 %v1741
      %3939 = vmatpush1.msra.mxu0 %v1739
      %3940 = vmatprep.subr.mxu0 0.0
      %3941 = vmatpush1.msra.mxu0 0.0
      %3942 = vmatprep.subr.mxu0 0.0
      %3943 = vmatpush1.msra.mxu0 0.0
      %3944 = vmatprep.subr.mxu0 0.0
      %3945 = vmatpush1.msra.mxu0 0.0
      %3946 = vmatprep.subr.mxu0 0.0
      %3947 = vmatpush1.msra.mxu0 0.0
      %3948 = vmatprep.subr.mxu0 0.0
      %3949 = vmatpush1.msra.mxu0 0.0
      %3950 = vmatprep.subr.mxu0 0.0
      %3951 = vmatpush1.msra.mxu0 0.0
      %3952 = vmatprep.subr.mxu0 0.0
      %3953 = vmatpush1.msra.mxu0 0.0
      %3954 = vmatprep.subr.mxu0 0.0
      %3955 = vmatpush1.msra.mxu0 0.0
      %3956 = vmatprep.subr.mxu0 0.0
      %3957 = vmatpush1.msra.mxu0 0.0
      %3958 = vmatprep.subr.mxu0 0.0
      %3959 = vmatpush1.msra.mxu0 0.0
      %3960 = vmatprep.subr.mxu0 0.0
      %3961 = vmatpush1.msra.mxu0 0.0
      %3962 = vmatprep.subr.mxu0 0.0
      %3963 = vmatpush1.msra.mxu0 0.0
      %3964 = vmatprep.subr.mxu0 0.0
      %3965 = vmatpush1.msra.mxu0 0.0
      %3966 = vmatprep.subr.mxu0 0.0
      %3967 = vmatpush1.msra.mxu0 0.0
      %3968 = vmatprep.subr.mxu0 0.0
      %3969 = vmatpush1.msra.mxu0 0.0
      %3970 = vmatprep.subr.mxu0 0.0
      %3971 = vmatpush1.msra.mxu0 0.0
      %3972 = vmatprep.subr.mxu0 0.0
      %3973 = vmatpush1.msra.mxu0 0.0
      %3974 = vmatprep.subr.mxu0 0.0
      %3975 = vmatpush1.msra.mxu0 0.0
      %3976 = vmatprep.subr.mxu0 0.0
      %3977 = vmatpush1.msra.mxu0 0.0
      %3978 = vmatprep.subr.mxu0 0.0
      %3979 = vmatpush1.msra.mxu0 0.0
      %3980 = vmatprep.subr.mxu0 0.0
      %3981 = vmatpush1.msra.mxu0 0.0
      %3982 = vmatprep.subr.mxu0 0.0
      %3983 = vmatpush1.msra.mxu0 0.0
      %3984 = vmatprep.subr.mxu0 0.0
      %3985 = vmatpush1.msra.mxu0 0.0
      %3986 = vmatprep.subr.mxu0 0.0
      %3987 = vmatpush1.msra.mxu0 0.0
      %3988 = vmatprep.subr.mxu0 0.0
      %3989 = vmatpush1.msra.mxu0 0.0
      %3990 = vmatprep.subr.mxu0 0.0
      %3991 = vmatpush1.msra.mxu0 0.0
      %3992 = vmatprep.subr.mxu0 0.0
      %3993 = vmatpush1.msra.mxu0 0.0
      %3994 = vmatprep.subr.mxu0 0.0
      %3995 = vmatpush1.msra.mxu0 0.0
      %3996 = vmatprep.subr.mxu0 0.0
      %3997 = vmatpush1.msra.mxu0 0.0
      %3998 = vmatprep.subr.mxu0 0.0
      %3999 = vmatpush1.msra.mxu0 0.0
      %4000 = vmatprep.subr.mxu0 0.0
      %4001 = vmatpush1.msra.mxu0 0.0
      %4002 = vmatprep.mubr.f32.mxu0 0.0
      %4003 = vmatmul.mubr.f32.gmra.mrb[0].mxu0 %v1246
      %v4004 = vpop.f32.mrb[0].mxu0
      %v4005 = vadd.f32 0.0, %v4004
      %v4006 = vpop.f32.mrb[0].mxu0
      %v4007 = vadd.f32 0.0, %v4006
      %4008 = vdwg.mxu0
      %4009 = vmatprep.subr.mxu0 0.0
      %4010 = vmatpush1.msra.mxu0 %v1743
      %4011 = vmatprep.subr.mxu0 0.0
      %4012 = vmatpush1.msra.mxu0 0.0
      %4013 = vmatprep.subr.mxu0 0.0
      %4014 = vmatpush1.msra.mxu0 0.0
      %4015 = vmatprep.subr.mxu0 0.0
      %4016 = vmatpush1.msra.mxu0 0.0
      %4017 = vmatprep.subr.mxu0 0.0
      %4018 = vmatpush1.msra.mxu0 0.0
      %4019 = vmatprep.subr.mxu0 0.0
      %4020 = vmatpush1.msra.mxu0 0.0
      %4021 = vmatprep.subr.mxu0 0.0
      %4022 = vmatpush1.msra.mxu0 0.0
      %4023 = vmatprep.subr.mxu0 0.0
      %4024 = vmatpush1.msra.mxu0 0.0
      %4025 = vmatprep.subr.mxu0 0.0
      %4026 = vmatpush1.msra.mxu0 0.0
      %4027 = vmatprep.subr.mxu0 0.0
      %4028 = vmatpush1.msra.mxu0 0.0
      %4029 = vmatprep.subr.mxu0 0.0
      %4030 = vmatpush1.msra.mxu0 0.0
      %4031 = vmatprep.subr.mxu0 0.0
      %4032 = vmatpush1.msra.mxu0 0.0
      %4033 = vmatprep.subr.mxu0 0.0
      %4034 = vmatpush1.msra.mxu0 0.0
      %4035 = vmatprep.subr.mxu0 0.0
      %4036 = vmatpush1.msra.mxu0 0.0
      %4037 = vmatprep.subr.mxu0 0.0
      %4038 = vmatpush1.msra.mxu0 0.0
      %4039 = vmatprep.subr.mxu0 0.0
      %4040 = vmatpush1.msra.mxu0 0.0
      %4041 = vmatprep.subr.mxu0 0.0
      %4042 = vmatpush1.msra.mxu0 0.0
      %4043 = vmatprep.subr.mxu0 0.0
      %4044 = vmatpush1.msra.mxu0 0.0
      %4045 = vmatprep.subr.mxu0 0.0
      %4046 = vmatpush1.msra.mxu0 0.0
      %4047 = vmatprep.subr.mxu0 0.0
      %4048 = vmatpush1.msra.mxu0 0.0
      %4049 = vmatprep.subr.mxu0 0.0
      %4050 = vmatpush1.msra.mxu0 0.0
      %4051 = vmatprep.subr.mxu0 0.0
      %4052 = vmatpush1.msra.mxu0 0.0
      %4053 = vmatprep.subr.mxu0 0.0
      %4054 = vmatpush1.msra.mxu0 0.0
      %4055 = vmatprep.subr.mxu0 0.0
      %4056 = vmatpush1.msra.mxu0 0.0
      %4057 = vmatprep.subr.mxu0 0.0
      %4058 = vmatpush1.msra.mxu0 0.0
      %4059 = vmatprep.subr.mxu0 0.0
      %4060 = vmatpush1.msra.mxu0 0.0
      %4061 = vmatprep.subr.mxu0 0.0
      %4062 = vmatpush1.msra.mxu0 0.0
      %4063 = vmatprep.subr.mxu0 0.0
      %4064 = vmatpush1.msra.mxu0 0.0
      %4065 = vmatprep.subr.mxu0 0.0
      %4066 = vmatpush1.msra.mxu0 0.0
      %4067 = vmatprep.subr.mxu0 0.0
      %4068 = vmatpush1.msra.mxu0 0.0
      %4069 = vmatprep.subr.mxu0 0.0
      %4070 = vmatpush1.msra.mxu0 0.0
      %4071 = vmatprep.subr.mxu0 0.0
      %4072 = vmatpush1.msra.mxu0 0.0
      %4073 = vmatprep.mubr.f32.mxu0 0.0
      %4074 = vmatmul.mubr.f32.gmra.mrb[0].mxu0 %v1246
      %v4075 = vpop.f32.mrb[0].mxu0
      %v4076 = vadd.f32 0.0, %v4075
      %v4077 = vpop.f32.mrb[0].mxu0
      %4078 = vdwg.mxu0
      %v4079 = vadd.f32 %v3935, %v4005
      %v4080 = vadd.f32 %v3936, %v4007
      %v4081 = vadd.f32 %v3937, %v4076
      %4082 = vrot.lane.b32.xlu0 %v910, 113
      %v4083 = vpop.permute.xlu0 %4082
      %4084 = vrot.lane.b32.xlu0 %v911, 113
      %v4085 = vpop.permute.xlu0 %4084
      %4086 = vrot.lane.b32.xlu0 %v912, 113
      %v4087 = vpop.permute.xlu0 %4086
      %v4088 = vsel %vm1406, %v4083, %v4085
      %v4089 = vsel %vm1406, %v4085, %v4087
      %v4090 = vsel %vm445, %v4088, 0
      %v4092 = vsel %vm445, %v4089, 0
      %v4094 = vsel %vm445, %v4087, 0
      %4096 = vmatprep.subr.mxu0 %v4092
      %4097 = vmatpush1.msra.mxu0 %v4090
      %4098 = vmatprep.subr.mxu0 0.0
      %4099 = vmatpush1.msra.mxu0 0.0
      %4100 = vmatprep.subr.mxu0 0.0
      %4101 = vmatpush1.msra.mxu0 0.0
      %4102 = vmatprep.subr.mxu0 0.0
      %4103 = vmatpush1.msra.mxu0 0.0
      %4104 = vmatprep.subr.mxu0 0.0
      %4105 = vmatpush1.msra.mxu0 0.0
      %4106 = vmatprep.subr.mxu0 0.0
      %4107 = vmatpush1.msra.mxu0 0.0
      %4108 = vmatprep.subr.mxu0 0.0
      %4109 = vmatpush1.msra.mxu0 0.0
      %4110 = vmatprep.subr.mxu0 0.0
      %4111 = vmatpush1.msra.mxu0 0.0
      %4112 = vmatprep.subr.mxu0 0.0
      %4113 = vmatpush1.msra.mxu0 0.0
      %4114 = vmatprep.subr.mxu0 0.0
      %4115 = vmatpush1.msra.mxu0 0.0
      %4116 = vmatprep.subr.mxu0 0.0
      %4117 = vmatpush1.msra.mxu0 0.0
      %4118 = vmatprep.subr.mxu0 0.0
      %4119 = vmatpush1.msra.mxu0 0.0
      %4120 = vmatprep.subr.mxu0 0.0
      %4121 = vmatpush1.msra.mxu0 0.0
      %4122 = vmatprep.subr.mxu0 0.0
      %4123 = vmatpush1.msra.mxu0 0.0
      %4124 = vmatprep.subr.mxu0 0.0
      %4125 = vmatpush1.msra.mxu0 0.0
      %4126 = vmatprep.subr.mxu0 0.0
      %4127 = vmatpush1.msra.mxu0 0.0
      %4128 = vmatprep.subr.mxu0 0.0
      %4129 = vmatpush1.msra.mxu0 0.0
      %4130 = vmatprep.subr.mxu0 0.0
      %4131 = vmatpush1.msra.mxu0 0.0
      %4132 = vmatprep.subr.mxu0 0.0
      %4133 = vmatpush1.msra.mxu0 0.0
      %4134 = vmatprep.subr.mxu0 0.0
      %4135 = vmatpush1.msra.mxu0 0.0
      %4136 = vmatprep.subr.mxu0 0.0
      %4137 = vmatpush1.msra.mxu0 0.0
      %4138 = vmatprep.subr.mxu0 0.0
      %4139 = vmatpush1.msra.mxu0 0.0
      %4140 = vmatprep.subr.mxu0 0.0
      %4141 = vmatpush1.msra.mxu0 0.0
      %4142 = vmatprep.subr.mxu0 0.0
      %4143 = vmatpush1.msra.mxu0 0.0
      %4144 = vmatprep.subr.mxu0 0.0
      %4145 = vmatpush1.msra.mxu0 0.0
      %4146 = vmatprep.subr.mxu0 0.0
      %4147 = vmatpush1.msra.mxu0 0.0
      %4148 = vmatprep.subr.mxu0 0.0
      %4149 = vmatpush1.msra.mxu0 0.0
      %4150 = vmatprep.subr.mxu0 0.0
      %4151 = vmatpush1.msra.mxu0 0.0
      %4152 = vmatprep.subr.mxu0 0.0
      %4153 = vmatpush1.msra.mxu0 0.0
      %4154 = vmatprep.subr.mxu0 0.0
      %4155 = vmatpush1.msra.mxu0 0.0
      %4156 = vmatprep.subr.mxu0 0.0
      %4157 = vmatpush1.msra.mxu0 0.0
      %4158 = vmatprep.subr.mxu0 0.0
      %4159 = vmatpush1.msra.mxu0 0.0
      %4160 = vmatprep.mubr.f32.mxu0 0.0
      %4161 = vmatmul.mubr.f32.gmra.mrb[0].mxu0 %v1410
      %v4162 = vpop.f32.mrb[0].mxu0
      %v4163 = vadd.f32 0.0, %v4162
      %v4164 = vpop.f32.mrb[0].mxu0
      %v4165 = vadd.f32 0.0, %v4164
      %4166 = vdwg.mxu0
      %4167 = vmatprep.subr.mxu0 0.0
      %4168 = vmatpush1.msra.mxu0 %v4094
      %4169 = vmatprep.subr.mxu0 0.0
      %4170 = vmatpush1.msra.mxu0 0.0
      %4171 = vmatprep.subr.mxu0 0.0
      %4172 = vmatpush1.msra.mxu0 0.0
      %4173 = vmatprep.subr.mxu0 0.0
      %4174 = vmatpush1.msra.mxu0 0.0
      %4175 = vmatprep.subr.mxu0 0.0
      %4176 = vmatpush1.msra.mxu0 0.0
      %4177 = vmatprep.subr.mxu0 0.0
      %4178 = vmatpush1.msra.mxu0 0.0
      %4179 = vmatprep.subr.mxu0 0.0
      %4180 = vmatpush1.msra.mxu0 0.0
      %4181 = vmatprep.subr.mxu0 0.0
      %4182 = vmatpush1.msra.mxu0 0.0
      %4183 = vmatprep.subr.mxu0 0.0
      %4184 = vmatpush1.msra.mxu0 0.0
      %4185 = vmatprep.subr.mxu0 0.0
      %4186 = vmatpush1.msra.mxu0 0.0
      %4187 = vmatprep.subr.mxu0 0.0
      %4188 = vmatpush1.msra.mxu0 0.0
      %4189 = vmatprep.subr.mxu0 0.0
      %4190 = vmatpush1.msra.mxu0 0.0
      %4191 = vmatprep.subr.mxu0 0.0
      %4192 = vmatpush1.msra.mxu0 0.0
      %4193 = vmatprep.subr.mxu0 0.0
      %4194 = vmatpush1.msra.mxu0 0.0
      %4195 = vmatprep.subr.mxu0 0.0
      %4196 = vmatpush1.msra.mxu0 0.0
      %4197 = vmatprep.subr.mxu0 0.0
      %4198 = vmatpush1.msra.mxu0 0.0
      %4199 = vmatprep.subr.mxu0 0.0
      %4200 = vmatpush1.msra.mxu0 0.0
      %4201 = vmatprep.subr.mxu0 0.0
      %4202 = vmatpush1.msra.mxu0 0.0
      %4203 = vmatprep.subr.mxu0 0.0
      %4204 = vmatpush1.msra.mxu0 0.0
      %4205 = vmatprep.subr.mxu0 0.0
      %4206 = vmatpush1.msra.mxu0 0.0
      %4207 = vmatprep.subr.mxu0 0.0
      %4208 = vmatpush1.msra.mxu0 0.0
      %4209 = vmatprep.subr.mxu0 0.0
      %4210 = vmatpush1.msra.mxu0 0.0
      %4211 = vmatprep.subr.mxu0 0.0
      %4212 = vmatpush1.msra.mxu0 0.0
      %4213 = vmatprep.subr.mxu0 0.0
      %4214 = vmatpush1.msra.mxu0 0.0
      %4215 = vmatprep.subr.mxu0 0.0
      %4216 = vmatpush1.msra.mxu0 0.0
      %4217 = vmatprep.subr.mxu0 0.0
      %4218 = vmatpush1.msra.mxu0 0.0
      %4219 = vmatprep.subr.mxu0 0.0
      %4220 = vmatpush1.msra.mxu0 0.0
      %4221 = vmatprep.subr.mxu0 0.0
      %4222 = vmatpush1.msra.mxu0 0.0
      %4223 = vmatprep.subr.mxu0 0.0
      %4224 = vmatpush1.msra.mxu0 0.0
      %4225 = vmatprep.subr.mxu0 0.0
      %4226 = vmatpush1.msra.mxu0 0.0
      %4227 = vmatprep.subr.mxu0 0.0
      %4228 = vmatpush1.msra.mxu0 0.0
      %4229 = vmatprep.subr.mxu0 0.0
      %4230 = vmatpush1.msra.mxu0 0.0
      %4231 = vmatprep.mubr.f32.mxu0 0.0
      %4232 = vmatmul.mubr.f32.gmra.mrb[0].mxu0 %v1410
      %v4233 = vpop.f32.mrb[0].mxu0
      %v4234 = vadd.f32 0.0, %v4233
      %v4235 = vpop.f32.mrb[0].mxu0
      %4236 = vdwg.mxu0
      %v4237 = vadd.f32 %v4079, %v4163
      %v4238 = vadd.f32 %v4080, %v4165
      %v4239 = vadd.f32 %v4081, %v4234
      %4240 = vrot.lane.b32.xlu0 %v1079, 113
      %v4241 = vpop.permute.xlu0 %4240
      %4242 = vrot.lane.b32.xlu0 %v1080, 113
      %v4243 = vpop.permute.xlu0 %4242
      %4244 = vrot.lane.b32.xlu0 %v1081, 113
      %v4245 = vpop.permute.xlu0 %4244
      %v4246 = vsel %vm1406, %v4241, %v4243
      %v4247 = vsel %vm1406, %v4243, %v4245
      %v4248 = vsel %vm445, %v4246, 0
      %v4250 = vsel %vm445, %v4247, 0
      %v4252 = vsel %vm445, %v4245, 0
      %4254 = vmatprep.subr.mxu0 %v4250
      %4255 = vmatpush1.msra.mxu0 %v4248
      %4256 = vmatprep.subr.mxu0 0.0
      %4257 = vmatpush1.msra.mxu0 0.0
      %4258 = vmatprep.subr.mxu0 0.0
      %4259 = vmatpush1.msra.mxu0 0.0
      %4260 = vmatprep.subr.mxu0 0.0
      %4261 = vmatpush1.msra.mxu0 0.0
      %4262 = vmatprep.subr.mxu0 0.0
      %4263 = vmatpush1.msra.mxu0 0.0
      %4264 = vmatprep.subr.mxu0 0.0
      %4265 = vmatpush1.msra.mxu0 0.0
      %4266 = vmatprep.subr.mxu0 0.0
      %4267 = vmatpush1.msra.mxu0 0.0
      %4268 = vmatprep.subr.mxu0 0.0
      %4269 = vmatpush1.msra.mxu0 0.0
      %4270 = vmatprep.subr.mxu0 0.0
      %4271 = vmatpush1.msra.mxu0 0.0
      %4272 = vmatprep.subr.mxu0 0.0
      %4273 = vmatpush1.msra.mxu0 0.0
      %4274 = vmatprep.subr.mxu0 0.0
      %4275 = vmatpush1.msra.mxu0 0.0
      %4276 = vmatprep.subr.mxu0 0.0
      %4277 = vmatpush1.msra.mxu0 0.0
      %4278 = vmatprep.subr.mxu0 0.0
      %4279 = vmatpush1.msra.mxu0 0.0
      %4280 = vmatprep.subr.mxu0 0.0
      %4281 = vmatpush1.msra.mxu0 0.0
      %4282 = vmatprep.subr.mxu0 0.0
      %4283 = vmatpush1.msra.mxu0 0.0
      %4284 = vmatprep.subr.mxu0 0.0
      %4285 = vmatpush1.msra.mxu0 0.0
      %4286 = vmatprep.subr.mxu0 0.0
      %4287 = vmatpush1.msra.mxu0 0.0
      %4288 = vmatprep.subr.mxu0 0.0
      %4289 = vmatpush1.msra.mxu0 0.0
      %4290 = vmatprep.subr.mxu0 0.0
      %4291 = vmatpush1.msra.mxu0 0.0
      %4292 = vmatprep.subr.mxu0 0.0
      %4293 = vmatpush1.msra.mxu0 0.0
      %4294 = vmatprep.subr.mxu0 0.0
      %4295 = vmatpush1.msra.mxu0 0.0
      %4296 = vmatprep.subr.mxu0 0.0
      %4297 = vmatpush1.msra.mxu0 0.0
      %4298 = vmatprep.subr.mxu0 0.0
      %4299 = vmatpush1.msra.mxu0 0.0
      %4300 = vmatprep.subr.mxu0 0.0
      %4301 = vmatpush1.msra.mxu0 0.0
      %4302 = vmatprep.subr.mxu0 0.0
      %4303 = vmatpush1.msra.mxu0 0.0
      %4304 = vmatprep.subr.mxu0 0.0
      %4305 = vmatpush1.msra.mxu0 0.0
      %4306 = vmatprep.subr.mxu0 0.0
      %4307 = vmatpush1.msra.mxu0 0.0
      %4308 = vmatprep.subr.mxu0 0.0
      %4309 = vmatpush1.msra.mxu0 0.0
      %4310 = vmatprep.subr.mxu0 0.0
      %4311 = vmatpush1.msra.mxu0 0.0
      %4312 = vmatprep.subr.mxu0 0.0
      %4313 = vmatpush1.msra.mxu0 0.0
      %4314 = vmatprep.subr.mxu0 0.0
      %4315 = vmatpush1.msra.mxu0 0.0
      %4316 = vmatprep.subr.mxu0 0.0
      %4317 = vmatpush1.msra.mxu0 0.0
      %4318 = vmatprep.mubr.f32.mxu0 0.0
      %4319 = vmatmul.mubr.f32.gmra.mrb[0].mxu0 %v1573
      %v4320 = vpop.f32.mrb[0].mxu0
      %v4321 = vadd.f32 0.0, %v4320
      %v4322 = vpop.f32.mrb[0].mxu0
      %v4323 = vadd.f32 0.0, %v4322
      %4324 = vdwg.mxu0
      %4325 = vmatprep.subr.mxu0 0.0
      %4326 = vmatpush1.msra.mxu0 %v4252
      %4327 = vmatprep.subr.mxu0 0.0
      %4328 = vmatpush1.msra.mxu0 0.0
      %4329 = vmatprep.subr.mxu0 0.0
      %4330 = vmatpush1.msra.mxu0 0.0
      %4331 = vmatprep.subr.mxu0 0.0
      %4332 = vmatpush1.msra.mxu0 0.0
      %4333 = vmatprep.subr.mxu0 0.0
      %4334 = vmatpush1.msra.mxu0 0.0
      %4335 = vmatprep.subr.mxu0 0.0
      %4336 = vmatpush1.msra.mxu0 0.0
      %4337 = vmatprep.subr.mxu0 0.0
      %4338 = vmatpush1.msra.mxu0 0.0
      %4339 = vmatprep.subr.mxu0 0.0
      %4340 = vmatpush1.msra.mxu0 0.0
      %4341 = vmatprep.subr.mxu0 0.0
      %4342 = vmatpush1.msra.mxu0 0.0
      %4343 = vmatprep.subr.mxu0 0.0
      %4344 = vmatpush1.msra.mxu0 0.0
      %4345 = vmatprep.subr.mxu0 0.0
      %4346 = vmatpush1.msra.mxu0 0.0
      %4347 = vmatprep.subr.mxu0 0.0
      %4348 = vmatpush1.msra.mxu0 0.0
      %4349 = vmatprep.subr.mxu0 0.0
      %4350 = vmatpush1.msra.mxu0 0.0
      %4351 = vmatprep.subr.mxu0 0.0
      %4352 = vmatpush1.msra.mxu0 0.0
      %4353 = vmatprep.subr.mxu0 0.0
      %4354 = vmatpush1.msra.mxu0 0.0
      %4355 = vmatprep.subr.mxu0 0.0
      %4356 = vmatpush1.msra.mxu0 0.0
      %4357 = vmatprep.subr.mxu0 0.0
      %4358 = vmatpush1.msra.mxu0 0.0
      %4359 = vmatprep.subr.mxu0 0.0
      %4360 = vmatpush1.msra.mxu0 0.0
      %4361 = vmatprep.subr.mxu0 0.0
      %4362 = vmatpush1.msra.mxu0 0.0
      %4363 = vmatprep.subr.mxu0 0.0
      %4364 = vmatpush1.msra.mxu0 0.0
      %4365 = vmatprep.subr.mxu0 0.0
      %4366 = vmatpush1.msra.mxu0 0.0
      %4367 = vmatprep.subr.mxu0 0.0
      %4368 = vmatpush1.msra.mxu0 0.0
      %4369 = vmatprep.subr.mxu0 0.0
      %4370 = vmatpush1.msra.mxu0 0.0
      %4371 = vmatprep.subr.mxu0 0.0
      %4372 = vmatpush1.msra.mxu0 0.0
      %4373 = vmatprep.subr.mxu0 0.0
      %4374 = vmatpush1.msra.mxu0 0.0
      %4375 = vmatprep.subr.mxu0 0.0
      %4376 = vmatpush1.msra.mxu0 0.0
      %4377 = vmatprep.subr.mxu0 0.0
      %4378 = vmatpush1.msra.mxu0 0.0
      %4379 = vmatprep.subr.mxu0 0.0
      %4380 = vmatpush1.msra.mxu0 0.0
      %4381 = vmatprep.subr.mxu0 0.0
      %4382 = vmatpush1.msra.mxu0 0.0
      %4383 = vmatprep.subr.mxu0 0.0
      %4384 = vmatpush1.msra.mxu0 0.0
      %4385 = vmatprep.subr.mxu0 0.0
      %4386 = vmatpush1.msra.mxu0 0.0
      %4387 = vmatprep.subr.mxu0 0.0
      %4388 = vmatpush1.msra.mxu0 0.0
      %4389 = vmatprep.mubr.f32.mxu0 0.0
      %4390 = vmatmul.mubr.f32.gmra.mrb[0].mxu0 %v1573
      %v4391 = vpop.f32.mrb[0].mxu0
      %v4392 = vadd.f32 0.0, %v4391
      %v4393 = vpop.f32.mrb[0].mxu0
      %4394 = vdwg.mxu0
      %v4395 = vadd.f32 %v4237, %v4321
      %v4396 = vadd.f32 %v4238, %v4323
      %v4397 = vadd.f32 %v4239, %v4392
      %4398 = vrot.lane.b32.xlu0 %v910, 112
      %v4399 = vpop.permute.xlu0 %4398
      %4400 = vrot.lane.b32.xlu0 %v911, 112
      %v4401 = vpop.permute.xlu0 %4400
      %4402 = vrot.lane.b32.xlu0 %v912, 112
      %v4403 = vpop.permute.xlu0 %4402
      %v4404 = vsel %vm1733, %v4399, %v4401
      %v4405 = vsel %vm1733, %v4401, %v4403
      %v4406 = vsel %vm445, %v4404, 0
      %v4408 = vsel %vm445, %v4405, 0
      %v4410 = vsel %vm445, %v4403, 0
      %4412 = vmatprep.subr.mxu0 %v4408
      %4413 = vmatpush1.msra.mxu0 %v4406
      %4414 = vmatprep.subr.mxu0 0.0
      %4415 = vmatpush1.msra.mxu0 0.0
      %4416 = vmatprep.subr.mxu0 0.0
      %4417 = vmatpush1.msra.mxu0 0.0
      %4418 = vmatprep.subr.mxu0 0.0
      %4419 = vmatpush1.msra.mxu0 0.0
      %4420 = vmatprep.subr.mxu0 0.0
      %4421 = vmatpush1.msra.mxu0 0.0
      %4422 = vmatprep.subr.mxu0 0.0
      %4423 = vmatpush1.msra.mxu0 0.0
      %4424 = vmatprep.subr.mxu0 0.0
      %4425 = vmatpush1.msra.mxu0 0.0
      %4426 = vmatprep.subr.mxu0 0.0
      %4427 = vmatpush1.msra.mxu0 0.0
      %4428 = vmatprep.subr.mxu0 0.0
      %4429 = vmatpush1.msra.mxu0 0.0
      %4430 = vmatprep.subr.mxu0 0.0
      %4431 = vmatpush1.msra.mxu0 0.0
      %4432 = vmatprep.subr.mxu0 0.0
      %4433 = vmatpush1.msra.mxu0 0.0
      %4434 = vmatprep.subr.mxu0 0.0
      %4435 = vmatpush1.msra.mxu0 0.0
      %4436 = vmatprep.subr.mxu0 0.0
      %4437 = vmatpush1.msra.mxu0 0.0
      %4438 = vmatprep.subr.mxu0 0.0
      %4439 = vmatpush1.msra.mxu0 0.0
      %4440 = vmatprep.subr.mxu0 0.0
      %4441 = vmatpush1.msra.mxu0 0.0
      %4442 = vmatprep.subr.mxu0 0.0
      %4443 = vmatpush1.msra.mxu0 0.0
      %4444 = vmatprep.subr.mxu0 0.0
      %4445 = vmatpush1.msra.mxu0 0.0
      %4446 = vmatprep.subr.mxu0 0.0
      %4447 = vmatpush1.msra.mxu0 0.0
      %4448 = vmatprep.subr.mxu0 0.0
      %4449 = vmatpush1.msra.mxu0 0.0
      %4450 = vmatprep.subr.mxu0 0.0
      %4451 = vmatpush1.msra.mxu0 0.0
      %4452 = vmatprep.subr.mxu0 0.0
      %4453 = vmatpush1.msra.mxu0 0.0
      %4454 = vmatprep.subr.mxu0 0.0
      %4455 = vmatpush1.msra.mxu0 0.0
      %4456 = vmatprep.subr.mxu0 0.0
      %4457 = vmatpush1.msra.mxu0 0.0
      %4458 = vmatprep.subr.mxu0 0.0
      %4459 = vmatpush1.msra.mxu0 0.0
      %4460 = vmatprep.subr.mxu0 0.0
      %4461 = vmatpush1.msra.mxu0 0.0
      %4462 = vmatprep.subr.mxu0 0.0
      %4463 = vmatpush1.msra.mxu0 0.0
      %4464 = vmatprep.subr.mxu0 0.0
      %4465 = vmatpush1.msra.mxu0 0.0
      %4466 = vmatprep.subr.mxu0 0.0
      %4467 = vmatpush1.msra.mxu0 0.0
      %4468 = vmatprep.subr.mxu0 0.0
      %4469 = vmatpush1.msra.mxu0 0.0
      %4470 = vmatprep.subr.mxu0 0.0
      %4471 = vmatpush1.msra.mxu0 0.0
      %4472 = vmatprep.subr.mxu0 0.0
      %4473 = vmatpush1.msra.mxu0 0.0
      %4474 = vmatprep.subr.mxu0 0.0
      %4475 = vmatpush1.msra.mxu0 0.0
      %4476 = vmatprep.mubr.f32.mxu0 0.0
      %4477 = vmatmul.mubr.f32.gmra.mrb[0].mxu0 %v1737
      %v4478 = vpop.f32.mrb[0].mxu0
      %v4479 = vadd.f32 0.0, %v4478
      %v4480 = vpop.f32.mrb[0].mxu0
      %v4481 = vadd.f32 0.0, %v4480
      %4482 = vdwg.mxu0
      %4483 = vmatprep.subr.mxu0 0.0
      %4484 = vmatpush1.msra.mxu0 %v4410
      %4485 = vmatprep.subr.mxu0 0.0
      %4486 = vmatpush1.msra.mxu0 0.0
      %4487 = vmatprep.subr.mxu0 0.0
      %4488 = vmatpush1.msra.mxu0 0.0
      %4489 = vmatprep.subr.mxu0 0.0
      %4490 = vmatpush1.msra.mxu0 0.0
      %4491 = vmatprep.subr.mxu0 0.0
      %4492 = vmatpush1.msra.mxu0 0.0
      %4493 = vmatprep.subr.mxu0 0.0
      %4494 = vmatpush1.msra.mxu0 0.0
      %4495 = vmatprep.subr.mxu0 0.0
      %4496 = vmatpush1.msra.mxu0 0.0
      %4497 = vmatprep.subr.mxu0 0.0
      %4498 = vmatpush1.msra.mxu0 0.0
      %4499 = vmatprep.subr.mxu0 0.0
      %4500 = vmatpush1.msra.mxu0 0.0
      %4501 = vmatprep.subr.mxu0 0.0
      %4502 = vmatpush1.msra.mxu0 0.0
      %4503 = vmatprep.subr.mxu0 0.0
      %4504 = vmatpush1.msra.mxu0 0.0
      %4505 = vmatprep.subr.mxu0 0.0
      %4506 = vmatpush1.msra.mxu0 0.0
      %4507 = vmatprep.subr.mxu0 0.0
      %4508 = vmatpush1.msra.mxu0 0.0
      %4509 = vmatprep.subr.mxu0 0.0
      %4510 = vmatpush1.msra.mxu0 0.0
      %4511 = vmatprep.subr.mxu0 0.0
      %4512 = vmatpush1.msra.mxu0 0.0
      %4513 = vmatprep.subr.mxu0 0.0
      %4514 = vmatpush1.msra.mxu0 0.0
      %4515 = vmatprep.subr.mxu0 0.0
      %4516 = vmatpush1.msra.mxu0 0.0
      %4517 = vmatprep.subr.mxu0 0.0
      %4518 = vmatpush1.msra.mxu0 0.0
      %4519 = vmatprep.subr.mxu0 0.0
      %4520 = vmatpush1.msra.mxu0 0.0
      %4521 = vmatprep.subr.mxu0 0.0
      %4522 = vmatpush1.msra.mxu0 0.0
      %4523 = vmatprep.subr.mxu0 0.0
      %4524 = vmatpush1.msra.mxu0 0.0
      %4525 = vmatprep.subr.mxu0 0.0
      %4526 = vmatpush1.msra.mxu0 0.0
      %4527 = vmatprep.subr.mxu0 0.0
      %4528 = vmatpush1.msra.mxu0 0.0
      %4529 = vmatprep.subr.mxu0 0.0
      %4530 = vmatpush1.msra.mxu0 0.0
      %4531 = vmatprep.subr.mxu0 0.0
      %4532 = vmatpush1.msra.mxu0 0.0
      %4533 = vmatprep.subr.mxu0 0.0
      %4534 = vmatpush1.msra.mxu0 0.0
      %4535 = vmatprep.subr.mxu0 0.0
      %4536 = vmatpush1.msra.mxu0 0.0
      %4537 = vmatprep.subr.mxu0 0.0
      %4538 = vmatpush1.msra.mxu0 0.0
      %4539 = vmatprep.subr.mxu0 0.0
      %4540 = vmatpush1.msra.mxu0 0.0
      %4541 = vmatprep.subr.mxu0 0.0
      %4542 = vmatpush1.msra.mxu0 0.0
      %4543 = vmatprep.subr.mxu0 0.0
      %4544 = vmatpush1.msra.mxu0 0.0
      %4545 = vmatprep.subr.mxu0 0.0
      %4546 = vmatpush1.msra.mxu0 0.0
      %4547 = vmatprep.mubr.f32.mxu0 0.0
      %4548 = vmatmul.mubr.f32.gmra.mrb[0].mxu0 %v1737
      %v4549 = vpop.f32.mrb[0].mxu0
      %v4550 = vadd.f32 0.0, %v4549
      %v4551 = vpop.f32.mrb[0].mxu0
      %4552 = vdwg.mxu0
      %v4553 = vadd.f32 %v4395, %v4479
      %v4554 = vadd.f32 %v4396, %v4481
      %v4555 = vadd.f32 %v4397, %v4550
      %v4556 = vmax.f32 %v3221, %v4553
      %v4557 = vmax.f32 %v3222, %v4554
      %v4558 = vmax.f32 %v3223, %v4555
      %4559 = vmatprep.subr.mxu0 %v1250
      %4560 = vmatpush1.msra.mxu0 %v1248
      %4561 = vmatprep.subr.mxu0 0.0
      %4562 = vmatpush1.msra.mxu0 0.0
      %4563 = vmatprep.subr.mxu0 0.0
      %4564 = vmatpush1.msra.mxu0 0.0
      %4565 = vmatprep.subr.mxu0 0.0
      %4566 = vmatpush1.msra.mxu0 0.0
      %4567 = vmatprep.subr.mxu0 0.0
      %4568 = vmatpush1.msra.mxu0 0.0
      %4569 = vmatprep.subr.mxu0 0.0
      %4570 = vmatpush1.msra.mxu0 0.0
      %4571 = vmatprep.subr.mxu0 0.0
      %4572 = vmatpush1.msra.mxu0 0.0
      %4573 = vmatprep.subr.mxu0 0.0
      %4574 = vmatpush1.msra.mxu0 0.0
      %4575 = vmatprep.subr.mxu0 0.0
      %4576 = vmatpush1.msra.mxu0 0.0
      %4577 = vmatprep.subr.mxu0 0.0
      %4578 = vmatpush1.msra.mxu0 0.0
      %4579 = vmatprep.subr.mxu0 0.0
      %4580 = vmatpush1.msra.mxu0 0.0
      %4581 = vmatprep.subr.mxu0 0.0
      %4582 = vmatpush1.msra.mxu0 0.0
      %4583 = vmatprep.subr.mxu0 0.0
      %4584 = vmatpush1.msra.mxu0 0.0
      %4585 = vmatprep.subr.mxu0 0.0
      %4586 = vmatpush1.msra.mxu0 0.0
      %4587 = vmatprep.subr.mxu0 0.0
      %4588 = vmatpush1.msra.mxu0 0.0
      %4589 = vmatprep.subr.mxu0 0.0
      %4590 = vmatpush1.msra.mxu0 0.0
      %4591 = vmatprep.subr.mxu0 0.0
      %4592 = vmatpush1.msra.mxu0 0.0
      %4593 = vmatprep.subr.mxu0 0.0
      %4594 = vmatpush1.msra.mxu0 0.0
      %4595 = vmatprep.subr.mxu0 0.0
      %4596 = vmatpush1.msra.mxu0 0.0
      %4597 = vmatprep.subr.mxu0 0.0
      %4598 = vmatpush1.msra.mxu0 0.0
      %4599 = vmatprep.subr.mxu0 0.0
      %4600 = vmatpush1.msra.mxu0 0.0
      %4601 = vmatprep.subr.mxu0 0.0
      %4602 = vmatpush1.msra.mxu0 0.0
      %4603 = vmatprep.subr.mxu0 0.0
      %4604 = vmatpush1.msra.mxu0 0.0
      %4605 = vmatprep.subr.mxu0 0.0
      %4606 = vmatpush1.msra.mxu0 0.0
      %4607 = vmatprep.subr.mxu0 0.0
      %4608 = vmatpush1.msra.mxu0 0.0
      %4609 = vmatprep.subr.mxu0 0.0
      %4610 = vmatpush1.msra.mxu0 0.0
      %4611 = vmatprep.subr.mxu0 0.0
      %4612 = vmatpush1.msra.mxu0 0.0
      %4613 = vmatprep.subr.mxu0 0.0
      %4614 = vmatpush1.msra.mxu0 0.0
      %4615 = vmatprep.subr.mxu0 0.0
      %4616 = vmatpush1.msra.mxu0 0.0
      %4617 = vmatprep.subr.mxu0 0.0
      %4618 = vmatpush1.msra.mxu0 0.0
      %4619 = vmatprep.subr.mxu0 0.0
      %4620 = vmatpush1.msra.mxu0 0.0
      %4621 = vmatprep.subr.mxu0 0.0
      %4622 = vmatpush1.msra.mxu0 0.0
      %4623 = vmatprep.mubr.f32.mxu0 0.0
      %4624 = vmatmul.mubr.f32.gmra.mrb[0].mxu0 %v443
      %v4625 = vpop.f32.mrb[0].mxu0
      %v4626 = vadd.f32 0.0, %v4625
      %v4627 = vpop.f32.mrb[0].mxu0
      %v4628 = vadd.f32 0.0, %v4627
      %4629 = vdwg.mxu0
      %4630 = vmatprep.subr.mxu0 0.0
      %4631 = vmatpush1.msra.mxu0 %v1252
      %4632 = vmatprep.subr.mxu0 0.0
      %4633 = vmatpush1.msra.mxu0 0.0
      %4634 = vmatprep.subr.mxu0 0.0
      %4635 = vmatpush1.msra.mxu0 0.0
      %4636 = vmatprep.subr.mxu0 0.0
      %4637 = vmatpush1.msra.mxu0 0.0
      %4638 = vmatprep.subr.mxu0 0.0
      %4639 = vmatpush1.msra.mxu0 0.0
      %4640 = vmatprep.subr.mxu0 0.0
      %4641 = vmatpush1.msra.mxu0 0.0
      %4642 = vmatprep.subr.mxu0 0.0
      %4643 = vmatpush1.msra.mxu0 0.0
      %4644 = vmatprep.subr.mxu0 0.0
      %4645 = vmatpush1.msra.mxu0 0.0
      %4646 = vmatprep.subr.mxu0 0.0
      %4647 = vmatpush1.msra.mxu0 0.0
      %4648 = vmatprep.subr.mxu0 0.0
      %4649 = vmatpush1.msra.mxu0 0.0
      %4650 = vmatprep.subr.mxu0 0.0
      %4651 = vmatpush1.msra.mxu0 0.0
      %4652 = vmatprep.subr.mxu0 0.0
      %4653 = vmatpush1.msra.mxu0 0.0
      %4654 = vmatprep.subr.mxu0 0.0
      %4655 = vmatpush1.msra.mxu0 0.0
      %4656 = vmatprep.subr.mxu0 0.0
      %4657 = vmatpush1.msra.mxu0 0.0
      %4658 = vmatprep.subr.mxu0 0.0
      %4659 = vmatpush1.msra.mxu0 0.0
      %4660 = vmatprep.subr.mxu0 0.0
      %4661 = vmatpush1.msra.mxu0 0.0
      %4662 = vmatprep.subr.mxu0 0.0
      %4663 = vmatpush1.msra.mxu0 0.0
      %4664 = vmatprep.subr.mxu0 0.0
      %4665 = vmatpush1.msra.mxu0 0.0
      %4666 = vmatprep.subr.mxu0 0.0
      %4667 = vmatpush1.msra.mxu0 0.0
      %4668 = vmatprep.subr.mxu0 0.0
      %4669 = vmatpush1.msra.mxu0 0.0
      %4670 = vmatprep.subr.mxu0 0.0
      %4671 = vmatpush1.msra.mxu0 0.0
      %4672 = vmatprep.subr.mxu0 0.0
      %4673 = vmatpush1.msra.mxu0 0.0
      %4674 = vmatprep.subr.mxu0 0.0
      %4675 = vmatpush1.msra.mxu0 0.0
      %4676 = vmatprep.subr.mxu0 0.0
      %4677 = vmatpush1.msra.mxu0 0.0
      %4678 = vmatprep.subr.mxu0 0.0
      %4679 = vmatpush1.msra.mxu0 0.0
      %4680 = vmatprep.subr.mxu0 0.0
      %4681 = vmatpush1.msra.mxu0 0.0
      %4682 = vmatprep.subr.mxu0 0.0
      %4683 = vmatpush1.msra.mxu0 0.0
      %4684 = vmatprep.subr.mxu0 0.0
      %4685 = vmatpush1.msra.mxu0 0.0
      %4686 = vmatprep.subr.mxu0 0.0
      %4687 = vmatpush1.msra.mxu0 0.0
      %4688 = vmatprep.subr.mxu0 0.0
      %4689 = vmatpush1.msra.mxu0 0.0
      %4690 = vmatprep.subr.mxu0 0.0
      %4691 = vmatpush1.msra.mxu0 0.0
      %4692 = vmatprep.subr.mxu0 0.0
      %4693 = vmatpush1.msra.mxu0 0.0
      %4694 = vmatprep.mubr.f32.mxu0 0.0
      %4695 = vmatmul.mubr.f32.gmra.mrb[0].mxu0 %v443
      %v4696 = vpop.f32.mrb[0].mxu0
      %v4697 = vadd.f32 0.0, %v4696
      %v4698 = vpop.f32.mrb[0].mxu0
      %4699 = vdwg.mxu0
      %4700 = vmatprep.subr.mxu0 %v1087
      %4701 = vmatpush1.msra.mxu0 %v1085
      %4702 = vmatprep.subr.mxu0 0.0
      %4703 = vmatpush1.msra.mxu0 0.0
      %4704 = vmatprep.subr.mxu0 0.0
      %4705 = vmatpush1.msra.mxu0 0.0
      %4706 = vmatprep.subr.mxu0 0.0
      %4707 = vmatpush1.msra.mxu0 0.0
      %4708 = vmatprep.subr.mxu0 0.0
      %4709 = vmatpush1.msra.mxu0 0.0
      %4710 = vmatprep.subr.mxu0 0.0
      %4711 = vmatpush1.msra.mxu0 0.0
      %4712 = vmatprep.subr.mxu0 0.0
      %4713 = vmatpush1.msra.mxu0 0.0
      %4714 = vmatprep.subr.mxu0 0.0
      %4715 = vmatpush1.msra.mxu0 0.0
      %4716 = vmatprep.subr.mxu0 0.0
      %4717 = vmatpush1.msra.mxu0 0.0
      %4718 = vmatprep.subr.mxu0 0.0
      %4719 = vmatpush1.msra.mxu0 0.0
      %4720 = vmatprep.subr.mxu0 0.0
      %4721 = vmatpush1.msra.mxu0 0.0
      %4722 = vmatprep.subr.mxu0 0.0
      %4723 = vmatpush1.msra.mxu0 0.0
      %4724 = vmatprep.subr.mxu0 0.0
      %4725 = vmatpush1.msra.mxu0 0.0
      %4726 = vmatprep.subr.mxu0 0.0
      %4727 = vmatpush1.msra.mxu0 0.0
      %4728 = vmatprep.subr.mxu0 0.0
      %4729 = vmatpush1.msra.mxu0 0.0
      %4730 = vmatprep.subr.mxu0 0.0
      %4731 = vmatpush1.msra.mxu0 0.0
      %4732 = vmatprep.subr.mxu0 0.0
      %4733 = vmatpush1.msra.mxu0 0.0
      %4734 = vmatprep.subr.mxu0 0.0
      %4735 = vmatpush1.msra.mxu0 0.0
      %4736 = vmatprep.subr.mxu0 0.0
      %4737 = vmatpush1.msra.mxu0 0.0
      %4738 = vmatprep.subr.mxu0 0.0
      %4739 = vmatpush1.msra.mxu0 0.0
      %4740 = vmatprep.subr.mxu0 0.0
      %4741 = vmatpush1.msra.mxu0 0.0
      %4742 = vmatprep.subr.mxu0 0.0
      %4743 = vmatpush1.msra.mxu0 0.0
      %4744 = vmatprep.subr.mxu0 0.0
      %4745 = vmatpush1.msra.mxu0 0.0
      %4746 = vmatprep.subr.mxu0 0.0
      %4747 = vmatpush1.msra.mxu0 0.0
      %4748 = vmatprep.subr.mxu0 0.0
      %4749 = vmatpush1.msra.mxu0 0.0
      %4750 = vmatprep.subr.mxu0 0.0
      %4751 = vmatpush1.msra.mxu0 0.0
      %4752 = vmatprep.subr.mxu0 0.0
      %4753 = vmatpush1.msra.mxu0 0.0
      %4754 = vmatprep.subr.mxu0 0.0
      %4755 = vmatpush1.msra.mxu0 0.0
      %4756 = vmatprep.subr.mxu0 0.0
      %4757 = vmatpush1.msra.mxu0 0.0
      %4758 = vmatprep.subr.mxu0 0.0
      %4759 = vmatpush1.msra.mxu0 0.0
      %4760 = vmatprep.subr.mxu0 0.0
      %4761 = vmatpush1.msra.mxu0 0.0
      %4762 = vmatprep.subr.mxu0 0.0
      %4763 = vmatpush1.msra.mxu0 0.0
      %4764 = vmatprep.mubr.f32.mxu0 0.0
      %4765 = vmatmul.mubr.f32.gmra.mrb[0].mxu0 %v594
      %v4766 = vpop.f32.mrb[0].mxu0
      %v4767 = vadd.f32 %v4626, %v4766
      %v4768 = vpop.f32.mrb[0].mxu0
      %v4769 = vadd.f32 %v4628, %v4768
      %4770 = vdwg.mxu0
      %4771 = vmatprep.subr.mxu0 0.0
      %4772 = vmatpush1.msra.mxu0 %v1089
      %4773 = vmatprep.subr.mxu0 0.0
      %4774 = vmatpush1.msra.mxu0 0.0
      %4775 = vmatprep.subr.mxu0 0.0
      %4776 = vmatpush1.msra.mxu0 0.0
      %4777 = vmatprep.subr.mxu0 0.0
      %4778 = vmatpush1.msra.mxu0 0.0
      %4779 = vmatprep.subr.mxu0 0.0
      %4780 = vmatpush1.msra.mxu0 0.0
      %4781 = vmatprep.subr.mxu0 0.0
      %4782 = vmatpush1.msra.mxu0 0.0
      %4783 = vmatprep.subr.mxu0 0.0
      %4784 = vmatpush1.msra.mxu0 0.0
      %4785 = vmatprep.subr.mxu0 0.0
      %4786 = vmatpush1.msra.mxu0 0.0
      %4787 = vmatprep.subr.mxu0 0.0
      %4788 = vmatpush1.msra.mxu0 0.0
      %4789 = vmatprep.subr.mxu0 0.0
      %4790 = vmatpush1.msra.mxu0 0.0
      %4791 = vmatprep.subr.mxu0 0.0
      %4792 = vmatpush1.msra.mxu0 0.0
      %4793 = vmatprep.subr.mxu0 0.0
      %4794 = vmatpush1.msra.mxu0 0.0
      %4795 = vmatprep.subr.mxu0 0.0
      %4796 = vmatpush1.msra.mxu0 0.0
      %4797 = vmatprep.subr.mxu0 0.0
      %4798 = vmatpush1.msra.mxu0 0.0
      %4799 = vmatprep.subr.mxu0 0.0
      %4800 = vmatpush1.msra.mxu0 0.0
      %4801 = vmatprep.subr.mxu0 0.0
      %4802 = vmatpush1.msra.mxu0 0.0
      %4803 = vmatprep.subr.mxu0 0.0
      %4804 = vmatpush1.msra.mxu0 0.0
      %4805 = vmatprep.subr.mxu0 0.0
      %4806 = vmatpush1.msra.mxu0 0.0
      %4807 = vmatprep.subr.mxu0 0.0
      %4808 = vmatpush1.msra.mxu0 0.0
      %4809 = vmatprep.subr.mxu0 0.0
      %4810 = vmatpush1.msra.mxu0 0.0
      %4811 = vmatprep.subr.mxu0 0.0
      %4812 = vmatpush1.msra.mxu0 0.0
      %4813 = vmatprep.subr.mxu0 0.0
      %4814 = vmatpush1.msra.mxu0 0.0
      %4815 = vmatprep.subr.mxu0 0.0
      %4816 = vmatpush1.msra.mxu0 0.0
      %4817 = vmatprep.subr.mxu0 0.0
      %4818 = vmatpush1.msra.mxu0 0.0
      %4819 = vmatprep.subr.mxu0 0.0
      %4820 = vmatpush1.msra.mxu0 0.0
      %4821 = vmatprep.subr.mxu0 0.0
      %4822 = vmatpush1.msra.mxu0 0.0
      %4823 = vmatprep.subr.mxu0 0.0
      %4824 = vmatpush1.msra.mxu0 0.0
      %4825 = vmatprep.subr.mxu0 0.0
      %4826 = vmatpush1.msra.mxu0 0.0
      %4827 = vmatprep.subr.mxu0 0.0
      %4828 = vmatpush1.msra.mxu0 0.0
      %4829 = vmatprep.subr.mxu0 0.0
      %4830 = vmatpush1.msra.mxu0 0.0
      %4831 = vmatprep.subr.mxu0 0.0
      %4832 = vmatpush1.msra.mxu0 0.0
      %4833 = vmatprep.subr.mxu0 0.0
      %4834 = vmatpush1.msra.mxu0 0.0
      %4835 = vmatprep.mubr.f32.mxu0 0.0
      %4836 = vmatmul.mubr.f32.gmra.mrb[0].mxu0 %v594
      %v4837 = vpop.f32.mrb[0].mxu0
      %v4838 = vadd.f32 %v4697, %v4837
      %v4839 = vpop.f32.mrb[0].mxu0
      %4840 = vdwg.mxu0
      %4841 = vmatprep.subr.mxu0 %v2627
      %4842 = vmatpush1.msra.mxu0 %v2625
      %4843 = vmatprep.subr.mxu0 0.0
      %4844 = vmatpush1.msra.mxu0 0.0
      %4845 = vmatprep.subr.mxu0 0.0
      %4846 = vmatpush1.msra.mxu0 0.0
      %4847 = vmatprep.subr.mxu0 0.0
      %4848 = vmatpush1.msra.mxu0 0.0
      %4849 = vmatprep.subr.mxu0 0.0
      %4850 = vmatpush1.msra.mxu0 0.0
      %4851 = vmatprep.subr.mxu0 0.0
      %4852 = vmatpush1.msra.mxu0 0.0
      %4853 = vmatprep.subr.mxu0 0.0
      %4854 = vmatpush1.msra.mxu0 0.0
      %4855 = vmatprep.subr.mxu0 0.0
      %4856 = vmatpush1.msra.mxu0 0.0
      %4857 = vmatprep.subr.mxu0 0.0
      %4858 = vmatpush1.msra.mxu0 0.0
      %4859 = vmatprep.subr.mxu0 0.0
      %4860 = vmatpush1.msra.mxu0 0.0
      %4861 = vmatprep.subr.mxu0 0.0
      %4862 = vmatpush1.msra.mxu0 0.0
      %4863 = vmatprep.subr.mxu0 0.0
      %4864 = vmatpush1.msra.mxu0 0.0
      %4865 = vmatprep.subr.mxu0 0.0
      %4866 = vmatpush1.msra.mxu0 0.0
      %4867 = vmatprep.subr.mxu0 0.0
      %4868 = vmatpush1.msra.mxu0 0.0
      %4869 = vmatprep.subr.mxu0 0.0
      %4870 = vmatpush1.msra.mxu0 0.0
      %4871 = vmatprep.subr.mxu0 0.0
      %4872 = vmatpush1.msra.mxu0 0.0
      %4873 = vmatprep.subr.mxu0 0.0
      %4874 = vmatpush1.msra.mxu0 0.0
      %4875 = vmatprep.subr.mxu0 0.0
      %4876 = vmatpush1.msra.mxu0 0.0
      %4877 = vmatprep.subr.mxu0 0.0
      %4878 = vmatpush1.msra.mxu0 0.0
      %4879 = vmatprep.subr.mxu0 0.0
      %4880 = vmatpush1.msra.mxu0 0.0
      %4881 = vmatprep.subr.mxu0 0.0
      %4882 = vmatpush1.msra.mxu0 0.0
      %4883 = vmatprep.subr.mxu0 0.0
      %4884 = vmatpush1.msra.mxu0 0.0
      %4885 = vmatprep.subr.mxu0 0.0
      %4886 = vmatpush1.msra.mxu0 0.0
      %4887 = vmatprep.subr.mxu0 0.0
      %4888 = vmatpush1.msra.mxu0 0.0
      %4889 = vmatprep.subr.mxu0 0.0
      %4890 = vmatpush1.msra.mxu0 0.0
      %4891 = vmatprep.subr.mxu0 0.0
      %4892 = vmatpush1.msra.mxu0 0.0
      %4893 = vmatprep.subr.mxu0 0.0
      %4894 = vmatpush1.msra.mxu0 0.0
      %4895 = vmatprep.subr.mxu0 0.0
      %4896 = vmatpush1.msra.mxu0 0.0
      %4897 = vmatprep.subr.mxu0 0.0
      %4898 = vmatpush1.msra.mxu0 0.0
      %4899 = vmatprep.subr.mxu0 0.0
      %4900 = vmatpush1.msra.mxu0 0.0
      %4901 = vmatprep.subr.mxu0 0.0
      %4902 = vmatpush1.msra.mxu0 0.0
      %4903 = vmatprep.subr.mxu0 0.0
      %4904 = vmatpush1.msra.mxu0 0.0
      %4905 = vmatprep.mubr.f32.mxu0 0.0
      %4906 = vmatmul.mubr.f32.gmra.mrb[0].mxu0 %v758
      %v4907 = vpop.f32.mrb[0].mxu0
      %v4908 = vadd.f32 0.0, %v4907
      %v4909 = vpop.f32.mrb[0].mxu0
      %v4910 = vadd.f32 0.0, %v4909
      %4911 = vdwg.mxu0
      %4912 = vmatprep.subr.mxu0 0.0
      %4913 = vmatpush1.msra.mxu0 %v2629
      %4914 = vmatprep.subr.mxu0 0.0
      %4915 = vmatpush1.msra.mxu0 0.0
      %4916 = vmatprep.subr.mxu0 0.0
      %4917 = vmatpush1.msra.mxu0 0.0
      %4918 = vmatprep.subr.mxu0 0.0
      %4919 = vmatpush1.msra.mxu0 0.0
      %4920 = vmatprep.subr.mxu0 0.0
      %4921 = vmatpush1.msra.mxu0 0.0
      %4922 = vmatprep.subr.mxu0 0.0
      %4923 = vmatpush1.msra.mxu0 0.0
      %4924 = vmatprep.subr.mxu0 0.0
      %4925 = vmatpush1.msra.mxu0 0.0
      %4926 = vmatprep.subr.mxu0 0.0
      %4927 = vmatpush1.msra.mxu0 0.0
      %4928 = vmatprep.subr.mxu0 0.0
      %4929 = vmatpush1.msra.mxu0 0.0
      %4930 = vmatprep.subr.mxu0 0.0
      %4931 = vmatpush1.msra.mxu0 0.0
      %4932 = vmatprep.subr.mxu0 0.0
      %4933 = vmatpush1.msra.mxu0 0.0
      %4934 = vmatprep.subr.mxu0 0.0
      %4935 = vmatpush1.msra.mxu0 0.0
      %4936 = vmatprep.subr.mxu0 0.0
      %4937 = vmatpush1.msra.mxu0 0.0
      %4938 = vmatprep.subr.mxu0 0.0
      %4939 = vmatpush1.msra.mxu0 0.0
      %4940 = vmatprep.subr.mxu0 0.0
      %4941 = vmatpush1.msra.mxu0 0.0
      %4942 = vmatprep.subr.mxu0 0.0
      %4943 = vmatpush1.msra.mxu0 0.0
      %4944 = vmatprep.subr.mxu0 0.0
      %4945 = vmatpush1.msra.mxu0 0.0
      %4946 = vmatprep.subr.mxu0 0.0
      %4947 = vmatpush1.msra.mxu0 0.0
      %4948 = vmatprep.subr.mxu0 0.0
      %4949 = vmatpush1.msra.mxu0 0.0
      %4950 = vmatprep.subr.mxu0 0.0
      %4951 = vmatpush1.msra.mxu0 0.0
      %4952 = vmatprep.subr.mxu0 0.0
      %4953 = vmatpush1.msra.mxu0 0.0
      %4954 = vmatprep.subr.mxu0 0.0
      %4955 = vmatpush1.msra.mxu0 0.0
      %4956 = vmatprep.subr.mxu0 0.0
      %4957 = vmatpush1.msra.mxu0 0.0
      %4958 = vmatprep.subr.mxu0 0.0
      %4959 = vmatpush1.msra.mxu0 0.0
      %4960 = vmatprep.subr.mxu0 0.0
      %4961 = vmatpush1.msra.mxu0 0.0
      %4962 = vmatprep.subr.mxu0 0.0
      %4963 = vmatpush1.msra.mxu0 0.0
      %4964 = vmatprep.subr.mxu0 0.0
      %4965 = vmatpush1.msra.mxu0 0.0
      %4966 = vmatprep.subr.mxu0 0.0
      %4967 = vmatpush1.msra.mxu0 0.0
      %4968 = vmatprep.subr.mxu0 0.0
      %4969 = vmatpush1.msra.mxu0 0.0
      %4970 = vmatprep.subr.mxu0 0.0
      %4971 = vmatpush1.msra.mxu0 0.0
      %4972 = vmatprep.subr.mxu0 0.0
      %4973 = vmatpush1.msra.mxu0 0.0
      %4974 = vmatprep.subr.mxu0 0.0
      %4975 = vmatpush1.msra.mxu0 0.0
      %4976 = vmatprep.mubr.f32.mxu0 0.0
      %4977 = vmatmul.mubr.f32.gmra.mrb[0].mxu0 %v758
      %v4978 = vpop.f32.mrb[0].mxu0
      %v4979 = vadd.f32 0.0, %v4978
      %v4980 = vpop.f32.mrb[0].mxu0
      %4981 = vdwg.mxu0
      %v4982 = vadd.f32 %v4767, %v4908
      %v4983 = vadd.f32 %v4769, %v4910
      %v4984 = vadd.f32 %v4838, %v4979
      %4985 = vmatprep.subr.mxu0 %v1577
      %4986 = vmatpush1.msra.mxu0 %v1575
      %4987 = vmatprep.subr.mxu0 0.0
      %4988 = vmatpush1.msra.mxu0 0.0
      %4989 = vmatprep.subr.mxu0 0.0
      %4990 = vmatpush1.msra.mxu0 0.0
      %4991 = vmatprep.subr.mxu0 0.0
      %4992 = vmatpush1.msra.mxu0 0.0
      %4993 = vmatprep.subr.mxu0 0.0
      %4994 = vmatpush1.msra.mxu0 0.0
      %4995 = vmatprep.subr.mxu0 0.0
      %4996 = vmatpush1.msra.mxu0 0.0
      %4997 = vmatprep.subr.mxu0 0.0
      %4998 = vmatpush1.msra.mxu0 0.0
      %4999 = vmatprep.subr.mxu0 0.0
      %5000 = vmatpush1.msra.mxu0 0.0
      %5001 = vmatprep.subr.mxu0 0.0
      %5002 = vmatpush1.msra.mxu0 0.0
      %5003 = vmatprep.subr.mxu0 0.0
      %5004 = vmatpush1.msra.mxu0 0.0
      %5005 = vmatprep.subr.mxu0 0.0
      %5006 = vmatpush1.msra.mxu0 0.0
      %5007 = vmatprep.subr.mxu0 0.0
      %5008 = vmatpush1.msra.mxu0 0.0
      %5009 = vmatprep.subr.mxu0 0.0
      %5010 = vmatpush1.msra.mxu0 0.0
      %5011 = vmatprep.subr.mxu0 0.0
      %5012 = vmatpush1.msra.mxu0 0.0
      %5013 = vmatprep.subr.mxu0 0.0
      %5014 = vmatpush1.msra.mxu0 0.0
      %5015 = vmatprep.subr.mxu0 0.0
      %5016 = vmatpush1.msra.mxu0 0.0
      %5017 = vmatprep.subr.mxu0 0.0
      %5018 = vmatpush1.msra.mxu0 0.0
      %5019 = vmatprep.subr.mxu0 0.0
      %5020 = vmatpush1.msra.mxu0 0.0
      %5021 = vmatprep.subr.mxu0 0.0
      %5022 = vmatpush1.msra.mxu0 0.0
      %5023 = vmatprep.subr.mxu0 0.0
      %5024 = vmatpush1.msra.mxu0 0.0
      %5025 = vmatprep.subr.mxu0 0.0
      %5026 = vmatpush1.msra.mxu0 0.0
      %5027 = vmatprep.subr.mxu0 0.0
      %5028 = vmatpush1.msra.mxu0 0.0
      %5029 = vmatprep.subr.mxu0 0.0
      %5030 = vmatpush1.msra.mxu0 0.0
      %5031 = vmatprep.subr.mxu0 0.0
      %5032 = vmatpush1.msra.mxu0 0.0
      %5033 = vmatprep.subr.mxu0 0.0
      %5034 = vmatpush1.msra.mxu0 0.0
      %5035 = vmatprep.subr.mxu0 0.0
      %5036 = vmatpush1.msra.mxu0 0.0
      %5037 = vmatprep.subr.mxu0 0.0
      %5038 = vmatpush1.msra.mxu0 0.0
      %5039 = vmatprep.subr.mxu0 0.0
      %5040 = vmatpush1.msra.mxu0 0.0
      %5041 = vmatprep.subr.mxu0 0.0
      %5042 = vmatpush1.msra.mxu0 0.0
      %5043 = vmatprep.subr.mxu0 0.0
      %5044 = vmatpush1.msra.mxu0 0.0
      %5045 = vmatprep.subr.mxu0 0.0
      %5046 = vmatpush1.msra.mxu0 0.0
      %5047 = vmatprep.subr.mxu0 0.0
      %5048 = vmatpush1.msra.mxu0 0.0
      %5049 = vmatprep.mubr.f32.mxu0 0.0
      %5050 = vmatmul.mubr.f32.gmra.mrb[0].mxu0 %v916
      %v5051 = vpop.f32.mrb[0].mxu0
      %v5052 = vadd.f32 0.0, %v5051
      %v5053 = vpop.f32.mrb[0].mxu0
      %v5054 = vadd.f32 0.0, %v5053
      %5055 = vdwg.mxu0
      %5056 = vmatprep.subr.mxu0 0.0
      %5057 = vmatpush1.msra.mxu0 %v1579
      %5058 = vmatprep.subr.mxu0 0.0
      %5059 = vmatpush1.msra.mxu0 0.0
      %5060 = vmatprep.subr.mxu0 0.0
      %5061 = vmatpush1.msra.mxu0 0.0
      %5062 = vmatprep.subr.mxu0 0.0
      %5063 = vmatpush1.msra.mxu0 0.0
      %5064 = vmatprep.subr.mxu0 0.0
      %5065 = vmatpush1.msra.mxu0 0.0
      %5066 = vmatprep.subr.mxu0 0.0
      %5067 = vmatpush1.msra.mxu0 0.0
      %5068 = vmatprep.subr.mxu0 0.0
      %5069 = vmatpush1.msra.mxu0 0.0
      %5070 = vmatprep.subr.mxu0 0.0
      %5071 = vmatpush1.msra.mxu0 0.0
      %5072 = vmatprep.subr.mxu0 0.0
      %5073 = vmatpush1.msra.mxu0 0.0
      %5074 = vmatprep.subr.mxu0 0.0
      %5075 = vmatpush1.msra.mxu0 0.0
      %5076 = vmatprep.subr.mxu0 0.0
      %5077 = vmatpush1.msra.mxu0 0.0
      %5078 = vmatprep.subr.mxu0 0.0
      %5079 = vmatpush1.msra.mxu0 0.0
      %5080 = vmatprep.subr.mxu0 0.0
      %5081 = vmatpush1.msra.mxu0 0.0
      %5082 = vmatprep.subr.mxu0 0.0
      %5083 = vmatpush1.msra.mxu0 0.0
      %5084 = vmatprep.subr.mxu0 0.0
      %5085 = vmatpush1.msra.mxu0 0.0
      %5086 = vmatprep.subr.mxu0 0.0
      %5087 = vmatpush1.msra.mxu0 0.0
      %5088 = vmatprep.subr.mxu0 0.0
      %5089 = vmatpush1.msra.mxu0 0.0
      %5090 = vmatprep.subr.mxu0 0.0
      %5091 = vmatpush1.msra.mxu0 0.0
      %5092 = vmatprep.subr.mxu0 0.0
      %5093 = vmatpush1.msra.mxu0 0.0
      %5094 = vmatprep.subr.mxu0 0.0
      %5095 = vmatpush1.msra.mxu0 0.0
      %5096 = vmatprep.subr.mxu0 0.0
      %5097 = vmatpush1.msra.mxu0 0.0
      %5098 = vmatprep.subr.mxu0 0.0
      %5099 = vmatpush1.msra.mxu0 0.0
      %5100 = vmatprep.subr.mxu0 0.0
      %5101 = vmatpush1.msra.mxu0 0.0
      %5102 = vmatprep.subr.mxu0 0.0
      %5103 = vmatpush1.msra.mxu0 0.0
      %5104 = vmatprep.subr.mxu0 0.0
      %5105 = vmatpush1.msra.mxu0 0.0
      %5106 = vmatprep.subr.mxu0 0.0
      %5107 = vmatpush1.msra.mxu0 0.0
      %5108 = vmatprep.subr.mxu0 0.0
      %5109 = vmatpush1.msra.mxu0 0.0
      %5110 = vmatprep.subr.mxu0 0.0
      %5111 = vmatpush1.msra.mxu0 0.0
      %5112 = vmatprep.subr.mxu0 0.0
      %5113 = vmatpush1.msra.mxu0 0.0
      %5114 = vmatprep.subr.mxu0 0.0
      %5115 = vmatpush1.msra.mxu0 0.0
      %5116 = vmatprep.subr.mxu0 0.0
      %5117 = vmatpush1.msra.mxu0 0.0
      %5118 = vmatprep.subr.mxu0 0.0
      %5119 = vmatpush1.msra.mxu0 0.0
      %5120 = vmatprep.mubr.f32.mxu0 0.0
      %5121 = vmatmul.mubr.f32.gmra.mrb[0].mxu0 %v916
      %v5122 = vpop.f32.mrb[0].mxu0
      %v5123 = vadd.f32 0.0, %v5122
      %v5124 = vpop.f32.mrb[0].mxu0
      %5125 = vdwg.mxu0
      %v5126 = vadd.f32 %v4982, %v5052
      %v5127 = vadd.f32 %v4983, %v5054
      %v5128 = vadd.f32 %v4984, %v5123
      %5129 = vmatprep.subr.mxu0 %v1741
      %5130 = vmatpush1.msra.mxu0 %v1739
      %5131 = vmatprep.subr.mxu0 0.0
      %5132 = vmatpush1.msra.mxu0 0.0
      %5133 = vmatprep.subr.mxu0 0.0
      %5134 = vmatpush1.msra.mxu0 0.0
      %5135 = vmatprep.subr.mxu0 0.0
      %5136 = vmatpush1.msra.mxu0 0.0
      %5137 = vmatprep.subr.mxu0 0.0
      %5138 = vmatpush1.msra.mxu0 0.0
      %5139 = vmatprep.subr.mxu0 0.0
      %5140 = vmatpush1.msra.mxu0 0.0
      %5141 = vmatprep.subr.mxu0 0.0
      %5142 = vmatpush1.msra.mxu0 0.0
      %5143 = vmatprep.subr.mxu0 0.0
      %5144 = vmatpush1.msra.mxu0 0.0
      %5145 = vmatprep.subr.mxu0 0.0
      %5146 = vmatpush1.msra.mxu0 0.0
      %5147 = vmatprep.subr.mxu0 0.0
      %5148 = vmatpush1.msra.mxu0 0.0
      %5149 = vmatprep.subr.mxu0 0.0
      %5150 = vmatpush1.msra.mxu0 0.0
      %5151 = vmatprep.subr.mxu0 0.0
      %5152 = vmatpush1.msra.mxu0 0.0
      %5153 = vmatprep.subr.mxu0 0.0
      %5154 = vmatpush1.msra.mxu0 0.0
      %5155 = vmatprep.subr.mxu0 0.0
      %5156 = vmatpush1.msra.mxu0 0.0
      %5157 = vmatprep.subr.mxu0 0.0
      %5158 = vmatpush1.msra.mxu0 0.0
      %5159 = vmatprep.subr.mxu0 0.0
      %5160 = vmatpush1.msra.mxu0 0.0
      %5161 = vmatprep.subr.mxu0 0.0
      %5162 = vmatpush1.msra.mxu0 0.0
      %5163 = vmatprep.subr.mxu0 0.0
      %5164 = vmatpush1.msra.mxu0 0.0
      %5165 = vmatprep.subr.mxu0 0.0
      %5166 = vmatpush1.msra.mxu0 0.0
      %5167 = vmatprep.subr.mxu0 0.0
      %5168 = vmatpush1.msra.mxu0 0.0
      %5169 = vmatprep.subr.mxu0 0.0
      %5170 = vmatpush1.msra.mxu0 0.0
      %5171 = vmatprep.subr.mxu0 0.0
      %5172 = vmatpush1.msra.mxu0 0.0
      %5173 = vmatprep.subr.mxu0 0.0
      %5174 = vmatpush1.msra.mxu0 0.0
      %5175 = vmatprep.subr.mxu0 0.0
      %5176 = vmatpush1.msra.mxu0 0.0
      %5177 = vmatprep.subr.mxu0 0.0
      %5178 = vmatpush1.msra.mxu0 0.0
      %5179 = vmatprep.subr.mxu0 0.0
      %5180 = vmatpush1.msra.mxu0 0.0
      %5181 = vmatprep.subr.mxu0 0.0
      %5182 = vmatpush1.msra.mxu0 0.0
      %5183 = vmatprep.subr.mxu0 0.0
      %5184 = vmatpush1.msra.mxu0 0.0
      %5185 = vmatprep.subr.mxu0 0.0
      %5186 = vmatpush1.msra.mxu0 0.0
      %5187 = vmatprep.subr.mxu0 0.0
      %5188 = vmatpush1.msra.mxu0 0.0
      %5189 = vmatprep.subr.mxu0 0.0
      %5190 = vmatpush1.msra.mxu0 0.0
      %5191 = vmatprep.subr.mxu0 0.0
      %5192 = vmatpush1.msra.mxu0 0.0
      %5193 = vmatprep.mubr.f32.mxu0 0.0
      %5194 = vmatmul.mubr.f32.gmra.mrb[0].mxu0 %v1083
      %v5195 = vpop.f32.mrb[0].mxu0
      %v5196 = vadd.f32 0.0, %v5195
      %v5197 = vpop.f32.mrb[0].mxu0
      %v5198 = vadd.f32 0.0, %v5197
      %5199 = vdwg.mxu0
      %5200 = vmatprep.subr.mxu0 0.0
      %5201 = vmatpush1.msra.mxu0 %v1743
      %5202 = vmatprep.subr.mxu0 0.0
      %5203 = vmatpush1.msra.mxu0 0.0
      %5204 = vmatprep.subr.mxu0 0.0
      %5205 = vmatpush1.msra.mxu0 0.0
      %5206 = vmatprep.subr.mxu0 0.0
      %5207 = vmatpush1.msra.mxu0 0.0
      %5208 = vmatprep.subr.mxu0 0.0
      %5209 = vmatpush1.msra.mxu0 0.0
      %5210 = vmatprep.subr.mxu0 0.0
      %5211 = vmatpush1.msra.mxu0 0.0
      %5212 = vmatprep.subr.mxu0 0.0
      %5213 = vmatpush1.msra.mxu0 0.0
      %5214 = vmatprep.subr.mxu0 0.0
      %5215 = vmatpush1.msra.mxu0 0.0
      %5216 = vmatprep.subr.mxu0 0.0
      %5217 = vmatpush1.msra.mxu0 0.0
      %5218 = vmatprep.subr.mxu0 0.0
      %5219 = vmatpush1.msra.mxu0 0.0
      %5220 = vmatprep.subr.mxu0 0.0
      %5221 = vmatpush1.msra.mxu0 0.0
      %5222 = vmatprep.subr.mxu0 0.0
      %5223 = vmatpush1.msra.mxu0 0.0
      %5224 = vmatprep.subr.mxu0 0.0
      %5225 = vmatpush1.msra.mxu0 0.0
      %5226 = vmatprep.subr.mxu0 0.0
      %5227 = vmatpush1.msra.mxu0 0.0
      %5228 = vmatprep.subr.mxu0 0.0
      %5229 = vmatpush1.msra.mxu0 0.0
      %5230 = vmatprep.subr.mxu0 0.0
      %5231 = vmatpush1.msra.mxu0 0.0
      %5232 = vmatprep.subr.mxu0 0.0
      %5233 = vmatpush1.msra.mxu0 0.0
      %5234 = vmatprep.subr.mxu0 0.0
      %5235 = vmatpush1.msra.mxu0 0.0
      %5236 = vmatprep.subr.mxu0 0.0
      %5237 = vmatpush1.msra.mxu0 0.0
      %5238 = vmatprep.subr.mxu0 0.0
      %5239 = vmatpush1.msra.mxu0 0.0
      %5240 = vmatprep.subr.mxu0 0.0
      %5241 = vmatpush1.msra.mxu0 0.0
      %5242 = vmatprep.subr.mxu0 0.0
      %5243 = vmatpush1.msra.mxu0 0.0
      %5244 = vmatprep.subr.mxu0 0.0
      %5245 = vmatpush1.msra.mxu0 0.0
      %5246 = vmatprep.subr.mxu0 0.0
      %5247 = vmatpush1.msra.mxu0 0.0
      %5248 = vmatprep.subr.mxu0 0.0
      %5249 = vmatpush1.msra.mxu0 0.0
      %5250 = vmatprep.subr.mxu0 0.0
      %5251 = vmatpush1.msra.mxu0 0.0
      %5252 = vmatprep.subr.mxu0 0.0
      %5253 = vmatpush1.msra.mxu0 0.0
      %5254 = vmatprep.subr.mxu0 0.0
      %5255 = vmatpush1.msra.mxu0 0.0
      %5256 = vmatprep.subr.mxu0 0.0
      %5257 = vmatpush1.msra.mxu0 0.0
      %5258 = vmatprep.subr.mxu0 0.0
      %5259 = vmatpush1.msra.mxu0 0.0
      %5260 = vmatprep.subr.mxu0 0.0
      %5261 = vmatpush1.msra.mxu0 0.0
      %5262 = vmatprep.subr.mxu0 0.0
      %5263 = vmatpush1.msra.mxu0 0.0
      %5264 = vmatprep.mubr.f32.mxu0 0.0
      %5265 = vmatmul.mubr.f32.gmra.mrb[0].mxu0 %v1083
      %v5266 = vpop.f32.mrb[0].mxu0
      %v5267 = vadd.f32 0.0, %v5266
      %v5268 = vpop.f32.mrb[0].mxu0
      %5269 = vdwg.mxu0
      %v5270 = vadd.f32 %v5126, %v5196
      %v5271 = vadd.f32 %v5127, %v5198
      %v5272 = vadd.f32 %v5128, %v5267
      %5273 = vmatprep.subr.mxu0 %v3073
      %5274 = vmatpush1.msra.mxu0 %v3071
      %5275 = vmatprep.subr.mxu0 0.0
      %5276 = vmatpush1.msra.mxu0 0.0
      %5277 = vmatprep.subr.mxu0 0.0
      %5278 = vmatpush1.msra.mxu0 0.0
      %5279 = vmatprep.subr.mxu0 0.0
      %5280 = vmatpush1.msra.mxu0 0.0
      %5281 = vmatprep.subr.mxu0 0.0
      %5282 = vmatpush1.msra.mxu0 0.0
      %5283 = vmatprep.subr.mxu0 0.0
      %5284 = vmatpush1.msra.mxu0 0.0
      %5285 = vmatprep.subr.mxu0 0.0
      %5286 = vmatpush1.msra.mxu0 0.0
      %5287 = vmatprep.subr.mxu0 0.0
      %5288 = vmatpush1.msra.mxu0 0.0
      %5289 = vmatprep.subr.mxu0 0.0
      %5290 = vmatpush1.msra.mxu0 0.0
      %5291 = vmatprep.subr.mxu0 0.0
      %5292 = vmatpush1.msra.mxu0 0.0
      %5293 = vmatprep.subr.mxu0 0.0
      %5294 = vmatpush1.msra.mxu0 0.0
      %5295 = vmatprep.subr.mxu0 0.0
      %5296 = vmatpush1.msra.mxu0 0.0
      %5297 = vmatprep.subr.mxu0 0.0
      %5298 = vmatpush1.msra.mxu0 0.0
      %5299 = vmatprep.subr.mxu0 0.0
      %5300 = vmatpush1.msra.mxu0 0.0
      %5301 = vmatprep.subr.mxu0 0.0
      %5302 = vmatpush1.msra.mxu0 0.0
      %5303 = vmatprep.subr.mxu0 0.0
      %5304 = vmatpush1.msra.mxu0 0.0
      %5305 = vmatprep.subr.mxu0 0.0
      %5306 = vmatpush1.msra.mxu0 0.0
      %5307 = vmatprep.subr.mxu0 0.0
      %5308 = vmatpush1.msra.mxu0 0.0
      %5309 = vmatprep.subr.mxu0 0.0
      %5310 = vmatpush1.msra.mxu0 0.0
      %5311 = vmatprep.subr.mxu0 0.0
      %5312 = vmatpush1.msra.mxu0 0.0
      %5313 = vmatprep.subr.mxu0 0.0
      %5314 = vmatpush1.msra.mxu0 0.0
      %5315 = vmatprep.subr.mxu0 0.0
      %5316 = vmatpush1.msra.mxu0 0.0
      %5317 = vmatprep.subr.mxu0 0.0
      %5318 = vmatpush1.msra.mxu0 0.0
      %5319 = vmatprep.subr.mxu0 0.0
      %5320 = vmatpush1.msra.mxu0 0.0
      %5321 = vmatprep.subr.mxu0 0.0
      %5322 = vmatpush1.msra.mxu0 0.0
      %5323 = vmatprep.subr.mxu0 0.0
      %5324 = vmatpush1.msra.mxu0 0.0
      %5325 = vmatprep.subr.mxu0 0.0
      %5326 = vmatpush1.msra.mxu0 0.0
      %5327 = vmatprep.subr.mxu0 0.0
      %5328 = vmatpush1.msra.mxu0 0.0
      %5329 = vmatprep.subr.mxu0 0.0
      %5330 = vmatpush1.msra.mxu0 0.0
      %5331 = vmatprep.subr.mxu0 0.0
      %5332 = vmatpush1.msra.mxu0 0.0
      %5333 = vmatprep.subr.mxu0 0.0
      %5334 = vmatpush1.msra.mxu0 0.0
      %5335 = vmatprep.subr.mxu0 0.0
      %5336 = vmatpush1.msra.mxu0 0.0
      %5337 = vmatprep.mubr.f32.mxu0 0.0
      %5338 = vmatmul.mubr.f32.gmra.mrb[0].mxu0 %v1246
      %v5339 = vpop.f32.mrb[0].mxu0
      %v5340 = vadd.f32 0.0, %v5339
      %v5341 = vpop.f32.mrb[0].mxu0
      %v5342 = vadd.f32 0.0, %v5341
      %5343 = vdwg.mxu0
      %5344 = vmatprep.subr.mxu0 0.0
      %5345 = vmatpush1.msra.mxu0 %v3075
      %5346 = vmatprep.subr.mxu0 0.0
      %5347 = vmatpush1.msra.mxu0 0.0
      %5348 = vmatprep.subr.mxu0 0.0
      %5349 = vmatpush1.msra.mxu0 0.0
      %5350 = vmatprep.subr.mxu0 0.0
      %5351 = vmatpush1.msra.mxu0 0.0
      %5352 = vmatprep.subr.mxu0 0.0
      %5353 = vmatpush1.msra.mxu0 0.0
      %5354 = vmatprep.subr.mxu0 0.0
      %5355 = vmatpush1.msra.mxu0 0.0
      %5356 = vmatprep.subr.mxu0 0.0
      %5357 = vmatpush1.msra.mxu0 0.0
      %5358 = vmatprep.subr.mxu0 0.0
      %5359 = vmatpush1.msra.mxu0 0.0
      %5360 = vmatprep.subr.mxu0 0.0
      %5361 = vmatpush1.msra.mxu0 0.0
      %5362 = vmatprep.subr.mxu0 0.0
      %5363 = vmatpush1.msra.mxu0 0.0
      %5364 = vmatprep.subr.mxu0 0.0
      %5365 = vmatpush1.msra.mxu0 0.0
      %5366 = vmatprep.subr.mxu0 0.0
      %5367 = vmatpush1.msra.mxu0 0.0
      %5368 = vmatprep.subr.mxu0 0.0
      %5369 = vmatpush1.msra.mxu0 0.0
      %5370 = vmatprep.subr.mxu0 0.0
      %5371 = vmatpush1.msra.mxu0 0.0
      %5372 = vmatprep.subr.mxu0 0.0
      %5373 = vmatpush1.msra.mxu0 0.0
      %5374 = vmatprep.subr.mxu0 0.0
      %5375 = vmatpush1.msra.mxu0 0.0
      %5376 = vmatprep.subr.mxu0 0.0
      %5377 = vmatpush1.msra.mxu0 0.0
      %5378 = vmatprep.subr.mxu0 0.0
      %5379 = vmatpush1.msra.mxu0 0.0
      %5380 = vmatprep.subr.mxu0 0.0
      %5381 = vmatpush1.msra.mxu0 0.0
      %5382 = vmatprep.subr.mxu0 0.0
      %5383 = vmatpush1.msra.mxu0 0.0
      %5384 = vmatprep.subr.mxu0 0.0
      %5385 = vmatpush1.msra.mxu0 0.0
      %5386 = vmatprep.subr.mxu0 0.0
      %5387 = vmatpush1.msra.mxu0 0.0
      %5388 = vmatprep.subr.mxu0 0.0
      %5389 = vmatpush1.msra.mxu0 0.0
      %5390 = vmatprep.subr.mxu0 0.0
      %5391 = vmatpush1.msra.mxu0 0.0
      %5392 = vmatprep.subr.mxu0 0.0
      %5393 = vmatpush1.msra.mxu0 0.0
      %5394 = vmatprep.subr.mxu0 0.0
      %5395 = vmatpush1.msra.mxu0 0.0
      %5396 = vmatprep.subr.mxu0 0.0
      %5397 = vmatpush1.msra.mxu0 0.0
      %5398 = vmatprep.subr.mxu0 0.0
      %5399 = vmatpush1.msra.mxu0 0.0
      %5400 = vmatprep.subr.mxu0 0.0
      %5401 = vmatpush1.msra.mxu0 0.0
      %5402 = vmatprep.subr.mxu0 0.0
      %5403 = vmatpush1.msra.mxu0 0.0
      %5404 = vmatprep.subr.mxu0 0.0
      %5405 = vmatpush1.msra.mxu0 0.0
      %5406 = vmatprep.subr.mxu0 0.0
      %5407 = vmatpush1.msra.mxu0 0.0
      %5408 = vmatprep.mubr.f32.mxu0 0.0
      %5409 = vmatmul.mubr.f32.gmra.mrb[0].mxu0 %v1246
      %v5410 = vpop.f32.mrb[0].mxu0
      %v5411 = vadd.f32 0.0, %v5410
      %v5412 = vpop.f32.mrb[0].mxu0
      %5413 = vdwg.mxu0
      %v5414 = vadd.f32 %v5270, %v5340
      %v5415 = vadd.f32 %v5271, %v5342
      %v5416 = vadd.f32 %v5272, %v5411
      %5417 = vmatprep.subr.mxu0 %v4250
      %5418 = vmatpush1.msra.mxu0 %v4248
      %5419 = vmatprep.subr.mxu0 0.0
      %5420 = vmatpush1.msra.mxu0 0.0
      %5421 = vmatprep.subr.mxu0 0.0
      %5422 = vmatpush1.msra.mxu0 0.0
      %5423 = vmatprep.subr.mxu0 0.0
      %5424 = vmatpush1.msra.mxu0 0.0
      %5425 = vmatprep.subr.mxu0 0.0
      %5426 = vmatpush1.msra.mxu0 0.0
      %5427 = vmatprep.subr.mxu0 0.0
      %5428 = vmatpush1.msra.mxu0 0.0
      %5429 = vmatprep.subr.mxu0 0.0
      %5430 = vmatpush1.msra.mxu0 0.0
      %5431 = vmatprep.subr.mxu0 0.0
      %5432 = vmatpush1.msra.mxu0 0.0
      %5433 = vmatprep.subr.mxu0 0.0
      %5434 = vmatpush1.msra.mxu0 0.0
      %5435 = vmatprep.subr.mxu0 0.0
      %5436 = vmatpush1.msra.mxu0 0.0
      %5437 = vmatprep.subr.mxu0 0.0
      %5438 = vmatpush1.msra.mxu0 0.0
      %5439 = vmatprep.subr.mxu0 0.0
      %5440 = vmatpush1.msra.mxu0 0.0
      %5441 = vmatprep.subr.mxu0 0.0
      %5442 = vmatpush1.msra.mxu0 0.0
      %5443 = vmatprep.subr.mxu0 0.0
      %5444 = vmatpush1.msra.mxu0 0.0
      %5445 = vmatprep.subr.mxu0 0.0
      %5446 = vmatpush1.msra.mxu0 0.0
      %5447 = vmatprep.subr.mxu0 0.0
      %5448 = vmatpush1.msra.mxu0 0.0
      %5449 = vmatprep.subr.mxu0 0.0
      %5450 = vmatpush1.msra.mxu0 0.0
      %5451 = vmatprep.subr.mxu0 0.0
      %5452 = vmatpush1.msra.mxu0 0.0
      %5453 = vmatprep.subr.mxu0 0.0
      %5454 = vmatpush1.msra.mxu0 0.0
      %5455 = vmatprep.subr.mxu0 0.0
      %5456 = vmatpush1.msra.mxu0 0.0
      %5457 = vmatprep.subr.mxu0 0.0
      %5458 = vmatpush1.msra.mxu0 0.0
      %5459 = vmatprep.subr.mxu0 0.0
      %5460 = vmatpush1.msra.mxu0 0.0
      %5461 = vmatprep.subr.mxu0 0.0
      %5462 = vmatpush1.msra.mxu0 0.0
      %5463 = vmatprep.subr.mxu0 0.0
      %5464 = vmatpush1.msra.mxu0 0.0
      %5465 = vmatprep.subr.mxu0 0.0
      %5466 = vmatpush1.msra.mxu0 0.0
      %5467 = vmatprep.subr.mxu0 0.0
      %5468 = vmatpush1.msra.mxu0 0.0
      %5469 = vmatprep.subr.mxu0 0.0
      %5470 = vmatpush1.msra.mxu0 0.0
      %5471 = vmatprep.subr.mxu0 0.0
      %5472 = vmatpush1.msra.mxu0 0.0
      %5473 = vmatprep.subr.mxu0 0.0
      %5474 = vmatpush1.msra.mxu0 0.0
      %5475 = vmatprep.subr.mxu0 0.0
      %5476 = vmatpush1.msra.mxu0 0.0
      %5477 = vmatprep.subr.mxu0 0.0
      %5478 = vmatpush1.msra.mxu0 0.0
      %5479 = vmatprep.subr.mxu0 0.0
      %5480 = vmatpush1.msra.mxu0 0.0
      %5481 = vmatprep.mubr.f32.mxu0 0.0
      %5482 = vmatmul.mubr.f32.gmra.mrb[0].mxu0 %v1410
      %v5483 = vpop.f32.mrb[0].mxu0
      %v5484 = vadd.f32 0.0, %v5483
      %v5485 = vpop.f32.mrb[0].mxu0
      %v5486 = vadd.f32 0.0, %v5485
      %5487 = vdwg.mxu0
      %5488 = vmatprep.subr.mxu0 0.0
      %5489 = vmatpush1.msra.mxu0 %v4252
      %5490 = vmatprep.subr.mxu0 0.0
      %5491 = vmatpush1.msra.mxu0 0.0
      %5492 = vmatprep.subr.mxu0 0.0
      %5493 = vmatpush1.msra.mxu0 0.0
      %5494 = vmatprep.subr.mxu0 0.0
      %5495 = vmatpush1.msra.mxu0 0.0
      %5496 = vmatprep.subr.mxu0 0.0
      %5497 = vmatpush1.msra.mxu0 0.0
      %5498 = vmatprep.subr.mxu0 0.0
      %5499 = vmatpush1.msra.mxu0 0.0
      %5500 = vmatprep.subr.mxu0 0.0
      %5501 = vmatpush1.msra.mxu0 0.0
      %5502 = vmatprep.subr.mxu0 0.0
      %5503 = vmatpush1.msra.mxu0 0.0
      %5504 = vmatprep.subr.mxu0 0.0
      %5505 = vmatpush1.msra.mxu0 0.0
      %5506 = vmatprep.subr.mxu0 0.0
      %5507 = vmatpush1.msra.mxu0 0.0
      %5508 = vmatprep.subr.mxu0 0.0
      %5509 = vmatpush1.msra.mxu0 0.0
      %5510 = vmatprep.subr.mxu0 0.0
      %5511 = vmatpush1.msra.mxu0 0.0
      %5512 = vmatprep.subr.mxu0 0.0
      %5513 = vmatpush1.msra.mxu0 0.0
      %5514 = vmatprep.subr.mxu0 0.0
      %5515 = vmatpush1.msra.mxu0 0.0
      %5516 = vmatprep.subr.mxu0 0.0
      %5517 = vmatpush1.msra.mxu0 0.0
      %5518 = vmatprep.subr.mxu0 0.0
      %5519 = vmatpush1.msra.mxu0 0.0
      %5520 = vmatprep.subr.mxu0 0.0
      %5521 = vmatpush1.msra.mxu0 0.0
      %5522 = vmatprep.subr.mxu0 0.0
      %5523 = vmatpush1.msra.mxu0 0.0
      %5524 = vmatprep.subr.mxu0 0.0
      %5525 = vmatpush1.msra.mxu0 0.0
      %5526 = vmatprep.subr.mxu0 0.0
      %5527 = vmatpush1.msra.mxu0 0.0
      %5528 = vmatprep.subr.mxu0 0.0
      %5529 = vmatpush1.msra.mxu0 0.0
      %5530 = vmatprep.subr.mxu0 0.0
      %5531 = vmatpush1.msra.mxu0 0.0
      %5532 = vmatprep.subr.mxu0 0.0
      %5533 = vmatpush1.msra.mxu0 0.0
      %5534 = vmatprep.subr.mxu0 0.0
      %5535 = vmatpush1.msra.mxu0 0.0
      %5536 = vmatprep.subr.mxu0 0.0
      %5537 = vmatpush1.msra.mxu0 0.0
      %5538 = vmatprep.subr.mxu0 0.0
      %5539 = vmatpush1.msra.mxu0 0.0
      %5540 = vmatprep.subr.mxu0 0.0
      %5541 = vmatpush1.msra.mxu0 0.0
      %5542 = vmatprep.subr.mxu0 0.0
      %5543 = vmatpush1.msra.mxu0 0.0
      %5544 = vmatprep.subr.mxu0 0.0
      %5545 = vmatpush1.msra.mxu0 0.0
      %5546 = vmatprep.subr.mxu0 0.0
      %5547 = vmatpush1.msra.mxu0 0.0
      %5548 = vmatprep.subr.mxu0 0.0
      %5549 = vmatpush1.msra.mxu0 0.0
      %5550 = vmatprep.subr.mxu0 0.0
      %5551 = vmatpush1.msra.mxu0 0.0
      %5552 = vmatprep.mubr.f32.mxu0 0.0
      %5553 = vmatmul.mubr.f32.gmra.mrb[0].mxu0 %v1410
      %v5554 = vpop.f32.mrb[0].mxu0
      %v5555 = vadd.f32 0.0, %v5554
      %v5556 = vpop.f32.mrb[0].mxu0
      %5557 = vdwg.mxu0
      %v5558 = vadd.f32 %v5414, %v5484
      %v5559 = vadd.f32 %v5415, %v5486
      %v5560 = vadd.f32 %v5416, %v5555
      %5561 = vmatprep.subr.mxu0 %v4408
      %5562 = vmatpush1.msra.mxu0 %v4406
      %5563 = vmatprep.subr.mxu0 0.0
      %5564 = vmatpush1.msra.mxu0 0.0
      %5565 = vmatprep.subr.mxu0 0.0
      %5566 = vmatpush1.msra.mxu0 0.0
      %5567 = vmatprep.subr.mxu0 0.0
      %5568 = vmatpush1.msra.mxu0 0.0
      %5569 = vmatprep.subr.mxu0 0.0
      %5570 = vmatpush1.msra.mxu0 0.0
      %5571 = vmatprep.subr.mxu0 0.0
      %5572 = vmatpush1.msra.mxu0 0.0
      %5573 = vmatprep.subr.mxu0 0.0
      %5574 = vmatpush1.msra.mxu0 0.0
      %5575 = vmatprep.subr.mxu0 0.0
      %5576 = vmatpush1.msra.mxu0 0.0
      %5577 = vmatprep.subr.mxu0 0.0
      %5578 = vmatpush1.msra.mxu0 0.0
      %5579 = vmatprep.subr.mxu0 0.0
      %5580 = vmatpush1.msra.mxu0 0.0
      %5581 = vmatprep.subr.mxu0 0.0
      %5582 = vmatpush1.msra.mxu0 0.0
      %5583 = vmatprep.subr.mxu0 0.0
      %5584 = vmatpush1.msra.mxu0 0.0
      %5585 = vmatprep.subr.mxu0 0.0
      %5586 = vmatpush1.msra.mxu0 0.0
      %5587 = vmatprep.subr.mxu0 0.0
      %5588 = vmatpush1.msra.mxu0 0.0
      %5589 = vmatprep.subr.mxu0 0.0
      %5590 = vmatpush1.msra.mxu0 0.0
      %5591 = vmatprep.subr.mxu0 0.0
      %5592 = vmatpush1.msra.mxu0 0.0
      %5593 = vmatprep.subr.mxu0 0.0
      %5594 = vmatpush1.msra.mxu0 0.0
      %5595 = vmatprep.subr.mxu0 0.0
      %5596 = vmatpush1.msra.mxu0 0.0
      %5597 = vmatprep.subr.mxu0 0.0
      %5598 = vmatpush1.msra.mxu0 0.0
      %5599 = vmatprep.subr.mxu0 0.0
      %5600 = vmatpush1.msra.mxu0 0.0
      %5601 = vmatprep.subr.mxu0 0.0
      %5602 = vmatpush1.msra.mxu0 0.0
      %5603 = vmatprep.subr.mxu0 0.0
      %5604 = vmatpush1.msra.mxu0 0.0
      %5605 = vmatprep.subr.mxu0 0.0
      %5606 = vmatpush1.msra.mxu0 0.0
      %5607 = vmatprep.subr.mxu0 0.0
      %5608 = vmatpush1.msra.mxu0 0.0
      %5609 = vmatprep.subr.mxu0 0.0
      %5610 = vmatpush1.msra.mxu0 0.0
      %5611 = vmatprep.subr.mxu0 0.0
      %5612 = vmatpush1.msra.mxu0 0.0
      %5613 = vmatprep.subr.mxu0 0.0
      %5614 = vmatpush1.msra.mxu0 0.0
      %5615 = vmatprep.subr.mxu0 0.0
      %5616 = vmatpush1.msra.mxu0 0.0
      %5617 = vmatprep.subr.mxu0 0.0
      %5618 = vmatpush1.msra.mxu0 0.0
      %5619 = vmatprep.subr.mxu0 0.0
      %5620 = vmatpush1.msra.mxu0 0.0
      %5621 = vmatprep.subr.mxu0 0.0
      %5622 = vmatpush1.msra.mxu0 0.0
      %5623 = vmatprep.subr.mxu0 0.0
      %5624 = vmatpush1.msra.mxu0 0.0
      %5625 = vmatprep.mubr.f32.mxu0 0.0
      %5626 = vmatmul.mubr.f32.gmra.mrb[0].mxu0 %v1573
      %v5627 = vpop.f32.mrb[0].mxu0
      %v5628 = vadd.f32 0.0, %v5627
      %v5629 = vpop.f32.mrb[0].mxu0
      %v5630 = vadd.f32 0.0, %v5629
      %5631 = vdwg.mxu0
      %5632 = vmatprep.subr.mxu0 0.0
      %5633 = vmatpush1.msra.mxu0 %v4410
      %5634 = vmatprep.subr.mxu0 0.0
      %5635 = vmatpush1.msra.mxu0 0.0
      %5636 = vmatprep.subr.mxu0 0.0
      %5637 = vmatpush1.msra.mxu0 0.0
      %5638 = vmatprep.subr.mxu0 0.0
      %5639 = vmatpush1.msra.mxu0 0.0
      %5640 = vmatprep.subr.mxu0 0.0
      %5641 = vmatpush1.msra.mxu0 0.0
      %5642 = vmatprep.subr.mxu0 0.0
      %5643 = vmatpush1.msra.mxu0 0.0
      %5644 = vmatprep.subr.mxu0 0.0
      %5645 = vmatpush1.msra.mxu0 0.0
      %5646 = vmatprep.subr.mxu0 0.0
      %5647 = vmatpush1.msra.mxu0 0.0
      %5648 = vmatprep.subr.mxu0 0.0
      %5649 = vmatpush1.msra.mxu0 0.0
      %5650 = vmatprep.subr.mxu0 0.0
      %5651 = vmatpush1.msra.mxu0 0.0
      %5652 = vmatprep.subr.mxu0 0.0
      %5653 = vmatpush1.msra.mxu0 0.0
      %5654 = vmatprep.subr.mxu0 0.0
      %5655 = vmatpush1.msra.mxu0 0.0
      %5656 = vmatprep.subr.mxu0 0.0
      %5657 = vmatpush1.msra.mxu0 0.0
      %5658 = vmatprep.subr.mxu0 0.0
      %5659 = vmatpush1.msra.mxu0 0.0
      %5660 = vmatprep.subr.mxu0 0.0
      %5661 = vmatpush1.msra.mxu0 0.0
      %5662 = vmatprep.subr.mxu0 0.0
      %5663 = vmatpush1.msra.mxu0 0.0
      %5664 = vmatprep.subr.mxu0 0.0
      %5665 = vmatpush1.msra.mxu0 0.0
      %5666 = vmatprep.subr.mxu0 0.0
      %5667 = vmatpush1.msra.mxu0 0.0
      %5668 = vmatprep.subr.mxu0 0.0
      %5669 = vmatpush1.msra.mxu0 0.0
      %5670 = vmatprep.subr.mxu0 0.0
      %5671 = vmatpush1.msra.mxu0 0.0
      %5672 = vmatprep.subr.mxu0 0.0
      %5673 = vmatpush1.msra.mxu0 0.0
      %5674 = vmatprep.subr.mxu0 0.0
      %5675 = vmatpush1.msra.mxu0 0.0
      %5676 = vmatprep.subr.mxu0 0.0
      %5677 = vmatpush1.msra.mxu0 0.0
      %5678 = vmatprep.subr.mxu0 0.0
      %5679 = vmatpush1.msra.mxu0 0.0
      %5680 = vmatprep.subr.mxu0 0.0
      %5681 = vmatpush1.msra.mxu0 0.0
      %5682 = vmatprep.subr.mxu0 0.0
      %5683 = vmatpush1.msra.mxu0 0.0
      %5684 = vmatprep.subr.mxu0 0.0
      %5685 = vmatpush1.msra.mxu0 0.0
      %5686 = vmatprep.subr.mxu0 0.0
      %5687 = vmatpush1.msra.mxu0 0.0
      %5688 = vmatprep.subr.mxu0 0.0
      %5689 = vmatpush1.msra.mxu0 0.0
      %5690 = vmatprep.subr.mxu0 0.0
      %5691 = vmatpush1.msra.mxu0 0.0
      %5692 = vmatprep.subr.mxu0 0.0
      %5693 = vmatpush1.msra.mxu0 0.0
      %5694 = vmatprep.subr.mxu0 0.0
      %5695 = vmatpush1.msra.mxu0 0.0
      %5696 = vmatprep.mubr.f32.mxu0 0.0
      %5697 = vmatmul.mubr.f32.gmra.mrb[0].mxu0 %v1573
      %v5698 = vpop.f32.mrb[0].mxu0
      %v5699 = vadd.f32 0.0, %v5698
      %v5700 = vpop.f32.mrb[0].mxu0
      %5701 = vdwg.mxu0
      %v5702 = vadd.f32 %v5558, %v5628
      %v5703 = vadd.f32 %v5559, %v5630
      %v5704 = vadd.f32 %v5560, %v5699
      %5705 = vrot.lane.b32.xlu0 %v1079, 112
      %v5706 = vpop.permute.xlu0 %5705
      %5707 = vrot.lane.b32.xlu0 %v1080, 112
      %v5708 = vpop.permute.xlu0 %5707
      %5709 = vrot.lane.b32.xlu0 %v1081, 112
      %v5710 = vpop.permute.xlu0 %5709
      %v5711 = vsel %vm1733, %v5706, %v5708
      %v5712 = vsel %vm1733, %v5708, %v5710
      %v5713 = vsel %vm445, %v5711, 0
      %v5715 = vsel %vm445, %v5712, 0
      %v5717 = vsel %vm445, %v5710, 0
      %5719 = vmatprep.subr.mxu0 %v5715
      %5720 = vmatpush1.msra.mxu0 %v5713
      %5721 = vmatprep.subr.mxu0 0.0
      %5722 = vmatpush1.msra.mxu0 0.0
      %5723 = vmatprep.subr.mxu0 0.0
      %5724 = vmatpush1.msra.mxu0 0.0
      %5725 = vmatprep.subr.mxu0 0.0
      %5726 = vmatpush1.msra.mxu0 0.0
      %5727 = vmatprep.subr.mxu0 0.0
      %5728 = vmatpush1.msra.mxu0 0.0
      %5729 = vmatprep.subr.mxu0 0.0
      %5730 = vmatpush1.msra.mxu0 0.0
      %5731 = vmatprep.subr.mxu0 0.0
      %5732 = vmatpush1.msra.mxu0 0.0
      %5733 = vmatprep.subr.mxu0 0.0
      %5734 = vmatpush1.msra.mxu0 0.0
      %5735 = vmatprep.subr.mxu0 0.0
      %5736 = vmatpush1.msra.mxu0 0.0
      %5737 = vmatprep.subr.mxu0 0.0
      %5738 = vmatpush1.msra.mxu0 0.0
      %5739 = vmatprep.subr.mxu0 0.0
      %5740 = vmatpush1.msra.mxu0 0.0
      %5741 = vmatprep.subr.mxu0 0.0
      %5742 = vmatpush1.msra.mxu0 0.0
      %5743 = vmatprep.subr.mxu0 0.0
      %5744 = vmatpush1.msra.mxu0 0.0
      %5745 = vmatprep.subr.mxu0 0.0
      %5746 = vmatpush1.msra.mxu0 0.0
      %5747 = vmatprep.subr.mxu0 0.0
      %5748 = vmatpush1.msra.mxu0 0.0
      %5749 = vmatprep.subr.mxu0 0.0
      %5750 = vmatpush1.msra.mxu0 0.0
      %5751 = vmatprep.subr.mxu0 0.0
      %5752 = vmatpush1.msra.mxu0 0.0
      %5753 = vmatprep.subr.mxu0 0.0
      %5754 = vmatpush1.msra.mxu0 0.0
      %5755 = vmatprep.subr.mxu0 0.0
      %5756 = vmatpush1.msra.mxu0 0.0
      %5757 = vmatprep.subr.mxu0 0.0
      %5758 = vmatpush1.msra.mxu0 0.0
      %5759 = vmatprep.subr.mxu0 0.0
      %5760 = vmatpush1.msra.mxu0 0.0
      %5761 = vmatprep.subr.mxu0 0.0
      %5762 = vmatpush1.msra.mxu0 0.0
      %5763 = vmatprep.subr.mxu0 0.0
      %5764 = vmatpush1.msra.mxu0 0.0
      %5765 = vmatprep.subr.mxu0 0.0
      %5766 = vmatpush1.msra.mxu0 0.0
      %5767 = vmatprep.subr.mxu0 0.0
      %5768 = vmatpush1.msra.mxu0 0.0
      %5769 = vmatprep.subr.mxu0 0.0
      %5770 = vmatpush1.msra.mxu0 0.0
      %5771 = vmatprep.subr.mxu0 0.0
      %5772 = vmatpush1.msra.mxu0 0.0
      %5773 = vmatprep.subr.mxu0 0.0
      %5774 = vmatpush1.msra.mxu0 0.0
      %5775 = vmatprep.subr.mxu0 0.0
      %5776 = vmatpush1.msra.mxu0 0.0
      %5777 = vmatprep.subr.mxu0 0.0
      %5778 = vmatpush1.msra.mxu0 0.0
      %5779 = vmatprep.subr.mxu0 0.0
      %5780 = vmatpush1.msra.mxu0 0.0
      %5781 = vmatprep.subr.mxu0 0.0
      %5782 = vmatpush1.msra.mxu0 0.0
      %5783 = vmatprep.mubr.f32.mxu0 0.0
      %5784 = vmatmul.mubr.f32.gmra.mrb[0].mxu0 %v1737
      %v5785 = vpop.f32.mrb[0].mxu0
      %v5786 = vadd.f32 0.0, %v5785
      %v5787 = vpop.f32.mrb[0].mxu0
      %v5788 = vadd.f32 0.0, %v5787
      %5789 = vdwg.mxu0
      %5790 = vmatprep.subr.mxu0 0.0
      %5791 = vmatpush1.msra.mxu0 %v5717
      %5792 = vmatprep.subr.mxu0 0.0
      %5793 = vmatpush1.msra.mxu0 0.0
      %5794 = vmatprep.subr.mxu0 0.0
      %5795 = vmatpush1.msra.mxu0 0.0
      %5796 = vmatprep.subr.mxu0 0.0
      %5797 = vmatpush1.msra.mxu0 0.0
      %5798 = vmatprep.subr.mxu0 0.0
      %5799 = vmatpush1.msra.mxu0 0.0
      %5800 = vmatprep.subr.mxu0 0.0
      %5801 = vmatpush1.msra.mxu0 0.0
      %5802 = vmatprep.subr.mxu0 0.0
      %5803 = vmatpush1.msra.mxu0 0.0
      %5804 = vmatprep.subr.mxu0 0.0
      %5805 = vmatpush1.msra.mxu0 0.0
      %5806 = vmatprep.subr.mxu0 0.0
      %5807 = vmatpush1.msra.mxu0 0.0
      %5808 = vmatprep.subr.mxu0 0.0
      %5809 = vmatpush1.msra.mxu0 0.0
      %5810 = vmatprep.subr.mxu0 0.0
      %5811 = vmatpush1.msra.mxu0 0.0
      %5812 = vmatprep.subr.mxu0 0.0
      %5813 = vmatpush1.msra.mxu0 0.0
      %5814 = vmatprep.subr.mxu0 0.0
      %5815 = vmatpush1.msra.mxu0 0.0
      %5816 = vmatprep.subr.mxu0 0.0
      %5817 = vmatpush1.msra.mxu0 0.0
      %5818 = vmatprep.subr.mxu0 0.0
      %5819 = vmatpush1.msra.mxu0 0.0
      %5820 = vmatprep.subr.mxu0 0.0
      %5821 = vmatpush1.msra.mxu0 0.0
      %5822 = vmatprep.subr.mxu0 0.0
      %5823 = vmatpush1.msra.mxu0 0.0
      %5824 = vmatprep.subr.mxu0 0.0
      %5825 = vmatpush1.msra.mxu0 0.0
      %5826 = vmatprep.subr.mxu0 0.0
      %5827 = vmatpush1.msra.mxu0 0.0
      %5828 = vmatprep.subr.mxu0 0.0
      %5829 = vmatpush1.msra.mxu0 0.0
      %5830 = vmatprep.subr.mxu0 0.0
      %5831 = vmatpush1.msra.mxu0 0.0
      %5832 = vmatprep.subr.mxu0 0.0
      %5833 = vmatpush1.msra.mxu0 0.0
      %5834 = vmatprep.subr.mxu0 0.0
      %5835 = vmatpush1.msra.mxu0 0.0
      %5836 = vmatprep.subr.mxu0 0.0
      %5837 = vmatpush1.msra.mxu0 0.0
      %5838 = vmatprep.subr.mxu0 0.0
      %5839 = vmatpush1.msra.mxu0 0.0
      %5840 = vmatprep.subr.mxu0 0.0
      %5841 = vmatpush1.msra.mxu0 0.0
      %5842 = vmatprep.subr.mxu0 0.0
      %5843 = vmatpush1.msra.mxu0 0.0
      %5844 = vmatprep.subr.mxu0 0.0
      %5845 = vmatpush1.msra.mxu0 0.0
      %5846 = vmatprep.subr.mxu0 0.0
      %5847 = vmatpush1.msra.mxu0 0.0
      %5848 = vmatprep.subr.mxu0 0.0
      %5849 = vmatpush1.msra.mxu0 0.0
      %5850 = vmatprep.subr.mxu0 0.0
      %5851 = vmatpush1.msra.mxu0 0.0
      %5852 = vmatprep.subr.mxu0 0.0
      %5853 = vmatpush1.msra.mxu0 0.0
      %5854 = vmatprep.mubr.f32.mxu0 0.0
      %5855 = vmatmul.mubr.f32.gmra.mrb[0].mxu0 %v1737
      %v5856 = vpop.f32.mrb[0].mxu0
      %v5857 = vadd.f32 0.0, %v5856
      %v5858 = vpop.f32.mrb[0].mxu0
      %5859 = vdwg.mxu0
      %v5860 = vadd.f32 %v5702, %v5786
      %v5861 = vadd.f32 %v5703, %v5788
      %v5862 = vadd.f32 %v5704, %v5857
      %v5863 = vmax.f32 %v4556, %v5860
      %v5864 = vmax.f32 %v4557, %v5861
      %v5865 = vmax.f32 %v4558, %v5862
      %v5866 = vld [vmem:[%s398] sm:$0xf]
      %5868 = vset.pattern.permute.xlu0 0
      %5869 = vperm.xlu0 %5868, %v5866
      %v5870 = vpop.permute.xlu0 %5869
      %v5872 = vadd.f32 %v5863, %v5870
      %v5873 = vadd.f32 %v5864, %v5870
      %v5874 = vadd.f32 %v5865, %v5870
      %v5875 = vmax.f32 %v5872, 0.0
      %v5876 = vmax.f32 %v5873, 0.0
      %v5877 = vmax.f32 %v5874, 0.0
      %v5878 = vld [vmem:[%s403] sm:$0xf]
      %s5879 = scalar_lea.vmem %s403, 4
      %v5880 = vld [vmem:[%s5879] sm:$0xf]
      %5884 = vrot.lane.b32.xlu0 %v5875, 127
      %v5885 = vpop.permute.xlu0 %5884
      %5886 = vrot.lane.b32.xlu0 %v5876, 127
      %v5887 = vpop.permute.xlu0 %5886
      %5888 = vrot.lane.b32.xlu0 %v5877, 127
      %v5889 = vpop.permute.xlu0 %5888
      %v5890 = vsel %vm754, %v5885, %v5887
      %v5891 = vsel %vm754, %v5887, %v5889
      %v5893 = vsel %vm441, %v5880, 0
      %v5895 = vsel %vm445, %v5890, 0
      %v5897 = vsel %vm445, %v5891, 0
      %v5899 = vsel %vm445, %v5889, 0
      %5901 = vmatprep.subr.mxu0 %v5897
      %5902 = vmatpush1.msra.mxu0 %v5895
      %5903 = vmatprep.subr.mxu0 0.0
      %5904 = vmatpush1.msra.mxu0 0.0
      %5905 = vmatprep.subr.mxu0 0.0
      %5906 = vmatpush1.msra.mxu0 0.0
      %5907 = vmatprep.subr.mxu0 0.0
      %5908 = vmatpush1.msra.mxu0 0.0
      %5909 = vmatprep.subr.mxu0 0.0
      %5910 = vmatpush1.msra.mxu0 0.0
      %5911 = vmatprep.subr.mxu0 0.0
      %5912 = vmatpush1.msra.mxu0 0.0
      %5913 = vmatprep.subr.mxu0 0.0
      %5914 = vmatpush1.msra.mxu0 0.0
      %5915 = vmatprep.subr.mxu0 0.0
      %5916 = vmatpush1.msra.mxu0 0.0
      %5917 = vmatprep.subr.mxu0 0.0
      %5918 = vmatpush1.msra.mxu0 0.0
      %5919 = vmatprep.subr.mxu0 0.0
      %5920 = vmatpush1.msra.mxu0 0.0
      %5921 = vmatprep.subr.mxu0 0.0
      %5922 = vmatpush1.msra.mxu0 0.0
      %5923 = vmatprep.subr.mxu0 0.0
      %5924 = vmatpush1.msra.mxu0 0.0
      %5925 = vmatprep.subr.mxu0 0.0
      %5926 = vmatpush1.msra.mxu0 0.0
      %5927 = vmatprep.subr.mxu0 0.0
      %5928 = vmatpush1.msra.mxu0 0.0
      %5929 = vmatprep.subr.mxu0 0.0
      %5930 = vmatpush1.msra.mxu0 0.0
      %5931 = vmatprep.subr.mxu0 0.0
      %5932 = vmatpush1.msra.mxu0 0.0
      %5933 = vmatprep.subr.mxu0 0.0
      %5934 = vmatpush1.msra.mxu0 0.0
      %5935 = vmatprep.subr.mxu0 0.0
      %5936 = vmatpush1.msra.mxu0 0.0
      %5937 = vmatprep.subr.mxu0 0.0
      %5938 = vmatpush1.msra.mxu0 0.0
      %5939 = vmatprep.subr.mxu0 0.0
      %5940 = vmatpush1.msra.mxu0 0.0
      %5941 = vmatprep.subr.mxu0 0.0
      %5942 = vmatpush1.msra.mxu0 0.0
      %5943 = vmatprep.subr.mxu0 0.0
      %5944 = vmatpush1.msra.mxu0 0.0
      %5945 = vmatprep.subr.mxu0 0.0
      %5946 = vmatpush1.msra.mxu0 0.0
      %5947 = vmatprep.subr.mxu0 0.0
      %5948 = vmatpush1.msra.mxu0 0.0
      %5949 = vmatprep.subr.mxu0 0.0
      %5950 = vmatpush1.msra.mxu0 0.0
      %5951 = vmatprep.subr.mxu0 0.0
      %5952 = vmatpush1.msra.mxu0 0.0
      %5953 = vmatprep.subr.mxu0 0.0
      %5954 = vmatpush1.msra.mxu0 0.0
      %5955 = vmatprep.subr.mxu0 0.0
      %5956 = vmatpush1.msra.mxu0 0.0
      %5957 = vmatprep.subr.mxu0 0.0
      %5958 = vmatpush1.msra.mxu0 0.0
      %5959 = vmatprep.subr.mxu0 0.0
      %5960 = vmatpush1.msra.mxu0 0.0
      %5961 = vmatprep.subr.mxu0 0.0
      %5962 = vmatpush1.msra.mxu0 0.0
      %5963 = vmatprep.subr.mxu0 0.0
      %5964 = vmatpush1.msra.mxu0 0.0
      %5965 = vmatprep.mubr.f32.mxu0 0.0
      %5966 = vmatmul.mubr.f32.gmra.mrb[0].mxu0 %v5893
      %v5967 = vpop.f32.mrb[0].mxu0
      %v5968 = vadd.f32 0.0, %v5967
      %v5969 = vpop.f32.mrb[0].mxu0
      %v5970 = vadd.f32 0.0, %v5969
      %5971 = vdwg.mxu0
      %5972 = vmatprep.subr.mxu0 0.0
      %5973 = vmatpush1.msra.mxu0 %v5899
      %5974 = vmatprep.subr.mxu0 0.0
      %5975 = vmatpush1.msra.mxu0 0.0
      %5976 = vmatprep.subr.mxu0 0.0
      %5977 = vmatpush1.msra.mxu0 0.0
      %5978 = vmatprep.subr.mxu0 0.0
      %5979 = vmatpush1.msra.mxu0 0.0
      %5980 = vmatprep.subr.mxu0 0.0
      %5981 = vmatpush1.msra.mxu0 0.0
      %5982 = vmatprep.subr.mxu0 0.0
      %5983 = vmatpush1.msra.mxu0 0.0
      %5984 = vmatprep.subr.mxu0 0.0
      %5985 = vmatpush1.msra.mxu0 0.0
      %5986 = vmatprep.subr.mxu0 0.0
      %5987 = vmatpush1.msra.mxu0 0.0
      %5988 = vmatprep.subr.mxu0 0.0
      %5989 = vmatpush1.msra.mxu0 0.0
      %5990 = vmatprep.subr.mxu0 0.0
      %5991 = vmatpush1.msra.mxu0 0.0
      %5992 = vmatprep.subr.mxu0 0.0
      %5993 = vmatpush1.msra.mxu0 0.0
      %5994 = vmatprep.subr.mxu0 0.0
      %5995 = vmatpush1.msra.mxu0 0.0
      %5996 = vmatprep.subr.mxu0 0.0
      %5997 = vmatpush1.msra.mxu0 0.0
      %5998 = vmatprep.subr.mxu0 0.0
      %5999 = vmatpush1.msra.mxu0 0.0
      %6000 = vmatprep.subr.mxu0 0.0
      %6001 = vmatpush1.msra.mxu0 0.0
      %6002 = vmatprep.subr.mxu0 0.0
      %6003 = vmatpush1.msra.mxu0 0.0
      %6004 = vmatprep.subr.mxu0 0.0
      %6005 = vmatpush1.msra.mxu0 0.0
      %6006 = vmatprep.subr.mxu0 0.0
      %6007 = vmatpush1.msra.mxu0 0.0
      %6008 = vmatprep.subr.mxu0 0.0
      %6009 = vmatpush1.msra.mxu0 0.0
      %6010 = vmatprep.subr.mxu0 0.0
      %6011 = vmatpush1.msra.mxu0 0.0
      %6012 = vmatprep.subr.mxu0 0.0
      %6013 = vmatpush1.msra.mxu0 0.0
      %6014 = vmatprep.subr.mxu0 0.0
      %6015 = vmatpush1.msra.mxu0 0.0
      %6016 = vmatprep.subr.mxu0 0.0
      %6017 = vmatpush1.msra.mxu0 0.0
      %6018 = vmatprep.subr.mxu0 0.0
      %6019 = vmatpush1.msra.mxu0 0.0
      %6020 = vmatprep.subr.mxu0 0.0
      %6021 = vmatpush1.msra.mxu0 0.0
      %6022 = vmatprep.subr.mxu0 0.0
      %6023 = vmatpush1.msra.mxu0 0.0
      %6024 = vmatprep.subr.mxu0 0.0
      %6025 = vmatpush1.msra.mxu0 0.0
      %6026 = vmatprep.subr.mxu0 0.0
      %6027 = vmatpush1.msra.mxu0 0.0
      %6028 = vmatprep.subr.mxu0 0.0
      %6029 = vmatpush1.msra.mxu0 0.0
      %6030 = vmatprep.subr.mxu0 0.0
      %6031 = vmatpush1.msra.mxu0 0.0
      %6032 = vmatprep.subr.mxu0 0.0
      %6033 = vmatpush1.msra.mxu0 0.0
      %6034 = vmatprep.subr.mxu0 0.0
      %6035 = vmatpush1.msra.mxu0 0.0
      %6036 = vmatprep.mubr.f32.mxu0 0.0
      %6037 = vmatmul.mubr.f32.gmra.mrb[0].mxu0 %v5893
      %v6038 = vpop.f32.mrb[0].mxu0
      %v6039 = vadd.f32 0.0, %v6038
      %v6040 = vpop.f32.mrb[0].mxu0
      %6041 = vdwg.mxu0
      %v6043 = vsel %vm441, %v5878, 0
      %v6045 = vsel %vm445, %v5875, 0
      %v6047 = vsel %vm445, %v5876, 0
      %v6049 = vsel %vm445, %v5877, 0
      %6051 = vmatprep.subr.mxu0 %v6047
      %6052 = vmatpush1.msra.mxu0 %v6045
      %6053 = vmatprep.subr.mxu0 0.0
      %6054 = vmatpush1.msra.mxu0 0.0
      %6055 = vmatprep.subr.mxu0 0.0
      %6056 = vmatpush1.msra.mxu0 0.0
      %6057 = vmatprep.subr.mxu0 0.0
      %6058 = vmatpush1.msra.mxu0 0.0
      %6059 = vmatprep.subr.mxu0 0.0
      %6060 = vmatpush1.msra.mxu0 0.0
      %6061 = vmatprep.subr.mxu0 0.0
      %6062 = vmatpush1.msra.mxu0 0.0
      %6063 = vmatprep.subr.mxu0 0.0
      %6064 = vmatpush1.msra.mxu0 0.0
      %6065 = vmatprep.subr.mxu0 0.0
      %6066 = vmatpush1.msra.mxu0 0.0
      %6067 = vmatprep.subr.mxu0 0.0
      %6068 = vmatpush1.msra.mxu0 0.0
      %6069 = vmatprep.subr.mxu0 0.0
      %6070 = vmatpush1.msra.mxu0 0.0
      %6071 = vmatprep.subr.mxu0 0.0
      %6072 = vmatpush1.msra.mxu0 0.0
      %6073 = vmatprep.subr.mxu0 0.0
      %6074 = vmatpush1.msra.mxu0 0.0
      %6075 = vmatprep.subr.mxu0 0.0
      %6076 = vmatpush1.msra.mxu0 0.0
      %6077 = vmatprep.subr.mxu0 0.0
      %6078 = vmatpush1.msra.mxu0 0.0
      %6079 = vmatprep.subr.mxu0 0.0
      %6080 = vmatpush1.msra.mxu0 0.0
      %6081 = vmatprep.subr.mxu0 0.0
      %6082 = vmatpush1.msra.mxu0 0.0
      %6083 = vmatprep.subr.mxu0 0.0
      %6084 = vmatpush1.msra.mxu0 0.0
      %6085 = vmatprep.subr.mxu0 0.0
      %6086 = vmatpush1.msra.mxu0 0.0
      %6087 = vmatprep.subr.mxu0 0.0
      %6088 = vmatpush1.msra.mxu0 0.0
      %6089 = vmatprep.subr.mxu0 0.0
      %6090 = vmatpush1.msra.mxu0 0.0
      %6091 = vmatprep.subr.mxu0 0.0
      %6092 = vmatpush1.msra.mxu0 0.0
      %6093 = vmatprep.subr.mxu0 0.0
      %6094 = vmatpush1.msra.mxu0 0.0
      %6095 = vmatprep.subr.mxu0 0.0
      %6096 = vmatpush1.msra.mxu0 0.0
      %6097 = vmatprep.subr.mxu0 0.0
      %6098 = vmatpush1.msra.mxu0 0.0
      %6099 = vmatprep.subr.mxu0 0.0
      %6100 = vmatpush1.msra.mxu0 0.0
      %6101 = vmatprep.subr.mxu0 0.0
      %6102 = vmatpush1.msra.mxu0 0.0
      %6103 = vmatprep.subr.mxu0 0.0
      %6104 = vmatpush1.msra.mxu0 0.0
      %6105 = vmatprep.subr.mxu0 0.0
      %6106 = vmatpush1.msra.mxu0 0.0
      %6107 = vmatprep.subr.mxu0 0.0
      %6108 = vmatpush1.msra.mxu0 0.0
      %6109 = vmatprep.subr.mxu0 0.0
      %6110 = vmatpush1.msra.mxu0 0.0
      %6111 = vmatprep.subr.mxu0 0.0
      %6112 = vmatpush1.msra.mxu0 0.0
      %6113 = vmatprep.subr.mxu0 0.0
      %6114 = vmatpush1.msra.mxu0 0.0
      %6115 = vmatprep.mubr.f32.mxu0 0.0
      %6116 = vmatmul.mubr.f32.gmra.mrb[0].mxu0 %v6043
      %v6117 = vpop.f32.mrb[0].mxu0
      %v6118 = vadd.f32 %v5968, %v6117
      %v6119 = vpop.f32.mrb[0].mxu0
      %v6120 = vadd.f32 %v5970, %v6119
      %6121 = vdwg.mxu0
      %6122 = vmatprep.subr.mxu0 0.0
      %6123 = vmatpush1.msra.mxu0 %v6049
      %6124 = vmatprep.subr.mxu0 0.0
      %6125 = vmatpush1.msra.mxu0 0.0
      %6126 = vmatprep.subr.mxu0 0.0
      %6127 = vmatpush1.msra.mxu0 0.0
      %6128 = vmatprep.subr.mxu0 0.0
      %6129 = vmatpush1.msra.mxu0 0.0
      %6130 = vmatprep.subr.mxu0 0.0
      %6131 = vmatpush1.msra.mxu0 0.0
      %6132 = vmatprep.subr.mxu0 0.0
      %6133 = vmatpush1.msra.mxu0 0.0
      %6134 = vmatprep.subr.mxu0 0.0
      %6135 = vmatpush1.msra.mxu0 0.0
      %6136 = vmatprep.subr.mxu0 0.0
      %6137 = vmatpush1.msra.mxu0 0.0
      %6138 = vmatprep.subr.mxu0 0.0
      %6139 = vmatpush1.msra.mxu0 0.0
      %6140 = vmatprep.subr.mxu0 0.0
      %6141 = vmatpush1.msra.mxu0 0.0
      %6142 = vmatprep.subr.mxu0 0.0
      %6143 = vmatpush1.msra.mxu0 0.0
      %6144 = vmatprep.subr.mxu0 0.0
      %6145 = vmatpush1.msra.mxu0 0.0
      %6146 = vmatprep.subr.mxu0 0.0
      %6147 = vmatpush1.msra.mxu0 0.0
      %6148 = vmatprep.subr.mxu0 0.0
      %6149 = vmatpush1.msra.mxu0 0.0
      %6150 = vmatprep.subr.mxu0 0.0
      %6151 = vmatpush1.msra.mxu0 0.0
      %6152 = vmatprep.subr.mxu0 0.0
      %6153 = vmatpush1.msra.mxu0 0.0
      %6154 = vmatprep.subr.mxu0 0.0
      %6155 = vmatpush1.msra.mxu0 0.0
      %6156 = vmatprep.subr.mxu0 0.0
      %6157 = vmatpush1.msra.mxu0 0.0
      %6158 = vmatprep.subr.mxu0 0.0
      %6159 = vmatpush1.msra.mxu0 0.0
      %6160 = vmatprep.subr.mxu0 0.0
      %6161 = vmatpush1.msra.mxu0 0.0
      %6162 = vmatprep.subr.mxu0 0.0
      %6163 = vmatpush1.msra.mxu0 0.0
      %6164 = vmatprep.subr.mxu0 0.0
      %6165 = vmatpush1.msra.mxu0 0.0
      %6166 = vmatprep.subr.mxu0 0.0
      %6167 = vmatpush1.msra.mxu0 0.0
      %6168 = vmatprep.subr.mxu0 0.0
      %6169 = vmatpush1.msra.mxu0 0.0
      %6170 = vmatprep.subr.mxu0 0.0
      %6171 = vmatpush1.msra.mxu0 0.0
      %6172 = vmatprep.subr.mxu0 0.0
      %6173 = vmatpush1.msra.mxu0 0.0
      %6174 = vmatprep.subr.mxu0 0.0
      %6175 = vmatpush1.msra.mxu0 0.0
      %6176 = vmatprep.subr.mxu0 0.0
      %6177 = vmatpush1.msra.mxu0 0.0
      %6178 = vmatprep.subr.mxu0 0.0
      %6179 = vmatpush1.msra.mxu0 0.0
      %6180 = vmatprep.subr.mxu0 0.0
      %6181 = vmatpush1.msra.mxu0 0.0
      %6182 = vmatprep.subr.mxu0 0.0
      %6183 = vmatpush1.msra.mxu0 0.0
      %6184 = vmatprep.subr.mxu0 0.0
      %6185 = vmatpush1.msra.mxu0 0.0
      %6186 = vmatprep.mubr.f32.mxu0 0.0
      %6187 = vmatmul.mubr.f32.gmra.mrb[0].mxu0 %v6043
      %v6188 = vpop.f32.mrb[0].mxu0
      %v6189 = vadd.f32 %v6039, %v6188
      %v6190 = vpop.f32.mrb[0].mxu0
      %6191 = vdwg.mxu0
      %s6192 = scalar_lea.vmem %s403, 8
      %v6193 = vld [vmem:[%s6192] sm:$0xf]
      %6194 = vrot.lane.b32.xlu0 %v5875, 126
      %v6195 = vpop.permute.xlu0 %6194
      %6196 = vrot.lane.b32.xlu0 %v5876, 126
      %v6197 = vpop.permute.xlu0 %6196
      %6198 = vrot.lane.b32.xlu0 %v5877, 126
      %v6199 = vpop.permute.xlu0 %6198
      %vm6200 = vcmask 1031168
      %v6201 = vsel %vm6200, %v6195, %v6197
      %v6202 = vsel %vm6200, %v6197, %v6199
      %v6204 = vsel %vm441, %v6193, 0
      %v6206 = vsel %vm445, %v6201, 0
      %v6208 = vsel %vm445, %v6202, 0
      %v6210 = vsel %vm445, %v6199, 0
      %6212 = vmatprep.subr.mxu0 %v6208
      %6213 = vmatpush1.msra.mxu0 %v6206
      %6214 = vmatprep.subr.mxu0 0.0
      %6215 = vmatpush1.msra.mxu0 0.0
      %6216 = vmatprep.subr.mxu0 0.0
      %6217 = vmatpush1.msra.mxu0 0.0
      %6218 = vmatprep.subr.mxu0 0.0
      %6219 = vmatpush1.msra.mxu0 0.0
      %6220 = vmatprep.subr.mxu0 0.0
      %6221 = vmatpush1.msra.mxu0 0.0
      %6222 = vmatprep.subr.mxu0 0.0
      %6223 = vmatpush1.msra.mxu0 0.0
      %6224 = vmatprep.subr.mxu0 0.0
      %6225 = vmatpush1.msra.mxu0 0.0
      %6226 = vmatprep.subr.mxu0 0.0
      %6227 = vmatpush1.msra.mxu0 0.0
      %6228 = vmatprep.subr.mxu0 0.0
      %6229 = vmatpush1.msra.mxu0 0.0
      %6230 = vmatprep.subr.mxu0 0.0
      %6231 = vmatpush1.msra.mxu0 0.0
      %6232 = vmatprep.subr.mxu0 0.0
      %6233 = vmatpush1.msra.mxu0 0.0
      %6234 = vmatprep.subr.mxu0 0.0
      %6235 = vmatpush1.msra.mxu0 0.0
      %6236 = vmatprep.subr.mxu0 0.0
      %6237 = vmatpush1.msra.mxu0 0.0
      %6238 = vmatprep.subr.mxu0 0.0
      %6239 = vmatpush1.msra.mxu0 0.0
      %6240 = vmatprep.subr.mxu0 0.0
      %6241 = vmatpush1.msra.mxu0 0.0
      %6242 = vmatprep.subr.mxu0 0.0
      %6243 = vmatpush1.msra.mxu0 0.0
      %6244 = vmatprep.subr.mxu0 0.0
      %6245 = vmatpush1.msra.mxu0 0.0
      %6246 = vmatprep.subr.mxu0 0.0
      %6247 = vmatpush1.msra.mxu0 0.0
      %6248 = vmatprep.subr.mxu0 0.0
      %6249 = vmatpush1.msra.mxu0 0.0
      %6250 = vmatprep.subr.mxu0 0.0
      %6251 = vmatpush1.msra.mxu0 0.0
      %6252 = vmatprep.subr.mxu0 0.0
      %6253 = vmatpush1.msra.mxu0 0.0
      %6254 = vmatprep.subr.mxu0 0.0
      %6255 = vmatpush1.msra.mxu0 0.0
      %6256 = vmatprep.subr.mxu0 0.0
      %6257 = vmatpush1.msra.mxu0 0.0
      %6258 = vmatprep.subr.mxu0 0.0
      %6259 = vmatpush1.msra.mxu0 0.0
      %6260 = vmatprep.subr.mxu0 0.0
      %6261 = vmatpush1.msra.mxu0 0.0
      %6262 = vmatprep.subr.mxu0 0.0
      %6263 = vmatpush1.msra.mxu0 0.0
      %6264 = vmatprep.subr.mxu0 0.0
      %6265 = vmatpush1.msra.mxu0 0.0
      %6266 = vmatprep.subr.mxu0 0.0
      %6267 = vmatpush1.msra.mxu0 0.0
      %6268 = vmatprep.subr.mxu0 0.0
      %6269 = vmatpush1.msra.mxu0 0.0
      %6270 = vmatprep.subr.mxu0 0.0
      %6271 = vmatpush1.msra.mxu0 0.0
      %6272 = vmatprep.subr.mxu0 0.0
      %6273 = vmatpush1.msra.mxu0 0.0
      %6274 = vmatprep.subr.mxu0 0.0
      %6275 = vmatpush1.msra.mxu0 0.0
      %6276 = vmatprep.mubr.f32.mxu0 0.0
      %6277 = vmatmul.mubr.f32.gmra.mrb[0].mxu0 %v6204
      %v6278 = vpop.f32.mrb[0].mxu0
      %v6279 = vadd.f32 0.0, %v6278
      %v6280 = vpop.f32.mrb[0].mxu0
      %v6281 = vadd.f32 0.0, %v6280
      %6282 = vdwg.mxu0
      %6283 = vmatprep.subr.mxu0 0.0
      %6284 = vmatpush1.msra.mxu0 %v6210
      %6285 = vmatprep.subr.mxu0 0.0
      %6286 = vmatpush1.msra.mxu0 0.0
      %6287 = vmatprep.subr.mxu0 0.0
      %6288 = vmatpush1.msra.mxu0 0.0
      %6289 = vmatprep.subr.mxu0 0.0
      %6290 = vmatpush1.msra.mxu0 0.0
      %6291 = vmatprep.subr.mxu0 0.0
      %6292 = vmatpush1.msra.mxu0 0.0
      %6293 = vmatprep.subr.mxu0 0.0
      %6294 = vmatpush1.msra.mxu0 0.0
      %6295 = vmatprep.subr.mxu0 0.0
      %6296 = vmatpush1.msra.mxu0 0.0
      %6297 = vmatprep.subr.mxu0 0.0
      %6298 = vmatpush1.msra.mxu0 0.0
      %6299 = vmatprep.subr.mxu0 0.0
      %6300 = vmatpush1.msra.mxu0 0.0
      %6301 = vmatprep.subr.mxu0 0.0
      %6302 = vmatpush1.msra.mxu0 0.0
      %6303 = vmatprep.subr.mxu0 0.0
      %6304 = vmatpush1.msra.mxu0 0.0
      %6305 = vmatprep.subr.mxu0 0.0
      %6306 = vmatpush1.msra.mxu0 0.0
      %6307 = vmatprep.subr.mxu0 0.0
      %6308 = vmatpush1.msra.mxu0 0.0
      %6309 = vmatprep.subr.mxu0 0.0
      %6310 = vmatpush1.msra.mxu0 0.0
      %6311 = vmatprep.subr.mxu0 0.0
      %6312 = vmatpush1.msra.mxu0 0.0
      %6313 = vmatprep.subr.mxu0 0.0
      %6314 = vmatpush1.msra.mxu0 0.0
      %6315 = vmatprep.subr.mxu0 0.0
      %6316 = vmatpush1.msra.mxu0 0.0
      %6317 = vmatprep.subr.mxu0 0.0
      %6318 = vmatpush1.msra.mxu0 0.0
      %6319 = vmatprep.subr.mxu0 0.0
      %6320 = vmatpush1.msra.mxu0 0.0
      %6321 = vmatprep.subr.mxu0 0.0
      %6322 = vmatpush1.msra.mxu0 0.0
      %6323 = vmatprep.subr.mxu0 0.0
      %6324 = vmatpush1.msra.mxu0 0.0
      %6325 = vmatprep.subr.mxu0 0.0
      %6326 = vmatpush1.msra.mxu0 0.0
      %6327 = vmatprep.subr.mxu0 0.0
      %6328 = vmatpush1.msra.mxu0 0.0
      %6329 = vmatprep.subr.mxu0 0.0
      %6330 = vmatpush1.msra.mxu0 0.0
      %6331 = vmatprep.subr.mxu0 0.0
      %6332 = vmatpush1.msra.mxu0 0.0
      %6333 = vmatprep.subr.mxu0 0.0
      %6334 = vmatpush1.msra.mxu0 0.0
      %6335 = vmatprep.subr.mxu0 0.0
      %6336 = vmatpush1.msra.mxu0 0.0
      %6337 = vmatprep.subr.mxu0 0.0
      %6338 = vmatpush1.msra.mxu0 0.0
      %6339 = vmatprep.subr.mxu0 0.0
      %6340 = vmatpush1.msra.mxu0 0.0
      %6341 = vmatprep.subr.mxu0 0.0
      %6342 = vmatpush1.msra.mxu0 0.0
      %6343 = vmatprep.subr.mxu0 0.0
      %6344 = vmatpush1.msra.mxu0 0.0
      %6345 = vmatprep.subr.mxu0 0.0
      %6346 = vmatpush1.msra.mxu0 0.0
      %6347 = vmatprep.mubr.f32.mxu0 0.0
      %6348 = vmatmul.mubr.f32.gmra.mrb[0].mxu0 %v6204
      %v6349 = vpop.f32.mrb[0].mxu0
      %v6350 = vadd.f32 0.0, %v6349
      %v6351 = vpop.f32.mrb[0].mxu0
      %6352 = vdwg.mxu0
      %v6353 = vadd.f32 %v6118, %v6279
      %v6354 = vadd.f32 %v6120, %v6281
      %v6355 = vadd.f32 %v6189, %v6350
      %s6356 = scalar_lea.vmem %s403, 12
      %v6357 = vld [vmem:[%s6356] sm:$0xf]
      %6358 = vrot.lane.b32.xlu0 %v5875, 113
      %v6359 = vpop.permute.xlu0 %6358
      %6360 = vrot.lane.b32.xlu0 %v5876, 113
      %v6361 = vpop.permute.xlu0 %6360
      %6362 = vrot.lane.b32.xlu0 %v5877, 113
      %v6363 = vpop.permute.xlu0 %6362
      %v6364 = vsel %vm1406, %v6359, %v6361
      %v6365 = vsel %vm1406, %v6361, %v6363
      %v6367 = vsel %vm441, %v6357, 0
      %v6369 = vsel %vm445, %v6364, 0
      %v6371 = vsel %vm445, %v6365, 0
      %v6373 = vsel %vm445, %v6363, 0
      %6375 = vmatprep.subr.mxu0 %v6371
      %6376 = vmatpush1.msra.mxu0 %v6369
      %6377 = vmatprep.subr.mxu0 0.0
      %6378 = vmatpush1.msra.mxu0 0.0
      %6379 = vmatprep.subr.mxu0 0.0
      %6380 = vmatpush1.msra.mxu0 0.0
      %6381 = vmatprep.subr.mxu0 0.0
      %6382 = vmatpush1.msra.mxu0 0.0
      %6383 = vmatprep.subr.mxu0 0.0
      %6384 = vmatpush1.msra.mxu0 0.0
      %6385 = vmatprep.subr.mxu0 0.0
      %6386 = vmatpush1.msra.mxu0 0.0
      %6387 = vmatprep.subr.mxu0 0.0
      %6388 = vmatpush1.msra.mxu0 0.0
      %6389 = vmatprep.subr.mxu0 0.0
      %6390 = vmatpush1.msra.mxu0 0.0
      %6391 = vmatprep.subr.mxu0 0.0
      %6392 = vmatpush1.msra.mxu0 0.0
      %6393 = vmatprep.subr.mxu0 0.0
      %6394 = vmatpush1.msra.mxu0 0.0
      %6395 = vmatprep.subr.mxu0 0.0
      %6396 = vmatpush1.msra.mxu0 0.0
      %6397 = vmatprep.subr.mxu0 0.0
      %6398 = vmatpush1.msra.mxu0 0.0
      %6399 = vmatprep.subr.mxu0 0.0
      %6400 = vmatpush1.msra.mxu0 0.0
      %6401 = vmatprep.subr.mxu0 0.0
      %6402 = vmatpush1.msra.mxu0 0.0
      %6403 = vmatprep.subr.mxu0 0.0
      %6404 = vmatpush1.msra.mxu0 0.0
      %6405 = vmatprep.subr.mxu0 0.0
      %6406 = vmatpush1.msra.mxu0 0.0
      %6407 = vmatprep.subr.mxu0 0.0
      %6408 = vmatpush1.msra.mxu0 0.0
      %6409 = vmatprep.subr.mxu0 0.0
      %6410 = vmatpush1.msra.mxu0 0.0
      %6411 = vmatprep.subr.mxu0 0.0
      %6412 = vmatpush1.msra.mxu0 0.0
      %6413 = vmatprep.subr.mxu0 0.0
      %6414 = vmatpush1.msra.mxu0 0.0
      %6415 = vmatprep.subr.mxu0 0.0
      %6416 = vmatpush1.msra.mxu0 0.0
      %6417 = vmatprep.subr.mxu0 0.0
      %6418 = vmatpush1.msra.mxu0 0.0
      %6419 = vmatprep.subr.mxu0 0.0
      %6420 = vmatpush1.msra.mxu0 0.0
      %6421 = vmatprep.subr.mxu0 0.0
      %6422 = vmatpush1.msra.mxu0 0.0
      %6423 = vmatprep.subr.mxu0 0.0
      %6424 = vmatpush1.msra.mxu0 0.0
      %6425 = vmatprep.subr.mxu0 0.0
      %6426 = vmatpush1.msra.mxu0 0.0
      %6427 = vmatprep.subr.mxu0 0.0
      %6428 = vmatpush1.msra.mxu0 0.0
      %6429 = vmatprep.subr.mxu0 0.0
      %6430 = vmatpush1.msra.mxu0 0.0
      %6431 = vmatprep.subr.mxu0 0.0
      %6432 = vmatpush1.msra.mxu0 0.0
      %6433 = vmatprep.subr.mxu0 0.0
      %6434 = vmatpush1.msra.mxu0 0.0
      %6435 = vmatprep.subr.mxu0 0.0
      %6436 = vmatpush1.msra.mxu0 0.0
      %6437 = vmatprep.subr.mxu0 0.0
      %6438 = vmatpush1.msra.mxu0 0.0
      %6439 = vmatprep.mubr.f32.mxu0 0.0
      %6440 = vmatmul.mubr.f32.gmra.mrb[0].mxu0 %v6367
      %v6441 = vpop.f32.mrb[0].mxu0
      %v6442 = vadd.f32 0.0, %v6441
      %v6443 = vpop.f32.mrb[0].mxu0
      %v6444 = vadd.f32 0.0, %v6443
      %6445 = vdwg.mxu0
      %6446 = vmatprep.subr.mxu0 0.0
      %6447 = vmatpush1.msra.mxu0 %v6373
      %6448 = vmatprep.subr.mxu0 0.0
      %6449 = vmatpush1.msra.mxu0 0.0
      %6450 = vmatprep.subr.mxu0 0.0
      %6451 = vmatpush1.msra.mxu0 0.0
      %6452 = vmatprep.subr.mxu0 0.0
      %6453 = vmatpush1.msra.mxu0 0.0
      %6454 = vmatprep.subr.mxu0 0.0
      %6455 = vmatpush1.msra.mxu0 0.0
      %6456 = vmatprep.subr.mxu0 0.0
      %6457 = vmatpush1.msra.mxu0 0.0
      %6458 = vmatprep.subr.mxu0 0.0
      %6459 = vmatpush1.msra.mxu0 0.0
      %6460 = vmatprep.subr.mxu0 0.0
      %6461 = vmatpush1.msra.mxu0 0.0
      %6462 = vmatprep.subr.mxu0 0.0
      %6463 = vmatpush1.msra.mxu0 0.0
      %6464 = vmatprep.subr.mxu0 0.0
      %6465 = vmatpush1.msra.mxu0 0.0
      %6466 = vmatprep.subr.mxu0 0.0
      %6467 = vmatpush1.msra.mxu0 0.0
      %6468 = vmatprep.subr.mxu0 0.0
      %6469 = vmatpush1.msra.mxu0 0.0
      %6470 = vmatprep.subr.mxu0 0.0
      %6471 = vmatpush1.msra.mxu0 0.0
      %6472 = vmatprep.subr.mxu0 0.0
      %6473 = vmatpush1.msra.mxu0 0.0
      %6474 = vmatprep.subr.mxu0 0.0
      %6475 = vmatpush1.msra.mxu0 0.0
      %6476 = vmatprep.subr.mxu0 0.0
      %6477 = vmatpush1.msra.mxu0 0.0
      %6478 = vmatprep.subr.mxu0 0.0
      %6479 = vmatpush1.msra.mxu0 0.0
      %6480 = vmatprep.subr.mxu0 0.0
      %6481 = vmatpush1.msra.mxu0 0.0
      %6482 = vmatprep.subr.mxu0 0.0
      %6483 = vmatpush1.msra.mxu0 0.0
      %6484 = vmatprep.subr.mxu0 0.0
      %6485 = vmatpush1.msra.mxu0 0.0
      %6486 = vmatprep.subr.mxu0 0.0
      %6487 = vmatpush1.msra.mxu0 0.0
      %6488 = vmatprep.subr.mxu0 0.0
      %6489 = vmatpush1.msra.mxu0 0.0
      %6490 = vmatprep.subr.mxu0 0.0
      %6491 = vmatpush1.msra.mxu0 0.0
      %6492 = vmatprep.subr.mxu0 0.0
      %6493 = vmatpush1.msra.mxu0 0.0
      %6494 = vmatprep.subr.mxu0 0.0
      %6495 = vmatpush1.msra.mxu0 0.0
      %6496 = vmatprep.subr.mxu0 0.0
      %6497 = vmatpush1.msra.mxu0 0.0
      %6498 = vmatprep.subr.mxu0 0.0
      %6499 = vmatpush1.msra.mxu0 0.0
      %6500 = vmatprep.subr.mxu0 0.0
      %6501 = vmatpush1.msra.mxu0 0.0
      %6502 = vmatprep.subr.mxu0 0.0
      %6503 = vmatpush1.msra.mxu0 0.0
      %6504 = vmatprep.subr.mxu0 0.0
      %6505 = vmatpush1.msra.mxu0 0.0
      %6506 = vmatprep.subr.mxu0 0.0
      %6507 = vmatpush1.msra.mxu0 0.0
      %6508 = vmatprep.subr.mxu0 0.0
      %6509 = vmatpush1.msra.mxu0 0.0
      %6510 = vmatprep.mubr.f32.mxu0 0.0
      %6511 = vmatmul.mubr.f32.gmra.mrb[0].mxu0 %v6367
      %v6512 = vpop.f32.mrb[0].mxu0
      %v6513 = vadd.f32 0.0, %v6512
      %v6514 = vpop.f32.mrb[0].mxu0
      %6515 = vdwg.mxu0
      %v6516 = vadd.f32 %v6353, %v6442
      %v6517 = vadd.f32 %v6354, %v6444
      %v6518 = vadd.f32 %v6355, %v6513
      %s6519 = scalar_lea.vmem %s403, 16
      %v6520 = vld [vmem:[%s6519] sm:$0xf]
      %6521 = vrot.lane.b32.xlu0 %v5875, 112
      %v6522 = vpop.permute.xlu0 %6521
      %6523 = vrot.lane.b32.xlu0 %v5876, 112
      %v6524 = vpop.permute.xlu0 %6523
      %6525 = vrot.lane.b32.xlu0 %v5877, 112
      %v6526 = vpop.permute.xlu0 %6525
      %v6527 = vsel %vm1733, %v6522, %v6524
      %v6528 = vsel %vm1733, %v6524, %v6526
      %v6530 = vsel %vm441, %v6520, 0
      %v6532 = vsel %vm445, %v6527, 0
      %v6534 = vsel %vm445, %v6528, 0
      %v6536 = vsel %vm445, %v6526, 0
      %6538 = vmatprep.subr.mxu0 %v6534
      %6539 = vmatpush1.msra.mxu0 %v6532
      %6540 = vmatprep.subr.mxu0 0.0
      %6541 = vmatpush1.msra.mxu0 0.0
      %6542 = vmatprep.subr.mxu0 0.0
      %6543 = vmatpush1.msra.mxu0 0.0
      %6544 = vmatprep.subr.mxu0 0.0
      %6545 = vmatpush1.msra.mxu0 0.0
      %6546 = vmatprep.subr.mxu0 0.0
      %6547 = vmatpush1.msra.mxu0 0.0
      %6548 = vmatprep.subr.mxu0 0.0
      %6549 = vmatpush1.msra.mxu0 0.0
      %6550 = vmatprep.subr.mxu0 0.0
      %6551 = vmatpush1.msra.mxu0 0.0
      %6552 = vmatprep.subr.mxu0 0.0
      %6553 = vmatpush1.msra.mxu0 0.0
      %6554 = vmatprep.subr.mxu0 0.0
      %6555 = vmatpush1.msra.mxu0 0.0
      %6556 = vmatprep.subr.mxu0 0.0
      %6557 = vmatpush1.msra.mxu0 0.0
      %6558 = vmatprep.subr.mxu0 0.0
      %6559 = vmatpush1.msra.mxu0 0.0
      %6560 = vmatprep.subr.mxu0 0.0
      %6561 = vmatpush1.msra.mxu0 0.0
      %6562 = vmatprep.subr.mxu0 0.0
      %6563 = vmatpush1.msra.mxu0 0.0
      %6564 = vmatprep.subr.mxu0 0.0
      %6565 = vmatpush1.msra.mxu0 0.0
      %6566 = vmatprep.subr.mxu0 0.0
      %6567 = vmatpush1.msra.mxu0 0.0
      %6568 = vmatprep.subr.mxu0 0.0
      %6569 = vmatpush1.msra.mxu0 0.0
      %6570 = vmatprep.subr.mxu0 0.0
      %6571 = vmatpush1.msra.mxu0 0.0
      %6572 = vmatprep.subr.mxu0 0.0
      %6573 = vmatpush1.msra.mxu0 0.0
      %6574 = vmatprep.subr.mxu0 0.0
      %6575 = vmatpush1.msra.mxu0 0.0
      %6576 = vmatprep.subr.mxu0 0.0
      %6577 = vmatpush1.msra.mxu0 0.0
      %6578 = vmatprep.subr.mxu0 0.0
      %6579 = vmatpush1.msra.mxu0 0.0
      %6580 = vmatprep.subr.mxu0 0.0
      %6581 = vmatpush1.msra.mxu0 0.0
      %6582 = vmatprep.subr.mxu0 0.0
      %6583 = vmatpush1.msra.mxu0 0.0
      %6584 = vmatprep.subr.mxu0 0.0
      %6585 = vmatpush1.msra.mxu0 0.0
      %6586 = vmatprep.subr.mxu0 0.0
      %6587 = vmatpush1.msra.mxu0 0.0
      %6588 = vmatprep.subr.mxu0 0.0
      %6589 = vmatpush1.msra.mxu0 0.0
      %6590 = vmatprep.subr.mxu0 0.0
      %6591 = vmatpush1.msra.mxu0 0.0
      %6592 = vmatprep.subr.mxu0 0.0
      %6593 = vmatpush1.msra.mxu0 0.0
      %6594 = vmatprep.subr.mxu0 0.0
      %6595 = vmatpush1.msra.mxu0 0.0
      %6596 = vmatprep.subr.mxu0 0.0
      %6597 = vmatpush1.msra.mxu0 0.0
      %6598 = vmatprep.subr.mxu0 0.0
      %6599 = vmatpush1.msra.mxu0 0.0
      %6600 = vmatprep.subr.mxu0 0.0
      %6601 = vmatpush1.msra.mxu0 0.0
      %6602 = vmatprep.mubr.f32.mxu0 0.0
      %6603 = vmatmul.mubr.f32.gmra.mrb[0].mxu0 %v6530
      %v6604 = vpop.f32.mrb[0].mxu0
      %v6605 = vadd.f32 0.0, %v6604
      %v6606 = vpop.f32.mrb[0].mxu0
      %v6607 = vadd.f32 0.0, %v6606
      %6608 = vdwg.mxu0
      %6609 = vmatprep.subr.mxu0 0.0
      %6610 = vmatpush1.msra.mxu0 %v6536
      %6611 = vmatprep.subr.mxu0 0.0
      %6612 = vmatpush1.msra.mxu0 0.0
      %6613 = vmatprep.subr.mxu0 0.0
      %6614 = vmatpush1.msra.mxu0 0.0
      %6615 = vmatprep.subr.mxu0 0.0
      %6616 = vmatpush1.msra.mxu0 0.0
      %6617 = vmatprep.subr.mxu0 0.0
      %6618 = vmatpush1.msra.mxu0 0.0
      %6619 = vmatprep.subr.mxu0 0.0
      %6620 = vmatpush1.msra.mxu0 0.0
      %6621 = vmatprep.subr.mxu0 0.0
      %6622 = vmatpush1.msra.mxu0 0.0
      %6623 = vmatprep.subr.mxu0 0.0
      %6624 = vmatpush1.msra.mxu0 0.0
      %6625 = vmatprep.subr.mxu0 0.0
      %6626 = vmatpush1.msra.mxu0 0.0
      %6627 = vmatprep.subr.mxu0 0.0
      %6628 = vmatpush1.msra.mxu0 0.0
      %6629 = vmatprep.subr.mxu0 0.0
      %6630 = vmatpush1.msra.mxu0 0.0
      %6631 = vmatprep.subr.mxu0 0.0
      %6632 = vmatpush1.msra.mxu0 0.0
      %6633 = vmatprep.subr.mxu0 0.0
      %6634 = vmatpush1.msra.mxu0 0.0
      %6635 = vmatprep.subr.mxu0 0.0
      %6636 = vmatpush1.msra.mxu0 0.0
      %6637 = vmatprep.subr.mxu0 0.0
      %6638 = vmatpush1.msra.mxu0 0.0
      %6639 = vmatprep.subr.mxu0 0.0
      %6640 = vmatpush1.msra.mxu0 0.0
      %6641 = vmatprep.subr.mxu0 0.0
      %6642 = vmatpush1.msra.mxu0 0.0
      %6643 = vmatprep.subr.mxu0 0.0
      %6644 = vmatpush1.msra.mxu0 0.0
      %6645 = vmatprep.subr.mxu0 0.0
      %6646 = vmatpush1.msra.mxu0 0.0
      %6647 = vmatprep.subr.mxu0 0.0
      %6648 = vmatpush1.msra.mxu0 0.0
      %6649 = vmatprep.subr.mxu0 0.0
      %6650 = vmatpush1.msra.mxu0 0.0
      %6651 = vmatprep.subr.mxu0 0.0
      %6652 = vmatpush1.msra.mxu0 0.0
      %6653 = vmatprep.subr.mxu0 0.0
      %6654 = vmatpush1.msra.mxu0 0.0
      %6655 = vmatprep.subr.mxu0 0.0
      %6656 = vmatpush1.msra.mxu0 0.0
      %6657 = vmatprep.subr.mxu0 0.0
      %6658 = vmatpush1.msra.mxu0 0.0
      %6659 = vmatprep.subr.mxu0 0.0
      %6660 = vmatpush1.msra.mxu0 0.0
      %6661 = vmatprep.subr.mxu0 0.0
      %6662 = vmatpush1.msra.mxu0 0.0
      %6663 = vmatprep.subr.mxu0 0.0
      %6664 = vmatpush1.msra.mxu0 0.0
      %6665 = vmatprep.subr.mxu0 0.0
      %6666 = vmatpush1.msra.mxu0 0.0
      %6667 = vmatprep.subr.mxu0 0.0
      %6668 = vmatpush1.msra.mxu0 0.0
      %6669 = vmatprep.subr.mxu0 0.0
      %6670 = vmatpush1.msra.mxu0 0.0
      %6671 = vmatprep.subr.mxu0 0.0
      %6672 = vmatpush1.msra.mxu0 0.0
      %6673 = vmatprep.mubr.f32.mxu0 0.0
      %6674 = vmatmul.mubr.f32.gmra.mrb[0].mxu0 %v6530
      %v6675 = vpop.f32.mrb[0].mxu0
      %v6676 = vadd.f32 0.0, %v6675
      %v6677 = vpop.f32.mrb[0].mxu0
      %6678 = vdwg.mxu0
      %v6679 = vadd.f32 %v6516, %v6605
      %v6680 = vadd.f32 %v6517, %v6607
      %v6681 = vadd.f32 %v6518, %v6676
      %s6682 = scalar_lea.vmem %s403, 20
      %v6683 = vld [vmem:[%s6682] sm:$0xf]
      %6684 = vrot.lane.b32.xlu0 %v5875, 111
      %v6685 = vpop.permute.xlu0 %6684
      %6686 = vrot.lane.b32.xlu0 %v5876, 111
      %v6687 = vpop.permute.xlu0 %6686
      %6688 = vrot.lane.b32.xlu0 %v5877, 111
      %v6689 = vpop.permute.xlu0 %6688
      %vm6690 = vcmask 908288
      %v6691 = vsel %vm6690, %v6685, %v6687
      %v6692 = vsel %vm6690, %v6687, %v6689
      %v6694 = vsel %vm441, %v6683, 0
      %v6696 = vsel %vm445, %v6691, 0
      %v6698 = vsel %vm445, %v6692, 0
      %v6700 = vsel %vm445, %v6689, 0
      %6702 = vmatprep.subr.mxu0 %v6698
      %6703 = vmatpush1.msra.mxu0 %v6696
      %6704 = vmatprep.subr.mxu0 0.0
      %6705 = vmatpush1.msra.mxu0 0.0
      %6706 = vmatprep.subr.mxu0 0.0
      %6707 = vmatpush1.msra.mxu0 0.0
      %6708 = vmatprep.subr.mxu0 0.0
      %6709 = vmatpush1.msra.mxu0 0.0
      %6710 = vmatprep.subr.mxu0 0.0
      %6711 = vmatpush1.msra.mxu0 0.0
      %6712 = vmatprep.subr.mxu0 0.0
      %6713 = vmatpush1.msra.mxu0 0.0
      %6714 = vmatprep.subr.mxu0 0.0
      %6715 = vmatpush1.msra.mxu0 0.0
      %6716 = vmatprep.subr.mxu0 0.0
      %6717 = vmatpush1.msra.mxu0 0.0
      %6718 = vmatprep.subr.mxu0 0.0
      %6719 = vmatpush1.msra.mxu0 0.0
      %6720 = vmatprep.subr.mxu0 0.0
      %6721 = vmatpush1.msra.mxu0 0.0
      %6722 = vmatprep.subr.mxu0 0.0
      %6723 = vmatpush1.msra.mxu0 0.0
      %6724 = vmatprep.subr.mxu0 0.0
      %6725 = vmatpush1.msra.mxu0 0.0
      %6726 = vmatprep.subr.mxu0 0.0
      %6727 = vmatpush1.msra.mxu0 0.0
      %6728 = vmatprep.subr.mxu0 0.0
      %6729 = vmatpush1.msra.mxu0 0.0
      %6730 = vmatprep.subr.mxu0 0.0
      %6731 = vmatpush1.msra.mxu0 0.0
      %6732 = vmatprep.subr.mxu0 0.0
      %6733 = vmatpush1.msra.mxu0 0.0
      %6734 = vmatprep.subr.mxu0 0.0
      %6735 = vmatpush1.msra.mxu0 0.0
      %6736 = vmatprep.subr.mxu0 0.0
      %6737 = vmatpush1.msra.mxu0 0.0
      %6738 = vmatprep.subr.mxu0 0.0
      %6739 = vmatpush1.msra.mxu0 0.0
      %6740 = vmatprep.subr.mxu0 0.0
      %6741 = vmatpush1.msra.mxu0 0.0
      %6742 = vmatprep.subr.mxu0 0.0
      %6743 = vmatpush1.msra.mxu0 0.0
      %6744 = vmatprep.subr.mxu0 0.0
      %6745 = vmatpush1.msra.mxu0 0.0
      %6746 = vmatprep.subr.mxu0 0.0
      %6747 = vmatpush1.msra.mxu0 0.0
      %6748 = vmatprep.subr.mxu0 0.0
      %6749 = vmatpush1.msra.mxu0 0.0
      %6750 = vmatprep.subr.mxu0 0.0
      %6751 = vmatpush1.msra.mxu0 0.0
      %6752 = vmatprep.subr.mxu0 0.0
      %6753 = vmatpush1.msra.mxu0 0.0
      %6754 = vmatprep.subr.mxu0 0.0
      %6755 = vmatpush1.msra.mxu0 0.0
      %6756 = vmatprep.subr.mxu0 0.0
      %6757 = vmatpush1.msra.mxu0 0.0
      %6758 = vmatprep.subr.mxu0 0.0
      %6759 = vmatpush1.msra.mxu0 0.0
      %6760 = vmatprep.subr.mxu0 0.0
      %6761 = vmatpush1.msra.mxu0 0.0
      %6762 = vmatprep.subr.mxu0 0.0
      %6763 = vmatpush1.msra.mxu0 0.0
      %6764 = vmatprep.subr.mxu0 0.0
      %6765 = vmatpush1.msra.mxu0 0.0
      %6766 = vmatprep.mubr.f32.mxu0 0.0
      %6767 = vmatmul.mubr.f32.gmra.mrb[0].mxu0 %v6694
      %v6768 = vpop.f32.mrb[0].mxu0
      %v6769 = vadd.f32 0.0, %v6768
      %v6770 = vpop.f32.mrb[0].mxu0
      %v6771 = vadd.f32 0.0, %v6770
      %6772 = vdwg.mxu0
      %6773 = vmatprep.subr.mxu0 0.0
      %6774 = vmatpush1.msra.mxu0 %v6700
      %6775 = vmatprep.subr.mxu0 0.0
      %6776 = vmatpush1.msra.mxu0 0.0
      %6777 = vmatprep.subr.mxu0 0.0
      %6778 = vmatpush1.msra.mxu0 0.0
      %6779 = vmatprep.subr.mxu0 0.0
      %6780 = vmatpush1.msra.mxu0 0.0
      %6781 = vmatprep.subr.mxu0 0.0
      %6782 = vmatpush1.msra.mxu0 0.0
      %6783 = vmatprep.subr.mxu0 0.0
      %6784 = vmatpush1.msra.mxu0 0.0
      %6785 = vmatprep.subr.mxu0 0.0
      %6786 = vmatpush1.msra.mxu0 0.0
      %6787 = vmatprep.subr.mxu0 0.0
      %6788 = vmatpush1.msra.mxu0 0.0
      %6789 = vmatprep.subr.mxu0 0.0
      %6790 = vmatpush1.msra.mxu0 0.0
      %6791 = vmatprep.subr.mxu0 0.0
      %6792 = vmatpush1.msra.mxu0 0.0
      %6793 = vmatprep.subr.mxu0 0.0
      %6794 = vmatpush1.msra.mxu0 0.0
      %6795 = vmatprep.subr.mxu0 0.0
      %6796 = vmatpush1.msra.mxu0 0.0
      %6797 = vmatprep.subr.mxu0 0.0
      %6798 = vmatpush1.msra.mxu0 0.0
      %6799 = vmatprep.subr.mxu0 0.0
      %6800 = vmatpush1.msra.mxu0 0.0
      %6801 = vmatprep.subr.mxu0 0.0
      %6802 = vmatpush1.msra.mxu0 0.0
      %6803 = vmatprep.subr.mxu0 0.0
      %6804 = vmatpush1.msra.mxu0 0.0
      %6805 = vmatprep.subr.mxu0 0.0
      %6806 = vmatpush1.msra.mxu0 0.0
      %6807 = vmatprep.subr.mxu0 0.0
      %6808 = vmatpush1.msra.mxu0 0.0
      %6809 = vmatprep.subr.mxu0 0.0
      %6810 = vmatpush1.msra.mxu0 0.0
      %6811 = vmatprep.subr.mxu0 0.0
      %6812 = vmatpush1.msra.mxu0 0.0
      %6813 = vmatprep.subr.mxu0 0.0
      %6814 = vmatpush1.msra.mxu0 0.0
      %6815 = vmatprep.subr.mxu0 0.0
      %6816 = vmatpush1.msra.mxu0 0.0
      %6817 = vmatprep.subr.mxu0 0.0
      %6818 = vmatpush1.msra.mxu0 0.0
      %6819 = vmatprep.subr.mxu0 0.0
      %6820 = vmatpush1.msra.mxu0 0.0
      %6821 = vmatprep.subr.mxu0 0.0
      %6822 = vmatpush1.msra.mxu0 0.0
      %6823 = vmatprep.subr.mxu0 0.0
      %6824 = vmatpush1.msra.mxu0 0.0
      %6825 = vmatprep.subr.mxu0 0.0
      %6826 = vmatpush1.msra.mxu0 0.0
      %6827 = vmatprep.subr.mxu0 0.0
      %6828 = vmatpush1.msra.mxu0 0.0
      %6829 = vmatprep.subr.mxu0 0.0
      %6830 = vmatpush1.msra.mxu0 0.0
      %6831 = vmatprep.subr.mxu0 0.0
      %6832 = vmatpush1.msra.mxu0 0.0
      %6833 = vmatprep.subr.mxu0 0.0
      %6834 = vmatpush1.msra.mxu0 0.0
      %6835 = vmatprep.subr.mxu0 0.0
      %6836 = vmatpush1.msra.mxu0 0.0
      %6837 = vmatprep.mubr.f32.mxu0 0.0
      %6838 = vmatmul.mubr.f32.gmra.mrb[0].mxu0 %v6694
      %v6839 = vpop.f32.mrb[0].mxu0
      %v6840 = vadd.f32 0.0, %v6839
      %v6841 = vpop.f32.mrb[0].mxu0
      %6842 = vdwg.mxu0
      %v6843 = vadd.f32 %v6679, %v6769
      %v6844 = vadd.f32 %v6680, %v6771
      %v6845 = vadd.f32 %v6681, %v6840
      %s6846 = scalar_lea.vmem %s403, 24
      %v6847 = vld [vmem:[%s6846] sm:$0xf]
      %6848 = vrot.lane.b32.xlu0 %v5875, 98
      %v6849 = vpop.permute.xlu0 %6848
      %6850 = vrot.lane.b32.xlu0 %v5876, 98
      %v6851 = vpop.permute.xlu0 %6850
      %6852 = vrot.lane.b32.xlu0 %v5877, 98
      %v6853 = vpop.permute.xlu0 %6852
      %vm6854 = vcmask 801792
      %v6855 = vsel %vm6854, %v6849, %v6851
      %v6856 = vsel %vm6854, %v6851, %v6853
      %v6858 = vsel %vm441, %v6847, 0
      %v6860 = vsel %vm445, %v6855, 0
      %v6862 = vsel %vm445, %v6856, 0
      %v6864 = vsel %vm445, %v6853, 0
      %6866 = vmatprep.subr.mxu0 %v6862
      %6867 = vmatpush1.msra.mxu0 %v6860
      %6868 = vmatprep.subr.mxu0 0.0
      %6869 = vmatpush1.msra.mxu0 0.0
      %6870 = vmatprep.subr.mxu0 0.0
      %6871 = vmatpush1.msra.mxu0 0.0
      %6872 = vmatprep.subr.mxu0 0.0
      %6873 = vmatpush1.msra.mxu0 0.0
      %6874 = vmatprep.subr.mxu0 0.0
      %6875 = vmatpush1.msra.mxu0 0.0
      %6876 = vmatprep.subr.mxu0 0.0
      %6877 = vmatpush1.msra.mxu0 0.0
      %6878 = vmatprep.subr.mxu0 0.0
      %6879 = vmatpush1.msra.mxu0 0.0
      %6880 = vmatprep.subr.mxu0 0.0
      %6881 = vmatpush1.msra.mxu0 0.0
      %6882 = vmatprep.subr.mxu0 0.0
      %6883 = vmatpush1.msra.mxu0 0.0
      %6884 = vmatprep.subr.mxu0 0.0
      %6885 = vmatpush1.msra.mxu0 0.0
      %6886 = vmatprep.subr.mxu0 0.0
      %6887 = vmatpush1.msra.mxu0 0.0
      %6888 = vmatprep.subr.mxu0 0.0
      %6889 = vmatpush1.msra.mxu0 0.0
      %6890 = vmatprep.subr.mxu0 0.0
      %6891 = vmatpush1.msra.mxu0 0.0
      %6892 = vmatprep.subr.mxu0 0.0
      %6893 = vmatpush1.msra.mxu0 0.0
      %6894 = vmatprep.subr.mxu0 0.0
      %6895 = vmatpush1.msra.mxu0 0.0
      %6896 = vmatprep.subr.mxu0 0.0
      %6897 = vmatpush1.msra.mxu0 0.0
      %6898 = vmatprep.subr.mxu0 0.0
      %6899 = vmatpush1.msra.mxu0 0.0
      %6900 = vmatprep.subr.mxu0 0.0
      %6901 = vmatpush1.msra.mxu0 0.0
      %6902 = vmatprep.subr.mxu0 0.0
      %6903 = vmatpush1.msra.mxu0 0.0
      %6904 = vmatprep.subr.mxu0 0.0
      %6905 = vmatpush1.msra.mxu0 0.0
      %6906 = vmatprep.subr.mxu0 0.0
      %6907 = vmatpush1.msra.mxu0 0.0
      %6908 = vmatprep.subr.mxu0 0.0
      %6909 = vmatpush1.msra.mxu0 0.0
      %6910 = vmatprep.subr.mxu0 0.0
      %6911 = vmatpush1.msra.mxu0 0.0
      %6912 = vmatprep.subr.mxu0 0.0
      %6913 = vmatpush1.msra.mxu0 0.0
      %6914 = vmatprep.subr.mxu0 0.0
      %6915 = vmatpush1.msra.mxu0 0.0
      %6916 = vmatprep.subr.mxu0 0.0
      %6917 = vmatpush1.msra.mxu0 0.0
      %6918 = vmatprep.subr.mxu0 0.0
      %6919 = vmatpush1.msra.mxu0 0.0
      %6920 = vmatprep.subr.mxu0 0.0
      %6921 = vmatpush1.msra.mxu0 0.0
      %6922 = vmatprep.subr.mxu0 0.0
      %6923 = vmatpush1.msra.mxu0 0.0
      %6924 = vmatprep.subr.mxu0 0.0
      %6925 = vmatpush1.msra.mxu0 0.0
      %6926 = vmatprep.subr.mxu0 0.0
      %6927 = vmatpush1.msra.mxu0 0.0
      %6928 = vmatprep.subr.mxu0 0.0
      %6929 = vmatpush1.msra.mxu0 0.0
      %6930 = vmatprep.mubr.f32.mxu0 0.0
      %6931 = vmatmul.mubr.f32.gmra.mrb[0].mxu0 %v6858
      %v6932 = vpop.f32.mrb[0].mxu0
      %v6933 = vadd.f32 0.0, %v6932
      %v6934 = vpop.f32.mrb[0].mxu0
      %v6935 = vadd.f32 0.0, %v6934
      %6936 = vdwg.mxu0
      %6937 = vmatprep.subr.mxu0 0.0
      %6938 = vmatpush1.msra.mxu0 %v6864
      %6939 = vmatprep.subr.mxu0 0.0
      %6940 = vmatpush1.msra.mxu0 0.0
      %6941 = vmatprep.subr.mxu0 0.0
      %6942 = vmatpush1.msra.mxu0 0.0
      %6943 = vmatprep.subr.mxu0 0.0
      %6944 = vmatpush1.msra.mxu0 0.0
      %6945 = vmatprep.subr.mxu0 0.0
      %6946 = vmatpush1.msra.mxu0 0.0
      %6947 = vmatprep.subr.mxu0 0.0
      %6948 = vmatpush1.msra.mxu0 0.0
      %6949 = vmatprep.subr.mxu0 0.0
      %6950 = vmatpush1.msra.mxu0 0.0
      %6951 = vmatprep.subr.mxu0 0.0
      %6952 = vmatpush1.msra.mxu0 0.0
      %6953 = vmatprep.subr.mxu0 0.0
      %6954 = vmatpush1.msra.mxu0 0.0
      %6955 = vmatprep.subr.mxu0 0.0
      %6956 = vmatpush1.msra.mxu0 0.0
      %6957 = vmatprep.subr.mxu0 0.0
      %6958 = vmatpush1.msra.mxu0 0.0
      %6959 = vmatprep.subr.mxu0 0.0
      %6960 = vmatpush1.msra.mxu0 0.0
      %6961 = vmatprep.subr.mxu0 0.0
      %6962 = vmatpush1.msra.mxu0 0.0
      %6963 = vmatprep.subr.mxu0 0.0
      %6964 = vmatpush1.msra.mxu0 0.0
      %6965 = vmatprep.subr.mxu0 0.0
      %6966 = vmatpush1.msra.mxu0 0.0
      %6967 = vmatprep.subr.mxu0 0.0
      %6968 = vmatpush1.msra.mxu0 0.0
      %6969 = vmatprep.subr.mxu0 0.0
      %6970 = vmatpush1.msra.mxu0 0.0
      %6971 = vmatprep.subr.mxu0 0.0
      %6972 = vmatpush1.msra.mxu0 0.0
      %6973 = vmatprep.subr.mxu0 0.0
      %6974 = vmatpush1.msra.mxu0 0.0
      %6975 = vmatprep.subr.mxu0 0.0
      %6976 = vmatpush1.msra.mxu0 0.0
      %6977 = vmatprep.subr.mxu0 0.0
      %6978 = vmatpush1.msra.mxu0 0.0
      %6979 = vmatprep.subr.mxu0 0.0
      %6980 = vmatpush1.msra.mxu0 0.0
      %6981 = vmatprep.subr.mxu0 0.0
      %6982 = vmatpush1.msra.mxu0 0.0
      %6983 = vmatprep.subr.mxu0 0.0
      %6984 = vmatpush1.msra.mxu0 0.0
      %6985 = vmatprep.subr.mxu0 0.0
      %6986 = vmatpush1.msra.mxu0 0.0
      %6987 = vmatprep.subr.mxu0 0.0
      %6988 = vmatpush1.msra.mxu0 0.0
      %6989 = vmatprep.subr.mxu0 0.0
      %6990 = vmatpush1.msra.mxu0 0.0
      %6991 = vmatprep.subr.mxu0 0.0
      %6992 = vmatpush1.msra.mxu0 0.0
      %6993 = vmatprep.subr.mxu0 0.0
      %6994 = vmatpush1.msra.mxu0 0.0
      %6995 = vmatprep.subr.mxu0 0.0
      %6996 = vmatpush1.msra.mxu0 0.0
      %6997 = vmatprep.subr.mxu0 0.0
      %6998 = vmatpush1.msra.mxu0 0.0
      %6999 = vmatprep.subr.mxu0 0.0
      %7000 = vmatpush1.msra.mxu0 0.0
      %7001 = vmatprep.mubr.f32.mxu0 0.0
      %7002 = vmatmul.mubr.f32.gmra.mrb[0].mxu0 %v6858
      %v7003 = vpop.f32.mrb[0].mxu0
      %v7004 = vadd.f32 0.0, %v7003
      %v7005 = vpop.f32.mrb[0].mxu0
      %7006 = vdwg.mxu0
      %v7007 = vadd.f32 %v6843, %v6933
      %v7008 = vadd.f32 %v6844, %v6935
      %v7009 = vadd.f32 %v6845, %v7004
      %s7010 = scalar_lea.vmem %s403, 28
      %v7011 = vld [vmem:[%s7010] sm:$0xf]
      %7012 = vrot.lane.b32.xlu0 %v5875, 97
      %v7013 = vpop.permute.xlu0 %7012
      %7014 = vrot.lane.b32.xlu0 %v5876, 97
      %v7015 = vpop.permute.xlu0 %7014
      %7016 = vrot.lane.b32.xlu0 %v5877, 97
      %v7017 = vpop.permute.xlu0 %7016
      %vm7018 = vcmask 793600
      %v7019 = vsel %vm7018, %v7013, %v7015
      %v7020 = vsel %vm7018, %v7015, %v7017
      %v7022 = vsel %vm441, %v7011, 0
      %v7024 = vsel %vm445, %v7019, 0
      %v7026 = vsel %vm445, %v7020, 0
      %v7028 = vsel %vm445, %v7017, 0
      %7030 = vmatprep.subr.mxu0 %v7026
      %7031 = vmatpush1.msra.mxu0 %v7024
      %7032 = vmatprep.subr.mxu0 0.0
      %7033 = vmatpush1.msra.mxu0 0.0
      %7034 = vmatprep.subr.mxu0 0.0
      %7035 = vmatpush1.msra.mxu0 0.0
      %7036 = vmatprep.subr.mxu0 0.0
      %7037 = vmatpush1.msra.mxu0 0.0
      %7038 = vmatprep.subr.mxu0 0.0
      %7039 = vmatpush1.msra.mxu0 0.0
      %7040 = vmatprep.subr.mxu0 0.0
      %7041 = vmatpush1.msra.mxu0 0.0
      %7042 = vmatprep.subr.mxu0 0.0
      %7043 = vmatpush1.msra.mxu0 0.0
      %7044 = vmatprep.subr.mxu0 0.0
      %7045 = vmatpush1.msra.mxu0 0.0
      %7046 = vmatprep.subr.mxu0 0.0
      %7047 = vmatpush1.msra.mxu0 0.0
      %7048 = vmatprep.subr.mxu0 0.0
      %7049 = vmatpush1.msra.mxu0 0.0
      %7050 = vmatprep.subr.mxu0 0.0
      %7051 = vmatpush1.msra.mxu0 0.0
      %7052 = vmatprep.subr.mxu0 0.0
      %7053 = vmatpush1.msra.mxu0 0.0
      %7054 = vmatprep.subr.mxu0 0.0
      %7055 = vmatpush1.msra.mxu0 0.0
      %7056 = vmatprep.subr.mxu0 0.0
      %7057 = vmatpush1.msra.mxu0 0.0
      %7058 = vmatprep.subr.mxu0 0.0
      %7059 = vmatpush1.msra.mxu0 0.0
      %7060 = vmatprep.subr.mxu0 0.0
      %7061 = vmatpush1.msra.mxu0 0.0
      %7062 = vmatprep.subr.mxu0 0.0
      %7063 = vmatpush1.msra.mxu0 0.0
      %7064 = vmatprep.subr.mxu0 0.0
      %7065 = vmatpush1.msra.mxu0 0.0
      %7066 = vmatprep.subr.mxu0 0.0
      %7067 = vmatpush1.msra.mxu0 0.0
      %7068 = vmatprep.subr.mxu0 0.0
      %7069 = vmatpush1.msra.mxu0 0.0
      %7070 = vmatprep.subr.mxu0 0.0
      %7071 = vmatpush1.msra.mxu0 0.0
      %7072 = vmatprep.subr.mxu0 0.0
      %7073 = vmatpush1.msra.mxu0 0.0
      %7074 = vmatprep.subr.mxu0 0.0
      %7075 = vmatpush1.msra.mxu0 0.0
      %7076 = vmatprep.subr.mxu0 0.0
      %7077 = vmatpush1.msra.mxu0 0.0
      %7078 = vmatprep.subr.mxu0 0.0
      %7079 = vmatpush1.msra.mxu0 0.0
      %7080 = vmatprep.subr.mxu0 0.0
      %7081 = vmatpush1.msra.mxu0 0.0
      %7082 = vmatprep.subr.mxu0 0.0
      %7083 = vmatpush1.msra.mxu0 0.0
      %7084 = vmatprep.subr.mxu0 0.0
      %7085 = vmatpush1.msra.mxu0 0.0
      %7086 = vmatprep.subr.mxu0 0.0
      %7087 = vmatpush1.msra.mxu0 0.0
      %7088 = vmatprep.subr.mxu0 0.0
      %7089 = vmatpush1.msra.mxu0 0.0
      %7090 = vmatprep.subr.mxu0 0.0
      %7091 = vmatpush1.msra.mxu0 0.0
      %7092 = vmatprep.subr.mxu0 0.0
      %7093 = vmatpush1.msra.mxu0 0.0
      %7094 = vmatprep.mubr.f32.mxu0 0.0
      %7095 = vmatmul.mubr.f32.gmra.mrb[0].mxu0 %v7022
      %v7096 = vpop.f32.mrb[0].mxu0
      %v7097 = vadd.f32 0.0, %v7096
      %v7098 = vpop.f32.mrb[0].mxu0
      %v7099 = vadd.f32 0.0, %v7098
      %7100 = vdwg.mxu0
      %7101 = vmatprep.subr.mxu0 0.0
      %7102 = vmatpush1.msra.mxu0 %v7028
      %7103 = vmatprep.subr.mxu0 0.0
      %7104 = vmatpush1.msra.mxu0 0.0
      %7105 = vmatprep.subr.mxu0 0.0
      %7106 = vmatpush1.msra.mxu0 0.0
      %7107 = vmatprep.subr.mxu0 0.0
      %7108 = vmatpush1.msra.mxu0 0.0
      %7109 = vmatprep.subr.mxu0 0.0
      %7110 = vmatpush1.msra.mxu0 0.0
      %7111 = vmatprep.subr.mxu0 0.0
      %7112 = vmatpush1.msra.mxu0 0.0
      %7113 = vmatprep.subr.mxu0 0.0
      %7114 = vmatpush1.msra.mxu0 0.0
      %7115 = vmatprep.subr.mxu0 0.0
      %7116 = vmatpush1.msra.mxu0 0.0
      %7117 = vmatprep.subr.mxu0 0.0
      %7118 = vmatpush1.msra.mxu0 0.0
      %7119 = vmatprep.subr.mxu0 0.0
      %7120 = vmatpush1.msra.mxu0 0.0
      %7121 = vmatprep.subr.mxu0 0.0
      %7122 = vmatpush1.msra.mxu0 0.0
      %7123 = vmatprep.subr.mxu0 0.0
      %7124 = vmatpush1.msra.mxu0 0.0
      %7125 = vmatprep.subr.mxu0 0.0
      %7126 = vmatpush1.msra.mxu0 0.0
      %7127 = vmatprep.subr.mxu0 0.0
      %7128 = vmatpush1.msra.mxu0 0.0
      %7129 = vmatprep.subr.mxu0 0.0
      %7130 = vmatpush1.msra.mxu0 0.0
      %7131 = vmatprep.subr.mxu0 0.0
      %7132 = vmatpush1.msra.mxu0 0.0
      %7133 = vmatprep.subr.mxu0 0.0
      %7134 = vmatpush1.msra.mxu0 0.0
      %7135 = vmatprep.subr.mxu0 0.0
      %7136 = vmatpush1.msra.mxu0 0.0
      %7137 = vmatprep.subr.mxu0 0.0
      %7138 = vmatpush1.msra.mxu0 0.0
      %7139 = vmatprep.subr.mxu0 0.0
      %7140 = vmatpush1.msra.mxu0 0.0
      %7141 = vmatprep.subr.mxu0 0.0
      %7142 = vmatpush1.msra.mxu0 0.0
      %7143 = vmatprep.subr.mxu0 0.0
      %7144 = vmatpush1.msra.mxu0 0.0
      %7145 = vmatprep.subr.mxu0 0.0
      %7146 = vmatpush1.msra.mxu0 0.0
      %7147 = vmatprep.subr.mxu0 0.0
      %7148 = vmatpush1.msra.mxu0 0.0
      %7149 = vmatprep.subr.mxu0 0.0
      %7150 = vmatpush1.msra.mxu0 0.0
      %7151 = vmatprep.subr.mxu0 0.0
      %7152 = vmatpush1.msra.mxu0 0.0
      %7153 = vmatprep.subr.mxu0 0.0
      %7154 = vmatpush1.msra.mxu0 0.0
      %7155 = vmatprep.subr.mxu0 0.0
      %7156 = vmatpush1.msra.mxu0 0.0
      %7157 = vmatprep.subr.mxu0 0.0
      %7158 = vmatpush1.msra.mxu0 0.0
      %7159 = vmatprep.subr.mxu0 0.0
      %7160 = vmatpush1.msra.mxu0 0.0
      %7161 = vmatprep.subr.mxu0 0.0
      %7162 = vmatpush1.msra.mxu0 0.0
      %7163 = vmatprep.subr.mxu0 0.0
      %7164 = vmatpush1.msra.mxu0 0.0
      %7165 = vmatprep.mubr.f32.mxu0 0.0
      %7166 = vmatmul.mubr.f32.gmra.mrb[0].mxu0 %v7022
      %v7167 = vpop.f32.mrb[0].mxu0
      %v7168 = vadd.f32 0.0, %v7167
      %v7169 = vpop.f32.mrb[0].mxu0
      %7170 = vdwg.mxu0
      %v7171 = vadd.f32 %v7007, %v7097
      %v7172 = vadd.f32 %v7008, %v7099
      %v7173 = vadd.f32 %v7009, %v7168
      %s7174 = scalar_lea.vmem %s403, 32
      %v7175 = vld [vmem:[%s7174] sm:$0xf]
      %7176 = vrot.lane.b32.xlu0 %v5875, 96
      %v7177 = vpop.permute.xlu0 %7176
      %7178 = vrot.lane.b32.xlu0 %v5876, 96
      %v7179 = vpop.permute.xlu0 %7178
      %7180 = vrot.lane.b32.xlu0 %v5877, 96
      %v7181 = vpop.permute.xlu0 %7180
      %vm7182 = vcmask 785408
      %v7183 = vsel %vm7182, %v7177, %v7179
      %v7184 = vsel %vm7182, %v7179, %v7181
      %v7186 = vsel %vm441, %v7175, 0
      %v7188 = vsel %vm445, %v7183, 0
      %v7190 = vsel %vm445, %v7184, 0
      %v7192 = vsel %vm445, %v7181, 0
      %7194 = vmatprep.subr.mxu0 %v7190
      %7195 = vmatpush1.msra.mxu0 %v7188
      %7196 = vmatprep.subr.mxu0 0.0
      %7197 = vmatpush1.msra.mxu0 0.0
      %7198 = vmatprep.subr.mxu0 0.0
      %7199 = vmatpush1.msra.mxu0 0.0
      %7200 = vmatprep.subr.mxu0 0.0
      %7201 = vmatpush1.msra.mxu0 0.0
      %7202 = vmatprep.subr.mxu0 0.0
      %7203 = vmatpush1.msra.mxu0 0.0
      %7204 = vmatprep.subr.mxu0 0.0
      %7205 = vmatpush1.msra.mxu0 0.0
      %7206 = vmatprep.subr.mxu0 0.0
      %7207 = vmatpush1.msra.mxu0 0.0
      %7208 = vmatprep.subr.mxu0 0.0
      %7209 = vmatpush1.msra.mxu0 0.0
      %7210 = vmatprep.subr.mxu0 0.0
      %7211 = vmatpush1.msra.mxu0 0.0
      %7212 = vmatprep.subr.mxu0 0.0
      %7213 = vmatpush1.msra.mxu0 0.0
      %7214 = vmatprep.subr.mxu0 0.0
      %7215 = vmatpush1.msra.mxu0 0.0
      %7216 = vmatprep.subr.mxu0 0.0
      %7217 = vmatpush1.msra.mxu0 0.0
      %7218 = vmatprep.subr.mxu0 0.0
      %7219 = vmatpush1.msra.mxu0 0.0
      %7220 = vmatprep.subr.mxu0 0.0
      %7221 = vmatpush1.msra.mxu0 0.0
      %7222 = vmatprep.subr.mxu0 0.0
      %7223 = vmatpush1.msra.mxu0 0.0
      %7224 = vmatprep.subr.mxu0 0.0
      %7225 = vmatpush1.msra.mxu0 0.0
      %7226 = vmatprep.subr.mxu0 0.0
      %7227 = vmatpush1.msra.mxu0 0.0
      %7228 = vmatprep.subr.mxu0 0.0
      %7229 = vmatpush1.msra.mxu0 0.0
      %7230 = vmatprep.subr.mxu0 0.0
      %7231 = vmatpush1.msra.mxu0 0.0
      %7232 = vmatprep.subr.mxu0 0.0
      %7233 = vmatpush1.msra.mxu0 0.0
      %7234 = vmatprep.subr.mxu0 0.0
      %7235 = vmatpush1.msra.mxu0 0.0
      %7236 = vmatprep.subr.mxu0 0.0
      %7237 = vmatpush1.msra.mxu0 0.0
      %7238 = vmatprep.subr.mxu0 0.0
      %7239 = vmatpush1.msra.mxu0 0.0
      %7240 = vmatprep.subr.mxu0 0.0
      %7241 = vmatpush1.msra.mxu0 0.0
      %7242 = vmatprep.subr.mxu0 0.0
      %7243 = vmatpush1.msra.mxu0 0.0
      %7244 = vmatprep.subr.mxu0 0.0
      %7245 = vmatpush1.msra.mxu0 0.0
      %7246 = vmatprep.subr.mxu0 0.0
      %7247 = vmatpush1.msra.mxu0 0.0
      %7248 = vmatprep.subr.mxu0 0.0
      %7249 = vmatpush1.msra.mxu0 0.0
      %7250 = vmatprep.subr.mxu0 0.0
      %7251 = vmatpush1.msra.mxu0 0.0
      %7252 = vmatprep.subr.mxu0 0.0
      %7253 = vmatpush1.msra.mxu0 0.0
      %7254 = vmatprep.subr.mxu0 0.0
      %7255 = vmatpush1.msra.mxu0 0.0
      %7256 = vmatprep.subr.mxu0 0.0
      %7257 = vmatpush1.msra.mxu0 0.0
      %7258 = vmatprep.mubr.f32.mxu0 0.0
      %7259 = vmatmul.mubr.f32.gmra.mrb[0].mxu0 %v7186
      %v7260 = vpop.f32.mrb[0].mxu0
      %v7261 = vadd.f32 0.0, %v7260
      %v7262 = vpop.f32.mrb[0].mxu0
      %v7263 = vadd.f32 0.0, %v7262
      %7264 = vdwg.mxu0
      %7265 = vmatprep.subr.mxu0 0.0
      %7266 = vmatpush1.msra.mxu0 %v7192
      %7267 = vmatprep.subr.mxu0 0.0
      %7268 = vmatpush1.msra.mxu0 0.0
      %7269 = vmatprep.subr.mxu0 0.0
      %7270 = vmatpush1.msra.mxu0 0.0
      %7271 = vmatprep.subr.mxu0 0.0
      %7272 = vmatpush1.msra.mxu0 0.0
      %7273 = vmatprep.subr.mxu0 0.0
      %7274 = vmatpush1.msra.mxu0 0.0
      %7275 = vmatprep.subr.mxu0 0.0
      %7276 = vmatpush1.msra.mxu0 0.0
      %7277 = vmatprep.subr.mxu0 0.0
      %7278 = vmatpush1.msra.mxu0 0.0
      %7279 = vmatprep.subr.mxu0 0.0
      %7280 = vmatpush1.msra.mxu0 0.0
      %7281 = vmatprep.subr.mxu0 0.0
      %7282 = vmatpush1.msra.mxu0 0.0
      %7283 = vmatprep.subr.mxu0 0.0
      %7284 = vmatpush1.msra.mxu0 0.0
      %7285 = vmatprep.subr.mxu0 0.0
      %7286 = vmatpush1.msra.mxu0 0.0
      %7287 = vmatprep.subr.mxu0 0.0
      %7288 = vmatpush1.msra.mxu0 0.0
      %7289 = vmatprep.subr.mxu0 0.0
      %7290 = vmatpush1.msra.mxu0 0.0
      %7291 = vmatprep.subr.mxu0 0.0
      %7292 = vmatpush1.msra.mxu0 0.0
      %7293 = vmatprep.subr.mxu0 0.0
      %7294 = vmatpush1.msra.mxu0 0.0
      %7295 = vmatprep.subr.mxu0 0.0
      %7296 = vmatpush1.msra.mxu0 0.0
      %7297 = vmatprep.subr.mxu0 0.0
      %7298 = vmatpush1.msra.mxu0 0.0
      %7299 = vmatprep.subr.mxu0 0.0
      %7300 = vmatpush1.msra.mxu0 0.0
      %7301 = vmatprep.subr.mxu0 0.0
      %7302 = vmatpush1.msra.mxu0 0.0
      %7303 = vmatprep.subr.mxu0 0.0
      %7304 = vmatpush1.msra.mxu0 0.0
      %7305 = vmatprep.subr.mxu0 0.0
      %7306 = vmatpush1.msra.mxu0 0.0
      %7307 = vmatprep.subr.mxu0 0.0
      %7308 = vmatpush1.msra.mxu0 0.0
      %7309 = vmatprep.subr.mxu0 0.0
      %7310 = vmatpush1.msra.mxu0 0.0
      %7311 = vmatprep.subr.mxu0 0.0
      %7312 = vmatpush1.msra.mxu0 0.0
      %7313 = vmatprep.subr.mxu0 0.0
      %7314 = vmatpush1.msra.mxu0 0.0
      %7315 = vmatprep.subr.mxu0 0.0
      %7316 = vmatpush1.msra.mxu0 0.0
      %7317 = vmatprep.subr.mxu0 0.0
      %7318 = vmatpush1.msra.mxu0 0.0
      %7319 = vmatprep.subr.mxu0 0.0
      %7320 = vmatpush1.msra.mxu0 0.0
      %7321 = vmatprep.subr.mxu0 0.0
      %7322 = vmatpush1.msra.mxu0 0.0
      %7323 = vmatprep.subr.mxu0 0.0
      %7324 = vmatpush1.msra.mxu0 0.0
      %7325 = vmatprep.subr.mxu0 0.0
      %7326 = vmatpush1.msra.mxu0 0.0
      %7327 = vmatprep.subr.mxu0 0.0
      %7328 = vmatpush1.msra.mxu0 0.0
      %7329 = vmatprep.mubr.f32.mxu0 0.0
      %7330 = vmatmul.mubr.f32.gmra.mrb[0].mxu0 %v7186
      %v7331 = vpop.f32.mrb[0].mxu0
      %v7332 = vadd.f32 0.0, %v7331
      %v7333 = vpop.f32.mrb[0].mxu0
      %7334 = vdwg.mxu0
      %v7335 = vadd.f32 %v7171, %v7261
      %v7336 = vadd.f32 %v7172, %v7263
      %v7337 = vadd.f32 %v7173, %v7332
      %v7338 = vld [vmem:[%s407] sm:$0xf]
      %7340 = vset.pattern.permute.xlu0 0
      %7341 = vperm.xlu0 %7340, %v7338
      %v7342 = vpop.permute.xlu0 %7341
      %v7344 = vadd.f32 %v7335, %v7342
      %v7345 = vadd.f32 %v7336, %v7342
      %v7346 = vadd.f32 %v7337, %v7342
      %v7347 = vmax.f32 %v7344, 0.0
      %v7348 = vmax.f32 %v7345, 0.0
      %v7349 = vmax.f32 %v7346, 0.0
      %v7350 = vld [vmem:[%s412] sm:$0x3]
      %s7351 = scalar_lea.vmem %s412, 2
      %v7352 = vld [vmem:[%s7351] sm:$0x3]
      %7355 = vrot.lane.b32.xlu0 %v7347, 127
      %v7356 = vpop.permute.xlu0 %7355
      %7357 = vrot.lane.b32.xlu0 %v7348, 127
      %v7358 = vpop.permute.xlu0 %7357
      %v7359 = vsel %vm754, %v7356, %v7358
      %v7361 = vsel %vm441, %v7352, 0
      %v7363 = vsel %vm445, %v7359, 0
      %v7365 = vsel %vm445, %v7358, 0
      %7367 = vmatprep.subr.mxu0 %v7365
      %7368 = vmatpush1.msra.mxu0 %v7363
      %7369 = vmatprep.subr.mxu0 0.0
      %7370 = vmatpush1.msra.mxu0 0.0
      %7371 = vmatprep.subr.mxu0 0.0
      %7372 = vmatpush1.msra.mxu0 0.0
      %7373 = vmatprep.subr.mxu0 0.0
      %7374 = vmatpush1.msra.mxu0 0.0
      %7375 = vmatprep.subr.mxu0 0.0
      %7376 = vmatpush1.msra.mxu0 0.0
      %7377 = vmatprep.subr.mxu0 0.0
      %7378 = vmatpush1.msra.mxu0 0.0
      %7379 = vmatprep.subr.mxu0 0.0
      %7380 = vmatpush1.msra.mxu0 0.0
      %7381 = vmatprep.subr.mxu0 0.0
      %7382 = vmatpush1.msra.mxu0 0.0
      %7383 = vmatprep.subr.mxu0 0.0
      %7384 = vmatpush1.msra.mxu0 0.0
      %7385 = vmatprep.subr.mxu0 0.0
      %7386 = vmatpush1.msra.mxu0 0.0
      %7387 = vmatprep.subr.mxu0 0.0
      %7388 = vmatpush1.msra.mxu0 0.0
      %7389 = vmatprep.subr.mxu0 0.0
      %7390 = vmatpush1.msra.mxu0 0.0
      %7391 = vmatprep.subr.mxu0 0.0
      %7392 = vmatpush1.msra.mxu0 0.0
      %7393 = vmatprep.subr.mxu0 0.0
      %7394 = vmatpush1.msra.mxu0 0.0
      %7395 = vmatprep.subr.mxu0 0.0
      %7396 = vmatpush1.msra.mxu0 0.0
      %7397 = vmatprep.subr.mxu0 0.0
      %7398 = vmatpush1.msra.mxu0 0.0
      %7399 = vmatprep.subr.mxu0 0.0
      %7400 = vmatpush1.msra.mxu0 0.0
      %7401 = vmatprep.subr.mxu0 0.0
      %7402 = vmatpush1.msra.mxu0 0.0
      %7403 = vmatprep.subr.mxu0 0.0
      %7404 = vmatpush1.msra.mxu0 0.0
      %7405 = vmatprep.subr.mxu0 0.0
      %7406 = vmatpush1.msra.mxu0 0.0
      %7407 = vmatprep.subr.mxu0 0.0
      %7408 = vmatpush1.msra.mxu0 0.0
      %7409 = vmatprep.subr.mxu0 0.0
      %7410 = vmatpush1.msra.mxu0 0.0
      %7411 = vmatprep.subr.mxu0 0.0
      %7412 = vmatpush1.msra.mxu0 0.0
      %7413 = vmatprep.subr.mxu0 0.0
      %7414 = vmatpush1.msra.mxu0 0.0
      %7415 = vmatprep.subr.mxu0 0.0
      %7416 = vmatpush1.msra.mxu0 0.0
      %7417 = vmatprep.subr.mxu0 0.0
      %7418 = vmatpush1.msra.mxu0 0.0
      %7419 = vmatprep.subr.mxu0 0.0
      %7420 = vmatpush1.msra.mxu0 0.0
      %7421 = vmatprep.subr.mxu0 0.0
      %7422 = vmatpush1.msra.mxu0 0.0
      %7423 = vmatprep.subr.mxu0 0.0
      %7424 = vmatpush1.msra.mxu0 0.0
      %7425 = vmatprep.subr.mxu0 0.0
      %7426 = vmatpush1.msra.mxu0 0.0
      %7427 = vmatprep.subr.mxu0 0.0
      %7428 = vmatpush1.msra.mxu0 0.0
      %7429 = vmatprep.subr.mxu0 0.0
      %7430 = vmatpush1.msra.mxu0 0.0
      %7431 = vmatprep.mubr.f32.mxu0 0.0
      %7432 = vmatmul.mubr.f32.gmra.mrb[0].mxu0 %v7361
      %v7433 = vpop.f32.mrb[0].mxu0
      %v7434 = vadd.f32 0.0, %v7433
      %v7435 = vpop.f32.mrb[0].mxu0
      %v7436 = vadd.f32 0.0, %v7435
      %7437 = vdwg.mxu0
      %v7439 = vsel %vm441, %v7350, 0
      %v7441 = vsel %vm445, %v7347, 0
      %v7443 = vsel %vm445, %v7348, 0
      %7445 = vmatprep.subr.mxu0 %v7443
      %7446 = vmatpush1.msra.mxu0 %v7441
      %7447 = vmatprep.subr.mxu0 0.0
      %7448 = vmatpush1.msra.mxu0 0.0
      %7449 = vmatprep.subr.mxu0 0.0
      %7450 = vmatpush1.msra.mxu0 0.0
      %7451 = vmatprep.subr.mxu0 0.0
      %7452 = vmatpush1.msra.mxu0 0.0
      %7453 = vmatprep.subr.mxu0 0.0
      %7454 = vmatpush1.msra.mxu0 0.0
      %7455 = vmatprep.subr.mxu0 0.0
      %7456 = vmatpush1.msra.mxu0 0.0
      %7457 = vmatprep.subr.mxu0 0.0
      %7458 = vmatpush1.msra.mxu0 0.0
      %7459 = vmatprep.subr.mxu0 0.0
      %7460 = vmatpush1.msra.mxu0 0.0
      %7461 = vmatprep.subr.mxu0 0.0
      %7462 = vmatpush1.msra.mxu0 0.0
      %7463 = vmatprep.subr.mxu0 0.0
      %7464 = vmatpush1.msra.mxu0 0.0
      %7465 = vmatprep.subr.mxu0 0.0
      %7466 = vmatpush1.msra.mxu0 0.0
      %7467 = vmatprep.subr.mxu0 0.0
      %7468 = vmatpush1.msra.mxu0 0.0
      %7469 = vmatprep.subr.mxu0 0.0
      %7470 = vmatpush1.msra.mxu0 0.0
      %7471 = vmatprep.subr.mxu0 0.0
      %7472 = vmatpush1.msra.mxu0 0.0
      %7473 = vmatprep.subr.mxu0 0.0
      %7474 = vmatpush1.msra.mxu0 0.0
      %7475 = vmatprep.subr.mxu0 0.0
      %7476 = vmatpush1.msra.mxu0 0.0
      %7477 = vmatprep.subr.mxu0 0.0
      %7478 = vmatpush1.msra.mxu0 0.0
      %7479 = vmatprep.subr.mxu0 0.0
      %7480 = vmatpush1.msra.mxu0 0.0
      %7481 = vmatprep.subr.mxu0 0.0
      %7482 = vmatpush1.msra.mxu0 0.0
      %7483 = vmatprep.subr.mxu0 0.0
      %7484 = vmatpush1.msra.mxu0 0.0
      %7485 = vmatprep.subr.mxu0 0.0
      %7486 = vmatpush1.msra.mxu0 0.0
      %7487 = vmatprep.subr.mxu0 0.0
      %7488 = vmatpush1.msra.mxu0 0.0
      %7489 = vmatprep.subr.mxu0 0.0
      %7490 = vmatpush1.msra.mxu0 0.0
      %7491 = vmatprep.subr.mxu0 0.0
      %7492 = vmatpush1.msra.mxu0 0.0
      %7493 = vmatprep.subr.mxu0 0.0
      %7494 = vmatpush1.msra.mxu0 0.0
      %7495 = vmatprep.subr.mxu0 0.0
      %7496 = vmatpush1.msra.mxu0 0.0
      %7497 = vmatprep.subr.mxu0 0.0
      %7498 = vmatpush1.msra.mxu0 0.0
      %7499 = vmatprep.subr.mxu0 0.0
      %7500 = vmatpush1.msra.mxu0 0.0
      %7501 = vmatprep.subr.mxu0 0.0
      %7502 = vmatpush1.msra.mxu0 0.0
      %7503 = vmatprep.subr.mxu0 0.0
      %7504 = vmatpush1.msra.mxu0 0.0
      %7505 = vmatprep.subr.mxu0 0.0
      %7506 = vmatpush1.msra.mxu0 0.0
      %7507 = vmatprep.subr.mxu0 0.0
      %7508 = vmatpush1.msra.mxu0 0.0
      %7509 = vmatprep.mubr.f32.mxu0 0.0
      %7510 = vmatmul.mubr.f32.gmra.mrb[0].mxu0 %v7439
      %v7511 = vpop.f32.mrb[0].mxu0
      %v7512 = vadd.f32 %v7434, %v7511
      %v7513 = vpop.f32.mrb[0].mxu0
      %v7514 = vadd.f32 %v7436, %v7513
      %7515 = vdwg.mxu0
      %s7516 = scalar_lea.vmem %s412, 4
      %v7517 = vld [vmem:[%s7516] sm:$0x3]
      %7518 = vrot.lane.b32.xlu0 %v7347, 126
      %v7519 = vpop.permute.xlu0 %7518
      %7520 = vrot.lane.b32.xlu0 %v7348, 126
      %v7521 = vpop.permute.xlu0 %7520
      %v7522 = vsel %vm6200, %v7519, %v7521
      %v7524 = vsel %vm441, %v7517, 0
      %v7526 = vsel %vm445, %v7522, 0
      %v7528 = vsel %vm445, %v7521, 0
      %7530 = vmatprep.subr.mxu0 %v7528
      %7531 = vmatpush1.msra.mxu0 %v7526
      %7532 = vmatprep.subr.mxu0 0.0
      %7533 = vmatpush1.msra.mxu0 0.0
      %7534 = vmatprep.subr.mxu0 0.0
      %7535 = vmatpush1.msra.mxu0 0.0
      %7536 = vmatprep.subr.mxu0 0.0
      %7537 = vmatpush1.msra.mxu0 0.0
      %7538 = vmatprep.subr.mxu0 0.0
      %7539 = vmatpush1.msra.mxu0 0.0
      %7540 = vmatprep.subr.mxu0 0.0
      %7541 = vmatpush1.msra.mxu0 0.0
      %7542 = vmatprep.subr.mxu0 0.0
      %7543 = vmatpush1.msra.mxu0 0.0
      %7544 = vmatprep.subr.mxu0 0.0
      %7545 = vmatpush1.msra.mxu0 0.0
      %7546 = vmatprep.subr.mxu0 0.0
      %7547 = vmatpush1.msra.mxu0 0.0
      %7548 = vmatprep.subr.mxu0 0.0
      %7549 = vmatpush1.msra.mxu0 0.0
      %7550 = vmatprep.subr.mxu0 0.0
      %7551 = vmatpush1.msra.mxu0 0.0
      %7552 = vmatprep.subr.mxu0 0.0
      %7553 = vmatpush1.msra.mxu0 0.0
      %7554 = vmatprep.subr.mxu0 0.0
      %7555 = vmatpush1.msra.mxu0 0.0
      %7556 = vmatprep.subr.mxu0 0.0
      %7557 = vmatpush1.msra.mxu0 0.0
      %7558 = vmatprep.subr.mxu0 0.0
      %7559 = vmatpush1.msra.mxu0 0.0
      %7560 = vmatprep.subr.mxu0 0.0
      %7561 = vmatpush1.msra.mxu0 0.0
      %7562 = vmatprep.subr.mxu0 0.0
      %7563 = vmatpush1.msra.mxu0 0.0
      %7564 = vmatprep.subr.mxu0 0.0
      %7565 = vmatpush1.msra.mxu0 0.0
      %7566 = vmatprep.subr.mxu0 0.0
      %7567 = vmatpush1.msra.mxu0 0.0
      %7568 = vmatprep.subr.mxu0 0.0
      %7569 = vmatpush1.msra.mxu0 0.0
      %7570 = vmatprep.subr.mxu0 0.0
      %7571 = vmatpush1.msra.mxu0 0.0
      %7572 = vmatprep.subr.mxu0 0.0
      %7573 = vmatpush1.msra.mxu0 0.0
      %7574 = vmatprep.subr.mxu0 0.0
      %7575 = vmatpush1.msra.mxu0 0.0
      %7576 = vmatprep.subr.mxu0 0.0
      %7577 = vmatpush1.msra.mxu0 0.0
      %7578 = vmatprep.subr.mxu0 0.0
      %7579 = vmatpush1.msra.mxu0 0.0
      %7580 = vmatprep.subr.mxu0 0.0
      %7581 = vmatpush1.msra.mxu0 0.0
      %7582 = vmatprep.subr.mxu0 0.0
      %7583 = vmatpush1.msra.mxu0 0.0
      %7584 = vmatprep.subr.mxu0 0.0
      %7585 = vmatpush1.msra.mxu0 0.0
      %7586 = vmatprep.subr.mxu0 0.0
      %7587 = vmatpush1.msra.mxu0 0.0
      %7588 = vmatprep.subr.mxu0 0.0
      %7589 = vmatpush1.msra.mxu0 0.0
      %7590 = vmatprep.subr.mxu0 0.0
      %7591 = vmatpush1.msra.mxu0 0.0
      %7592 = vmatprep.subr.mxu0 0.0
      %7593 = vmatpush1.msra.mxu0 0.0
      %7594 = vmatprep.mubr.f32.mxu0 0.0
      %7595 = vmatmul.mubr.f32.gmra.mrb[0].mxu0 %v7524
      %v7596 = vpop.f32.mrb[0].mxu0
      %v7597 = vadd.f32 0.0, %v7596
      %v7598 = vpop.f32.mrb[0].mxu0
      %v7599 = vadd.f32 0.0, %v7598
      %7600 = vdwg.mxu0
      %v7601 = vadd.f32 %v7512, %v7597
      %v7602 = vadd.f32 %v7514, %v7599
      %s7603 = scalar_lea.vmem %s412, 6
      %v7604 = vld [vmem:[%s7603] sm:$0x3]
      %7605 = vrot.lane.b32.xlu0 %v7347, 113
      %v7606 = vpop.permute.xlu0 %7605
      %7607 = vrot.lane.b32.xlu0 %v7348, 113
      %v7608 = vpop.permute.xlu0 %7607
      %v7609 = vsel %vm1406, %v7606, %v7608
      %v7611 = vsel %vm441, %v7604, 0
      %v7613 = vsel %vm445, %v7609, 0
      %v7615 = vsel %vm445, %v7608, 0
      %7617 = vmatprep.subr.mxu0 %v7615
      %7618 = vmatpush1.msra.mxu0 %v7613
      %7619 = vmatprep.subr.mxu0 0.0
      %7620 = vmatpush1.msra.mxu0 0.0
      %7621 = vmatprep.subr.mxu0 0.0
      %7622 = vmatpush1.msra.mxu0 0.0
      %7623 = vmatprep.subr.mxu0 0.0
      %7624 = vmatpush1.msra.mxu0 0.0
      %7625 = vmatprep.subr.mxu0 0.0
      %7626 = vmatpush1.msra.mxu0 0.0
      %7627 = vmatprep.subr.mxu0 0.0
      %7628 = vmatpush1.msra.mxu0 0.0
      %7629 = vmatprep.subr.mxu0 0.0
      %7630 = vmatpush1.msra.mxu0 0.0
      %7631 = vmatprep.subr.mxu0 0.0
      %7632 = vmatpush1.msra.mxu0 0.0
      %7633 = vmatprep.subr.mxu0 0.0
      %7634 = vmatpush1.msra.mxu0 0.0
      %7635 = vmatprep.subr.mxu0 0.0
      %7636 = vmatpush1.msra.mxu0 0.0
      %7637 = vmatprep.subr.mxu0 0.0
      %7638 = vmatpush1.msra.mxu0 0.0
      %7639 = vmatprep.subr.mxu0 0.0
      %7640 = vmatpush1.msra.mxu0 0.0
      %7641 = vmatprep.subr.mxu0 0.0
      %7642 = vmatpush1.msra.mxu0 0.0
      %7643 = vmatprep.subr.mxu0 0.0
      %7644 = vmatpush1.msra.mxu0 0.0
      %7645 = vmatprep.subr.mxu0 0.0
      %7646 = vmatpush1.msra.mxu0 0.0
      %7647 = vmatprep.subr.mxu0 0.0
      %7648 = vmatpush1.msra.mxu0 0.0
      %7649 = vmatprep.subr.mxu0 0.0
      %7650 = vmatpush1.msra.mxu0 0.0
      %7651 = vmatprep.subr.mxu0 0.0
      %7652 = vmatpush1.msra.mxu0 0.0
      %7653 = vmatprep.subr.mxu0 0.0
      %7654 = vmatpush1.msra.mxu0 0.0
      %7655 = vmatprep.subr.mxu0 0.0
      %7656 = vmatpush1.msra.mxu0 0.0
      %7657 = vmatprep.subr.mxu0 0.0
      %7658 = vmatpush1.msra.mxu0 0.0
      %7659 = vmatprep.subr.mxu0 0.0
      %7660 = vmatpush1.msra.mxu0 0.0
      %7661 = vmatprep.subr.mxu0 0.0
      %7662 = vmatpush1.msra.mxu0 0.0
      %7663 = vmatprep.subr.mxu0 0.0
      %7664 = vmatpush1.msra.mxu0 0.0
      %7665 = vmatprep.subr.mxu0 0.0
      %7666 = vmatpush1.msra.mxu0 0.0
      %7667 = vmatprep.subr.mxu0 0.0
      %7668 = vmatpush1.msra.mxu0 0.0
      %7669 = vmatprep.subr.mxu0 0.0
      %7670 = vmatpush1.msra.mxu0 0.0
      %7671 = vmatprep.subr.mxu0 0.0
      %7672 = vmatpush1.msra.mxu0 0.0
      %7673 = vmatprep.subr.mxu0 0.0
      %7674 = vmatpush1.msra.mxu0 0.0
      %7675 = vmatprep.subr.mxu0 0.0
      %7676 = vmatpush1.msra.mxu0 0.0
      %7677 = vmatprep.subr.mxu0 0.0
      %7678 = vmatpush1.msra.mxu0 0.0
      %7679 = vmatprep.subr.mxu0 0.0
      %7680 = vmatpush1.msra.mxu0 0.0
      %7681 = vmatprep.mubr.f32.mxu0 0.0
      %7682 = vmatmul.mubr.f32.gmra.mrb[0].mxu0 %v7611
      %v7683 = vpop.f32.mrb[0].mxu0
      %v7684 = vadd.f32 0.0, %v7683
      %v7685 = vpop.f32.mrb[0].mxu0
      %v7686 = vadd.f32 0.0, %v7685
      %7687 = vdwg.mxu0
      %v7688 = vadd.f32 %v7601, %v7684
      %v7689 = vadd.f32 %v7602, %v7686
      %s7690 = scalar_lea.vmem %s412, 8
      %v7691 = vld [vmem:[%s7690] sm:$0x3]
      %7692 = vrot.lane.b32.xlu0 %v7347, 112
      %v7693 = vpop.permute.xlu0 %7692
      %7694 = vrot.lane.b32.xlu0 %v7348, 112
      %v7695 = vpop.permute.xlu0 %7694
      %v7696 = vsel %vm1733, %v7693, %v7695
      %v7698 = vsel %vm441, %v7691, 0
      %v7700 = vsel %vm445, %v7696, 0
      %v7702 = vsel %vm445, %v7695, 0
      %7704 = vmatprep.subr.mxu0 %v7702
      %7705 = vmatpush1.msra.mxu0 %v7700
      %7706 = vmatprep.subr.mxu0 0.0
      %7707 = vmatpush1.msra.mxu0 0.0
      %7708 = vmatprep.subr.mxu0 0.0
      %7709 = vmatpush1.msra.mxu0 0.0
      %7710 = vmatprep.subr.mxu0 0.0
      %7711 = vmatpush1.msra.mxu0 0.0
      %7712 = vmatprep.subr.mxu0 0.0
      %7713 = vmatpush1.msra.mxu0 0.0
      %7714 = vmatprep.subr.mxu0 0.0
      %7715 = vmatpush1.msra.mxu0 0.0
      %7716 = vmatprep.subr.mxu0 0.0
      %7717 = vmatpush1.msra.mxu0 0.0
      %7718 = vmatprep.subr.mxu0 0.0
      %7719 = vmatpush1.msra.mxu0 0.0
      %7720 = vmatprep.subr.mxu0 0.0
      %7721 = vmatpush1.msra.mxu0 0.0
      %7722 = vmatprep.subr.mxu0 0.0
      %7723 = vmatpush1.msra.mxu0 0.0
      %7724 = vmatprep.subr.mxu0 0.0
      %7725 = vmatpush1.msra.mxu0 0.0
      %7726 = vmatprep.subr.mxu0 0.0
      %7727 = vmatpush1.msra.mxu0 0.0
      %7728 = vmatprep.subr.mxu0 0.0
      %7729 = vmatpush1.msra.mxu0 0.0
      %7730 = vmatprep.subr.mxu0 0.0
      %7731 = vmatpush1.msra.mxu0 0.0
      %7732 = vmatprep.subr.mxu0 0.0
      %7733 = vmatpush1.msra.mxu0 0.0
      %7734 = vmatprep.subr.mxu0 0.0
      %7735 = vmatpush1.msra.mxu0 0.0
      %7736 = vmatprep.subr.mxu0 0.0
      %7737 = vmatpush1.msra.mxu0 0.0
      %7738 = vmatprep.subr.mxu0 0.0
      %7739 = vmatpush1.msra.mxu0 0.0
      %7740 = vmatprep.subr.mxu0 0.0
      %7741 = vmatpush1.msra.mxu0 0.0
      %7742 = vmatprep.subr.mxu0 0.0
      %7743 = vmatpush1.msra.mxu0 0.0
      %7744 = vmatprep.subr.mxu0 0.0
      %7745 = vmatpush1.msra.mxu0 0.0
      %7746 = vmatprep.subr.mxu0 0.0
      %7747 = vmatpush1.msra.mxu0 0.0
      %7748 = vmatprep.subr.mxu0 0.0
      %7749 = vmatpush1.msra.mxu0 0.0
      %7750 = vmatprep.subr.mxu0 0.0
      %7751 = vmatpush1.msra.mxu0 0.0
      %7752 = vmatprep.subr.mxu0 0.0
      %7753 = vmatpush1.msra.mxu0 0.0
      %7754 = vmatprep.subr.mxu0 0.0
      %7755 = vmatpush1.msra.mxu0 0.0
      %7756 = vmatprep.subr.mxu0 0.0
      %7757 = vmatpush1.msra.mxu0 0.0
      %7758 = vmatprep.subr.mxu0 0.0
      %7759 = vmatpush1.msra.mxu0 0.0
      %7760 = vmatprep.subr.mxu0 0.0
      %7761 = vmatpush1.msra.mxu0 0.0
      %7762 = vmatprep.subr.mxu0 0.0
      %7763 = vmatpush1.msra.mxu0 0.0
      %7764 = vmatprep.subr.mxu0 0.0
      %7765 = vmatpush1.msra.mxu0 0.0
      %7766 = vmatprep.subr.mxu0 0.0
      %7767 = vmatpush1.msra.mxu0 0.0
      %7768 = vmatprep.mubr.f32.mxu0 0.0
      %7769 = vmatmul.mubr.f32.gmra.mrb[0].mxu0 %v7698
      %v7770 = vpop.f32.mrb[0].mxu0
      %v7771 = vadd.f32 0.0, %v7770
      %v7772 = vpop.f32.mrb[0].mxu0
      %v7773 = vadd.f32 0.0, %v7772
      %7774 = vdwg.mxu0
      %v7775 = vadd.f32 %v7688, %v7771
      %v7776 = vadd.f32 %v7689, %v7773
      %s7777 = scalar_lea.vmem %s412, 10
      %v7778 = vld [vmem:[%s7777] sm:$0x3]
      %7779 = vrot.lane.b32.xlu0 %v7347, 111
      %v7780 = vpop.permute.xlu0 %7779
      %7781 = vrot.lane.b32.xlu0 %v7348, 111
      %v7782 = vpop.permute.xlu0 %7781
      %v7783 = vsel %vm6690, %v7780, %v7782
      %v7785 = vsel %vm441, %v7778, 0
      %v7787 = vsel %vm445, %v7783, 0
      %v7789 = vsel %vm445, %v7782, 0
      %7791 = vmatprep.subr.mxu0 %v7789
      %7792 = vmatpush1.msra.mxu0 %v7787
      %7793 = vmatprep.subr.mxu0 0.0
      %7794 = vmatpush1.msra.mxu0 0.0
      %7795 = vmatprep.subr.mxu0 0.0
      %7796 = vmatpush1.msra.mxu0 0.0
      %7797 = vmatprep.subr.mxu0 0.0
      %7798 = vmatpush1.msra.mxu0 0.0
      %7799 = vmatprep.subr.mxu0 0.0
      %7800 = vmatpush1.msra.mxu0 0.0
      %7801 = vmatprep.subr.mxu0 0.0
      %7802 = vmatpush1.msra.mxu0 0.0
      %7803 = vmatprep.subr.mxu0 0.0
      %7804 = vmatpush1.msra.mxu0 0.0
      %7805 = vmatprep.subr.mxu0 0.0
      %7806 = vmatpush1.msra.mxu0 0.0
      %7807 = vmatprep.subr.mxu0 0.0
      %7808 = vmatpush1.msra.mxu0 0.0
      %7809 = vmatprep.subr.mxu0 0.0
      %7810 = vmatpush1.msra.mxu0 0.0
      %7811 = vmatprep.subr.mxu0 0.0
      %7812 = vmatpush1.msra.mxu0 0.0
      %7813 = vmatprep.subr.mxu0 0.0
      %7814 = vmatpush1.msra.mxu0 0.0
      %7815 = vmatprep.subr.mxu0 0.0
      %7816 = vmatpush1.msra.mxu0 0.0
      %7817 = vmatprep.subr.mxu0 0.0
      %7818 = vmatpush1.msra.mxu0 0.0
      %7819 = vmatprep.subr.mxu0 0.0
      %7820 = vmatpush1.msra.mxu0 0.0
      %7821 = vmatprep.subr.mxu0 0.0
      %7822 = vmatpush1.msra.mxu0 0.0
      %7823 = vmatprep.subr.mxu0 0.0
      %7824 = vmatpush1.msra.mxu0 0.0
      %7825 = vmatprep.subr.mxu0 0.0
      %7826 = vmatpush1.msra.mxu0 0.0
      %7827 = vmatprep.subr.mxu0 0.0
      %7828 = vmatpush1.msra.mxu0 0.0
      %7829 = vmatprep.subr.mxu0 0.0
      %7830 = vmatpush1.msra.mxu0 0.0
      %7831 = vmatprep.subr.mxu0 0.0
      %7832 = vmatpush1.msra.mxu0 0.0
      %7833 = vmatprep.subr.mxu0 0.0
      %7834 = vmatpush1.msra.mxu0 0.0
      %7835 = vmatprep.subr.mxu0 0.0
      %7836 = vmatpush1.msra.mxu0 0.0
      %7837 = vmatprep.subr.mxu0 0.0
      %7838 = vmatpush1.msra.mxu0 0.0
      %7839 = vmatprep.subr.mxu0 0.0
      %7840 = vmatpush1.msra.mxu0 0.0
      %7841 = vmatprep.subr.mxu0 0.0
      %7842 = vmatpush1.msra.mxu0 0.0
      %7843 = vmatprep.subr.mxu0 0.0
      %7844 = vmatpush1.msra.mxu0 0.0
      %7845 = vmatprep.subr.mxu0 0.0
      %7846 = vmatpush1.msra.mxu0 0.0
      %7847 = vmatprep.subr.mxu0 0.0
      %7848 = vmatpush1.msra.mxu0 0.0
      %7849 = vmatprep.subr.mxu0 0.0
      %7850 = vmatpush1.msra.mxu0 0.0
      %7851 = vmatprep.subr.mxu0 0.0
      %7852 = vmatpush1.msra.mxu0 0.0
      %7853 = vmatprep.subr.mxu0 0.0
      %7854 = vmatpush1.msra.mxu0 0.0
      %7855 = vmatprep.mubr.f32.mxu0 0.0
      %7856 = vmatmul.mubr.f32.gmra.mrb[0].mxu0 %v7785
      %v7857 = vpop.f32.mrb[0].mxu0
      %v7858 = vadd.f32 0.0, %v7857
      %v7859 = vpop.f32.mrb[0].mxu0
      %v7860 = vadd.f32 0.0, %v7859
      %7861 = vdwg.mxu0
      %v7862 = vadd.f32 %v7775, %v7858
      %v7863 = vadd.f32 %v7776, %v7860
      %s7864 = scalar_lea.vmem %s412, 12
      %v7865 = vld [vmem:[%s7864] sm:$0x3]
      %7866 = vrot.lane.b32.xlu0 %v7347, 98
      %v7867 = vpop.permute.xlu0 %7866
      %7868 = vrot.lane.b32.xlu0 %v7348, 98
      %v7869 = vpop.permute.xlu0 %7868
      %v7870 = vsel %vm6854, %v7867, %v7869
      %v7872 = vsel %vm441, %v7865, 0
      %v7874 = vsel %vm445, %v7870, 0
      %v7876 = vsel %vm445, %v7869, 0
      %7878 = vmatprep.subr.mxu0 %v7876
      %7879 = vmatpush1.msra.mxu0 %v7874
      %7880 = vmatprep.subr.mxu0 0.0
      %7881 = vmatpush1.msra.mxu0 0.0
      %7882 = vmatprep.subr.mxu0 0.0
      %7883 = vmatpush1.msra.mxu0 0.0
      %7884 = vmatprep.subr.mxu0 0.0
      %7885 = vmatpush1.msra.mxu0 0.0
      %7886 = vmatprep.subr.mxu0 0.0
      %7887 = vmatpush1.msra.mxu0 0.0
      %7888 = vmatprep.subr.mxu0 0.0
      %7889 = vmatpush1.msra.mxu0 0.0
      %7890 = vmatprep.subr.mxu0 0.0
      %7891 = vmatpush1.msra.mxu0 0.0
      %7892 = vmatprep.subr.mxu0 0.0
      %7893 = vmatpush1.msra.mxu0 0.0
      %7894 = vmatprep.subr.mxu0 0.0
      %7895 = vmatpush1.msra.mxu0 0.0
      %7896 = vmatprep.subr.mxu0 0.0
      %7897 = vmatpush1.msra.mxu0 0.0
      %7898 = vmatprep.subr.mxu0 0.0
      %7899 = vmatpush1.msra.mxu0 0.0
      %7900 = vmatprep.subr.mxu0 0.0
      %7901 = vmatpush1.msra.mxu0 0.0
      %7902 = vmatprep.subr.mxu0 0.0
      %7903 = vmatpush1.msra.mxu0 0.0
      %7904 = vmatprep.subr.mxu0 0.0
      %7905 = vmatpush1.msra.mxu0 0.0
      %7906 = vmatprep.subr.mxu0 0.0
      %7907 = vmatpush1.msra.mxu0 0.0
      %7908 = vmatprep.subr.mxu0 0.0
      %7909 = vmatpush1.msra.mxu0 0.0
      %7910 = vmatprep.subr.mxu0 0.0
      %7911 = vmatpush1.msra.mxu0 0.0
      %7912 = vmatprep.subr.mxu0 0.0
      %7913 = vmatpush1.msra.mxu0 0.0
      %7914 = vmatprep.subr.mxu0 0.0
      %7915 = vmatpush1.msra.mxu0 0.0
      %7916 = vmatprep.subr.mxu0 0.0
      %7917 = vmatpush1.msra.mxu0 0.0
      %7918 = vmatprep.subr.mxu0 0.0
      %7919 = vmatpush1.msra.mxu0 0.0
      %7920 = vmatprep.subr.mxu0 0.0
      %7921 = vmatpush1.msra.mxu0 0.0
      %7922 = vmatprep.subr.mxu0 0.0
      %7923 = vmatpush1.msra.mxu0 0.0
      %7924 = vmatprep.subr.mxu0 0.0
      %7925 = vmatpush1.msra.mxu0 0.0
      %7926 = vmatprep.subr.mxu0 0.0
      %7927 = vmatpush1.msra.mxu0 0.0
      %7928 = vmatprep.subr.mxu0 0.0
      %7929 = vmatpush1.msra.mxu0 0.0
      %7930 = vmatprep.subr.mxu0 0.0
      %7931 = vmatpush1.msra.mxu0 0.0
      %7932 = vmatprep.subr.mxu0 0.0
      %7933 = vmatpush1.msra.mxu0 0.0
      %7934 = vmatprep.subr.mxu0 0.0
      %7935 = vmatpush1.msra.mxu0 0.0
      %7936 = vmatprep.subr.mxu0 0.0
      %7937 = vmatpush1.msra.mxu0 0.0
      %7938 = vmatprep.subr.mxu0 0.0
      %7939 = vmatpush1.msra.mxu0 0.0
      %7940 = vmatprep.subr.mxu0 0.0
      %7941 = vmatpush1.msra.mxu0 0.0
      %7942 = vmatprep.mubr.f32.mxu0 0.0
      %7943 = vmatmul.mubr.f32.gmra.mrb[0].mxu0 %v7872
      %v7944 = vpop.f32.mrb[0].mxu0
      %v7945 = vadd.f32 0.0, %v7944
      %v7946 = vpop.f32.mrb[0].mxu0
      %v7947 = vadd.f32 0.0, %v7946
      %7948 = vdwg.mxu0
      %v7949 = vadd.f32 %v7862, %v7945
      %v7950 = vadd.f32 %v7863, %v7947
      %s7951 = scalar_lea.vmem %s412, 14
      %v7952 = vld [vmem:[%s7951] sm:$0x3]
      %7953 = vrot.lane.b32.xlu0 %v7347, 97
      %v7954 = vpop.permute.xlu0 %7953
      %7955 = vrot.lane.b32.xlu0 %v7348, 97
      %v7956 = vpop.permute.xlu0 %7955
      %v7957 = vsel %vm7018, %v7954, %v7956
      %v7959 = vsel %vm441, %v7952, 0
      %v7961 = vsel %vm445, %v7957, 0
      %v7963 = vsel %vm445, %v7956, 0
      %7965 = vmatprep.subr.mxu0 %v7963
      %7966 = vmatpush1.msra.mxu0 %v7961
      %7967 = vmatprep.subr.mxu0 0.0
      %7968 = vmatpush1.msra.mxu0 0.0
      %7969 = vmatprep.subr.mxu0 0.0
      %7970 = vmatpush1.msra.mxu0 0.0
      %7971 = vmatprep.subr.mxu0 0.0
      %7972 = vmatpush1.msra.mxu0 0.0
      %7973 = vmatprep.subr.mxu0 0.0
      %7974 = vmatpush1.msra.mxu0 0.0
      %7975 = vmatprep.subr.mxu0 0.0
      %7976 = vmatpush1.msra.mxu0 0.0
      %7977 = vmatprep.subr.mxu0 0.0
      %7978 = vmatpush1.msra.mxu0 0.0
      %7979 = vmatprep.subr.mxu0 0.0
      %7980 = vmatpush1.msra.mxu0 0.0
      %7981 = vmatprep.subr.mxu0 0.0
      %7982 = vmatpush1.msra.mxu0 0.0
      %7983 = vmatprep.subr.mxu0 0.0
      %7984 = vmatpush1.msra.mxu0 0.0
      %7985 = vmatprep.subr.mxu0 0.0
      %7986 = vmatpush1.msra.mxu0 0.0
      %7987 = vmatprep.subr.mxu0 0.0
      %7988 = vmatpush1.msra.mxu0 0.0
      %7989 = vmatprep.subr.mxu0 0.0
      %7990 = vmatpush1.msra.mxu0 0.0
      %7991 = vmatprep.subr.mxu0 0.0
      %7992 = vmatpush1.msra.mxu0 0.0
      %7993 = vmatprep.subr.mxu0 0.0
      %7994 = vmatpush1.msra.mxu0 0.0
      %7995 = vmatprep.subr.mxu0 0.0
      %7996 = vmatpush1.msra.mxu0 0.0
      %7997 = vmatprep.subr.mxu0 0.0
      %7998 = vmatpush1.msra.mxu0 0.0
      %7999 = vmatprep.subr.mxu0 0.0
      %8000 = vmatpush1.msra.mxu0 0.0
      %8001 = vmatprep.subr.mxu0 0.0
      %8002 = vmatpush1.msra.mxu0 0.0
      %8003 = vmatprep.subr.mxu0 0.0
      %8004 = vmatpush1.msra.mxu0 0.0
      %8005 = vmatprep.subr.mxu0 0.0
      %8006 = vmatpush1.msra.mxu0 0.0
      %8007 = vmatprep.subr.mxu0 0.0
      %8008 = vmatpush1.msra.mxu0 0.0
      %8009 = vmatprep.subr.mxu0 0.0
      %8010 = vmatpush1.msra.mxu0 0.0
      %8011 = vmatprep.subr.mxu0 0.0
      %8012 = vmatpush1.msra.mxu0 0.0
      %8013 = vmatprep.subr.mxu0 0.0
      %8014 = vmatpush1.msra.mxu0 0.0
      %8015 = vmatprep.subr.mxu0 0.0
      %8016 = vmatpush1.msra.mxu0 0.0
      %8017 = vmatprep.subr.mxu0 0.0
      %8018 = vmatpush1.msra.mxu0 0.0
      %8019 = vmatprep.subr.mxu0 0.0
      %8020 = vmatpush1.msra.mxu0 0.0
      %8021 = vmatprep.subr.mxu0 0.0
      %8022 = vmatpush1.msra.mxu0 0.0
      %8023 = vmatprep.subr.mxu0 0.0
      %8024 = vmatpush1.msra.mxu0 0.0
      %8025 = vmatprep.subr.mxu0 0.0
      %8026 = vmatpush1.msra.mxu0 0.0
      %8027 = vmatprep.subr.mxu0 0.0
      %8028 = vmatpush1.msra.mxu0 0.0
      %8029 = vmatprep.mubr.f32.mxu0 0.0
      %8030 = vmatmul.mubr.f32.gmra.mrb[0].mxu0 %v7959
      %v8031 = vpop.f32.mrb[0].mxu0
      %v8032 = vadd.f32 0.0, %v8031
      %v8033 = vpop.f32.mrb[0].mxu0
      %v8034 = vadd.f32 0.0, %v8033
      %8035 = vdwg.mxu0
      %v8036 = vadd.f32 %v7949, %v8032
      %v8037 = vadd.f32 %v7950, %v8034
      %s8038 = scalar_lea.vmem %s412, 16
      %v8039 = vld [vmem:[%s8038] sm:$0x3]
      %8041 = vrot.lane.b32.xlu0 %v7347, 96
      %v8042 = vpop.permute.xlu0 %8041
      %8043 = vrot.lane.b32.xlu0 %v7348, 96
      %v8044 = vpop.permute.xlu0 %8043
      %8045 = vrot.lane.b32.xlu0 %v7349, 96
      %v8046 = vpop.permute.xlu0 %8045
      %v8047 = vsel %vm7182, %v8042, %v8044
      %v8048 = vsel %vm7182, %v8044, %v8046
      %v8050 = vsel %vm441, %v8039, 0
      %v8052 = vsel %vm445, %v8047, 0
      %v8054 = vsel %vm445, %v8048, 0
      %8056 = vmatprep.subr.mxu0 %v8054
      %8057 = vmatpush1.msra.mxu0 %v8052
      %8058 = vmatprep.subr.mxu0 0.0
      %8059 = vmatpush1.msra.mxu0 0.0
      %8060 = vmatprep.subr.mxu0 0.0
      %8061 = vmatpush1.msra.mxu0 0.0
      %8062 = vmatprep.subr.mxu0 0.0
      %8063 = vmatpush1.msra.mxu0 0.0
      %8064 = vmatprep.subr.mxu0 0.0
      %8065 = vmatpush1.msra.mxu0 0.0
      %8066 = vmatprep.subr.mxu0 0.0
      %8067 = vmatpush1.msra.mxu0 0.0
      %8068 = vmatprep.subr.mxu0 0.0
      %8069 = vmatpush1.msra.mxu0 0.0
      %8070 = vmatprep.subr.mxu0 0.0
      %8071 = vmatpush1.msra.mxu0 0.0
      %8072 = vmatprep.subr.mxu0 0.0
      %8073 = vmatpush1.msra.mxu0 0.0
      %8074 = vmatprep.subr.mxu0 0.0
      %8075 = vmatpush1.msra.mxu0 0.0
      %8076 = vmatprep.subr.mxu0 0.0
      %8077 = vmatpush1.msra.mxu0 0.0
      %8078 = vmatprep.subr.mxu0 0.0
      %8079 = vmatpush1.msra.mxu0 0.0
      %8080 = vmatprep.subr.mxu0 0.0
      %8081 = vmatpush1.msra.mxu0 0.0
      %8082 = vmatprep.subr.mxu0 0.0
      %8083 = vmatpush1.msra.mxu0 0.0
      %8084 = vmatprep.subr.mxu0 0.0
      %8085 = vmatpush1.msra.mxu0 0.0
      %8086 = vmatprep.subr.mxu0 0.0
      %8087 = vmatpush1.msra.mxu0 0.0
      %8088 = vmatprep.subr.mxu0 0.0
      %8089 = vmatpush1.msra.mxu0 0.0
      %8090 = vmatprep.subr.mxu0 0.0
      %8091 = vmatpush1.msra.mxu0 0.0
      %8092 = vmatprep.subr.mxu0 0.0
      %8093 = vmatpush1.msra.mxu0 0.0
      %8094 = vmatprep.subr.mxu0 0.0
      %8095 = vmatpush1.msra.mxu0 0.0
      %8096 = vmatprep.subr.mxu0 0.0
      %8097 = vmatpush1.msra.mxu0 0.0
      %8098 = vmatprep.subr.mxu0 0.0
      %8099 = vmatpush1.msra.mxu0 0.0
      %8100 = vmatprep.subr.mxu0 0.0
      %8101 = vmatpush1.msra.mxu0 0.0
      %8102 = vmatprep.subr.mxu0 0.0
      %8103 = vmatpush1.msra.mxu0 0.0
      %8104 = vmatprep.subr.mxu0 0.0
      %8105 = vmatpush1.msra.mxu0 0.0
      %8106 = vmatprep.subr.mxu0 0.0
      %8107 = vmatpush1.msra.mxu0 0.0
      %8108 = vmatprep.subr.mxu0 0.0
      %8109 = vmatpush1.msra.mxu0 0.0
      %8110 = vmatprep.subr.mxu0 0.0
      %8111 = vmatpush1.msra.mxu0 0.0
      %8112 = vmatprep.subr.mxu0 0.0
      %8113 = vmatpush1.msra.mxu0 0.0
      %8114 = vmatprep.subr.mxu0 0.0
      %8115 = vmatpush1.msra.mxu0 0.0
      %8116 = vmatprep.subr.mxu0 0.0
      %8117 = vmatpush1.msra.mxu0 0.0
      %8118 = vmatprep.subr.mxu0 0.0
      %8119 = vmatpush1.msra.mxu0 0.0
      %8120 = vmatprep.mubr.f32.mxu0 0.0
      %8121 = vmatmul.mubr.f32.gmra.mrb[0].mxu0 %v8050
      %v8122 = vpop.f32.mrb[0].mxu0
      %v8123 = vadd.f32 0.0, %v8122
      %v8124 = vpop.f32.mrb[0].mxu0
      %v8125 = vadd.f32 0.0, %v8124
      %8126 = vdwg.mxu0
      %v8127 = vadd.f32 %v8036, %v8123
      %v8128 = vadd.f32 %v8037, %v8125
      %v8129 = vld [vmem:[%s416] sm:$0x3]
      %8131 = vset.pattern.permute.xlu0 0
      %8132 = vperm.xlu0 %8131, %v8129
      %v8133 = vpop.permute.xlu0 %8132
      %v8135 = vadd.f32 %v8127, %v8133
      %v8136 = vadd.f32 %v8128, %v8133
      %v8137 = vmax.f32 %v8135, 0.0
      %v8138 = vmax.f32 %v8136, 0.0
      %v8141 = vcombine.low %v8137, %v8138
      %v8143 = vunpack.c.l.s4 1983009808
      %v8144 = vunpack.c.0.s8 %v8143
      %v8145 = vlaneseq
      %v8146 = vshrl.u32 %v8145, 7
      %v8147 = vsub.s32 %v8144, %v8146
      %v8148 = vrot.slane %v8141, %v8147
      %vm8150 = vcmask 1041408
      %vm8151 = vcmask 789506
      %vm8152 = vmor %vm8151, %vm8150
      %8153 = vst.msk [vmem:[%s425] sm:$0xf] %vm8152, %v8148
      %p8154 = scmp.lt.s32.totalorder %s22, 1
      %s8155 = scalar_select %p8154, %s22, 1
      %p8156 = scmp.lt.s32.totalorder %s23, 1
      %s8157 = scalar_select %p8156, %s23, 1
      %s8158 = smul.addr %s8157, 2
      %s8159 = smul.addr %s8155, 4
      %s8160 = sadd.s32 %s8158, %s8159
      %s8161 = smul.addr %s8160, 2
      %s8162 = scalar_lea.vmem %s7, %s8161
      // Predicated region
      $region49: #{forward.1} parent=47 // pred_check
        %p8163 = pneg %p234
      $region50: #{forward.1} parent=47 // pred_check_branch
        %8165 = sbr.rel (%p8163) target = $region52
      $region51: #{forward.1} parent=47 // pred_region
        _
      $region52: #{forward.1} parent=47 // pred_fallthru
        _
    $region48: #{forward.1} parent=5 // pred_fallthru
      _
    %p8166 = scmp.le.s32.totalorder 2, %s13
    // Predicated region
    $region53: #{forward.1} parent=5 // pred_check
      %p8167 = pneg %p8166
    $region54: #{forward.1} parent=5 // pred_check_branch
      %8169 = sbr.rel (%p8167) target = $region56
    $region55: #{forward.1} parent=5 // pred_region
      %s8170 = ssub.s32 %s13, 2
      // Predicated region
      $region57: #{forward.1} parent=55 // pred_check
        %p8171 = pneg %p240
      $region58: #{forward.1} parent=55 // pred_check_branch
        %8173 = sbr.rel (%p8171) target = $region60
      $region59: #{forward.1} parent=55 // pred_region
        %p8174 = scmp.lt.s32.totalorder %s24, 1
        %s8175 = scalar_select %p8174, %s24, 1
        %p8176 = scmp.lt.s32.totalorder %s25, 1
        %s8177 = scalar_select %p8176, %s25, 1
        %s8178 = smul.addr %s8177, 2
        %s8179 = smul.addr %s8175, 4
        %s8180 = sadd.s32 %s8178, %s8179
        %s8181 = smul.addr %s8180, 2
        %s8182 = scalar_lea.vmem %s7, %s8181
      $region60: #{forward.1} parent=55 // pred_fallthru
        _
    $region56: #{forward.1} parent=5 // pred_fallthru
      _
  $region6: #{forward.1} parent=0 // loop_footer
    %s17 = sadd.s32 1, %s13
  $region7: #{forward.1} parent=0 // loop_footer_branch
    %12 = sbr.rel target = $region3
  $region8: #{forward.1} parent=0 // loop_exit
    _

</llo_original>
